<compile_context>
chip_gen: v5e
topology: v5e:2x2
jax: 0.10.0
libtpu: 0.0.40
codegen_flags: <defaults>
</compile_context>

<pallas_src>
import functools

import jax
import jax.numpy as jnp
from jax import lax
from jax.experimental import pallas as pl
from jax.experimental.pallas import tpu as pltpu


def _make_kernel(H, W, Cin, Cout, F, B, eps):
    Hp, Wp = H + 2, W + 2
    M = H * Wp                      # output window rows (incl. 2 pad cols per image row)
    L = F + Hp * Wp + B             # padded flat buffer length (multiple of 8)
    K2 = 9 * Cout + Cin             # conv2 contraction: 9 taps + fused shortcut
    f32, bf16 = jnp.float32, jnp.bfloat16

    def kernel(xpf_ref, mask_ref, a1_ref, g1_ref, bt1_ref, w1_ref,
               scale_ref, shift_ref, a2_ref, g2_ref, bt2_ref, w2_ref, bo_ref,
               out_ref, act1_s, patch1_s, pad2_s, patch2_s):
        x = xpf_ref[0]                                   # (L, Cin) f32, zero-padded
        mL = mask_ref[...]                               # (L, 1)  1 = real pixel
        m2 = mask_ref[pl.ds(F + Wp, M), :]               # (M, 1)  valid-column mask

        # ---- GroupNorm1 + SiLU (stats unmasked: pad positions of x are exact zeros)
        s1 = jnp.sum(x, axis=0, keepdims=True)           # (1, Cin)
        s2 = jnp.sum(x * x, axis=0, keepdims=True)
        mu = jnp.dot(s1, a1_ref[...], preferred_element_type=f32)
        ex2 = jnp.dot(s2, a1_ref[...], preferred_element_type=f32)
        inv = lax.rsqrt(ex2 - mu * mu + eps)
        xn = (x - mu) * inv * g1_ref[...] + bt1_ref[...]
        act1_s[...] = mL * (xn * jax.nn.sigmoid(xn))     # pad ring re-zeroed

        # ---- Conv1: im2col into the contraction dim, one MXU matmul (bf16) -------
        for k in range(9):
            kh, kw = divmod(k, 3)
            patch1_s[:, pl.ds(k * Cin, Cin)] = (
                act1_s[pl.ds((F - 1) + kh * Wp + kw, M), :].astype(bf16))
        h = jnp.dot(patch1_s[...], w1_ref[...], preferred_element_type=f32)
        # conv1 bias, class-emb multiply, time-emb add folded into scale/shift.
        h = h * scale_ref[0] + shift_ref[0]              # (M, Cout) f32

        # ---- GroupNorm2 (masked stats: pad columns of h are garbage) + SiLU ------
        hm = h * m2
        s1b = jnp.sum(hm, axis=0, keepdims=True)
        s2b = jnp.sum(hm * h, axis=0, keepdims=True)
        mu2 = jnp.dot(s1b, a2_ref[...], preferred_element_type=f32)
        ex22 = jnp.dot(s2b, a2_ref[...], preferred_element_type=f32)
        inv2 = lax.rsqrt(ex22 - mu2 * mu2 + eps)
        hn = (h - mu2) * inv2 * g2_ref[...] + bt2_ref[...]
        a2 = m2 * (hn * jax.nn.sigmoid(hn))              # zeros at pad columns
        # TODO(synk): Dropout(p=0.1) is identity here (eval-mode forward only).

        # ---- Conv2 + shortcut: padded buffer, 10-slab im2col, one matmul ---------
        # Zero only the pad ring each step (interior is fully overwritten below).
        pad2_s[pl.ds(0, F + Wp), :] = jnp.zeros((F + Wp, Cout), f32)
        pad2_s[pl.ds(F + Wp + M, L - (F + Wp + M)), :] = (
            jnp.zeros((L - (F + Wp + M), Cout), f32))
        pad2_s[pl.ds(F + Wp, M), :] = a2
        for k in range(9):
            kh, kw = divmod(k, 3)
            patch2_s[:, pl.ds(k * Cout, Cout)] = (
                pad2_s[pl.ds((F - 1) + kh * Wp + kw, M), :].astype(bf16))
        patch2_s[:, pl.ds(9 * Cout, Cin)] = (
            xpf_ref[0, pl.ds(F + Wp, M), :].astype(bf16))       # shortcut tap
        y = jnp.dot(patch2_s[...], w2_ref[...], preferred_element_type=f32)
        out_ref[0] = (y + bo_ref[...]).astype(out_ref.dtype)

    return kernel, M, L


def residual_block_forward(x_nchw, t, c, p, *, n_groups, eps=1e-5):
    """Forward of ResidualBlock. x: (N, Cin, H, W); t, c: (N, time_channels)."""
    f32, bf16 = jnp.float32, jnp.bfloat16
    N, Cin, H, W = x_nchw.shape
    Cout = p["conv1_w"].shape[0]
    assert Cin % n_groups == 0 and Cout % n_groups == 0
    Hp, Wp = H + 2, W + 2
    F = (-Wp) % 8 or 8                      # front flat pad: interior starts on a x8 row
    L = ((F + Hp * Wp + 1 + 7) // 8) * 8    # total flat length, multiple of 8
    B = L - F - Hp * Wp                     # back flat pad (>= 1)
    M = H * Wp
    K2 = 9 * Cout + Cin

    kernel, M_, L_ = _make_kernel(H, W, Cin, Cout, F, B, eps)
    assert (M_, L_) == (M, L)

    # --- layout glue (kept minimal; module interface is NCHW) --------------------
    x = jnp.transpose(x_nchw, (0, 2, 3, 1)).astype(f32)               # NHWC
    xp = jnp.pad(x, ((0, 0), (1, 1), (1, 1), (0, 0))).reshape(N, Hp * Wp, Cin)
    xpf = jnp.pad(xp, ((0, 0), (F, B), (0, 0)))                       # (N, L, Cin)

    mask = jnp.pad(jnp.ones((H, W), f32), ((1, 1), (1, 1))).reshape(Hp * Wp, 1)
    mask = jnp.pad(mask, ((F, B), (0, 0)))                            # (L, 1)

    def gmat(C):  # group-mean matrix: (1,C) channel sums -> per-channel group means
        ids = jnp.arange(C) // (C // n_groups)
        return (ids[:, None] == ids[None, :]).astype(f32) / ((C // n_groups) * H * W)

    A1, A2 = gmat(Cin), gmat(Cout)

    # conv weights: (Cout,Cin,3,3) -> (kh,kw,Cin,Cout) -> (9*Cin,Cout); bf16 for MXU.
    w1 = jnp.transpose(p["conv1_w"].astype(f32), (2, 3, 1, 0)).reshape(9 * Cin, Cout)
    w2 = jnp.transpose(p["conv2_w"].astype(f32), (2, 3, 1, 0)).reshape(9 * Cout, Cout)
    if p.get("short_w") is None:
        assert Cin == Cout, "identity shortcut requires in_channels == out_channels"
        ws = jnp.eye(Cin, dtype=f32)
        bs = jnp.zeros((Cout,), f32)
    else:
        ws = p["short_w"].astype(f32).T
        bs = p["short_b"].astype(f32)
    w1 = w1.astype(bf16)
    w2aug = jnp.concatenate([w2, ws], axis=0).astype(bf16)            # (K2, Cout)
    bo = (p["conv2_b"].astype(f32) + bs).reshape(1, Cout)

    # time / class embeddings: one batched matmul each, conv1 bias folded in.
    def silu(v):
        return v * jax.nn.sigmoid(v)

    cemb = silu(c.astype(f32)) @ p["class_w"].astype(f32).T + p["class_b"].astype(f32)
    temb = silu(t.astype(f32)) @ p["time_w"].astype(f32).T + p["time_b"].astype(f32)
    scale = cemb.reshape(N, 1, Cout)
    shift = (p["conv1_b"].astype(f32)[None, :] * cemb + temb).reshape(N, 1, Cout)

    args = (
        xpf, mask, A1,
        p["norm1_g"].astype(f32).reshape(1, Cin), p["norm1_b"].astype(f32).reshape(1, Cin),
        w1, scale, shift, A2,
        p["norm2_g"].astype(f32).reshape(1, Cout), p["norm2_b"].astype(f32).reshape(1, Cout),
        w2aug, bo,
    )

    full2 = lambda n: (0, 0)
    in_specs = [
        pl.BlockSpec((1, L, Cin), lambda n: (n, 0, 0)),     # xpf
        pl.BlockSpec((L, 1), full2),                        # pad mask
        pl.BlockSpec((Cin, Cin), full2),                    # A1 (group-mean matrix)
        pl.BlockSpec((1, Cin), full2),                      # gamma1
        pl.BlockSpec((1, Cin), full2),                      # beta1
        pl.BlockSpec((9 * Cin, Cout), full2),               # conv1 weight (im2col K)
        pl.BlockSpec((1, 1, Cout), lambda n: (n, 0, 0)),    # scale (= cemb)
        pl.BlockSpec((1, 1, Cout), lambda n: (n, 0, 0)),    # shift (= b1*cemb + temb)
        pl.BlockSpec((Cout, Cout), full2),                  # A2
        pl.BlockSpec((1, Cout), full2),                     # gamma2
        pl.BlockSpec((1, Cout), full2),                     # beta2
        pl.BlockSpec((K2, Cout), full2),                    # conv2 + shortcut weight
        pl.BlockSpec((1, Cout), full2),                     # conv2 + shortcut bias
    ]

    Y = pl.pallas_call(
        kernel,
        out_shape=jax.ShapeDtypeStruct((N, M, Cout), f32),
        grid=(N,),
        in_specs=in_specs,
        out_specs=pl.BlockSpec((1, M, Cout), lambda n: (n, 0, 0)),
        scratch_shapes=[
            pltpu.VMEM((L, Cin), f32),            # act1 (padded flat, GN1+SiLU)
            pltpu.VMEM((M, 9 * Cin), bf16),       # conv1 im2col slab
            pltpu.VMEM((L, Cout), f32),           # padded flat conv2 input
            pltpu.VMEM((M, K2), bf16),            # conv2(+shortcut) im2col slab
        ],
        compiler_params=pltpu.CompilerParams(
            dimension_semantics=("parallel",),
            vmem_limit_bytes=32 * 1024 * 1024,    # explicit; usage here is < 2 MiB
        ),
    )(*args)

    out = Y.reshape(N, H, Wp, Cout)[:, :, 1:W + 1, :]      # drop the 2 pad columns
    return jnp.transpose(out, (0, 3, 1, 2))                 # back to NCHW


def reference_residual_block(x, t, c, p, *, n_groups, eps=1e-5):
    def silu(v):
        return v * jax.nn.sigmoid(v)

    def gn(v, gamma, beta):
        Nn, C, Hh, Ww = v.shape
        vg = v.reshape(Nn, n_groups, -1)
        m = jnp.mean(vg, axis=2, keepdims=True)
        var = jnp.mean((vg - m) ** 2, axis=2, keepdims=True)
        vn = ((vg - m) * lax.rsqrt(var + eps)).reshape(Nn, C, Hh, Ww)
        return vn * gamma.reshape(1, C, 1, 1) + beta.reshape(1, C, 1, 1)

    def conv3(v, w, b):
        y = lax.conv_general_dilated(v, w, (1, 1), ((1, 1), (1, 1)),
                                     dimension_numbers=("NCHW", "OIHW", "NCHW"))
        return y + b.reshape(1, -1, 1, 1)

    h = conv3(silu(gn(x, p["norm1_g"], p["norm1_b"])), p["conv1_w"], p["conv1_b"])
    cemb = silu(c) @ p["class_w"].T + p["class_b"]
    temb = silu(t) @ p["time_w"].T + p["time_b"]
    h = h * cemb[:, :, None, None] + temb[:, :, None, None]
    h = conv3(silu(gn(h, p["norm2_g"], p["norm2_b"])), p["conv2_w"], p["conv2_b"])
    sc = jnp.einsum("nchw,oc->nohw", x, p["short_w"]) + p["short_b"].reshape(1, -1, 1, 1)
    return h + sc


if __name__ == "__main__":
    key = jax.random.PRNGKey(0)
    N, Cin, Cout, Tch, H, W = 2, 32, 64, 32, 16, 16
    n_groups = 32
    f32 = jnp.float32
    ks = jax.random.split(key, 17)

    def unif(k, shape, bound):
        return jax.random.uniform(k, shape, f32, -bound, bound)

    x = jax.random.normal(ks[0], (N, Cin, H, W), f32)
    t = jax.random.normal(ks[1], (N, Tch), f32)
    c = jax.random.normal(ks[2], (N, Tch), f32)

    b1k = 1.0 / (Cin * 9) ** 0.5
    b2k = 1.0 / (Cout * 9) ** 0.5
    blin = 1.0 / Tch ** 0.5
    bsk = 1.0 / Cin ** 0.5
    params = {
        "norm1_g": 1.0 + unif(ks[3], (Cin,), 0.5),
        "norm1_b": unif(ks[4], (Cin,), 0.5),
        "conv1_w": unif(ks[5], (Cout, Cin, 3, 3), b1k),
        "conv1_b": unif(ks[6], (Cout,), b1k),
        "norm2_g": 1.0 + unif(ks[7], (Cout,), 0.5),
        "norm2_b": unif(ks[8], (Cout,), 0.5),
        "conv2_w": unif(ks[9], (Cout, Cout, 3, 3), b2k),
        "conv2_b": unif(ks[10], (Cout,), b2k),
        "time_w": unif(ks[11], (Cout, Tch), blin),
        "time_b": unif(ks[12], (Cout,), blin),
        "class_w": unif(ks[13], (Cout, Tch), blin),
        "class_b": unif(ks[14], (Cout,), blin),
        "short_w": unif(ks[15], (Cout, Cin), bsk),
        "short_b": unif(ks[16], (Cout,), bsk),
    }

    fwd = jax.jit(functools.partial(residual_block_forward, n_groups=n_groups))
    out = jax.block_until_ready(fwd(x, t, c, params))

    ref = reference_residual_block(x, t, c, params, n_groups=n_groups)
    assert out.shape == (N, Cout, H, W), out.shape
    err = float(jnp.max(jnp.abs(out - ref)))
    # bf16 matmul operands -> relaxed tolerance vs. the pure-f32 reference.
    assert jnp.allclose(out, ref, atol=5e-2, rtol=5e-2), err
    print("KERNEL_OK")
</pallas_src>

<mosaic_0001>
module attributes {stable_mosaic.version = 11 : i64} {
  func.func @kernel(%arg0: i32, %arg1: memref<1x336x32xf32, #tpu.memory_space<vmem>>, %arg2: memref<336x1xf32, #tpu.memory_space<vmem>>, %arg3: memref<32x32xf32, #tpu.memory_space<vmem>>, %arg4: memref<1x32xf32, #tpu.memory_space<vmem>>, %arg5: memref<1x32xf32, #tpu.memory_space<vmem>>, %arg6: memref<288x64xbf16, #tpu.memory_space<vmem>>, %arg7: memref<1x1x64xf32, #tpu.memory_space<vmem>>, %arg8: memref<1x1x64xf32, #tpu.memory_space<vmem>>, %arg9: memref<64x64xf32, #tpu.memory_space<vmem>>, %arg10: memref<1x64xf32, #tpu.memory_space<vmem>>, %arg11: memref<1x64xf32, #tpu.memory_space<vmem>>, %arg12: memref<608x64xbf16, #tpu.memory_space<vmem>>, %arg13: memref<1x64xf32, #tpu.memory_space<vmem>>, %arg14: memref<1x288x64xf32, #tpu.memory_space<vmem>>, %arg15: memref<336x32xf32, #tpu.memory_space<vmem>>, %arg16: memref<288x288xbf16, #tpu.memory_space<vmem>>, %arg17: memref<336x64xf32, #tpu.memory_space<vmem>>, %arg18: memref<288x608xbf16, #tpu.memory_space<vmem>>) attributes {dimension_semantics = [#tpu.dimension_semantics<parallel>], iteration_bounds = array<i64: 2>, scalar_prefetch = 0 : i64, scratch_operands = 4 : i64, tpu.core_type = #tpu.core_type<tc>, window_params = [{transform_indices = @transform_0, window_bounds = array<i64: 1, 336, 32>}, {pipeline_mode = #tpu.pipeline_mode<synchronous>, transform_indices = @transform_1, window_bounds = array<i64: 336, 1>}, {pipeline_mode = #tpu.pipeline_mode<synchronous>, transform_indices = @transform_2, window_bounds = array<i64: 32, 32>}, {pipeline_mode = #tpu.pipeline_mode<synchronous>, transform_indices = @transform_3, window_bounds = array<i64: 1, 32>}, {pipeline_mode = #tpu.pipeline_mode<synchronous>, transform_indices = @transform_4, window_bounds = array<i64: 1, 32>}, {pipeline_mode = #tpu.pipeline_mode<synchronous>, transform_indices = @transform_5, window_bounds = array<i64: 288, 64>}, {transform_indices = @transform_6, window_bounds = array<i64: 1, 1, 64>}, {transform_indices = @transform_7, window_bounds = array<i64: 1, 1, 64>}, {pipeline_mode = #tpu.pipeline_mode<synchronous>, transform_indices = @transform_8, window_bounds = array<i64: 64, 64>}, {pipeline_mode = #tpu.pipeline_mode<synchronous>, transform_indices = @transform_9, window_bounds = array<i64: 1, 64>}, {pipeline_mode = #tpu.pipeline_mode<synchronous>, transform_indices = @transform_10, window_bounds = array<i64: 1, 64>}, {pipeline_mode = #tpu.pipeline_mode<synchronous>, transform_indices = @transform_11, window_bounds = array<i64: 608, 64>}, {pipeline_mode = #tpu.pipeline_mode<synchronous>, transform_indices = @transform_12, window_bounds = array<i64: 1, 64>}, {transform_indices = @transform_13, window_bounds = array<i64: 1, 288, 64>}]} {
    %c0 = arith.constant 0 : index
    %c0_0 = arith.constant 0 : index
    %c0_1 = arith.constant 0 : index
    %0 = vector.load %arg1[%c0, %c0_0, %c0_1] : memref<1x336x32xf32, #tpu.memory_space<vmem>>, vector<1x336x32xf32>
    %1 = vector.shape_cast %0 : vector<1x336x32xf32> to vector<336x32xf32>
    %c0_2 = arith.constant 0 : index
    %c0_3 = arith.constant 0 : index
    %2 = vector.load %arg2[%c0_2, %c0_3] : memref<336x1xf32, #tpu.memory_space<vmem>>, vector<336x1xf32>
    %c24 = arith.constant 24 : index
    %c0_4 = arith.constant 0 : index
    %3 = vector.load %arg2[%c24, %c0_4] : memref<336x1xf32, #tpu.memory_space<vmem>>, vector<288x1xf32>
    %cst = arith.constant dense<0.000000e+00> : vector<32xf32>
    %4 = vector.multi_reduction <add>, %1, %cst [0] : vector<336x32xf32> to vector<32xf32>
    %5 = vector.shape_cast %4 : vector<32xf32> to vector<1x32xf32>
    %6 = arith.mulf %1, %1 : vector<336x32xf32>
    %cst_5 = arith.constant dense<0.000000e+00> : vector<32xf32>
    %7 = vector.multi_reduction <add>, %6, %cst_5 [0] : vector<336x32xf32> to vector<32xf32>
    %8 = vector.shape_cast %7 : vector<32xf32> to vector<1x32xf32>
    %c0_6 = arith.constant 0 : index
    %c0_7 = arith.constant 0 : index
    %9 = vector.load %arg3[%c0_6, %c0_7] : memref<32x32xf32, #tpu.memory_space<vmem>>, vector<32x32xf32>
    %cst_8 = arith.constant dense<0.000000e+00> : vector<1x32xf32>
    %10 = tpu.matmul %5, %9, %cst_8 {dimension_numbers = #tpu.dot_dimension_numbers<[1], [0], [0], [1], [0, 0, 1, 1], [], []>} : vector<1x32xf32>, vector<32x32xf32>, vector<1x32xf32> -> vector<1x32xf32>
    %c0_9 = arith.constant 0 : index
    %c0_10 = arith.constant 0 : index
    %11 = vector.load %arg3[%c0_9, %c0_10] : memref<32x32xf32, #tpu.memory_space<vmem>>, vector<32x32xf32>
    %cst_11 = arith.constant dense<0.000000e+00> : vector<1x32xf32>
    %12 = tpu.matmul %8, %11, %cst_11 {dimension_numbers = #tpu.dot_dimension_numbers<[1], [0], [0], [1], [0, 0, 1, 1], [], []>} : vector<1x32xf32>, vector<32x32xf32>, vector<1x32xf32> -> vector<1x32xf32>
    %13 = arith.mulf %10, %10 : vector<1x32xf32>
    %14 = arith.subf %12, %13 : vector<1x32xf32>
    %cst_12 = arith.constant 9.99999974E-6 : f32
    %15 = vector.broadcast %cst_12 : f32 to vector<1x32xf32>
    %16 = arith.addf %14, %15 : vector<1x32xf32>
    %17 = math.rsqrt %16 : vector<1x32xf32>
    %18 = vector.broadcast %10 : vector<1x32xf32> to vector<336x32xf32>
    %19 = arith.subf %1, %18 : vector<336x32xf32>
    %20 = vector.broadcast %17 : vector<1x32xf32> to vector<336x32xf32>
    %21 = arith.mulf %19, %20 : vector<336x32xf32>
    %c0_13 = arith.constant 0 : index
    %c0_14 = arith.constant 0 : index
    %22 = vector.load %arg4[%c0_13, %c0_14] : memref<1x32xf32, #tpu.memory_space<vmem>>, vector<1x32xf32>
    %23 = vector.broadcast %22 : vector<1x32xf32> to vector<336x32xf32>
    %24 = arith.mulf %21, %23 : vector<336x32xf32>
    %c0_15 = arith.constant 0 : index
    %c0_16 = arith.constant 0 : index
    %25 = vector.load %arg5[%c0_15, %c0_16] : memref<1x32xf32, #tpu.memory_space<vmem>>, vector<1x32xf32>
    %26 = vector.broadcast %25 : vector<1x32xf32> to vector<336x32xf32>
    %27 = arith.addf %24, %26 : vector<336x32xf32>
    %28 = arith.negf %27 : vector<336x32xf32>
    %29 = math.exp %28 : vector<336x32xf32>
    %cst_17 = arith.constant 1.000000e+00 : f32
    %30 = vector.broadcast %cst_17 : f32 to vector<336x32xf32>
    %31 = arith.addf %30, %29 : vector<336x32xf32>
    %32 = arith.divf %30, %31 : vector<336x32xf32>
    %33 = arith.mulf %27, %32 : vector<336x32xf32>
    %34 = vector.broadcast %2 : vector<336x1xf32> to vector<336x32xf32>
    %35 = arith.mulf %34, %33 : vector<336x32xf32>
    %c0_18 = arith.constant 0 : index
    %c0_19 = arith.constant 0 : index
    %36 = vector.load %arg15[%c0_18, %c0_19] : memref<336x32xf32, #tpu.memory_space<vmem>>, vector<336x32xf32>
    tpu.vector_store %arg15[%c0_18, %c0_19], %35 {strides = array<i32>} : memref<336x32xf32, #tpu.memory_space<vmem>>, vector<336x32xf32>,
    %c5 = arith.constant 5 : index
    %c0_20 = arith.constant 0 : index
    %37 = vector.load %arg15[%c5, %c0_20] : memref<336x32xf32, #tpu.memory_space<vmem>>, vector<288x32xf32>
    %38 = arith.truncf %37 : vector<288x32xf32> to vector<288x32xbf16>
    %c0_21 = arith.constant 0 : index
    %c0_22 = arith.constant 0 : index
    %39 = vector.load %arg16[%c0_21, %c0_22] : memref<288x288xbf16, #tpu.memory_space<vmem>>, vector<288x32xbf16>
    tpu.vector_store %arg16[%c0_21, %c0_22], %38 {strides = array<i32>} : memref<288x288xbf16, #tpu.memory_space<vmem>>, vector<288x32xbf16>,
    %c6 = arith.constant 6 : index
    %c0_23 = arith.constant 0 : index
    %40 = vector.load %arg15[%c6, %c0_23] : memref<336x32xf32, #tpu.memory_space<vmem>>, vector<288x32xf32>
    %41 = arith.truncf %40 : vector<288x32xf32> to vector<288x32xbf16>
    %c0_24 = arith.constant 0 : index
    %c32 = arith.constant 32 : index
    %42 = vector.load %arg16[%c0_24, %c32] : memref<288x288xbf16, #tpu.memory_space<vmem>>, vector<288x32xbf16>
    tpu.vector_store %arg16[%c0_24, %c32], %41 {strides = array<i32>} : memref<288x288xbf16, #tpu.memory_space<vmem>>, vector<288x32xbf16>,
    %c7 = arith.constant 7 : index
    %c0_25 = arith.constant 0 : index
    %43 = vector.load %arg15[%c7, %c0_25] : memref<336x32xf32, #tpu.memory_space<vmem>>, vector<288x32xf32>
    %44 = arith.truncf %43 : vector<288x32xf32> to vector<288x32xbf16>
    %c0_26 = arith.constant 0 : index
    %c64 = arith.constant 64 : index
    %45 = vector.load %arg16[%c0_26, %c64] : memref<288x288xbf16, #tpu.memory_space<vmem>>, vector<288x32xbf16>
    tpu.vector_store %arg16[%c0_26, %c64], %44 {strides = array<i32>} : memref<288x288xbf16, #tpu.memory_space<vmem>>, vector<288x32xbf16>,
    %c23 = arith.constant 23 : index
    %c0_27 = arith.constant 0 : index
    %46 = vector.load %arg15[%c23, %c0_27] : memref<336x32xf32, #tpu.memory_space<vmem>>, vector<288x32xf32>
    %47 = arith.truncf %46 : vector<288x32xf32> to vector<288x32xbf16>
    %c0_28 = arith.constant 0 : index
    %c96 = arith.constant 96 : index
    %48 = vector.load %arg16[%c0_28, %c96] : memref<288x288xbf16, #tpu.memory_space<vmem>>, vector<288x32xbf16>
    tpu.vector_store %arg16[%c0_28, %c96], %47 {strides = array<i32>} : memref<288x288xbf16, #tpu.memory_space<vmem>>, vector<288x32xbf16>,
    %c24_29 = arith.constant 24 : index
    %c0_30 = arith.constant 0 : index
    %49 = vector.load %arg15[%c24_29, %c0_30] : memref<336x32xf32, #tpu.memory_space<vmem>>, vector<288x32xf32>
    %50 = arith.truncf %49 : vector<288x32xf32> to vector<288x32xbf16>
    %c0_31 = arith.constant 0 : index
    %c128 = arith.constant 128 : index
    %51 = vector.load %arg16[%c0_31, %c128] : memref<288x288xbf16, #tpu.memory_space<vmem>>, vector<288x32xbf16>
    tpu.vector_store %arg16[%c0_31, %c128], %50 {strides = array<i32>} : memref<288x288xbf16, #tpu.memory_space<vmem>>, vector<288x32xbf16>,
    %c25 = arith.constant 25 : index
    %c0_32 = arith.constant 0 : index
    %52 = vector.load %arg15[%c25, %c0_32] : memref<336x32xf32, #tpu.memory_space<vmem>>, vector<288x32xf32>
    %53 = arith.truncf %52 : vector<288x32xf32> to vector<288x32xbf16>
    %c0_33 = arith.constant 0 : index
    %c160 = arith.constant 160 : index
    %54 = vector.load %arg16[%c0_33, %c160] : memref<288x288xbf16, #tpu.memory_space<vmem>>, vector<288x32xbf16>
    tpu.vector_store %arg16[%c0_33, %c160], %53 {strides = array<i32>} : memref<288x288xbf16, #tpu.memory_space<vmem>>, vector<288x32xbf16>,
    %c41 = arith.constant 41 : index
    %c0_34 = arith.constant 0 : index
    %55 = vector.load %arg15[%c41, %c0_34] : memref<336x32xf32, #tpu.memory_space<vmem>>, vector<288x32xf32>
    %56 = arith.truncf %55 : vector<288x32xf32> to vector<288x32xbf16>
    %c0_35 = arith.constant 0 : index
    %c192 = arith.constant 192 : index
    %57 = vector.load %arg16[%c0_35, %c192] : memref<288x288xbf16, #tpu.memory_space<vmem>>, vector<288x32xbf16>
    tpu.vector_store %arg16[%c0_35, %c192], %56 {strides = array<i32>} : memref<288x288xbf16, #tpu.memory_space<vmem>>, vector<288x32xbf16>,
    %c42 = arith.constant 42 : index
    %c0_36 = arith.constant 0 : index
    %58 = vector.load %arg15[%c42, %c0_36] : memref<336x32xf32, #tpu.memory_space<vmem>>, vector<288x32xf32>
    %59 = arith.truncf %58 : vector<288x32xf32> to vector<288x32xbf16>
    %c0_37 = arith.constant 0 : index
    %c224 = arith.constant 224 : index
    %60 = vector.load %arg16[%c0_37, %c224] : memref<288x288xbf16, #tpu.memory_space<vmem>>, vector<288x32xbf16>
    tpu.vector_store %arg16[%c0_37, %c224], %59 {strides = array<i32>} : memref<288x288xbf16, #tpu.memory_space<vmem>>, vector<288x32xbf16>,
    %c43 = arith.constant 43 : index
    %c0_38 = arith.constant 0 : index
    %61 = vector.load %arg15[%c43, %c0_38] : memref<336x32xf32, #tpu.memory_space<vmem>>, vector<288x32xf32>
    %62 = arith.truncf %61 : vector<288x32xf32> to vector<288x32xbf16>
    %c0_39 = arith.constant 0 : index
    %c256 = arith.constant 256 : index
    %63 = vector.load %arg16[%c0_39, %c256] : memref<288x288xbf16, #tpu.memory_space<vmem>>, vector<288x32xbf16>
    tpu.vector_store %arg16[%c0_39, %c256], %62 {strides = array<i32>} : memref<288x288xbf16, #tpu.memory_space<vmem>>, vector<288x32xbf16>,
    %c0_40 = arith.constant 0 : index
    %c0_41 = arith.constant 0 : index
    %64 = vector.load %arg16[%c0_40, %c0_41] : memref<288x288xbf16, #tpu.memory_space<vmem>>, vector<288x288xbf16>
    %c0_42 = arith.constant 0 : index
    %c0_43 = arith.constant 0 : index
    %65 = vector.load %arg6[%c0_42, %c0_43] : memref<288x64xbf16, #tpu.memory_space<vmem>>, vector<288x64xbf16>
    %cst_44 = arith.constant dense<0.000000e+00> : vector<288x64xf32>
    %66 = tpu.matmul %64, %65, %cst_44 {dimension_numbers = #tpu.dot_dimension_numbers<[1], [0], [0], [1], [0, 0, 1, 1], [], []>} : vector<288x288xbf16>, vector<288x64xbf16>, vector<288x64xf32> -> vector<288x64xf32>
    %c0_45 = arith.constant 0 : index
    %c0_46 = arith.constant 0 : index
    %c0_47 = arith.constant 0 : index
    %67 = vector.load %arg7[%c0_45, %c0_46, %c0_47] : memref<1x1x64xf32, #tpu.memory_space<vmem>>, vector<1x1x64xf32>
    %68 = vector.shape_cast %67 : vector<1x1x64xf32> to vector<1x64xf32>
    %69 = vector.broadcast %68 : vector<1x64xf32> to vector<288x64xf32>
    %70 = arith.mulf %66, %69 : vector<288x64xf32>
    %c0_48 = arith.constant 0 : index
    %c0_49 = arith.constant 0 : index
    %c0_50 = arith.constant 0 : index
    %71 = vector.load %arg8[%c0_48, %c0_49, %c0_50] : memref<1x1x64xf32, #tpu.memory_space<vmem>>, vector<1x1x64xf32>
    %72 = vector.shape_cast %71 : vector<1x1x64xf32> to vector<1x64xf32>
    %73 = vector.broadcast %72 : vector<1x64xf32> to vector<288x64xf32>
    %74 = arith.addf %70, %73 : vector<288x64xf32>
    %75 = vector.broadcast %3 : vector<288x1xf32> to vector<288x64xf32>
    %76 = arith.mulf %74, %75 : vector<288x64xf32>
    %cst_51 = arith.constant dense<0.000000e+00> : vector<64xf32>
    %77 = vector.multi_reduction <add>, %76, %cst_51 [0] : vector<288x64xf32> to vector<64xf32>
    %78 = vector.shape_cast %77 : vector<64xf32> to vector<1x64xf32>
    %79 = arith.mulf %76, %74 : vector<288x64xf32>
    %cst_52 = arith.constant dense<0.000000e+00> : vector<64xf32>
    %80 = vector.multi_reduction <add>, %79, %cst_52 [0] : vector<288x64xf32> to vector<64xf32>
    %81 = vector.shape_cast %80 : vector<64xf32> to vector<1x64xf32>
    %c0_53 = arith.constant 0 : index
    %c0_54 = arith.constant 0 : index
    %82 = vector.load %arg9[%c0_53, %c0_54] : memref<64x64xf32, #tpu.memory_space<vmem>>, vector<64x64xf32>
    %cst_55 = arith.constant dense<0.000000e+00> : vector<1x64xf32>
    %83 = tpu.matmul %78, %82, %cst_55 {dimension_numbers = #tpu.dot_dimension_numbers<[1], [0], [0], [1], [0, 0, 1, 1], [], []>} : vector<1x64xf32>, vector<64x64xf32>, vector<1x64xf32> -> vector<1x64xf32>
    %c0_56 = arith.constant 0 : index
    %c0_57 = arith.constant 0 : index
    %84 = vector.load %arg9[%c0_56, %c0_57] : memref<64x64xf32, #tpu.memory_space<vmem>>, vector<64x64xf32>
    %cst_58 = arith.constant dense<0.000000e+00> : vector<1x64xf32>
    %85 = tpu.matmul %81, %84, %cst_58 {dimension_numbers = #tpu.dot_dimension_numbers<[1], [0], [0], [1], [0, 0, 1, 1], [], []>} : vector<1x64xf32>, vector<64x64xf32>, vector<1x64xf32> -> vector<1x64xf32>
    %86 = arith.mulf %83, %83 : vector<1x64xf32>
    %87 = arith.subf %85, %86 : vector<1x64xf32>
    %cst_59 = arith.constant 9.99999974E-6 : f32
    %88 = vector.broadcast %cst_59 : f32 to vector<1x64xf32>
    %89 = arith.addf %87, %88 : vector<1x64xf32>
    %90 = math.rsqrt %89 : vector<1x64xf32>
    %91 = vector.broadcast %83 : vector<1x64xf32> to vector<288x64xf32>
    %92 = arith.subf %74, %91 : vector<288x64xf32>
    %93 = vector.broadcast %90 : vector<1x64xf32> to vector<288x64xf32>
    %94 = arith.mulf %92, %93 : vector<288x64xf32>
    %c0_60 = arith.constant 0 : index
    %c0_61 = arith.constant 0 : index
    %95 = vector.load %arg10[%c0_60, %c0_61] : memref<1x64xf32, #tpu.memory_space<vmem>>, vector<1x64xf32>
    %96 = vector.broadcast %95 : vector<1x64xf32> to vector<288x64xf32>
    %97 = arith.mulf %94, %96 : vector<288x64xf32>
    %c0_62 = arith.constant 0 : index
    %c0_63 = arith.constant 0 : index
    %98 = vector.load %arg11[%c0_62, %c0_63] : memref<1x64xf32, #tpu.memory_space<vmem>>, vector<1x64xf32>
    %99 = vector.broadcast %98 : vector<1x64xf32> to vector<288x64xf32>
    %100 = arith.addf %97, %99 : vector<288x64xf32>
    %101 = arith.negf %100 : vector<288x64xf32>
    %102 = math.exp %101 : vector<288x64xf32>
    %cst_64 = arith.constant 1.000000e+00 : f32
    %103 = vector.broadcast %cst_64 : f32 to vector<288x64xf32>
    %104 = arith.addf %103, %102 : vector<288x64xf32>
    %105 = arith.divf %103, %104 : vector<288x64xf32>
    %106 = arith.mulf %100, %105 : vector<288x64xf32>
    %107 = vector.broadcast %3 : vector<288x1xf32> to vector<288x64xf32>
    %108 = arith.mulf %107, %106 : vector<288x64xf32>
    %cst_65 = arith.constant 0.000000e+00 : f32
    %109 = vector.broadcast %cst_65 : f32 to vector<24x64xf32>
    %c0_66 = arith.constant 0 : index
    %c0_67 = arith.constant 0 : index
    %110 = vector.load %arg17[%c0_66, %c0_67] : memref<336x64xf32, #tpu.memory_space<vmem>>, vector<24x64xf32>
    tpu.vector_store %arg17[%c0_66, %c0_67], %109 {strides = array<i32>} : memref<336x64xf32, #tpu.memory_space<vmem>>, vector<24x64xf32>,
    %cst_68 = arith.constant 0.000000e+00 : f32
    %111 = vector.broadcast %cst_68 : f32 to vector<24x64xf32>
    %c312 = arith.constant 312 : index
    %c0_69 = arith.constant 0 : index
    %112 = vector.load %arg17[%c312, %c0_69] : memref<336x64xf32, #tpu.memory_space<vmem>>, vector<24x64xf32>
    tpu.vector_store %arg17[%c312, %c0_69], %111 {strides = array<i32>} : memref<336x64xf32, #tpu.memory_space<vmem>>, vector<24x64xf32>,
    %c24_70 = arith.constant 24 : index
    %c0_71 = arith.constant 0 : index
    %113 = vector.load %arg17[%c24_70, %c0_71] : memref<336x64xf32, #tpu.memory_space<vmem>>, vector<288x64xf32>
    tpu.vector_store %arg17[%c24_70, %c0_71], %108 {strides = array<i32>} : memref<336x64xf32, #tpu.memory_space<vmem>>, vector<288x64xf32>,
    %c5_72 = arith.constant 5 : index
    %c0_73 = arith.constant 0 : index
    %114 = vector.load %arg17[%c5_72, %c0_73] : memref<336x64xf32, #tpu.memory_space<vmem>>, vector<288x64xf32>
    %115 = arith.truncf %114 : vector<288x64xf32> to vector<288x64xbf16>
    %c0_74 = arith.constant 0 : index
    %c0_75 = arith.constant 0 : index
    %116 = vector.load %arg18[%c0_74, %c0_75] : memref<288x608xbf16, #tpu.memory_space<vmem>>, vector<288x64xbf16>
    tpu.vector_store %arg18[%c0_74, %c0_75], %115 {strides = array<i32>} : memref<288x608xbf16, #tpu.memory_space<vmem>>, vector<288x64xbf16>,
    %c6_76 = arith.constant 6 : index
    %c0_77 = arith.constant 0 : index
    %117 = vector.load %arg17[%c6_76, %c0_77] : memref<336x64xf32, #tpu.memory_space<vmem>>, vector<288x64xf32>
    %118 = arith.truncf %117 : vector<288x64xf32> to vector<288x64xbf16>
    %c0_78 = arith.constant 0 : index
    %c64_79 = arith.constant 64 : index
    %119 = vector.load %arg18[%c0_78, %c64_79] : memref<288x608xbf16, #tpu.memory_space<vmem>>, vector<288x64xbf16>
    tpu.vector_store %arg18[%c0_78, %c64_79], %118 {strides = array<i32>} : memref<288x608xbf16, #tpu.memory_space<vmem>>, vector<288x64xbf16>,
    %c7_80 = arith.constant 7 : index
    %c0_81 = arith.constant 0 : index
    %120 = vector.load %arg17[%c7_80, %c0_81] : memref<336x64xf32, #tpu.memory_space<vmem>>, vector<288x64xf32>
    %121 = arith.truncf %120 : vector<288x64xf32> to vector<288x64xbf16>
    %c0_82 = arith.constant 0 : index
    %c128_83 = arith.constant 128 : index
    %122 = vector.load %arg18[%c0_82, %c128_83] : memref<288x608xbf16, #tpu.memory_space<vmem>>, vector<288x64xbf16>
    tpu.vector_store %arg18[%c0_82, %c128_83], %121 {strides = array<i32>} : memref<288x608xbf16, #tpu.memory_space<vmem>>, vector<288x64xbf16>,
    %c23_84 = arith.constant 23 : index
    %c0_85 = arith.constant 0 : index
    %123 = vector.load %arg17[%c23_84, %c0_85] : memref<336x64xf32, #tpu.memory_space<vmem>>, vector<288x64xf32>
    %124 = arith.truncf %123 : vector<288x64xf32> to vector<288x64xbf16>
    %c0_86 = arith.constant 0 : index
    %c192_87 = arith.constant 192 : index
    %125 = vector.load %arg18[%c0_86, %c192_87] : memref<288x608xbf16, #tpu.memory_space<vmem>>, vector<288x64xbf16>
    tpu.vector_store %arg18[%c0_86, %c192_87], %124 {strides = array<i32>} : memref<288x608xbf16, #tpu.memory_space<vmem>>, vector<288x64xbf16>,
    %c24_88 = arith.constant 24 : index
    %c0_89 = arith.constant 0 : index
    %126 = vector.load %arg17[%c24_88, %c0_89] : memref<336x64xf32, #tpu.memory_space<vmem>>, vector<288x64xf32>
    %127 = arith.truncf %126 : vector<288x64xf32> to vector<288x64xbf16>
    %c0_90 = arith.constant 0 : index
    %c256_91 = arith.constant 256 : index
    %128 = vector.load %arg18[%c0_90, %c256_91] : memref<288x608xbf16, #tpu.memory_space<vmem>>, vector<288x64xbf16>
    tpu.vector_store %arg18[%c0_90, %c256_91], %127 {strides = array<i32>} : memref<288x608xbf16, #tpu.memory_space<vmem>>, vector<288x64xbf16>,
    %c25_92 = arith.constant 25 : index
    %c0_93 = arith.constant 0 : index
    %129 = vector.load %arg17[%c25_92, %c0_93] : memref<336x64xf32, #tpu.memory_space<vmem>>, vector<288x64xf32>
    %130 = arith.truncf %129 : vector<288x64xf32> to vector<288x64xbf16>
    %c0_94 = arith.constant 0 : index
    %c320 = arith.constant 320 : index
    %131 = vector.load %arg18[%c0_94, %c320] : memref<288x608xbf16, #tpu.memory_space<vmem>>, vector<288x64xbf16>
    tpu.vector_store %arg18[%c0_94, %c320], %130 {strides = array<i32>} : memref<288x608xbf16, #tpu.memory_space<vmem>>, vector<288x64xbf16>,
    %c41_95 = arith.constant 41 : index
    %c0_96 = arith.constant 0 : index
    %132 = vector.load %arg17[%c41_95, %c0_96] : memref<336x64xf32, #tpu.memory_space<vmem>>, vector<288x64xf32>
    %133 = arith.truncf %132 : vector<288x64xf32> to vector<288x64xbf16>
    %c0_97 = arith.constant 0 : index
    %c384 = arith.constant 384 : index
    %134 = vector.load %arg18[%c0_97, %c384] : memref<288x608xbf16, #tpu.memory_space<vmem>>, vector<288x64xbf16>
    tpu.vector_store %arg18[%c0_97, %c384], %133 {strides = array<i32>} : memref<288x608xbf16, #tpu.memory_space<vmem>>, vector<288x64xbf16>,
    %c42_98 = arith.constant 42 : index
    %c0_99 = arith.constant 0 : index
    %135 = vector.load %arg17[%c42_98, %c0_99] : memref<336x64xf32, #tpu.memory_space<vmem>>, vector<288x64xf32>
    %136 = arith.truncf %135 : vector<288x64xf32> to vector<288x64xbf16>
    %c0_100 = arith.constant 0 : index
    %c448 = arith.constant 448 : index
    %137 = vector.load %arg18[%c0_100, %c448] : memref<288x608xbf16, #tpu.memory_space<vmem>>, vector<288x64xbf16>
    tpu.vector_store %arg18[%c0_100, %c448], %136 {strides = array<i32>} : memref<288x608xbf16, #tpu.memory_space<vmem>>, vector<288x64xbf16>,
    %c43_101 = arith.constant 43 : index
    %c0_102 = arith.constant 0 : index
    %138 = vector.load %arg17[%c43_101, %c0_102] : memref<336x64xf32, #tpu.memory_space<vmem>>, vector<288x64xf32>
    %139 = arith.truncf %138 : vector<288x64xf32> to vector<288x64xbf16>
    %c0_103 = arith.constant 0 : index
    %c512 = arith.constant 512 : index
    %140 = vector.load %arg18[%c0_103, %c512] : memref<288x608xbf16, #tpu.memory_space<vmem>>, vector<288x64xbf16>
    tpu.vector_store %arg18[%c0_103, %c512], %139 {strides = array<i32>} : memref<288x608xbf16, #tpu.memory_space<vmem>>, vector<288x64xbf16>,
    %c0_104 = arith.constant 0 : index
    %c24_105 = arith.constant 24 : index
    %c0_106 = arith.constant 0 : index
    %141 = vector.load %arg1[%c0_104, %c24_105, %c0_106] : memref<1x336x32xf32, #tpu.memory_space<vmem>>, vector<1x288x32xf32>
    %142 = vector.shape_cast %141 : vector<1x288x32xf32> to vector<288x32xf32>
    %143 = arith.truncf %142 : vector<288x32xf32> to vector<288x32xbf16>
    %c0_107 = arith.constant 0 : index
    %c576 = arith.constant 576 : index
    %144 = vector.load %arg18[%c0_107, %c576] : memref<288x608xbf16, #tpu.memory_space<vmem>>, vector<288x32xbf16>
    tpu.vector_store %arg18[%c0_107, %c576], %143 {strides = array<i32>} : memref<288x608xbf16, #tpu.memory_space<vmem>>, vector<288x32xbf16>,
    %c0_108 = arith.constant 0 : index
    %c0_109 = arith.constant 0 : index
    %145 = vector.load %arg18[%c0_108, %c0_109] : memref<288x608xbf16, #tpu.memory_space<vmem>>, vector<288x608xbf16>
    %c0_110 = arith.constant 0 : index
    %c0_111 = arith.constant 0 : index
    %146 = vector.load %arg12[%c0_110, %c0_111] : memref<608x64xbf16, #tpu.memory_space<vmem>>, vector<608x64xbf16>
    %cst_112 = arith.constant dense<0.000000e+00> : vector<288x64xf32>
    %147 = tpu.matmul %145, %146, %cst_112 {dimension_numbers = #tpu.dot_dimension_numbers<[1], [0], [0], [1], [0, 0, 1, 1], [], []>} : vector<288x608xbf16>, vector<608x64xbf16>, vector<288x64xf32> -> vector<288x64xf32>
    %c0_113 = arith.constant 0 : index
    %c0_114 = arith.constant 0 : index
    %148 = vector.load %arg13[%c0_113, %c0_114] : memref<1x64xf32, #tpu.memory_space<vmem>>, vector<1x64xf32>
    %149 = vector.broadcast %148 : vector<1x64xf32> to vector<288x64xf32>
    %150 = arith.addf %147, %149 : vector<288x64xf32>
    %c0_115 = arith.constant 0 : index
    %c0_116 = arith.constant 0 : index
    %c0_117 = arith.constant 0 : index
    %151 = vector.load %arg14[%c0_115, %c0_116, %c0_117] : memref<1x288x64xf32, #tpu.memory_space<vmem>>, vector<1x288x64xf32>
    %152 = vector.shape_cast %151 : vector<1x288x64xf32> to vector<288x64xf32>
    %153 = vector.shape_cast %150 : vector<288x64xf32> to vector<1x288x64xf32>
    tpu.vector_store %arg14[%c0_115, %c0_116, %c0_117], %153 {strides = array<i32>} : memref<1x288x64xf32, #tpu.memory_space<vmem>>, vector<1x288x64xf32>,
    return
  }
  func.func @transform_0(%arg0: i32) -> (i32, i32, i32) {
    %c0_i32 = arith.constant 0 : i32
    %c0_i32_0 = arith.constant 0 : i32
    %c0_i32_1 = arith.constant 0 : i32
    return %arg0, %c0_i32, %c0_i32_0 : i32, i32, i32
  }
  func.func @transform_1(%arg0: i32) -> (i32, i32) {
    %c0_i32 = arith.constant 0 : i32
    %c0_i32_0 = arith.constant 0 : i32
    %c0_i32_1 = arith.constant 0 : i32
    return %c0_i32, %c0_i32_0 : i32, i32
  }
  func.func @transform_2(%arg0: i32) -> (i32, i32) {
    %c0_i32 = arith.constant 0 : i32
    %c0_i32_0 = arith.constant 0 : i32
    %c0_i32_1 = arith.constant 0 : i32
    return %c0_i32, %c0_i32_0 : i32, i32
  }
  func.func @transform_3(%arg0: i32) -> (i32, i32) {
    %c0_i32 = arith.constant 0 : i32
    %c0_i32_0 = arith.constant 0 : i32
    %c0_i32_1 = arith.constant 0 : i32
    return %c0_i32, %c0_i32_0 : i32, i32
  }
  func.func @transform_4(%arg0: i32) -> (i32, i32) {
    %c0_i32 = arith.constant 0 : i32
    %c0_i32_0 = arith.constant 0 : i32
    %c0_i32_1 = arith.constant 0 : i32
    return %c0_i32, %c0_i32_0 : i32, i32
  }
  func.func @transform_5(%arg0: i32) -> (i32, i32) {
    %c0_i32 = arith.constant 0 : i32
    %c0_i32_0 = arith.constant 0 : i32
    %c0_i32_1 = arith.constant 0 : i32
    return %c0_i32, %c0_i32_0 : i32, i32
  }
  func.func @transform_6(%arg0: i32) -> (i32, i32, i32) {
    %c0_i32 = arith.constant 0 : i32
    %c0_i32_0 = arith.constant 0 : i32
    %c0_i32_1 = arith.constant 0 : i32
    return %arg0, %c0_i32, %c0_i32_0 : i32, i32, i32
  }
  func.func @transform_7(%arg0: i32) -> (i32, i32, i32) {
    %c0_i32 = arith.constant 0 : i32
    %c0_i32_0 = arith.constant 0 : i32
    %c0_i32_1 = arith.constant 0 : i32
    return %arg0, %c0_i32, %c0_i32_0 : i32, i32, i32
  }
  func.func @transform_8(%arg0: i32) -> (i32, i32) {
    %c0_i32 = arith.constant 0 : i32
    %c0_i32_0 = arith.constant 0 : i32
    %c0_i32_1 = arith.constant 0 : i32
    return %c0_i32, %c0_i32_0 : i32, i32
  }
  func.func @transform_9(%arg0: i32) -> (i32, i32) {
    %c0_i32 = arith.constant 0 : i32
    %c0_i32_0 = arith.constant 0 : i32
    %c0_i32_1 = arith.constant 0 : i32
    return %c0_i32, %c0_i32_0 : i32, i32
  }
  func.func @transform_10(%arg0: i32) -> (i32, i32) {
    %c0_i32 = arith.constant 0 : i32
    %c0_i32_0 = arith.constant 0 : i32
    %c0_i32_1 = arith.constant 0 : i32
    return %c0_i32, %c0_i32_0 : i32, i32
  }
  func.func @transform_11(%arg0: i32) -> (i32, i32) {
    %c0_i32 = arith.constant 0 : i32
    %c0_i32_0 = arith.constant 0 : i32
    %c0_i32_1 = arith.constant 0 : i32
    return %c0_i32, %c0_i32_0 : i32, i32
  }
  func.func @transform_12(%arg0: i32) -> (i32, i32) {
    %c0_i32 = arith.constant 0 : i32
    %c0_i32_0 = arith.constant 0 : i32
    %c0_i32_1 = arith.constant 0 : i32
    return %c0_i32, %c0_i32_0 : i32, i32
  }
  func.func @transform_13(%arg0: i32) -> (i32, i32, i32) {
    %c0_i32 = arith.constant 0 : i32
    %c0_i32_0 = arith.constant 0 : i32
    %c0_i32_1 = arith.constant 0 : i32
    return %arg0, %c0_i32, %c0_i32_0 : i32, i32, i32
  }
}

</mosaic_0001>

<llo_original>
// kernel: residual_block_forward.1
$region0: #{residual_block_forward.1}
  #allocation0 [shape = 'u32[]', space=smem, size = 0x4, offset = 0x4, fixed_abs, tag = 'smem constant byte address 0x4 - core index']
  #allocation1 [shape = 'u32[72,128]{1,0:T(1,128)}', space=vmem, size = 0x9000, scoped, tag = 'internal scratch']
  #allocation2 [shape = 'f32[336,32]{1,0:T(8,128)}', space=vmem, size = 0x2a000, scoped, tag = 'scratch operand']
  #allocation3 [shape = 'bf16[288,288]{1,0:T(8,128)(2,1)}', space=vmem, size = 0x36000, scoped, tag = 'scratch operand']
  #allocation4 [shape = 'f32[336,64]{1,0:T(8,128)}', space=vmem, size = 0x2a000, scoped, tag = 'scratch operand']
  #allocation5 [shape = 'bf16[288,608]{1,0:T(8,128)(2,1)}', space=vmem, size = 0x5a000, scoped, tag = 'scratch operand']
  %s0 = inlined_call_operand.vmem [shape: f32[2,336,32], index: 0, kind: input, shape index: {}]
  %s1 = inlined_call_operand.vmem [shape: f32[336,1], index: 1, kind: input, shape index: {}]
  %s2 = inlined_call_operand.vmem [shape: f32[32,32], index: 2, kind: input, shape index: {}]
  %s3 = inlined_call_operand.vmem [shape: f32[1,32], index: 3, kind: input, shape index: {}]
  %s4 = inlined_call_operand.vmem [shape: f32[1,32], index: 4, kind: input, shape index: {}]
  %s5 = inlined_call_operand.vmem [shape: bf16[288,64], index: 5, kind: input, shape index: {}]
  %s6 = inlined_call_operand.vmem [shape: f32[2,1,64], index: 6, kind: input, shape index: {}]
  %s7 = inlined_call_operand.vmem [shape: f32[2,1,64], index: 7, kind: input, shape index: {}]
  %s8 = inlined_call_operand.vmem [shape: f32[64,64], index: 8, kind: input, shape index: {}]
  %s9 = inlined_call_operand.vmem [shape: f32[1,64], index: 9, kind: input, shape index: {}]
  %s10 = inlined_call_operand.vmem [shape: f32[1,64], index: 10, kind: input, shape index: {}]
  %s11 = inlined_call_operand.vmem [shape: bf16[608,64], index: 11, kind: input, shape index: {}]
  %s12 = inlined_call_operand.vmem [shape: f32[1,64], index: 12, kind: input, shape index: {}]
  %s13 = inlined_call_operand.vmem [shape: f32[2,288,64], index: 13, kind: output, shape index: {}]
  %s14 = sld [smem:[#allocation0]]
  $region85: #{residual_block_forward.1} parent=0
    _
  %s16 = ssub.s32 1, %s14
  %s17 = scalar_select 0, %s16, %s14
  loop: start=0, step=1, limit=4
  $region2: #{residual_block_forward.1} parent=0 // loop_pre_header
    _
  $region3: #{residual_block_forward.1} parent=0 // loop_header
    %s19 = sphi 0, %s23
    %p20 = scmp.ge.s32.totalorder %s19, 4
    %s29 = sphi 0, %s31
    %s32 = sphi 0, %s29
    %s33 = sphi 0, %s32
    %s49 = sphi 0, %s33
    %s53 = sphi 0, %s53
    %s55 = sphi 0, %s53
    %s56 = sphi 0, %s55
    %s70 = sphi 0, %s56
    %s74 = sphi 0, %s74
    %s76 = sphi 0, %s74
    %s77 = sphi 0, %s76
    %s91 = sphi 0, %s77
    %s95 = sphi 0, %s95
    %s97 = sphi 0, %s95
    %s98 = sphi 0, %s97
    %s112 = sphi 0, %s98
    %s116 = sphi 0, %s116
    %s118 = sphi 0, %s116
    %s119 = sphi 0, %s118
    %s133 = sphi 0, %s119
    %s137 = sphi 0, %s137
    %s139 = sphi 0, %s137
    %s140 = sphi 0, %s139
    %s154 = sphi 0, %s140
    %s160 = sphi 0, %s162
    %s163 = sphi 0, %s160
    %s164 = sphi 0, %s163
    %s180 = sphi 0, %s164
    %s186 = sphi 0, %s188
    %s189 = sphi 0, %s186
    %s190 = sphi 0, %s189
    %s206 = sphi 0, %s190
    %s210 = sphi 0, %s210
    %s212 = sphi 0, %s210
    %s213 = sphi 0, %s212
    %s227 = sphi 0, %s213
    %s231 = sphi 0, %s231
    %s233 = sphi 0, %s231
    %s234 = sphi 0, %s233
    %s248 = sphi 0, %s234
    %s252 = sphi 0, %s252
    %s254 = sphi 0, %s252
    %s255 = sphi 0, %s254
    %s269 = sphi 0, %s255
    %s273 = sphi 0, %s273
    %s275 = sphi 0, %s273
    %s276 = sphi 0, %s275
    %s290 = sphi 0, %s276
    %s294 = sphi 0, %s294
    %s296 = sphi 0, %s294
    %s297 = sphi 0, %s296
    %s311 = sphi 0, %s297
    %s317 = sphi 0, %s319
    %s320 = sphi 0, %s317
    %s321 = sphi 0, %s320
    %s337 = sphi 0, %s321
  $region4: #{residual_block_forward.1} parent=0 // loop_header_branch
    %22 = sbr.rel (%p20) target = $region8
  $region5: #{residual_block_forward.1} parent=0 // loop_body
    %s24 = ssub.s32 %s19, 1
    %s25 = ssub.s32 %s19, 2
    %s26 = sadd.s32 %s19, 1
    %s27 = ssub.s32 %s19, %s26
    %p28 = scmp.eq.s32.totalorder %s27, 0
    %s30 = sadd.s32 %s29, 1
    %s31 = scalar_select %p28, %s29, %s30
    %p34 = pneg %p28
    %p35 = scmp.eq.s32.totalorder %s19, 1
    %p36 = por %p34, %p35
    %p37 = scmp.ne.s32.totalorder %s29, %s32
    %p38 = scmp.eq.s32.totalorder %s19, 0
    %p39 = por %p37, %p38
    %p40 = scmp.ne.s32.totalorder %s29, %s32
    %p41 = scmp.eq.s32.totalorder %s24, 1
    %p42 = por %p40, %p41
    %p43 = scmp.ne.s32.totalorder %s32, %s33
    %p44 = scmp.eq.s32.totalorder %s24, 0
    %p45 = por %p43, %p44
    %p46 = scmp.ne.s32.totalorder %s32, %s33
    %p47 = scmp.eq.s32.totalorder %s25, 1
    %p48 = por %p46, %p47
    %p50 = scmp.ne.s32.totalorder %s33, %s49
    %p51 = scmp.eq.s32.totalorder %s25, 0
    %p52 = por %p50, %p51
    %s54 = sadd.s32 %s53, 1
    %p57 = scmp.eq.s32.totalorder %s19, 1
    %p58 = scmp.ne.s32.totalorder %s53, %s55
    %p59 = scmp.eq.s32.totalorder %s19, 0
    %p60 = por %p58, %p59
    %p61 = scmp.ne.s32.totalorder %s53, %s55
    %p62 = scmp.eq.s32.totalorder %s24, 1
    %p63 = por %p61, %p62
    %p64 = scmp.ne.s32.totalorder %s55, %s56
    %p65 = scmp.eq.s32.totalorder %s24, 0
    %p66 = por %p64, %p65
    %p67 = scmp.ne.s32.totalorder %s55, %s56
    %p68 = scmp.eq.s32.totalorder %s25, 1
    %p69 = por %p67, %p68
    %p71 = scmp.ne.s32.totalorder %s56, %s70
    %p72 = scmp.eq.s32.totalorder %s25, 0
    %p73 = por %p71, %p72
    %s75 = sadd.s32 %s74, 1
    %p78 = scmp.eq.s32.totalorder %s19, 1
    %p79 = scmp.ne.s32.totalorder %s74, %s76
    %p80 = scmp.eq.s32.totalorder %s19, 0
    %p81 = por %p79, %p80
    %p82 = scmp.ne.s32.totalorder %s74, %s76
    %p83 = scmp.eq.s32.totalorder %s24, 1
    %p84 = por %p82, %p83
    %p85 = scmp.ne.s32.totalorder %s76, %s77
    %p86 = scmp.eq.s32.totalorder %s24, 0
    %p87 = por %p85, %p86
    %p88 = scmp.ne.s32.totalorder %s76, %s77
    %p89 = scmp.eq.s32.totalorder %s25, 1
    %p90 = por %p88, %p89
    %p92 = scmp.ne.s32.totalorder %s77, %s91
    %p93 = scmp.eq.s32.totalorder %s25, 0
    %p94 = por %p92, %p93
    %s96 = sadd.s32 %s95, 1
    %p99 = scmp.eq.s32.totalorder %s19, 1
    %p100 = scmp.ne.s32.totalorder %s95, %s97
    %p101 = scmp.eq.s32.totalorder %s19, 0
    %p102 = por %p100, %p101
    %p103 = scmp.ne.s32.totalorder %s95, %s97
    %p104 = scmp.eq.s32.totalorder %s24, 1
    %p105 = por %p103, %p104
    %p106 = scmp.ne.s32.totalorder %s97, %s98
    %p107 = scmp.eq.s32.totalorder %s24, 0
    %p108 = por %p106, %p107
    %p109 = scmp.ne.s32.totalorder %s97, %s98
    %p110 = scmp.eq.s32.totalorder %s25, 1
    %p111 = por %p109, %p110
    %p113 = scmp.ne.s32.totalorder %s98, %s112
    %p114 = scmp.eq.s32.totalorder %s25, 0
    %p115 = por %p113, %p114
    %s117 = sadd.s32 %s116, 1
    %p120 = scmp.eq.s32.totalorder %s19, 1
    %p121 = scmp.ne.s32.totalorder %s116, %s118
    %p122 = scmp.eq.s32.totalorder %s19, 0
    %p123 = por %p121, %p122
    %p124 = scmp.ne.s32.totalorder %s116, %s118
    %p125 = scmp.eq.s32.totalorder %s24, 1
    %p126 = por %p124, %p125
    %p127 = scmp.ne.s32.totalorder %s118, %s119
    %p128 = scmp.eq.s32.totalorder %s24, 0
    %p129 = por %p127, %p128
    %p130 = scmp.ne.s32.totalorder %s118, %s119
    %p131 = scmp.eq.s32.totalorder %s25, 1
    %p132 = por %p130, %p131
    %p134 = scmp.ne.s32.totalorder %s119, %s133
    %p135 = scmp.eq.s32.totalorder %s25, 0
    %p136 = por %p134, %p135
    %s138 = sadd.s32 %s137, 1
    %p141 = scmp.eq.s32.totalorder %s19, 1
    %p142 = scmp.ne.s32.totalorder %s137, %s139
    %p143 = scmp.eq.s32.totalorder %s19, 0
    %p144 = por %p142, %p143
    %p145 = scmp.ne.s32.totalorder %s137, %s139
    %p146 = scmp.eq.s32.totalorder %s24, 1
    %p147 = por %p145, %p146
    %p148 = scmp.ne.s32.totalorder %s139, %s140
    %p149 = scmp.eq.s32.totalorder %s24, 0
    %p150 = por %p148, %p149
    %p151 = scmp.ne.s32.totalorder %s139, %s140
    %p152 = scmp.eq.s32.totalorder %s25, 1
    %p153 = por %p151, %p152
    %p155 = scmp.ne.s32.totalorder %s140, %s154
    %p156 = scmp.eq.s32.totalorder %s25, 0
    %p157 = por %p155, %p156
    %s158 = ssub.s32 %s19, %s26
    %p159 = scmp.eq.s32.totalorder %s158, 0
    %s161 = sadd.s32 %s160, 1
    %s162 = scalar_select %p159, %s160, %s161
    %p165 = pneg %p159
    %p166 = scmp.eq.s32.totalorder %s19, 1
    %p167 = por %p165, %p166
    %p168 = scmp.ne.s32.totalorder %s160, %s163
    %p169 = scmp.eq.s32.totalorder %s19, 0
    %p170 = por %p168, %p169
    %p171 = scmp.ne.s32.totalorder %s160, %s163
    %p172 = scmp.eq.s32.totalorder %s24, 1
    %p173 = por %p171, %p172
    %p174 = scmp.ne.s32.totalorder %s163, %s164
    %p175 = scmp.eq.s32.totalorder %s24, 0
    %p176 = por %p174, %p175
    %p177 = scmp.ne.s32.totalorder %s163, %s164
    %p178 = scmp.eq.s32.totalorder %s25, 1
    %p179 = por %p177, %p178
    %p181 = scmp.ne.s32.totalorder %s164, %s180
    %p182 = scmp.eq.s32.totalorder %s25, 0
    %p183 = por %p181, %p182
    %s184 = ssub.s32 %s19, %s26
    %p185 = scmp.eq.s32.totalorder %s184, 0
    %s187 = sadd.s32 %s186, 1
    %s188 = scalar_select %p185, %s186, %s187
    %p191 = pneg %p185
    %p192 = scmp.eq.s32.totalorder %s19, 1
    %p193 = por %p191, %p192
    %p194 = scmp.ne.s32.totalorder %s186, %s189
    %p195 = scmp.eq.s32.totalorder %s19, 0
    %p196 = por %p194, %p195
    %p197 = scmp.ne.s32.totalorder %s186, %s189
    %p198 = scmp.eq.s32.totalorder %s24, 1
    %p199 = por %p197, %p198
    %p200 = scmp.ne.s32.totalorder %s189, %s190
    %p201 = scmp.eq.s32.totalorder %s24, 0
    %p202 = por %p200, %p201
    %p203 = scmp.ne.s32.totalorder %s189, %s190
    %p204 = scmp.eq.s32.totalorder %s25, 1
    %p205 = por %p203, %p204
    %p207 = scmp.ne.s32.totalorder %s190, %s206
    %p208 = scmp.eq.s32.totalorder %s25, 0
    %p209 = por %p207, %p208
    %s211 = sadd.s32 %s210, 1
    %p214 = scmp.eq.s32.totalorder %s19, 1
    %p215 = scmp.ne.s32.totalorder %s210, %s212
    %p216 = scmp.eq.s32.totalorder %s19, 0
    %p217 = por %p215, %p216
    %p218 = scmp.ne.s32.totalorder %s210, %s212
    %p219 = scmp.eq.s32.totalorder %s24, 1
    %p220 = por %p218, %p219
    %p221 = scmp.ne.s32.totalorder %s212, %s213
    %p222 = scmp.eq.s32.totalorder %s24, 0
    %p223 = por %p221, %p222
    %p224 = scmp.ne.s32.totalorder %s212, %s213
    %p225 = scmp.eq.s32.totalorder %s25, 1
    %p226 = por %p224, %p225
    %p228 = scmp.ne.s32.totalorder %s213, %s227
    %p229 = scmp.eq.s32.totalorder %s25, 0
    %p230 = por %p228, %p229
    %s232 = sadd.s32 %s231, 1
    %p235 = scmp.eq.s32.totalorder %s19, 1
    %p236 = scmp.ne.s32.totalorder %s231, %s233
    %p237 = scmp.eq.s32.totalorder %s19, 0
    %p238 = por %p236, %p237
    %p239 = scmp.ne.s32.totalorder %s231, %s233
    %p240 = scmp.eq.s32.totalorder %s24, 1
    %p241 = por %p239, %p240
    %p242 = scmp.ne.s32.totalorder %s233, %s234
    %p243 = scmp.eq.s32.totalorder %s24, 0
    %p244 = por %p242, %p243
    %p245 = scmp.ne.s32.totalorder %s233, %s234
    %p246 = scmp.eq.s32.totalorder %s25, 1
    %p247 = por %p245, %p246
    %p249 = scmp.ne.s32.totalorder %s234, %s248
    %p250 = scmp.eq.s32.totalorder %s25, 0
    %p251 = por %p249, %p250
    %s253 = sadd.s32 %s252, 1
    %p256 = scmp.eq.s32.totalorder %s19, 1
    %p257 = scmp.ne.s32.totalorder %s252, %s254
    %p258 = scmp.eq.s32.totalorder %s19, 0
    %p259 = por %p257, %p258
    %p260 = scmp.ne.s32.totalorder %s252, %s254
    %p261 = scmp.eq.s32.totalorder %s24, 1
    %p262 = por %p260, %p261
    %p263 = scmp.ne.s32.totalorder %s254, %s255
    %p264 = scmp.eq.s32.totalorder %s24, 0
    %p265 = por %p263, %p264
    %p266 = scmp.ne.s32.totalorder %s254, %s255
    %p267 = scmp.eq.s32.totalorder %s25, 1
    %p268 = por %p266, %p267
    %p270 = scmp.ne.s32.totalorder %s255, %s269
    %p271 = scmp.eq.s32.totalorder %s25, 0
    %p272 = por %p270, %p271
    %s274 = sadd.s32 %s273, 1
    %p277 = scmp.eq.s32.totalorder %s19, 1
    %p278 = scmp.ne.s32.totalorder %s273, %s275
    %p279 = scmp.eq.s32.totalorder %s19, 0
    %p280 = por %p278, %p279
    %p281 = scmp.ne.s32.totalorder %s273, %s275
    %p282 = scmp.eq.s32.totalorder %s24, 1
    %p283 = por %p281, %p282
    %p284 = scmp.ne.s32.totalorder %s275, %s276
    %p285 = scmp.eq.s32.totalorder %s24, 0
    %p286 = por %p284, %p285
    %p287 = scmp.ne.s32.totalorder %s275, %s276
    %p288 = scmp.eq.s32.totalorder %s25, 1
    %p289 = por %p287, %p288
    %p291 = scmp.ne.s32.totalorder %s276, %s290
    %p292 = scmp.eq.s32.totalorder %s25, 0
    %p293 = por %p291, %p292
    %s295 = sadd.s32 %s294, 1
    %p298 = scmp.eq.s32.totalorder %s19, 1
    %p299 = scmp.ne.s32.totalorder %s294, %s296
    %p300 = scmp.eq.s32.totalorder %s19, 0
    %p301 = por %p299, %p300
    %p302 = scmp.ne.s32.totalorder %s294, %s296
    %p303 = scmp.eq.s32.totalorder %s24, 1
    %p304 = por %p302, %p303
    %p305 = scmp.ne.s32.totalorder %s296, %s297
    %p306 = scmp.eq.s32.totalorder %s24, 0
    %p307 = por %p305, %p306
    %p308 = scmp.ne.s32.totalorder %s296, %s297
    %p309 = scmp.eq.s32.totalorder %s25, 1
    %p310 = por %p308, %p309
    %p312 = scmp.ne.s32.totalorder %s297, %s311
    %p313 = scmp.eq.s32.totalorder %s25, 0
    %p314 = por %p312, %p313
    %s315 = ssub.s32 %s19, %s26
    %p316 = scmp.eq.s32.totalorder %s315, 0
    %s318 = sadd.s32 %s317, 1
    %s319 = scalar_select %p316, %s317, %s318
    %p322 = pneg %p316
    %p323 = scmp.eq.s32.totalorder %s19, 1
    %p324 = por %p322, %p323
    %p325 = scmp.ne.s32.totalorder %s317, %s320
    %p326 = scmp.eq.s32.totalorder %s19, 0
    %p327 = por %p325, %p326
    %p328 = scmp.ne.s32.totalorder %s317, %s320
    %p329 = scmp.eq.s32.totalorder %s24, 1
    %p330 = por %p328, %p329
    %p331 = scmp.ne.s32.totalorder %s320, %s321
    %p332 = scmp.eq.s32.totalorder %s24, 0
    %p333 = por %p331, %p332
    %p334 = scmp.ne.s32.totalorder %s320, %s321
    %p335 = scmp.eq.s32.totalorder %s25, 1
    %p336 = por %p334, %p335
    %p338 = scmp.ne.s32.totalorder %s321, %s337
    %p339 = scmp.eq.s32.totalorder %s25, 0
    %p340 = por %p338, %p339
    %p341 = scmp.le.s32.totalorder 1, %s19
    %p342 = scmp.lt.s32.totalorder %s19, 3
    %p343 = pnand %p341, %p342
    %p344 = pneg %p343
    // Predicated region
    $region9: #{residual_block_forward.1} parent=5 // pred_check
      _
    $region10: #{residual_block_forward.1} parent=5 // pred_check_branch
      %346 = sbr.rel (%p343) target = $region12
    $region11: #{residual_block_forward.1} parent=5 // pred_region
      %s347 = ssub.s32 %s19, 1
      // Predicated region
      $region13: #{residual_block_forward.1} parent=11 // pred_check
        %p348 = pneg %p66
      $region14: #{residual_block_forward.1} parent=11 // pred_check_branch
        %350 = sbr.rel (%p348) target = $region16
      $region15: #{residual_block_forward.1} parent=11 // pred_region
        _
      $region16: #{residual_block_forward.1} parent=11 // pred_fallthru
        _
      // Predicated region
      $region17: #{residual_block_forward.1} parent=11 // pred_check
        %p351 = pneg %p87
      $region18: #{residual_block_forward.1} parent=11 // pred_check_branch
        %353 = sbr.rel (%p351) target = $region20
      $region19: #{residual_block_forward.1} parent=11 // pred_region
        _
      $region20: #{residual_block_forward.1} parent=11 // pred_fallthru
        _
      // Predicated region
      $region21: #{residual_block_forward.1} parent=11 // pred_check
        %p354 = pneg %p108
      $region22: #{residual_block_forward.1} parent=11 // pred_check_branch
        %356 = sbr.rel (%p354) target = $region24
      $region23: #{residual_block_forward.1} parent=11 // pred_region
        _
      $region24: #{residual_block_forward.1} parent=11 // pred_fallthru
        _
      // Predicated region
      $region25: #{residual_block_forward.1} parent=11 // pred_check
        %p357 = pneg %p129
      $region26: #{residual_block_forward.1} parent=11 // pred_check_branch
        %359 = sbr.rel (%p357) target = $region28
      $region27: #{residual_block_forward.1} parent=11 // pred_region
        _
      $region28: #{residual_block_forward.1} parent=11 // pred_fallthru
        _
      // Predicated region
      $region29: #{residual_block_forward.1} parent=11 // pred_check
        %p360 = pneg %p150
      $region30: #{residual_block_forward.1} parent=11 // pred_check_branch
        %362 = sbr.rel (%p360) target = $region32
      $region31: #{residual_block_forward.1} parent=11 // pred_region
        _
      $region32: #{residual_block_forward.1} parent=11 // pred_fallthru
        _
      // Predicated region
      $region33: #{residual_block_forward.1} parent=11 // pred_check
        %p363 = pneg %p223
      $region34: #{residual_block_forward.1} parent=11 // pred_check_branch
        %365 = sbr.rel (%p363) target = $region36
      $region35: #{residual_block_forward.1} parent=11 // pred_region
        _
      $region36: #{residual_block_forward.1} parent=11 // pred_fallthru
        _
      // Predicated region
      $region37: #{residual_block_forward.1} parent=11 // pred_check
        %p366 = pneg %p244
      $region38: #{residual_block_forward.1} parent=11 // pred_check_branch
        %368 = sbr.rel (%p366) target = $region40
      $region39: #{residual_block_forward.1} parent=11 // pred_region
        _
      $region40: #{residual_block_forward.1} parent=11 // pred_fallthru
        _
      // Predicated region
      $region41: #{residual_block_forward.1} parent=11 // pred_check
        %p369 = pneg %p265
      $region42: #{residual_block_forward.1} parent=11 // pred_check_branch
        %371 = sbr.rel (%p369) target = $region44
      $region43: #{residual_block_forward.1} parent=11 // pred_region
        _
      $region44: #{residual_block_forward.1} parent=11 // pred_fallthru
        _
      // Predicated region
      $region45: #{residual_block_forward.1} parent=11 // pred_check
        %p372 = pneg %p286
      $region46: #{residual_block_forward.1} parent=11 // pred_check_branch
        %374 = sbr.rel (%p372) target = $region48
      $region47: #{residual_block_forward.1} parent=11 // pred_region
        _
      $region48: #{residual_block_forward.1} parent=11 // pred_fallthru
        _
      // Predicated region
      $region49: #{residual_block_forward.1} parent=11 // pred_check
        %p375 = pneg %p307
      $region50: #{residual_block_forward.1} parent=11 // pred_check_branch
        %377 = sbr.rel (%p375) target = $region52
      $region51: #{residual_block_forward.1} parent=11 // pred_region
        _
      $region52: #{residual_block_forward.1} parent=11 // pred_fallthru
        _
    $region12: #{residual_block_forward.1} parent=5 // pred_fallthru
      _
    %p378 = scmp.lt.s32.totalorder %s19, 2
    // Predicated region
    $region53: #{residual_block_forward.1} parent=5 // pred_check
      %p379 = pneg %p378
    $region54: #{residual_block_forward.1} parent=5 // pred_check_branch
      %381 = sbr.rel (%p379) target = $region56
    $region55: #{residual_block_forward.1} parent=5 // pred_region
      // Predicated region
      $region57: #{residual_block_forward.1} parent=55 // pred_check
        %p382 = pneg %p39
      $region58: #{residual_block_forward.1} parent=55 // pred_check_branch
        %384 = sbr.rel (%p382) target = $region60
      $region59: #{residual_block_forward.1} parent=55 // pred_region
        %p385 = scmp.lt.s32.totalorder %s19, 1
        %s386 = scalar_select %p385, %s19, 1
        %s387 = smul.addr %s386, 42
        %s388 = smul.addr %s387, 8
        %s389 = scalar_lea.vmem %s0, %s388
      $region60: #{residual_block_forward.1} parent=55 // pred_fallthru
        _
      // Predicated region
      $region61: #{residual_block_forward.1} parent=55 // pred_check
        %p390 = pneg %p170
      $region62: #{residual_block_forward.1} parent=55 // pred_check_branch
        %392 = sbr.rel (%p390) target = $region64
      $region63: #{residual_block_forward.1} parent=55 // pred_region
        %p393 = scmp.lt.s32.totalorder %s19, 1
        %s394 = scalar_select %p393, %s19, 1
        %s395 = scalar_lea.vmem %s6, %s394
      $region64: #{residual_block_forward.1} parent=55 // pred_fallthru
        _
      // Predicated region
      $region65: #{residual_block_forward.1} parent=55 // pred_check
        %p396 = pneg %p196
      $region66: #{residual_block_forward.1} parent=55 // pred_check_branch
        %398 = sbr.rel (%p396) target = $region68
      $region67: #{residual_block_forward.1} parent=55 // pred_region
        %p399 = scmp.lt.s32.totalorder %s19, 1
        %s400 = scalar_select %p399, %s19, 1
        %s401 = scalar_lea.vmem %s7, %s400
      $region68: #{residual_block_forward.1} parent=55 // pred_fallthru
        _
    $region56: #{residual_block_forward.1} parent=5 // pred_fallthru
      _
    %p402 = scmp.le.s32.totalorder 1, %s19
    %p403 = scmp.lt.s32.totalorder %s19, 3
    %p404 = pnand %p402, %p403
    %p405 = pneg %p404
    // Predicated region
    $region69: #{residual_block_forward.1} parent=5 // pred_check
      _
    $region70: #{residual_block_forward.1} parent=5 // pred_check_branch
      %407 = sbr.rel (%p404) target = $region72
    $region71: #{residual_block_forward.1} parent=5 // pred_region
      %s408 = ssub.s32 %s19, 1
      %p409 = scmp.lt.s32.totalorder %s24, 1
      %s410 = scalar_select %p409, %s24, 1
      %s411 = smul.addr %s410, 42
      %s412 = smul.addr %s411, 8
      %s413 = scalar_lea.vmem %s0, %s412
      %p414 = pneg %p45
      %p415 = pneg %p42
      %p416 = pneg %p66
      %p417 = pneg %p63
      %p418 = pneg %p87
      %p419 = pneg %p84
      %p420 = pneg %p108
      %p421 = pneg %p105
      %p422 = pneg %p129
      %p423 = pneg %p126
      %p424 = pneg %p150
      %p425 = pneg %p147
      %p426 = scmp.lt.s32.totalorder %s24, 1
      %s427 = scalar_select %p426, %s24, 1
      %s428 = scalar_lea.vmem %s6, %s427
      %p429 = pneg %p176
      %p430 = pneg %p173
      %p431 = scmp.lt.s32.totalorder %s24, 1
      %s432 = scalar_select %p431, %s24, 1
      %s433 = scalar_lea.vmem %s7, %s432
      %p434 = pneg %p202
      %p435 = pneg %p199
      %p436 = pneg %p223
      %p437 = pneg %p220
      %p438 = pneg %p244
      %p439 = pneg %p241
      %p440 = pneg %p265
      %p441 = pneg %p262
      %p442 = pneg %p286
      %p443 = pneg %p283
      %p444 = pneg %p307
      %p445 = pneg %p304
      %p446 = pneg %p333
      %p447 = pneg %p330
      %p448 = scmp.lt.s32.totalorder %s24, 1
      %s449 = scalar_select %p448, %s24, 1
      %s450 = smul.addr %s449, 36
      %s451 = smul.addr %s450, 8
      %s452 = scalar_lea.vmem %s13, %s451
      %p453 = scmp.lt.s32.totalorder %s24, 1
      %s454 = scalar_select %p453, %s24, 1
      %s455 = smul.addr %s454, 42
      %s456 = smul.addr %s455, 8
      %s457 = scalar_lea.vmem %s0, %s456
      %p458 = scmp.lt.s32.totalorder %s24, 1
      %s459 = scalar_select %p458, %s24, 1
      %s460 = scalar_lea.vmem %s6, %s459
      %p461 = scmp.lt.s32.totalorder %s24, 1
      %s462 = scalar_select %p461, %s24, 1
      %s463 = scalar_lea.vmem %s7, %s462
      %p464 = scmp.lt.s32.totalorder %s24, 1
      %s465 = scalar_select %p464, %s24, 1
      %s466 = smul.addr %s465, 36
      %s467 = smul.addr %s466, 8
      %s468 = scalar_lea.vmem %s13, %s467
      %v470 = vld [vmem:[%s457] sm:$0xff]
      %v471 = vld [vmem:[%s457 + $0x8] sm:$0xff]
      %v472 = vld [vmem:[%s457 + $0x10] sm:$0xff]
      %v473 = vld [vmem:[%s457 + $0x18] sm:$0xff]
      %v474 = vld [vmem:[%s457 + $0x20] sm:$0xff]
      %v475 = vld [vmem:[%s457 + $0x28] sm:$0xff]
      %v476 = vld [vmem:[%s457 + $0x30] sm:$0xff]
      %v477 = vld [vmem:[%s457 + $0x38] sm:$0xff]
      %v478 = vld [vmem:[%s457 + $0x40] sm:$0xff]
      %v479 = vld [vmem:[%s457 + $0x48] sm:$0xff]
      %v480 = vld [vmem:[%s457 + $0x50] sm:$0xff]
      %v481 = vld [vmem:[%s457 + $0x58] sm:$0xff]
      %v482 = vld [vmem:[%s457 + $0x60] sm:$0xff]
      %v483 = vld [vmem:[%s457 + $0x68] sm:$0xff]
      %v484 = vld [vmem:[%s457 + $0x70] sm:$0xff]
      %v485 = vld [vmem:[%s457 + $0x78] sm:$0xff]
      %v486 = vld [vmem:[%s457 + $0x80] sm:$0xff]
      %v487 = vld [vmem:[%s457 + $0x88] sm:$0xff]
      %v488 = vld [vmem:[%s457 + $0x90] sm:$0xff]
      %v489 = vld [vmem:[%s457 + $0x98] sm:$0xff]
      %v490 = vld [vmem:[%s457 + $0xa0] sm:$0xff]
      %v491 = vld [vmem:[%s457 + $0xa8] sm:$0xff]
      %v492 = vld [vmem:[%s457 + $0xb0] sm:$0xff]
      %v493 = vld [vmem:[%s457 + $0xb8] sm:$0xff]
      %v494 = vld [vmem:[%s457 + $0xc0] sm:$0xff]
      %v495 = vld [vmem:[%s457 + $0xc8] sm:$0xff]
      %v496 = vld [vmem:[%s457 + $0xd0] sm:$0xff]
      %v497 = vld [vmem:[%s457 + $0xd8] sm:$0xff]
      %v498 = vld [vmem:[%s457 + $0xe0] sm:$0xff]
      %v499 = vld [vmem:[%s457 + $0xe8] sm:$0xff]
      %v500 = vld [vmem:[%s457 + $0xf0] sm:$0xff]
      %v501 = vld [vmem:[%s457 + $0xf8] sm:$0xff]
      %v502 = vld [vmem:[%s457 + $0x100] sm:$0xff]
      %v503 = vld [vmem:[%s457 + $0x108] sm:$0xff]
      %v504 = vld [vmem:[%s457 + $0x110] sm:$0xff]
      %v505 = vld [vmem:[%s457 + $0x118] sm:$0xff]
      %v506 = vld [vmem:[%s457 + $0x120] sm:$0xff]
      %v507 = vld [vmem:[%s457 + $0x128] sm:$0xff]
      %v508 = vld [vmem:[%s457 + $0x130] sm:$0xff]
      %v509 = vld [vmem:[%s457 + $0x138] sm:$0xff]
      %v510 = vld [vmem:[%s457 + $0x140] sm:$0xff]
      %v511 = vld [vmem:[%s457 + $0x148] sm:$0xff]
      %v512 = vld [vmem:[%s1] sm:$0xff]
      %v513 = vld [vmem:[%s1 + $0x8] sm:$0xff]
      %v514 = vld [vmem:[%s1 + $0x10] sm:$0xff]
      %v515 = vld [vmem:[%s1 + $0x18] sm:$0xff]
      %v516 = vld [vmem:[%s1 + $0x20] sm:$0xff]
      %v517 = vld [vmem:[%s1 + $0x28] sm:$0xff]
      %v518 = vld [vmem:[%s1 + $0x30] sm:$0xff]
      %v519 = vld [vmem:[%s1 + $0x38] sm:$0xff]
      %v520 = vld [vmem:[%s1 + $0x40] sm:$0xff]
      %v521 = vld [vmem:[%s1 + $0x48] sm:$0xff]
      %v522 = vld [vmem:[%s1 + $0x50] sm:$0xff]
      %v523 = vld [vmem:[%s1 + $0x58] sm:$0xff]
      %v524 = vld [vmem:[%s1 + $0x60] sm:$0xff]
      %v525 = vld [vmem:[%s1 + $0x68] sm:$0xff]
      %v526 = vld [vmem:[%s1 + $0x70] sm:$0xff]
      %v527 = vld [vmem:[%s1 + $0x78] sm:$0xff]
      %v528 = vld [vmem:[%s1 + $0x80] sm:$0xff]
      %v529 = vld [vmem:[%s1 + $0x88] sm:$0xff]
      %v530 = vld [vmem:[%s1 + $0x90] sm:$0xff]
      %v531 = vld [vmem:[%s1 + $0x98] sm:$0xff]
      %v532 = vld [vmem:[%s1 + $0xa0] sm:$0xff]
      %v533 = vld [vmem:[%s1 + $0xa8] sm:$0xff]
      %v534 = vld [vmem:[%s1 + $0xb0] sm:$0xff]
      %v535 = vld [vmem:[%s1 + $0xb8] sm:$0xff]
      %v536 = vld [vmem:[%s1 + $0xc0] sm:$0xff]
      %v537 = vld [vmem:[%s1 + $0xc8] sm:$0xff]
      %v538 = vld [vmem:[%s1 + $0xd0] sm:$0xff]
      %v539 = vld [vmem:[%s1 + $0xd8] sm:$0xff]
      %v540 = vld [vmem:[%s1 + $0xe0] sm:$0xff]
      %v541 = vld [vmem:[%s1 + $0xe8] sm:$0xff]
      %v542 = vld [vmem:[%s1 + $0xf0] sm:$0xff]
      %v543 = vld [vmem:[%s1 + $0xf8] sm:$0xff]
      %v544 = vld [vmem:[%s1 + $0x100] sm:$0xff]
      %v545 = vld [vmem:[%s1 + $0x108] sm:$0xff]
      %v546 = vld [vmem:[%s1 + $0x110] sm:$0xff]
      %v547 = vld [vmem:[%s1 + $0x118] sm:$0xff]
      %v548 = vld [vmem:[%s1 + $0x120] sm:$0xff]
      %v549 = vld [vmem:[%s1 + $0x128] sm:$0xff]
      %v550 = vld [vmem:[%s1 + $0x130] sm:$0xff]
      %v551 = vld [vmem:[%s1 + $0x138] sm:$0xff]
      %v552 = vld [vmem:[%s1 + $0x140] sm:$0xff]
      %v553 = vld [vmem:[%s1 + $0x148] sm:$0xff]
      %vm554 = vcmask 261120
      %v555 = vsel %vm554, %v470, 0.0
      %v556 = vsel %vm554, %v471, 0.0
      %v557 = vadd.f32 %v555, %v556
      %v558 = vsel %vm554, %v472, 0.0
      %v559 = vadd.f32 %v557, %v558
      %v560 = vsel %vm554, %v473, 0.0
      %v561 = vadd.f32 %v559, %v560
      %v562 = vsel %vm554, %v474, 0.0
      %v563 = vadd.f32 %v561, %v562
      %v564 = vsel %vm554, %v475, 0.0
      %v565 = vadd.f32 %v563, %v564
      %v566 = vsel %vm554, %v476, 0.0
      %v567 = vadd.f32 %v565, %v566
      %v568 = vsel %vm554, %v477, 0.0
      %v569 = vadd.f32 %v567, %v568
      %v570 = vsel %vm554, %v478, 0.0
      %v571 = vadd.f32 %v569, %v570
      %v572 = vsel %vm554, %v479, 0.0
      %v573 = vadd.f32 %v571, %v572
      %v574 = vsel %vm554, %v480, 0.0
      %v575 = vadd.f32 %v573, %v574
      %v576 = vsel %vm554, %v481, 0.0
      %v577 = vadd.f32 %v575, %v576
      %v578 = vsel %vm554, %v482, 0.0
      %v579 = vadd.f32 %v577, %v578
      %v580 = vsel %vm554, %v483, 0.0
      %v581 = vadd.f32 %v579, %v580
      %v582 = vsel %vm554, %v484, 0.0
      %v583 = vadd.f32 %v581, %v582
      %v584 = vsel %vm554, %v485, 0.0
      %v585 = vadd.f32 %v583, %v584
      %v586 = vsel %vm554, %v486, 0.0
      %v587 = vadd.f32 %v585, %v586
      %v588 = vsel %vm554, %v487, 0.0
      %v589 = vadd.f32 %v587, %v588
      %v590 = vsel %vm554, %v488, 0.0
      %v591 = vadd.f32 %v589, %v590
      %v592 = vsel %vm554, %v489, 0.0
      %v593 = vadd.f32 %v591, %v592
      %v594 = vsel %vm554, %v490, 0.0
      %v595 = vadd.f32 %v593, %v594
      %v596 = vsel %vm554, %v491, 0.0
      %v597 = vadd.f32 %v595, %v596
      %v598 = vsel %vm554, %v492, 0.0
      %v599 = vadd.f32 %v597, %v598
      %v600 = vsel %vm554, %v493, 0.0
      %v601 = vadd.f32 %v599, %v600
      %v602 = vsel %vm554, %v494, 0.0
      %v603 = vadd.f32 %v601, %v602
      %v604 = vsel %vm554, %v495, 0.0
      %v605 = vadd.f32 %v603, %v604
      %v606 = vsel %vm554, %v496, 0.0
      %v607 = vadd.f32 %v605, %v606
      %v608 = vsel %vm554, %v497, 0.0
      %v609 = vadd.f32 %v607, %v608
      %v610 = vsel %vm554, %v498, 0.0
      %v611 = vadd.f32 %v609, %v610
      %v612 = vsel %vm554, %v499, 0.0
      %v613 = vadd.f32 %v611, %v612
      %v614 = vsel %vm554, %v500, 0.0
      %v615 = vadd.f32 %v613, %v614
      %v616 = vsel %vm554, %v501, 0.0
      %v617 = vadd.f32 %v615, %v616
      %v618 = vsel %vm554, %v502, 0.0
      %v619 = vadd.f32 %v617, %v618
      %v620 = vsel %vm554, %v503, 0.0
      %v621 = vadd.f32 %v619, %v620
      %v622 = vsel %vm554, %v504, 0.0
      %v623 = vadd.f32 %v621, %v622
      %v624 = vsel %vm554, %v505, 0.0
      %v625 = vadd.f32 %v623, %v624
      %v626 = vsel %vm554, %v506, 0.0
      %v627 = vadd.f32 %v625, %v626
      %v628 = vsel %vm554, %v507, 0.0
      %v629 = vadd.f32 %v627, %v628
      %v630 = vsel %vm554, %v508, 0.0
      %v631 = vadd.f32 %v629, %v630
      %v632 = vsel %vm554, %v509, 0.0
      %v633 = vadd.f32 %v631, %v632
      %v634 = vsel %vm554, %v510, 0.0
      %v635 = vadd.f32 %v633, %v634
      %v636 = vsel %vm554, %v511, 0.0
      %v637 = vadd.f32 %v635, %v636
      %v638 = vrot.slane %v637, 4
      %v639 = vadd.f32 %v637, %v638
      %v640 = vrot.slane %v639, 2
      %v641 = vadd.f32 %v639, %v640
      %v642 = vrot.slane %v641, 1
      %v643 = vadd.f32 %v641, %v642
      %v644 = vmul.f32 %v470, %v470
      %v645 = vmul.f32 %v471, %v471
      %v646 = vmul.f32 %v472, %v472
      %v647 = vmul.f32 %v473, %v473
      %v648 = vmul.f32 %v474, %v474
      %v649 = vmul.f32 %v475, %v475
      %v650 = vmul.f32 %v476, %v476
      %v651 = vmul.f32 %v477, %v477
      %v652 = vmul.f32 %v478, %v478
      %v653 = vmul.f32 %v479, %v479
      %v654 = vmul.f32 %v480, %v480
      %v655 = vmul.f32 %v481, %v481
      %v656 = vmul.f32 %v482, %v482
      %v657 = vmul.f32 %v483, %v483
      %v658 = vmul.f32 %v484, %v484
      %v659 = vmul.f32 %v485, %v485
      %v660 = vmul.f32 %v486, %v486
      %v661 = vmul.f32 %v487, %v487
      %v662 = vmul.f32 %v488, %v488
      %v663 = vmul.f32 %v489, %v489
      %v664 = vmul.f32 %v490, %v490
      %v665 = vmul.f32 %v491, %v491
      %v666 = vmul.f32 %v492, %v492
      %v667 = vmul.f32 %v493, %v493
      %v668 = vmul.f32 %v494, %v494
      %v669 = vmul.f32 %v495, %v495
      %v670 = vmul.f32 %v496, %v496
      %v671 = vmul.f32 %v497, %v497
      %v672 = vmul.f32 %v498, %v498
      %v673 = vmul.f32 %v499, %v499
      %v674 = vmul.f32 %v500, %v500
      %v675 = vmul.f32 %v501, %v501
      %v676 = vmul.f32 %v502, %v502
      %v677 = vmul.f32 %v503, %v503
      %v678 = vmul.f32 %v504, %v504
      %v679 = vmul.f32 %v505, %v505
      %v680 = vmul.f32 %v506, %v506
      %v681 = vmul.f32 %v507, %v507
      %v682 = vmul.f32 %v508, %v508
      %v683 = vmul.f32 %v509, %v509
      %v684 = vmul.f32 %v510, %v510
      %v685 = vmul.f32 %v511, %v511
      %v686 = vsel %vm554, %v644, 0.0
      %v687 = vsel %vm554, %v645, 0.0
      %v688 = vadd.f32 %v686, %v687
      %v689 = vsel %vm554, %v646, 0.0
      %v690 = vadd.f32 %v688, %v689
      %v691 = vsel %vm554, %v647, 0.0
      %v692 = vadd.f32 %v690, %v691
      %v693 = vsel %vm554, %v648, 0.0
      %v694 = vadd.f32 %v692, %v693
      %v695 = vsel %vm554, %v649, 0.0
      %v696 = vadd.f32 %v694, %v695
      %v697 = vsel %vm554, %v650, 0.0
      %v698 = vadd.f32 %v696, %v697
      %v699 = vsel %vm554, %v651, 0.0
      %v700 = vadd.f32 %v698, %v699
      %v701 = vsel %vm554, %v652, 0.0
      %v702 = vadd.f32 %v700, %v701
      %v703 = vsel %vm554, %v653, 0.0
      %v704 = vadd.f32 %v702, %v703
      %v705 = vsel %vm554, %v654, 0.0
      %v706 = vadd.f32 %v704, %v705
      %v707 = vsel %vm554, %v655, 0.0
      %v708 = vadd.f32 %v706, %v707
      %v709 = vsel %vm554, %v656, 0.0
      %v710 = vadd.f32 %v708, %v709
      %v711 = vsel %vm554, %v657, 0.0
      %v712 = vadd.f32 %v710, %v711
      %v713 = vsel %vm554, %v658, 0.0
      %v714 = vadd.f32 %v712, %v713
      %v715 = vsel %vm554, %v659, 0.0
      %v716 = vadd.f32 %v714, %v715
      %v717 = vsel %vm554, %v660, 0.0
      %v718 = vadd.f32 %v716, %v717
      %v719 = vsel %vm554, %v661, 0.0
      %v720 = vadd.f32 %v718, %v719
      %v721 = vsel %vm554, %v662, 0.0
      %v722 = vadd.f32 %v720, %v721
      %v723 = vsel %vm554, %v663, 0.0
      %v724 = vadd.f32 %v722, %v723
      %v725 = vsel %vm554, %v664, 0.0
      %v726 = vadd.f32 %v724, %v725
      %v727 = vsel %vm554, %v665, 0.0
      %v728 = vadd.f32 %v726, %v727
      %v729 = vsel %vm554, %v666, 0.0
      %v730 = vadd.f32 %v728, %v729
      %v731 = vsel %vm554, %v667, 0.0
      %v732 = vadd.f32 %v730, %v731
      %v733 = vsel %vm554, %v668, 0.0
      %v734 = vadd.f32 %v732, %v733
      %v735 = vsel %vm554, %v669, 0.0
      %v736 = vadd.f32 %v734, %v735
      %v737 = vsel %vm554, %v670, 0.0
      %v738 = vadd.f32 %v736, %v737
      %v739 = vsel %vm554, %v671, 0.0
      %v740 = vadd.f32 %v738, %v739
      %v741 = vsel %vm554, %v672, 0.0
      %v742 = vadd.f32 %v740, %v741
      %v743 = vsel %vm554, %v673, 0.0
      %v744 = vadd.f32 %v742, %v743
      %v745 = vsel %vm554, %v674, 0.0
      %v746 = vadd.f32 %v744, %v745
      %v747 = vsel %vm554, %v675, 0.0
      %v748 = vadd.f32 %v746, %v747
      %v749 = vsel %vm554, %v676, 0.0
      %v750 = vadd.f32 %v748, %v749
      %v751 = vsel %vm554, %v677, 0.0
      %v752 = vadd.f32 %v750, %v751
      %v753 = vsel %vm554, %v678, 0.0
      %v754 = vadd.f32 %v752, %v753
      %v755 = vsel %vm554, %v679, 0.0
      %v756 = vadd.f32 %v754, %v755
      %v757 = vsel %vm554, %v680, 0.0
      %v758 = vadd.f32 %v756, %v757
      %v759 = vsel %vm554, %v681, 0.0
      %v760 = vadd.f32 %v758, %v759
      %v761 = vsel %vm554, %v682, 0.0
      %v762 = vadd.f32 %v760, %v761
      %v763 = vsel %vm554, %v683, 0.0
      %v764 = vadd.f32 %v762, %v763
      %v765 = vsel %vm554, %v684, 0.0
      %v766 = vadd.f32 %v764, %v765
      %v767 = vsel %vm554, %v685, 0.0
      %v768 = vadd.f32 %v766, %v767
      %v769 = vrot.slane %v768, 4
      %v770 = vadd.f32 %v768, %v769
      %v771 = vrot.slane %v770, 2
      %v772 = vadd.f32 %v770, %v771
      %v773 = vrot.slane %v772, 1
      %v774 = vadd.f32 %v772, %v773
      %v775 = vld [vmem:[%s2] sm:$0xff]
      %v776 = vld [vmem:[%s2 + $0x8] sm:$0xff]
      %v777 = vld [vmem:[%s2 + $0x10] sm:$0xff]
      %v778 = vld [vmem:[%s2 + $0x18] sm:$0xff]
      %v780 = vsel %vm554, %v643, 0
      %782 = vmatpush.msra.mxu0 0.0
      %783 = vmatpush.msra.mxu0 0.0
      %784 = vmatpush.msra.mxu0 0.0
      %785 = vmatpush.msra.mxu0 0.0
      %786 = vmatpush.msra.mxu0 0.0
      %787 = vmatpush.msra.mxu0 0.0
      %788 = vmatpush.msra.mxu0 0.0
      %789 = vmatpush.msra.mxu0 0.0
      %790 = vmatpush.msra.mxu0 0.0
      %791 = vmatpush.msra.mxu0 0.0
      %792 = vmatpush.msra.mxu0 0.0
      %793 = vmatpush.msra.mxu0 0.0
      %794 = vmatpush.msra.mxu0 %v778
      %795 = vmatpush.msra.mxu0 %v777
      %796 = vmatpush.msra.mxu0 %v776
      %797 = vmatpush.msra.mxu0 %v775
      %798 = vmatmul.f32.gmra.mxu0 %v780
      %v799 = vpop.f32.mrf.mxu0
      %v800 = vadd.f32 0.0, %v799
      %801 = vdwg.mxu0
      %v803 = vsel %vm554, %v774, 0
      %805 = vmatpush.msra.mxu0 0.0
      %806 = vmatpush.msra.mxu0 0.0
      %807 = vmatpush.msra.mxu0 0.0
      %808 = vmatpush.msra.mxu0 0.0
      %809 = vmatpush.msra.mxu0 0.0
      %810 = vmatpush.msra.mxu0 0.0
      %811 = vmatpush.msra.mxu0 0.0
      %812 = vmatpush.msra.mxu0 0.0
      %813 = vmatpush.msra.mxu0 0.0
      %814 = vmatpush.msra.mxu0 0.0
      %815 = vmatpush.msra.mxu0 0.0
      %816 = vmatpush.msra.mxu0 0.0
      %817 = vmatpush.msra.mxu0 %v778
      %818 = vmatpush.msra.mxu0 %v777
      %819 = vmatpush.msra.mxu0 %v776
      %820 = vmatpush.msra.mxu0 %v775
      %821 = vmatmul.f32.gmra.mxu0 %v803
      %v822 = vpop.f32.mrf.mxu0
      %v823 = vadd.f32 0.0, %v822
      %824 = vdwg.mxu0
      %v825 = vmul.f32 %v800, %v800
      %v826 = vsub.f32 %v823, %v825
      %v827 = vadd.f32 %v826, 1e-05
      %v828 = vrsqrt.pop %v827
      %v829 = vmul.f32 %v828, %v827
      %v830 = vmul.f32 %v829, %v828
      %v831 = vmul.f32 0.5, %v830
      %v832 = vsub.f32 1.5, %v831
      %v833 = vmul.f32 %v828, %v832
      %vm834 = vweird.f32 %v827
      %vm835 = vweird.f32 %v828
      %vm836 = vmor %vm834, %vm835
      %v837 = vsel %vm836, %v828, %v833
      %v838 = vperm.slane %v800, 0
      %v839 = vsub.f32 %v470, %v838
      %v840 = vsub.f32 %v471, %v838
      %v841 = vsub.f32 %v472, %v838
      %v842 = vsub.f32 %v473, %v838
      %v843 = vsub.f32 %v474, %v838
      %v844 = vsub.f32 %v475, %v838
      %v845 = vsub.f32 %v476, %v838
      %v846 = vsub.f32 %v477, %v838
      %v847 = vsub.f32 %v478, %v838
      %v848 = vsub.f32 %v479, %v838
      %v849 = vsub.f32 %v480, %v838
      %v850 = vsub.f32 %v481, %v838
      %v851 = vsub.f32 %v482, %v838
      %v852 = vsub.f32 %v483, %v838
      %v853 = vsub.f32 %v484, %v838
      %v854 = vsub.f32 %v485, %v838
      %v855 = vsub.f32 %v486, %v838
      %v856 = vsub.f32 %v487, %v838
      %v857 = vsub.f32 %v488, %v838
      %v858 = vsub.f32 %v489, %v838
      %v859 = vsub.f32 %v490, %v838
      %v860 = vsub.f32 %v491, %v838
      %v861 = vsub.f32 %v492, %v838
      %v862 = vsub.f32 %v493, %v838
      %v863 = vsub.f32 %v494, %v838
      %v864 = vsub.f32 %v495, %v838
      %v865 = vsub.f32 %v496, %v838
      %v866 = vsub.f32 %v497, %v838
      %v867 = vsub.f32 %v498, %v838
      %v868 = vsub.f32 %v499, %v838
      %v869 = vsub.f32 %v500, %v838
      %v870 = vsub.f32 %v501, %v838
      %v871 = vsub.f32 %v502, %v838
      %v872 = vsub.f32 %v503, %v838
      %v873 = vsub.f32 %v504, %v838
      %v874 = vsub.f32 %v505, %v838
      %v875 = vsub.f32 %v506, %v838
      %v876 = vsub.f32 %v507, %v838
      %v877 = vsub.f32 %v508, %v838
      %v878 = vsub.f32 %v509, %v838
      %v879 = vsub.f32 %v510, %v838
      %v880 = vsub.f32 %v511, %v838
      %v881 = vperm.slane %v837, 0
      %v882 = vmul.f32 %v839, %v881
      %v883 = vmul.f32 %v840, %v881
      %v884 = vmul.f32 %v841, %v881
      %v885 = vmul.f32 %v842, %v881
      %v886 = vmul.f32 %v843, %v881
      %v887 = vmul.f32 %v844, %v881
      %v888 = vmul.f32 %v845, %v881
      %v889 = vmul.f32 %v846, %v881
      %v890 = vmul.f32 %v847, %v881
      %v891 = vmul.f32 %v848, %v881
      %v892 = vmul.f32 %v849, %v881
      %v893 = vmul.f32 %v850, %v881
      %v894 = vmul.f32 %v851, %v881
      %v895 = vmul.f32 %v852, %v881
      %v896 = vmul.f32 %v853, %v881
      %v897 = vmul.f32 %v854, %v881
      %v898 = vmul.f32 %v855, %v881
      %v899 = vmul.f32 %v856, %v881
      %v900 = vmul.f32 %v857, %v881
      %v901 = vmul.f32 %v858, %v881
      %v902 = vmul.f32 %v859, %v881
      %v903 = vmul.f32 %v860, %v881
      %v904 = vmul.f32 %v861, %v881
      %v905 = vmul.f32 %v862, %v881
      %v906 = vmul.f32 %v863, %v881
      %v907 = vmul.f32 %v864, %v881
      %v908 = vmul.f32 %v865, %v881
      %v909 = vmul.f32 %v866, %v881
      %v910 = vmul.f32 %v867, %v881
      %v911 = vmul.f32 %v868, %v881
      %v912 = vmul.f32 %v869, %v881
      %v913 = vmul.f32 %v870, %v881
      %v914 = vmul.f32 %v871, %v881
      %v915 = vmul.f32 %v872, %v881
      %v916 = vmul.f32 %v873, %v881
      %v917 = vmul.f32 %v874, %v881
      %v918 = vmul.f32 %v875, %v881
      %v919 = vmul.f32 %v876, %v881
      %v920 = vmul.f32 %v877, %v881
      %v921 = vmul.f32 %v878, %v881
      %v922 = vmul.f32 %v879, %v881
      %v923 = vmul.f32 %v880, %v881
      %v924 = vld [vmem:[%s3] sm:$0x1]
      %v926 = vperm.slane %v924, 0
      %v928 = vmul.f32 %v882, %v926
      %v929 = vmul.f32 %v883, %v926
      %v930 = vmul.f32 %v884, %v926
      %v931 = vmul.f32 %v885, %v926
      %v932 = vmul.f32 %v886, %v926
      %v933 = vmul.f32 %v887, %v926
      %v934 = vmul.f32 %v888, %v926
      %v935 = vmul.f32 %v889, %v926
      %v936 = vmul.f32 %v890, %v926
      %v937 = vmul.f32 %v891, %v926
      %v938 = vmul.f32 %v892, %v926
      %v939 = vmul.f32 %v893, %v926
      %v940 = vmul.f32 %v894, %v926
      %v941 = vmul.f32 %v895, %v926
      %v942 = vmul.f32 %v896, %v926
      %v943 = vmul.f32 %v897, %v926
      %v944 = vmul.f32 %v898, %v926
      %v945 = vmul.f32 %v899, %v926
      %v946 = vmul.f32 %v900, %v926
      %v947 = vmul.f32 %v901, %v926
      %v948 = vmul.f32 %v902, %v926
      %v949 = vmul.f32 %v903, %v926
      %v950 = vmul.f32 %v904, %v926
      %v951 = vmul.f32 %v905, %v926
      %v952 = vmul.f32 %v906, %v926
      %v953 = vmul.f32 %v907, %v926
      %v954 = vmul.f32 %v908, %v926
      %v955 = vmul.f32 %v909, %v926
      %v956 = vmul.f32 %v910, %v926
      %v957 = vmul.f32 %v911, %v926
      %v958 = vmul.f32 %v912, %v926
      %v959 = vmul.f32 %v913, %v926
      %v960 = vmul.f32 %v914, %v926
      %v961 = vmul.f32 %v915, %v926
      %v962 = vmul.f32 %v916, %v926
      %v963 = vmul.f32 %v917, %v926
      %v964 = vmul.f32 %v918, %v926
      %v965 = vmul.f32 %v919, %v926
      %v966 = vmul.f32 %v920, %v926
      %v967 = vmul.f32 %v921, %v926
      %v968 = vmul.f32 %v922, %v926
      %v969 = vmul.f32 %v923, %v926
      %v970 = vld [vmem:[%s4] sm:$0x1]
      %v972 = vperm.slane %v970, 0
      %v974 = vadd.f32 %v928, %v972
      %v975 = vadd.f32 %v929, %v972
      %v976 = vadd.f32 %v930, %v972
      %v977 = vadd.f32 %v931, %v972
      %v978 = vadd.f32 %v932, %v972
      %v979 = vadd.f32 %v933, %v972
      %v980 = vadd.f32 %v934, %v972
      %v981 = vadd.f32 %v935, %v972
      %v982 = vadd.f32 %v936, %v972
      %v983 = vadd.f32 %v937, %v972
      %v984 = vadd.f32 %v938, %v972
      %v985 = vadd.f32 %v939, %v972
      %v986 = vadd.f32 %v940, %v972
      %v987 = vadd.f32 %v941, %v972
      %v988 = vadd.f32 %v942, %v972
      %v989 = vadd.f32 %v943, %v972
      %v990 = vadd.f32 %v944, %v972
      %v991 = vadd.f32 %v945, %v972
      %v992 = vadd.f32 %v946, %v972
      %v993 = vadd.f32 %v947, %v972
      %v994 = vadd.f32 %v948, %v972
      %v995 = vadd.f32 %v949, %v972
      %v996 = vadd.f32 %v950, %v972
      %v997 = vadd.f32 %v951, %v972
      %v998 = vadd.f32 %v952, %v972
      %v999 = vadd.f32 %v953, %v972
      %v1000 = vadd.f32 %v954, %v972
      %v1001 = vadd.f32 %v955, %v972
      %v1002 = vadd.f32 %v956, %v972
      %v1003 = vadd.f32 %v957, %v972
      %v1004 = vadd.f32 %v958, %v972
      %v1005 = vadd.f32 %v959, %v972
      %v1006 = vadd.f32 %v960, %v972
      %v1007 = vadd.f32 %v961, %v972
      %v1008 = vadd.f32 %v962, %v972
      %v1009 = vadd.f32 %v963, %v972
      %v1010 = vadd.f32 %v964, %v972
      %v1011 = vadd.f32 %v965, %v972
      %v1012 = vadd.f32 %v966, %v972
      %v1013 = vadd.f32 %v967, %v972
      %v1014 = vadd.f32 %v968, %v972
      %v1015 = vadd.f32 %v969, %v972
      %v1016 = vxor.u32 %v974, 2147483648
      %v1017 = vxor.u32 %v975, 2147483648
      %v1018 = vxor.u32 %v976, 2147483648
      %v1019 = vxor.u32 %v977, 2147483648
      %v1020 = vxor.u32 %v978, 2147483648
      %v1021 = vxor.u32 %v979, 2147483648
      %v1022 = vxor.u32 %v980, 2147483648
      %v1023 = vxor.u32 %v981, 2147483648
      %v1024 = vxor.u32 %v982, 2147483648
      %v1025 = vxor.u32 %v983, 2147483648
      %v1026 = vxor.u32 %v984, 2147483648
      %v1027 = vxor.u32 %v985, 2147483648
      %v1028 = vxor.u32 %v986, 2147483648
      %v1029 = vxor.u32 %v987, 2147483648
      %v1030 = vxor.u32 %v988, 2147483648
      %v1031 = vxor.u32 %v989, 2147483648
      %v1032 = vxor.u32 %v990, 2147483648
      %v1033 = vxor.u32 %v991, 2147483648
      %v1034 = vxor.u32 %v992, 2147483648
      %v1035 = vxor.u32 %v993, 2147483648
      %v1036 = vxor.u32 %v994, 2147483648
      %v1037 = vxor.u32 %v995, 2147483648
      %v1038 = vxor.u32 %v996, 2147483648
      %v1039 = vxor.u32 %v997, 2147483648
      %v1040 = vxor.u32 %v998, 2147483648
      %v1041 = vxor.u32 %v999, 2147483648
      %v1042 = vxor.u32 %v1000, 2147483648
      %v1043 = vxor.u32 %v1001, 2147483648
      %v1044 = vxor.u32 %v1002, 2147483648
      %v1045 = vxor.u32 %v1003, 2147483648
      %v1046 = vxor.u32 %v1004, 2147483648
      %v1047 = vxor.u32 %v1005, 2147483648
      %v1048 = vxor.u32 %v1006, 2147483648
      %v1049 = vxor.u32 %v1007, 2147483648
      %v1050 = vxor.u32 %v1008, 2147483648
      %v1051 = vxor.u32 %v1009, 2147483648
      %v1052 = vxor.u32 %v1010, 2147483648
      %v1053 = vxor.u32 %v1011, 2147483648
      %v1054 = vxor.u32 %v1012, 2147483648
      %v1055 = vxor.u32 %v1013, 2147483648
      %v1056 = vxor.u32 %v1014, 2147483648
      %v1057 = vxor.u32 %v1015, 2147483648
      %v1058 = vmul.f32 %v1016, 1.442695
      %v1059 = vpow.pop %v1058
      %v1060 = vmul.f32 %v1017, 1.442695
      %v1061 = vpow.pop %v1060
      %v1062 = vmul.f32 %v1018, 1.442695
      %v1063 = vpow.pop %v1062
      %v1064 = vmul.f32 %v1019, 1.442695
      %v1065 = vpow.pop %v1064
      %v1066 = vmul.f32 %v1020, 1.442695
      %v1067 = vpow.pop %v1066
      %v1068 = vmul.f32 %v1021, 1.442695
      %v1069 = vpow.pop %v1068
      %v1070 = vmul.f32 %v1022, 1.442695
      %v1071 = vpow.pop %v1070
      %v1072 = vmul.f32 %v1023, 1.442695
      %v1073 = vpow.pop %v1072
      %v1074 = vmul.f32 %v1024, 1.442695
      %v1075 = vpow.pop %v1074
      %v1076 = vmul.f32 %v1025, 1.442695
      %v1077 = vpow.pop %v1076
      %v1078 = vmul.f32 %v1026, 1.442695
      %v1079 = vpow.pop %v1078
      %v1080 = vmul.f32 %v1027, 1.442695
      %v1081 = vpow.pop %v1080
      %v1082 = vmul.f32 %v1028, 1.442695
      %v1083 = vpow.pop %v1082
      %v1084 = vmul.f32 %v1029, 1.442695
      %v1085 = vpow.pop %v1084
      %v1086 = vmul.f32 %v1030, 1.442695
      %v1087 = vpow.pop %v1086
      %v1088 = vmul.f32 %v1031, 1.442695
      %v1089 = vpow.pop %v1088
      %v1090 = vmul.f32 %v1032, 1.442695
      %v1091 = vpow.pop %v1090
      %v1092 = vmul.f32 %v1033, 1.442695
      %v1093 = vpow.pop %v1092
      %v1094 = vmul.f32 %v1034, 1.442695
      %v1095 = vpow.pop %v1094
      %v1096 = vmul.f32 %v1035, 1.442695
      %v1097 = vpow.pop %v1096
      %v1098 = vmul.f32 %v1036, 1.442695
      %v1099 = vpow.pop %v1098
      %v1100 = vmul.f32 %v1037, 1.442695
      %v1101 = vpow.pop %v1100
      %v1102 = vmul.f32 %v1038, 1.442695
      %v1103 = vpow.pop %v1102
      %v1104 = vmul.f32 %v1039, 1.442695
      %v1105 = vpow.pop %v1104
      %v1106 = vmul.f32 %v1040, 1.442695
      %v1107 = vpow.pop %v1106
      %v1108 = vmul.f32 %v1041, 1.442695
      %v1109 = vpow.pop %v1108
      %v1110 = vmul.f32 %v1042, 1.442695
      %v1111 = vpow.pop %v1110
      %v1112 = vmul.f32 %v1043, 1.442695
      %v1113 = vpow.pop %v1112
      %v1114 = vmul.f32 %v1044, 1.442695
      %v1115 = vpow.pop %v1114
      %v1116 = vmul.f32 %v1045, 1.442695
      %v1117 = vpow.pop %v1116
      %v1118 = vmul.f32 %v1046, 1.442695
      %v1119 = vpow.pop %v1118
      %v1120 = vmul.f32 %v1047, 1.442695
      %v1121 = vpow.pop %v1120
      %v1122 = vmul.f32 %v1048, 1.442695
      %v1123 = vpow.pop %v1122
      %v1124 = vmul.f32 %v1049, 1.442695
      %v1125 = vpow.pop %v1124
      %v1126 = vmul.f32 %v1050, 1.442695
      %v1127 = vpow.pop %v1126
      %v1128 = vmul.f32 %v1051, 1.442695
      %v1129 = vpow.pop %v1128
      %v1130 = vmul.f32 %v1052, 1.442695
      %v1131 = vpow.pop %v1130
      %v1132 = vmul.f32 %v1053, 1.442695
      %v1133 = vpow.pop %v1132
      %v1134 = vmul.f32 %v1054, 1.442695
      %v1135 = vpow.pop %v1134
      %v1136 = vmul.f32 %v1055, 1.442695
      %v1137 = vpow.pop %v1136
      %v1138 = vmul.f32 %v1056, 1.442695
      %v1139 = vpow.pop %v1138
      %v1140 = vmul.f32 %v1057, 1.442695
      %v1141 = vpow.pop %v1140
      %v1142 = vadd.f32 %v1059, 1.0
      %v1143 = vadd.f32 %v1061, 1.0
      %v1144 = vadd.f32 %v1063, 1.0
      %v1145 = vadd.f32 %v1065, 1.0
      %v1146 = vadd.f32 %v1067, 1.0
      %v1147 = vadd.f32 %v1069, 1.0
      %v1148 = vadd.f32 %v1071, 1.0
      %v1149 = vadd.f32 %v1073, 1.0
      %v1150 = vadd.f32 %v1075, 1.0
      %v1151 = vadd.f32 %v1077, 1.0
      %v1152 = vadd.f32 %v1079, 1.0
      %v1153 = vadd.f32 %v1081, 1.0
      %v1154 = vadd.f32 %v1083, 1.0
      %v1155 = vadd.f32 %v1085, 1.0
      %v1156 = vadd.f32 %v1087, 1.0
      %v1157 = vadd.f32 %v1089, 1.0
      %v1158 = vadd.f32 %v1091, 1.0
      %v1159 = vadd.f32 %v1093, 1.0
      %v1160 = vadd.f32 %v1095, 1.0
      %v1161 = vadd.f32 %v1097, 1.0
      %v1162 = vadd.f32 %v1099, 1.0
      %v1163 = vadd.f32 %v1101, 1.0
      %v1164 = vadd.f32 %v1103, 1.0
      %v1165 = vadd.f32 %v1105, 1.0
      %v1166 = vadd.f32 %v1107, 1.0
      %v1167 = vadd.f32 %v1109, 1.0
      %v1168 = vadd.f32 %v1111, 1.0
      %v1169 = vadd.f32 %v1113, 1.0
      %v1170 = vadd.f32 %v1115, 1.0
      %v1171 = vadd.f32 %v1117, 1.0
      %v1172 = vadd.f32 %v1119, 1.0
      %v1173 = vadd.f32 %v1121, 1.0
      %v1174 = vadd.f32 %v1123, 1.0
      %v1175 = vadd.f32 %v1125, 1.0
      %v1176 = vadd.f32 %v1127, 1.0
      %v1177 = vadd.f32 %v1129, 1.0
      %v1178 = vadd.f32 %v1131, 1.0
      %v1179 = vadd.f32 %v1133, 1.0
      %v1180 = vadd.f32 %v1135, 1.0
      %v1181 = vadd.f32 %v1137, 1.0
      %v1182 = vadd.f32 %v1139, 1.0
      %v1183 = vadd.f32 %v1141, 1.0
      %v1184 = vrcp.pop %v1142
      %v1185 = vmul.f32 %v1142, %v1184
      %v1186 = vsub.f32 1.0, %v1185
      %v1187 = vmul.f32 %v1184, %v1186
      %v1188 = vadd.f32 %v1184, %v1187
      %vm1189 = vweird.f32 %v1142
      %vm1190 = vweird.f32 %v1184
      %vm1191 = vmor %vm1189, %vm1190
      %v1192 = vsel %vm1191, %v1184, %v1188
      %v1193 = vand.u32 2147483647, %v1142
      %vm1194 = vcmp.eq.f32.partialorder %v1193, 8.507059e+37
      %v1195 = vand.u32 %v1142, 2147483648
      %v1196 = vor.u32 1.1754944e-38, %v1195
      %v1197 = vsel %vm1194, %v1196, %v1192
      %v1198 = vmul.f32 1.0, %v1197
      %v1199 = vrcp.pop %v1143
      %v1200 = vmul.f32 %v1143, %v1199
      %v1201 = vsub.f32 1.0, %v1200
      %v1202 = vmul.f32 %v1199, %v1201
      %v1203 = vadd.f32 %v1199, %v1202
      %vm1204 = vweird.f32 %v1143
      %vm1205 = vweird.f32 %v1199
      %vm1206 = vmor %vm1204, %vm1205
      %v1207 = vsel %vm1206, %v1199, %v1203
      %v1208 = vand.u32 2147483647, %v1143
      %vm1209 = vcmp.eq.f32.partialorder %v1208, 8.507059e+37
      %v1210 = vand.u32 %v1143, 2147483648
      %v1211 = vor.u32 1.1754944e-38, %v1210
      %v1212 = vsel %vm1209, %v1211, %v1207
      %v1213 = vmul.f32 1.0, %v1212
      %v1214 = vrcp.pop %v1144
      %v1215 = vmul.f32 %v1144, %v1214
      %v1216 = vsub.f32 1.0, %v1215
      %v1217 = vmul.f32 %v1214, %v1216
      %v1218 = vadd.f32 %v1214, %v1217
      %vm1219 = vweird.f32 %v1144
      %vm1220 = vweird.f32 %v1214
      %vm1221 = vmor %vm1219, %vm1220
      %v1222 = vsel %vm1221, %v1214, %v1218
      %v1223 = vand.u32 2147483647, %v1144
      %vm1224 = vcmp.eq.f32.partialorder %v1223, 8.507059e+37
      %v1225 = vand.u32 %v1144, 2147483648
      %v1226 = vor.u32 1.1754944e-38, %v1225
      %v1227 = vsel %vm1224, %v1226, %v1222
      %v1228 = vmul.f32 1.0, %v1227
      %v1229 = vrcp.pop %v1145
      %v1230 = vmul.f32 %v1145, %v1229
      %v1231 = vsub.f32 1.0, %v1230
      %v1232 = vmul.f32 %v1229, %v1231
      %v1233 = vadd.f32 %v1229, %v1232
      %vm1234 = vweird.f32 %v1145
      %vm1235 = vweird.f32 %v1229
      %vm1236 = vmor %vm1234, %vm1235
      %v1237 = vsel %vm1236, %v1229, %v1233
      %v1238 = vand.u32 2147483647, %v1145
      %vm1239 = vcmp.eq.f32.partialorder %v1238, 8.507059e+37
      %v1240 = vand.u32 %v1145, 2147483648
      %v1241 = vor.u32 1.1754944e-38, %v1240
      %v1242 = vsel %vm1239, %v1241, %v1237
      %v1243 = vmul.f32 1.0, %v1242
      %v1244 = vrcp.pop %v1146
      %v1245 = vmul.f32 %v1146, %v1244
      %v1246 = vsub.f32 1.0, %v1245
      %v1247 = vmul.f32 %v1244, %v1246
      %v1248 = vadd.f32 %v1244, %v1247
      %vm1249 = vweird.f32 %v1146
      %vm1250 = vweird.f32 %v1244
      %vm1251 = vmor %vm1249, %vm1250
      %v1252 = vsel %vm1251, %v1244, %v1248
      %v1253 = vand.u32 2147483647, %v1146
      %vm1254 = vcmp.eq.f32.partialorder %v1253, 8.507059e+37
      %v1255 = vand.u32 %v1146, 2147483648
      %v1256 = vor.u32 1.1754944e-38, %v1255
      %v1257 = vsel %vm1254, %v1256, %v1252
      %v1258 = vmul.f32 1.0, %v1257
      %v1259 = vrcp.pop %v1147
      %v1260 = vmul.f32 %v1147, %v1259
      %v1261 = vsub.f32 1.0, %v1260
      %v1262 = vmul.f32 %v1259, %v1261
      %v1263 = vadd.f32 %v1259, %v1262
      %vm1264 = vweird.f32 %v1147
      %vm1265 = vweird.f32 %v1259
      %vm1266 = vmor %vm1264, %vm1265
      %v1267 = vsel %vm1266, %v1259, %v1263
      %v1268 = vand.u32 2147483647, %v1147
      %vm1269 = vcmp.eq.f32.partialorder %v1268, 8.507059e+37
      %v1270 = vand.u32 %v1147, 2147483648
      %v1271 = vor.u32 1.1754944e-38, %v1270
      %v1272 = vsel %vm1269, %v1271, %v1267
      %v1273 = vmul.f32 1.0, %v1272
      %v1274 = vrcp.pop %v1148
      %v1275 = vmul.f32 %v1148, %v1274
      %v1276 = vsub.f32 1.0, %v1275
      %v1277 = vmul.f32 %v1274, %v1276
      %v1278 = vadd.f32 %v1274, %v1277
      %vm1279 = vweird.f32 %v1148
      %vm1280 = vweird.f32 %v1274
      %vm1281 = vmor %vm1279, %vm1280
      %v1282 = vsel %vm1281, %v1274, %v1278
      %v1283 = vand.u32 2147483647, %v1148
      %vm1284 = vcmp.eq.f32.partialorder %v1283, 8.507059e+37
      %v1285 = vand.u32 %v1148, 2147483648
      %v1286 = vor.u32 1.1754944e-38, %v1285
      %v1287 = vsel %vm1284, %v1286, %v1282
      %v1288 = vmul.f32 1.0, %v1287
      %v1289 = vrcp.pop %v1149
      %v1290 = vmul.f32 %v1149, %v1289
      %v1291 = vsub.f32 1.0, %v1290
      %v1292 = vmul.f32 %v1289, %v1291
      %v1293 = vadd.f32 %v1289, %v1292
      %vm1294 = vweird.f32 %v1149
      %vm1295 = vweird.f32 %v1289
      %vm1296 = vmor %vm1294, %vm1295
      %v1297 = vsel %vm1296, %v1289, %v1293
      %v1298 = vand.u32 2147483647, %v1149
      %vm1299 = vcmp.eq.f32.partialorder %v1298, 8.507059e+37
      %v1300 = vand.u32 %v1149, 2147483648
      %v1301 = vor.u32 1.1754944e-38, %v1300
      %v1302 = vsel %vm1299, %v1301, %v1297
      %v1303 = vmul.f32 1.0, %v1302
      %v1304 = vrcp.pop %v1150
      %v1305 = vmul.f32 %v1150, %v1304
      %v1306 = vsub.f32 1.0, %v1305
      %v1307 = vmul.f32 %v1304, %v1306
      %v1308 = vadd.f32 %v1304, %v1307
      %vm1309 = vweird.f32 %v1150
      %vm1310 = vweird.f32 %v1304
      %vm1311 = vmor %vm1309, %vm1310
      %v1312 = vsel %vm1311, %v1304, %v1308
      %v1313 = vand.u32 2147483647, %v1150
      %vm1314 = vcmp.eq.f32.partialorder %v1313, 8.507059e+37
      %v1315 = vand.u32 %v1150, 2147483648
      %v1316 = vor.u32 1.1754944e-38, %v1315
      %v1317 = vsel %vm1314, %v1316, %v1312
      %v1318 = vmul.f32 1.0, %v1317
      %v1319 = vrcp.pop %v1151
      %v1320 = vmul.f32 %v1151, %v1319
      %v1321 = vsub.f32 1.0, %v1320
      %v1322 = vmul.f32 %v1319, %v1321
      %v1323 = vadd.f32 %v1319, %v1322
      %vm1324 = vweird.f32 %v1151
      %vm1325 = vweird.f32 %v1319
      %vm1326 = vmor %vm1324, %vm1325
      %v1327 = vsel %vm1326, %v1319, %v1323
      %v1328 = vand.u32 2147483647, %v1151
      %vm1329 = vcmp.eq.f32.partialorder %v1328, 8.507059e+37
      %v1330 = vand.u32 %v1151, 2147483648
      %v1331 = vor.u32 1.1754944e-38, %v1330
      %v1332 = vsel %vm1329, %v1331, %v1327
      %v1333 = vmul.f32 1.0, %v1332
      %v1334 = vrcp.pop %v1152
      %v1335 = vmul.f32 %v1152, %v1334
      %v1336 = vsub.f32 1.0, %v1335
      %v1337 = vmul.f32 %v1334, %v1336
      %v1338 = vadd.f32 %v1334, %v1337
      %vm1339 = vweird.f32 %v1152
      %vm1340 = vweird.f32 %v1334
      %vm1341 = vmor %vm1339, %vm1340
      %v1342 = vsel %vm1341, %v1334, %v1338
      %v1343 = vand.u32 2147483647, %v1152
      %vm1344 = vcmp.eq.f32.partialorder %v1343, 8.507059e+37
      %v1345 = vand.u32 %v1152, 2147483648
      %v1346 = vor.u32 1.1754944e-38, %v1345
      %v1347 = vsel %vm1344, %v1346, %v1342
      %v1348 = vmul.f32 1.0, %v1347
      %v1349 = vrcp.pop %v1153
      %v1350 = vmul.f32 %v1153, %v1349
      %v1351 = vsub.f32 1.0, %v1350
      %v1352 = vmul.f32 %v1349, %v1351
      %v1353 = vadd.f32 %v1349, %v1352
      %vm1354 = vweird.f32 %v1153
      %vm1355 = vweird.f32 %v1349
      %vm1356 = vmor %vm1354, %vm1355
      %v1357 = vsel %vm1356, %v1349, %v1353
      %v1358 = vand.u32 2147483647, %v1153
      %vm1359 = vcmp.eq.f32.partialorder %v1358, 8.507059e+37
      %v1360 = vand.u32 %v1153, 2147483648
      %v1361 = vor.u32 1.1754944e-38, %v1360
      %v1362 = vsel %vm1359, %v1361, %v1357
      %v1363 = vmul.f32 1.0, %v1362
      %v1364 = vrcp.pop %v1154
      %v1365 = vmul.f32 %v1154, %v1364
      %v1366 = vsub.f32 1.0, %v1365
      %v1367 = vmul.f32 %v1364, %v1366
      %v1368 = vadd.f32 %v1364, %v1367
      %vm1369 = vweird.f32 %v1154
      %vm1370 = vweird.f32 %v1364
      %vm1371 = vmor %vm1369, %vm1370
      %v1372 = vsel %vm1371, %v1364, %v1368
      %v1373 = vand.u32 2147483647, %v1154
      %vm1374 = vcmp.eq.f32.partialorder %v1373, 8.507059e+37
      %v1375 = vand.u32 %v1154, 2147483648
      %v1376 = vor.u32 1.1754944e-38, %v1375
      %v1377 = vsel %vm1374, %v1376, %v1372
      %v1378 = vmul.f32 1.0, %v1377
      %v1379 = vrcp.pop %v1155
      %v1380 = vmul.f32 %v1155, %v1379
      %v1381 = vsub.f32 1.0, %v1380
      %v1382 = vmul.f32 %v1379, %v1381
      %v1383 = vadd.f32 %v1379, %v1382
      %vm1384 = vweird.f32 %v1155
      %vm1385 = vweird.f32 %v1379
      %vm1386 = vmor %vm1384, %vm1385
      %v1387 = vsel %vm1386, %v1379, %v1383
      %v1388 = vand.u32 2147483647, %v1155
      %vm1389 = vcmp.eq.f32.partialorder %v1388, 8.507059e+37
      %v1390 = vand.u32 %v1155, 2147483648
      %v1391 = vor.u32 1.1754944e-38, %v1390
      %v1392 = vsel %vm1389, %v1391, %v1387
      %v1393 = vmul.f32 1.0, %v1392
      %v1394 = vrcp.pop %v1156
      %v1395 = vmul.f32 %v1156, %v1394
      %v1396 = vsub.f32 1.0, %v1395
      %v1397 = vmul.f32 %v1394, %v1396
      %v1398 = vadd.f32 %v1394, %v1397
      %vm1399 = vweird.f32 %v1156
      %vm1400 = vweird.f32 %v1394
      %vm1401 = vmor %vm1399, %vm1400
      %v1402 = vsel %vm1401, %v1394, %v1398
      %v1403 = vand.u32 2147483647, %v1156
      %vm1404 = vcmp.eq.f32.partialorder %v1403, 8.507059e+37
      %v1405 = vand.u32 %v1156, 2147483648
      %v1406 = vor.u32 1.1754944e-38, %v1405
      %v1407 = vsel %vm1404, %v1406, %v1402
      %v1408 = vmul.f32 1.0, %v1407
      %v1409 = vrcp.pop %v1157
      %v1410 = vmul.f32 %v1157, %v1409
      %v1411 = vsub.f32 1.0, %v1410
      %v1412 = vmul.f32 %v1409, %v1411
      %v1413 = vadd.f32 %v1409, %v1412
      %vm1414 = vweird.f32 %v1157
      %vm1415 = vweird.f32 %v1409
      %vm1416 = vmor %vm1414, %vm1415
      %v1417 = vsel %vm1416, %v1409, %v1413
      %v1418 = vand.u32 2147483647, %v1157
      %vm1419 = vcmp.eq.f32.partialorder %v1418, 8.507059e+37
      %v1420 = vand.u32 %v1157, 2147483648
      %v1421 = vor.u32 1.1754944e-38, %v1420
      %v1422 = vsel %vm1419, %v1421, %v1417
      %v1423 = vmul.f32 1.0, %v1422
      %v1424 = vrcp.pop %v1158
      %v1425 = vmul.f32 %v1158, %v1424
      %v1426 = vsub.f32 1.0, %v1425
      %v1427 = vmul.f32 %v1424, %v1426
      %v1428 = vadd.f32 %v1424, %v1427
      %vm1429 = vweird.f32 %v1158
      %vm1430 = vweird.f32 %v1424
      %vm1431 = vmor %vm1429, %vm1430
      %v1432 = vsel %vm1431, %v1424, %v1428
      %v1433 = vand.u32 2147483647, %v1158
      %vm1434 = vcmp.eq.f32.partialorder %v1433, 8.507059e+37
      %v1435 = vand.u32 %v1158, 2147483648
      %v1436 = vor.u32 1.1754944e-38, %v1435
      %v1437 = vsel %vm1434, %v1436, %v1432
      %v1438 = vmul.f32 1.0, %v1437
      %v1439 = vrcp.pop %v1159
      %v1440 = vmul.f32 %v1159, %v1439
      %v1441 = vsub.f32 1.0, %v1440
      %v1442 = vmul.f32 %v1439, %v1441
      %v1443 = vadd.f32 %v1439, %v1442
      %vm1444 = vweird.f32 %v1159
      %vm1445 = vweird.f32 %v1439
      %vm1446 = vmor %vm1444, %vm1445
      %v1447 = vsel %vm1446, %v1439, %v1443
      %v1448 = vand.u32 2147483647, %v1159
      %vm1449 = vcmp.eq.f32.partialorder %v1448, 8.507059e+37
      %v1450 = vand.u32 %v1159, 2147483648
      %v1451 = vor.u32 1.1754944e-38, %v1450
      %v1452 = vsel %vm1449, %v1451, %v1447
      %v1453 = vmul.f32 1.0, %v1452
      %v1454 = vrcp.pop %v1160
      %v1455 = vmul.f32 %v1160, %v1454
      %v1456 = vsub.f32 1.0, %v1455
      %v1457 = vmul.f32 %v1454, %v1456
      %v1458 = vadd.f32 %v1454, %v1457
      %vm1459 = vweird.f32 %v1160
      %vm1460 = vweird.f32 %v1454
      %vm1461 = vmor %vm1459, %vm1460
      %v1462 = vsel %vm1461, %v1454, %v1458
      %v1463 = vand.u32 2147483647, %v1160
      %vm1464 = vcmp.eq.f32.partialorder %v1463, 8.507059e+37
      %v1465 = vand.u32 %v1160, 2147483648
      %v1466 = vor.u32 1.1754944e-38, %v1465
      %v1467 = vsel %vm1464, %v1466, %v1462
      %v1468 = vmul.f32 1.0, %v1467
      %v1469 = vrcp.pop %v1161
      %v1470 = vmul.f32 %v1161, %v1469
      %v1471 = vsub.f32 1.0, %v1470
      %v1472 = vmul.f32 %v1469, %v1471
      %v1473 = vadd.f32 %v1469, %v1472
      %vm1474 = vweird.f32 %v1161
      %vm1475 = vweird.f32 %v1469
      %vm1476 = vmor %vm1474, %vm1475
      %v1477 = vsel %vm1476, %v1469, %v1473
      %v1478 = vand.u32 2147483647, %v1161
      %vm1479 = vcmp.eq.f32.partialorder %v1478, 8.507059e+37
      %v1480 = vand.u32 %v1161, 2147483648
      %v1481 = vor.u32 1.1754944e-38, %v1480
      %v1482 = vsel %vm1479, %v1481, %v1477
      %v1483 = vmul.f32 1.0, %v1482
      %v1484 = vrcp.pop %v1162
      %v1485 = vmul.f32 %v1162, %v1484
      %v1486 = vsub.f32 1.0, %v1485
      %v1487 = vmul.f32 %v1484, %v1486
      %v1488 = vadd.f32 %v1484, %v1487
      %vm1489 = vweird.f32 %v1162
      %vm1490 = vweird.f32 %v1484
      %vm1491 = vmor %vm1489, %vm1490
      %v1492 = vsel %vm1491, %v1484, %v1488
      %v1493 = vand.u32 2147483647, %v1162
      %vm1494 = vcmp.eq.f32.partialorder %v1493, 8.507059e+37
      %v1495 = vand.u32 %v1162, 2147483648
      %v1496 = vor.u32 1.1754944e-38, %v1495
      %v1497 = vsel %vm1494, %v1496, %v1492
      %v1498 = vmul.f32 1.0, %v1497
      %v1499 = vrcp.pop %v1163
      %v1500 = vmul.f32 %v1163, %v1499
      %v1501 = vsub.f32 1.0, %v1500
      %v1502 = vmul.f32 %v1499, %v1501
      %v1503 = vadd.f32 %v1499, %v1502
      %vm1504 = vweird.f32 %v1163
      %vm1505 = vweird.f32 %v1499
      %vm1506 = vmor %vm1504, %vm1505
      %v1507 = vsel %vm1506, %v1499, %v1503
      %v1508 = vand.u32 2147483647, %v1163
      %vm1509 = vcmp.eq.f32.partialorder %v1508, 8.507059e+37
      %v1510 = vand.u32 %v1163, 2147483648
      %v1511 = vor.u32 1.1754944e-38, %v1510
      %v1512 = vsel %vm1509, %v1511, %v1507
      %v1513 = vmul.f32 1.0, %v1512
      %v1514 = vrcp.pop %v1164
      %v1515 = vmul.f32 %v1164, %v1514
      %v1516 = vsub.f32 1.0, %v1515
      %v1517 = vmul.f32 %v1514, %v1516
      %v1518 = vadd.f32 %v1514, %v1517
      %vm1519 = vweird.f32 %v1164
      %vm1520 = vweird.f32 %v1514
      %vm1521 = vmor %vm1519, %vm1520
      %v1522 = vsel %vm1521, %v1514, %v1518
      %v1523 = vand.u32 2147483647, %v1164
      %vm1524 = vcmp.eq.f32.partialorder %v1523, 8.507059e+37
      %v1525 = vand.u32 %v1164, 2147483648
      %v1526 = vor.u32 1.1754944e-38, %v1525
      %v1527 = vsel %vm1524, %v1526, %v1522
      %v1528 = vmul.f32 1.0, %v1527
      %v1529 = vrcp.pop %v1165
      %v1530 = vmul.f32 %v1165, %v1529
      %v1531 = vsub.f32 1.0, %v1530
      %v1532 = vmul.f32 %v1529, %v1531
      %v1533 = vadd.f32 %v1529, %v1532
      %vm1534 = vweird.f32 %v1165
      %vm1535 = vweird.f32 %v1529
      %vm1536 = vmor %vm1534, %vm1535
      %v1537 = vsel %vm1536, %v1529, %v1533
      %v1538 = vand.u32 2147483647, %v1165
      %vm1539 = vcmp.eq.f32.partialorder %v1538, 8.507059e+37
      %v1540 = vand.u32 %v1165, 2147483648
      %v1541 = vor.u32 1.1754944e-38, %v1540
      %v1542 = vsel %vm1539, %v1541, %v1537
      %v1543 = vmul.f32 1.0, %v1542
      %v1544 = vrcp.pop %v1166
      %v1545 = vmul.f32 %v1166, %v1544
      %v1546 = vsub.f32 1.0, %v1545
      %v1547 = vmul.f32 %v1544, %v1546
      %v1548 = vadd.f32 %v1544, %v1547
      %vm1549 = vweird.f32 %v1166
      %vm1550 = vweird.f32 %v1544
      %vm1551 = vmor %vm1549, %vm1550
      %v1552 = vsel %vm1551, %v1544, %v1548
      %v1553 = vand.u32 2147483647, %v1166
      %vm1554 = vcmp.eq.f32.partialorder %v1553, 8.507059e+37
      %v1555 = vand.u32 %v1166, 2147483648
      %v1556 = vor.u32 1.1754944e-38, %v1555
      %v1557 = vsel %vm1554, %v1556, %v1552
      %v1558 = vmul.f32 1.0, %v1557
      %v1559 = vrcp.pop %v1167
      %v1560 = vmul.f32 %v1167, %v1559
      %v1561 = vsub.f32 1.0, %v1560
      %v1562 = vmul.f32 %v1559, %v1561
      %v1563 = vadd.f32 %v1559, %v1562
      %vm1564 = vweird.f32 %v1167
      %vm1565 = vweird.f32 %v1559
      %vm1566 = vmor %vm1564, %vm1565
      %v1567 = vsel %vm1566, %v1559, %v1563
      %v1568 = vand.u32 2147483647, %v1167
      %vm1569 = vcmp.eq.f32.partialorder %v1568, 8.507059e+37
      %v1570 = vand.u32 %v1167, 2147483648
      %v1571 = vor.u32 1.1754944e-38, %v1570
      %v1572 = vsel %vm1569, %v1571, %v1567
      %v1573 = vmul.f32 1.0, %v1572
      %v1574 = vrcp.pop %v1168
      %v1575 = vmul.f32 %v1168, %v1574
      %v1576 = vsub.f32 1.0, %v1575
      %v1577 = vmul.f32 %v1574, %v1576
      %v1578 = vadd.f32 %v1574, %v1577
      %vm1579 = vweird.f32 %v1168
      %vm1580 = vweird.f32 %v1574
      %vm1581 = vmor %vm1579, %vm1580
      %v1582 = vsel %vm1581, %v1574, %v1578
      %v1583 = vand.u32 2147483647, %v1168
      %vm1584 = vcmp.eq.f32.partialorder %v1583, 8.507059e+37
      %v1585 = vand.u32 %v1168, 2147483648
      %v1586 = vor.u32 1.1754944e-38, %v1585
      %v1587 = vsel %vm1584, %v1586, %v1582
      %v1588 = vmul.f32 1.0, %v1587
      %v1589 = vrcp.pop %v1169
      %v1590 = vmul.f32 %v1169, %v1589
      %v1591 = vsub.f32 1.0, %v1590
      %v1592 = vmul.f32 %v1589, %v1591
      %v1593 = vadd.f32 %v1589, %v1592
      %vm1594 = vweird.f32 %v1169
      %vm1595 = vweird.f32 %v1589
      %vm1596 = vmor %vm1594, %vm1595
      %v1597 = vsel %vm1596, %v1589, %v1593
      %v1598 = vand.u32 2147483647, %v1169
      %vm1599 = vcmp.eq.f32.partialorder %v1598, 8.507059e+37
      %v1600 = vand.u32 %v1169, 2147483648
      %v1601 = vor.u32 1.1754944e-38, %v1600
      %v1602 = vsel %vm1599, %v1601, %v1597
      %v1603 = vmul.f32 1.0, %v1602
      %v1604 = vrcp.pop %v1170
      %v1605 = vmul.f32 %v1170, %v1604
      %v1606 = vsub.f32 1.0, %v1605
      %v1607 = vmul.f32 %v1604, %v1606
      %v1608 = vadd.f32 %v1604, %v1607
      %vm1609 = vweird.f32 %v1170
      %vm1610 = vweird.f32 %v1604
      %vm1611 = vmor %vm1609, %vm1610
      %v1612 = vsel %vm1611, %v1604, %v1608
      %v1613 = vand.u32 2147483647, %v1170
      %vm1614 = vcmp.eq.f32.partialorder %v1613, 8.507059e+37
      %v1615 = vand.u32 %v1170, 2147483648
      %v1616 = vor.u32 1.1754944e-38, %v1615
      %v1617 = vsel %vm1614, %v1616, %v1612
      %v1618 = vmul.f32 1.0, %v1617
      %v1619 = vrcp.pop %v1171
      %v1620 = vmul.f32 %v1171, %v1619
      %v1621 = vsub.f32 1.0, %v1620
      %v1622 = vmul.f32 %v1619, %v1621
      %v1623 = vadd.f32 %v1619, %v1622
      %vm1624 = vweird.f32 %v1171
      %vm1625 = vweird.f32 %v1619
      %vm1626 = vmor %vm1624, %vm1625
      %v1627 = vsel %vm1626, %v1619, %v1623
      %v1628 = vand.u32 2147483647, %v1171
      %vm1629 = vcmp.eq.f32.partialorder %v1628, 8.507059e+37
      %v1630 = vand.u32 %v1171, 2147483648
      %v1631 = vor.u32 1.1754944e-38, %v1630
      %v1632 = vsel %vm1629, %v1631, %v1627
      %v1633 = vmul.f32 1.0, %v1632
      %v1634 = vrcp.pop %v1172
      %v1635 = vmul.f32 %v1172, %v1634
      %v1636 = vsub.f32 1.0, %v1635
      %v1637 = vmul.f32 %v1634, %v1636
      %v1638 = vadd.f32 %v1634, %v1637
      %vm1639 = vweird.f32 %v1172
      %vm1640 = vweird.f32 %v1634
      %vm1641 = vmor %vm1639, %vm1640
      %v1642 = vsel %vm1641, %v1634, %v1638
      %v1643 = vand.u32 2147483647, %v1172
      %vm1644 = vcmp.eq.f32.partialorder %v1643, 8.507059e+37
      %v1645 = vand.u32 %v1172, 2147483648
      %v1646 = vor.u32 1.1754944e-38, %v1645
      %v1647 = vsel %vm1644, %v1646, %v1642
      %v1648 = vmul.f32 1.0, %v1647
      %v1649 = vrcp.pop %v1173
      %v1650 = vmul.f32 %v1173, %v1649
      %v1651 = vsub.f32 1.0, %v1650
      %v1652 = vmul.f32 %v1649, %v1651
      %v1653 = vadd.f32 %v1649, %v1652
      %vm1654 = vweird.f32 %v1173
      %vm1655 = vweird.f32 %v1649
      %vm1656 = vmor %vm1654, %vm1655
      %v1657 = vsel %vm1656, %v1649, %v1653
      %v1658 = vand.u32 2147483647, %v1173
      %vm1659 = vcmp.eq.f32.partialorder %v1658, 8.507059e+37
      %v1660 = vand.u32 %v1173, 2147483648
      %v1661 = vor.u32 1.1754944e-38, %v1660
      %v1662 = vsel %vm1659, %v1661, %v1657
      %v1663 = vmul.f32 1.0, %v1662
      %v1664 = vrcp.pop %v1174
      %v1665 = vmul.f32 %v1174, %v1664
      %v1666 = vsub.f32 1.0, %v1665
      %v1667 = vmul.f32 %v1664, %v1666
      %v1668 = vadd.f32 %v1664, %v1667
      %vm1669 = vweird.f32 %v1174
      %vm1670 = vweird.f32 %v1664
      %vm1671 = vmor %vm1669, %vm1670
      %v1672 = vsel %vm1671, %v1664, %v1668
      %v1673 = vand.u32 2147483647, %v1174
      %vm1674 = vcmp.eq.f32.partialorder %v1673, 8.507059e+37
      %v1675 = vand.u32 %v1174, 2147483648
      %v1676 = vor.u32 1.1754944e-38, %v1675
      %v1677 = vsel %vm1674, %v1676, %v1672
      %v1678 = vmul.f32 1.0, %v1677
      %v1679 = vrcp.pop %v1175
      %v1680 = vmul.f32 %v1175, %v1679
      %v1681 = vsub.f32 1.0, %v1680
      %v1682 = vmul.f32 %v1679, %v1681
      %v1683 = vadd.f32 %v1679, %v1682
      %vm1684 = vweird.f32 %v1175
      %vm1685 = vweird.f32 %v1679
      %vm1686 = vmor %vm1684, %vm1685
      %v1687 = vsel %vm1686, %v1679, %v1683
      %v1688 = vand.u32 2147483647, %v1175
      %vm1689 = vcmp.eq.f32.partialorder %v1688, 8.507059e+37
      %v1690 = vand.u32 %v1175, 2147483648
      %v1691 = vor.u32 1.1754944e-38, %v1690
      %v1692 = vsel %vm1689, %v1691, %v1687
      %v1693 = vmul.f32 1.0, %v1692
      %v1694 = vrcp.pop %v1176
      %v1695 = vmul.f32 %v1176, %v1694
      %v1696 = vsub.f32 1.0, %v1695
      %v1697 = vmul.f32 %v1694, %v1696
      %v1698 = vadd.f32 %v1694, %v1697
      %vm1699 = vweird.f32 %v1176
      %vm1700 = vweird.f32 %v1694
      %vm1701 = vmor %vm1699, %vm1700
      %v1702 = vsel %vm1701, %v1694, %v1698
      %v1703 = vand.u32 2147483647, %v1176
      %vm1704 = vcmp.eq.f32.partialorder %v1703, 8.507059e+37
      %v1705 = vand.u32 %v1176, 2147483648
      %v1706 = vor.u32 1.1754944e-38, %v1705
      %v1707 = vsel %vm1704, %v1706, %v1702
      %v1708 = vmul.f32 1.0, %v1707
      %v1709 = vrcp.pop %v1177
      %v1710 = vmul.f32 %v1177, %v1709
      %v1711 = vsub.f32 1.0, %v1710
      %v1712 = vmul.f32 %v1709, %v1711
      %v1713 = vadd.f32 %v1709, %v1712
      %vm1714 = vweird.f32 %v1177
      %vm1715 = vweird.f32 %v1709
      %vm1716 = vmor %vm1714, %vm1715
      %v1717 = vsel %vm1716, %v1709, %v1713
      %v1718 = vand.u32 2147483647, %v1177
      %vm1719 = vcmp.eq.f32.partialorder %v1718, 8.507059e+37
      %v1720 = vand.u32 %v1177, 2147483648
      %v1721 = vor.u32 1.1754944e-38, %v1720
      %v1722 = vsel %vm1719, %v1721, %v1717
      %v1723 = vmul.f32 1.0, %v1722
      %v1724 = vrcp.pop %v1178
      %v1725 = vmul.f32 %v1178, %v1724
      %v1726 = vsub.f32 1.0, %v1725
      %v1727 = vmul.f32 %v1724, %v1726
      %v1728 = vadd.f32 %v1724, %v1727
      %vm1729 = vweird.f32 %v1178
      %vm1730 = vweird.f32 %v1724
      %vm1731 = vmor %vm1729, %vm1730
      %v1732 = vsel %vm1731, %v1724, %v1728
      %v1733 = vand.u32 2147483647, %v1178
      %vm1734 = vcmp.eq.f32.partialorder %v1733, 8.507059e+37
      %v1735 = vand.u32 %v1178, 2147483648
      %v1736 = vor.u32 1.1754944e-38, %v1735
      %v1737 = vsel %vm1734, %v1736, %v1732
      %v1738 = vmul.f32 1.0, %v1737
      %v1739 = vrcp.pop %v1179
      %v1740 = vmul.f32 %v1179, %v1739
      %v1741 = vsub.f32 1.0, %v1740
      %v1742 = vmul.f32 %v1739, %v1741
      %v1743 = vadd.f32 %v1739, %v1742
      %vm1744 = vweird.f32 %v1179
      %vm1745 = vweird.f32 %v1739
      %vm1746 = vmor %vm1744, %vm1745
      %v1747 = vsel %vm1746, %v1739, %v1743
      %v1748 = vand.u32 2147483647, %v1179
      %vm1749 = vcmp.eq.f32.partialorder %v1748, 8.507059e+37
      %v1750 = vand.u32 %v1179, 2147483648
      %v1751 = vor.u32 1.1754944e-38, %v1750
      %v1752 = vsel %vm1749, %v1751, %v1747
      %v1753 = vmul.f32 1.0, %v1752
      %v1754 = vrcp.pop %v1180
      %v1755 = vmul.f32 %v1180, %v1754
      %v1756 = vsub.f32 1.0, %v1755
      %v1757 = vmul.f32 %v1754, %v1756
      %v1758 = vadd.f32 %v1754, %v1757
      %vm1759 = vweird.f32 %v1180
      %vm1760 = vweird.f32 %v1754
      %vm1761 = vmor %vm1759, %vm1760
      %v1762 = vsel %vm1761, %v1754, %v1758
      %v1763 = vand.u32 2147483647, %v1180
      %vm1764 = vcmp.eq.f32.partialorder %v1763, 8.507059e+37
      %v1765 = vand.u32 %v1180, 2147483648
      %v1766 = vor.u32 1.1754944e-38, %v1765
      %v1767 = vsel %vm1764, %v1766, %v1762
      %v1768 = vmul.f32 1.0, %v1767
      %v1769 = vrcp.pop %v1181
      %v1770 = vmul.f32 %v1181, %v1769
      %v1771 = vsub.f32 1.0, %v1770
      %v1772 = vmul.f32 %v1769, %v1771
      %v1773 = vadd.f32 %v1769, %v1772
      %vm1774 = vweird.f32 %v1181
      %vm1775 = vweird.f32 %v1769
      %vm1776 = vmor %vm1774, %vm1775
      %v1777 = vsel %vm1776, %v1769, %v1773
      %v1778 = vand.u32 2147483647, %v1181
      %vm1779 = vcmp.eq.f32.partialorder %v1778, 8.507059e+37
      %v1780 = vand.u32 %v1181, 2147483648
      %v1781 = vor.u32 1.1754944e-38, %v1780
      %v1782 = vsel %vm1779, %v1781, %v1777
      %v1783 = vmul.f32 1.0, %v1782
      %v1784 = vrcp.pop %v1182
      %v1785 = vmul.f32 %v1182, %v1784
      %v1786 = vsub.f32 1.0, %v1785
      %v1787 = vmul.f32 %v1784, %v1786
      %v1788 = vadd.f32 %v1784, %v1787
      %vm1789 = vweird.f32 %v1182
      %vm1790 = vweird.f32 %v1784
      %vm1791 = vmor %vm1789, %vm1790
      %v1792 = vsel %vm1791, %v1784, %v1788
      %v1793 = vand.u32 2147483647, %v1182
      %vm1794 = vcmp.eq.f32.partialorder %v1793, 8.507059e+37
      %v1795 = vand.u32 %v1182, 2147483648
      %v1796 = vor.u32 1.1754944e-38, %v1795
      %v1797 = vsel %vm1794, %v1796, %v1792
      %v1798 = vmul.f32 1.0, %v1797
      %v1799 = vrcp.pop %v1183
      %v1800 = vmul.f32 %v1183, %v1799
      %v1801 = vsub.f32 1.0, %v1800
      %v1802 = vmul.f32 %v1799, %v1801
      %v1803 = vadd.f32 %v1799, %v1802
      %vm1804 = vweird.f32 %v1183
      %vm1805 = vweird.f32 %v1799
      %vm1806 = vmor %vm1804, %vm1805
      %v1807 = vsel %vm1806, %v1799, %v1803
      %v1808 = vand.u32 2147483647, %v1183
      %vm1809 = vcmp.eq.f32.partialorder %v1808, 8.507059e+37
      %v1810 = vand.u32 %v1183, 2147483648
      %v1811 = vor.u32 1.1754944e-38, %v1810
      %v1812 = vsel %vm1809, %v1811, %v1807
      %v1813 = vmul.f32 1.0, %v1812
      %v1814 = vmul.f32 %v974, %v1198
      %v1815 = vmul.f32 %v975, %v1213
      %v1816 = vmul.f32 %v976, %v1228
      %v1817 = vmul.f32 %v977, %v1243
      %v1818 = vmul.f32 %v978, %v1258
      %v1819 = vmul.f32 %v979, %v1273
      %v1820 = vmul.f32 %v980, %v1288
      %v1821 = vmul.f32 %v981, %v1303
      %v1822 = vmul.f32 %v982, %v1318
      %v1823 = vmul.f32 %v983, %v1333
      %v1824 = vmul.f32 %v984, %v1348
      %v1825 = vmul.f32 %v985, %v1363
      %v1826 = vmul.f32 %v986, %v1378
      %v1827 = vmul.f32 %v987, %v1393
      %v1828 = vmul.f32 %v988, %v1408
      %v1829 = vmul.f32 %v989, %v1423
      %v1830 = vmul.f32 %v990, %v1438
      %v1831 = vmul.f32 %v991, %v1453
      %v1832 = vmul.f32 %v992, %v1468
      %v1833 = vmul.f32 %v993, %v1483
      %v1834 = vmul.f32 %v994, %v1498
      %v1835 = vmul.f32 %v995, %v1513
      %v1836 = vmul.f32 %v996, %v1528
      %v1837 = vmul.f32 %v997, %v1543
      %v1838 = vmul.f32 %v998, %v1558
      %v1839 = vmul.f32 %v999, %v1573
      %v1840 = vmul.f32 %v1000, %v1588
      %v1841 = vmul.f32 %v1001, %v1603
      %v1842 = vmul.f32 %v1002, %v1618
      %v1843 = vmul.f32 %v1003, %v1633
      %v1844 = vmul.f32 %v1004, %v1648
      %v1845 = vmul.f32 %v1005, %v1663
      %v1846 = vmul.f32 %v1006, %v1678
      %v1847 = vmul.f32 %v1007, %v1693
      %v1848 = vmul.f32 %v1008, %v1708
      %v1849 = vmul.f32 %v1009, %v1723
      %v1850 = vmul.f32 %v1010, %v1738
      %v1851 = vmul.f32 %v1011, %v1753
      %v1852 = vmul.f32 %v1012, %v1768
      %v1853 = vmul.f32 %v1013, %v1783
      %v1854 = vmul.f32 %v1014, %v1798
      %v1855 = vmul.f32 %v1015, %v1813
      %1857 = vset.pattern.permute.xlu0 0
      %1858 = vperm.xlu0 %1857, %v512
      %v1859 = vpop.permute.xlu0 %1858
      %1862 = vset.pattern.permute.xlu0 0
      %1863 = vperm.xlu0 %1862, %v513
      %v1864 = vpop.permute.xlu0 %1863
      %1867 = vset.pattern.permute.xlu0 0
      %1868 = vperm.xlu0 %1867, %v514
      %v1869 = vpop.permute.xlu0 %1868
      %1872 = vset.pattern.permute.xlu0 0
      %1873 = vperm.xlu0 %1872, %v515
      %v1874 = vpop.permute.xlu0 %1873
      %1877 = vset.pattern.permute.xlu0 0
      %1878 = vperm.xlu0 %1877, %v516
      %v1879 = vpop.permute.xlu0 %1878
      %1882 = vset.pattern.permute.xlu0 0
      %1883 = vperm.xlu0 %1882, %v517
      %v1884 = vpop.permute.xlu0 %1883
      %1887 = vset.pattern.permute.xlu0 0
      %1888 = vperm.xlu0 %1887, %v518
      %v1889 = vpop.permute.xlu0 %1888
      %1892 = vset.pattern.permute.xlu0 0
      %1893 = vperm.xlu0 %1892, %v519
      %v1894 = vpop.permute.xlu0 %1893
      %1897 = vset.pattern.permute.xlu0 0
      %1898 = vperm.xlu0 %1897, %v520
      %v1899 = vpop.permute.xlu0 %1898
      %1902 = vset.pattern.permute.xlu0 0
      %1903 = vperm.xlu0 %1902, %v521
      %v1904 = vpop.permute.xlu0 %1903
      %1907 = vset.pattern.permute.xlu0 0
      %1908 = vperm.xlu0 %1907, %v522
      %v1909 = vpop.permute.xlu0 %1908
      %1912 = vset.pattern.permute.xlu0 0
      %1913 = vperm.xlu0 %1912, %v523
      %v1914 = vpop.permute.xlu0 %1913
      %1917 = vset.pattern.permute.xlu0 0
      %1918 = vperm.xlu0 %1917, %v524
      %v1919 = vpop.permute.xlu0 %1918
      %1922 = vset.pattern.permute.xlu0 0
      %1923 = vperm.xlu0 %1922, %v525
      %v1924 = vpop.permute.xlu0 %1923
      %1927 = vset.pattern.permute.xlu0 0
      %1928 = vperm.xlu0 %1927, %v526
      %v1929 = vpop.permute.xlu0 %1928
      %1932 = vset.pattern.permute.xlu0 0
      %1933 = vperm.xlu0 %1932, %v527
      %v1934 = vpop.permute.xlu0 %1933
      %1937 = vset.pattern.permute.xlu0 0
      %1938 = vperm.xlu0 %1937, %v528
      %v1939 = vpop.permute.xlu0 %1938
      %1942 = vset.pattern.permute.xlu0 0
      %1943 = vperm.xlu0 %1942, %v529
      %v1944 = vpop.permute.xlu0 %1943
      %1947 = vset.pattern.permute.xlu0 0
      %1948 = vperm.xlu0 %1947, %v530
      %v1949 = vpop.permute.xlu0 %1948
      %1952 = vset.pattern.permute.xlu0 0
      %1953 = vperm.xlu0 %1952, %v531
      %v1954 = vpop.permute.xlu0 %1953
      %1957 = vset.pattern.permute.xlu0 0
      %1958 = vperm.xlu0 %1957, %v532
      %v1959 = vpop.permute.xlu0 %1958
      %1962 = vset.pattern.permute.xlu0 0
      %1963 = vperm.xlu0 %1962, %v533
      %v1964 = vpop.permute.xlu0 %1963
      %1967 = vset.pattern.permute.xlu0 0
      %1968 = vperm.xlu0 %1967, %v534
      %v1969 = vpop.permute.xlu0 %1968
      %1972 = vset.pattern.permute.xlu0 0
      %1973 = vperm.xlu0 %1972, %v535
      %v1974 = vpop.permute.xlu0 %1973
      %1977 = vset.pattern.permute.xlu0 0
      %1978 = vperm.xlu0 %1977, %v536
      %v1979 = vpop.permute.xlu0 %1978
      %1982 = vset.pattern.permute.xlu0 0
      %1983 = vperm.xlu0 %1982, %v537
      %v1984 = vpop.permute.xlu0 %1983
      %1987 = vset.pattern.permute.xlu0 0
      %1988 = vperm.xlu0 %1987, %v538
      %v1989 = vpop.permute.xlu0 %1988
      %1992 = vset.pattern.permute.xlu0 0
      %1993 = vperm.xlu0 %1992, %v539
      %v1994 = vpop.permute.xlu0 %1993
      %1997 = vset.pattern.permute.xlu0 0
      %1998 = vperm.xlu0 %1997, %v540
      %v1999 = vpop.permute.xlu0 %1998
      %2002 = vset.pattern.permute.xlu0 0
      %2003 = vperm.xlu0 %2002, %v541
      %v2004 = vpop.permute.xlu0 %2003
      %2007 = vset.pattern.permute.xlu0 0
      %2008 = vperm.xlu0 %2007, %v542
      %v2009 = vpop.permute.xlu0 %2008
      %2012 = vset.pattern.permute.xlu0 0
      %2013 = vperm.xlu0 %2012, %v543
      %v2014 = vpop.permute.xlu0 %2013
      %2017 = vset.pattern.permute.xlu0 0
      %2018 = vperm.xlu0 %2017, %v544
      %v2019 = vpop.permute.xlu0 %2018
      %2022 = vset.pattern.permute.xlu0 0
      %2023 = vperm.xlu0 %2022, %v545
      %v2024 = vpop.permute.xlu0 %2023
      %2027 = vset.pattern.permute.xlu0 0
      %2028 = vperm.xlu0 %2027, %v546
      %v2029 = vpop.permute.xlu0 %2028
      %2032 = vset.pattern.permute.xlu0 0
      %2033 = vperm.xlu0 %2032, %v547
      %v2034 = vpop.permute.xlu0 %2033
      %2037 = vset.pattern.permute.xlu0 0
      %2038 = vperm.xlu0 %2037, %v548
      %v2039 = vpop.permute.xlu0 %2038
      %2042 = vset.pattern.permute.xlu0 0
      %2043 = vperm.xlu0 %2042, %v549
      %v2044 = vpop.permute.xlu0 %2043
      %2047 = vset.pattern.permute.xlu0 0
      %2048 = vperm.xlu0 %2047, %v550
      %v2049 = vpop.permute.xlu0 %2048
      %2052 = vset.pattern.permute.xlu0 0
      %2053 = vperm.xlu0 %2052, %v551
      %v2054 = vpop.permute.xlu0 %2053
      %2057 = vset.pattern.permute.xlu0 0
      %2058 = vperm.xlu0 %2057, %v552
      %v2059 = vpop.permute.xlu0 %2058
      %2062 = vset.pattern.permute.xlu0 0
      %2063 = vperm.xlu0 %2062, %v553
      %v2064 = vpop.permute.xlu0 %2063
      %v2066 = vmul.f32 %v1859, %v1814
      %v2067 = vmul.f32 %v1864, %v1815
      %v2068 = vmul.f32 %v1869, %v1816
      %v2069 = vmul.f32 %v1874, %v1817
      %v2070 = vmul.f32 %v1879, %v1818
      %v2071 = vmul.f32 %v1884, %v1819
      %v2072 = vmul.f32 %v1889, %v1820
      %v2073 = vmul.f32 %v1894, %v1821
      %v2074 = vmul.f32 %v1899, %v1822
      %v2075 = vmul.f32 %v1904, %v1823
      %v2076 = vmul.f32 %v1909, %v1824
      %v2077 = vmul.f32 %v1914, %v1825
      %v2078 = vmul.f32 %v1919, %v1826
      %v2079 = vmul.f32 %v1924, %v1827
      %v2080 = vmul.f32 %v1929, %v1828
      %v2081 = vmul.f32 %v1934, %v1829
      %v2082 = vmul.f32 %v1939, %v1830
      %v2083 = vmul.f32 %v1944, %v1831
      %v2084 = vmul.f32 %v1949, %v1832
      %v2085 = vmul.f32 %v1954, %v1833
      %v2086 = vmul.f32 %v1959, %v1834
      %v2087 = vmul.f32 %v1964, %v1835
      %v2088 = vmul.f32 %v1969, %v1836
      %v2089 = vmul.f32 %v1974, %v1837
      %v2090 = vmul.f32 %v1979, %v1838
      %v2091 = vmul.f32 %v1984, %v1839
      %v2092 = vmul.f32 %v1989, %v1840
      %v2093 = vmul.f32 %v1994, %v1841
      %v2094 = vmul.f32 %v1999, %v1842
      %v2095 = vmul.f32 %v2004, %v1843
      %v2096 = vmul.f32 %v2009, %v1844
      %v2097 = vmul.f32 %v2014, %v1845
      %v2098 = vmul.f32 %v2019, %v1846
      %v2099 = vmul.f32 %v2024, %v1847
      %v2100 = vmul.f32 %v2029, %v1848
      %v2101 = vmul.f32 %v2034, %v1849
      %v2102 = vmul.f32 %v2039, %v1850
      %v2103 = vmul.f32 %v2044, %v1851
      %v2104 = vmul.f32 %v2049, %v1852
      %v2105 = vmul.f32 %v2054, %v1853
      %v2106 = vmul.f32 %v2059, %v1854
      %v2107 = vmul.f32 %v2064, %v1855
      %2108 = vst.msk [vmem:[#allocation2] sm:$0xff] %vm554, %v2066
      %2109 = vst.msk [vmem:[#allocation2 + $0x8] sm:$0xff] %vm554, %v2067
      %2110 = vst.msk [vmem:[#allocation2 + $0x10] sm:$0xff] %vm554, %v2068
      %2111 = vst.msk [vmem:[#allocation2 + $0x18] sm:$0xff] %vm554, %v2069
      %2112 = vst.msk [vmem:[#allocation2 + $0x20] sm:$0xff] %vm554, %v2070
      %2113 = vst.msk [vmem:[#allocation2 + $0x28] sm:$0xff] %vm554, %v2071
      %2114 = vst.msk [vmem:[#allocation2 + $0x30] sm:$0xff] %vm554, %v2072
      %2115 = vst.msk [vmem:[#allocation2 + $0x38] sm:$0xff] %vm554, %v2073
      %2116 = vst.msk [vmem:[#allocation2 + $0x40] sm:$0xff] %vm554, %v2074
      %2117 = vst.msk [vmem:[#allocation2 + $0x48] sm:$0xff] %vm554, %v2075
      %2118 = vst.msk [vmem:[#allocation2 + $0x50] sm:$0xff] %vm554, %v2076
      %2119 = vst.msk [vmem:[#allocation2 + $0x58] sm:$0xff] %vm554, %v2077
      %2120 = vst.msk [vmem:[#allocation2 + $0x60] sm:$0xff] %vm554, %v2078
      %2121 = vst.msk [vmem:[#allocation2 + $0x68] sm:$0xff] %vm554, %v2079
      %2122 = vst.msk [vmem:[#allocation2 + $0x70] sm:$0xff] %vm554, %v2080
      %2123 = vst.msk [vmem:[#allocation2 + $0x78] sm:$0xff] %vm554, %v2081
      %2124 = vst.msk [vmem:[#allocation2 + $0x80] sm:$0xff] %vm554, %v2082
      %2125 = vst.msk [vmem:[#allocation2 + $0x88] sm:$0xff] %vm554, %v2083
      %2126 = vst.msk [vmem:[#allocation2 + $0x90] sm:$0xff] %vm554, %v2084
      %2127 = vst.msk [vmem:[#allocation2 + $0x98] sm:$0xff] %vm554, %v2085
      %2128 = vst.msk [vmem:[#allocation2 + $0xa0] sm:$0xff] %vm554, %v2086
      %2129 = vst.msk [vmem:[#allocation2 + $0xa8] sm:$0xff] %vm554, %v2087
      %2130 = vst.msk [vmem:[#allocation2 + $0xb0] sm:$0xff] %vm554, %v2088
      %2131 = vst.msk [vmem:[#allocation2 + $0xb8] sm:$0xff] %vm554, %v2089
      %2132 = vst.msk [vmem:[#allocation2 + $0xc0] sm:$0xff] %vm554, %v2090
      %2133 = vst.msk [vmem:[#allocation2 + $0xc8] sm:$0xff] %vm554, %v2091
      %2134 = vst.msk [vmem:[#allocation2 + $0xd0] sm:$0xff] %vm554, %v2092
      %2135 = vst.msk [vmem:[#allocation2 + $0xd8] sm:$0xff] %vm554, %v2093
      %2136 = vst.msk [vmem:[#allocation2 + $0xe0] sm:$0xff] %vm554, %v2094
      %2137 = vst.msk [vmem:[#allocation2 + $0xe8] sm:$0xff] %vm554, %v2095
      %2138 = vst.msk [vmem:[#allocation2 + $0xf0] sm:$0xff] %vm554, %v2096
      %2139 = vst.msk [vmem:[#allocation2 + $0xf8] sm:$0xff] %vm554, %v2097
      %2140 = vst.msk [vmem:[#allocation2 + $0x100] sm:$0xff] %vm554, %v2098
      %2141 = vst.msk [vmem:[#allocation2 + $0x108] sm:$0xff] %vm554, %v2099
      %2142 = vst.msk [vmem:[#allocation2 + $0x110] sm:$0xff] %vm554, %v2100
      %2143 = vst.msk [vmem:[#allocation2 + $0x118] sm:$0xff] %vm554, %v2101
      %2144 = vst.msk [vmem:[#allocation2 + $0x120] sm:$0xff] %vm554, %v2102
      %2145 = vst.msk [vmem:[#allocation2 + $0x128] sm:$0xff] %vm554, %v2103
      %2146 = vst.msk [vmem:[#allocation2 + $0x130] sm:$0xff] %vm554, %v2104
      %2147 = vst.msk [vmem:[#allocation2 + $0x138] sm:$0xff] %vm554, %v2105
      %2148 = vst.msk [vmem:[#allocation2 + $0x140] sm:$0xff] %vm554, %v2106
      %2149 = vst.msk [vmem:[#allocation2 + $0x148] sm:$0xff] %vm554, %v2107
      %v2150 = vld [vmem:[#allocation2 + $0x5] sm:$0xff]
      %v2151 = vld [vmem:[#allocation2 + $0xd] sm:$0xff]
      %v2152 = vld [vmem:[#allocation2 + $0x15] sm:$0xff]
      %v2153 = vld [vmem:[#allocation2 + $0x1d] sm:$0xff]
      %v2154 = vld [vmem:[#allocation2 + $0x25] sm:$0xff]
      %v2155 = vld [vmem:[#allocation2 + $0x2d] sm:$0xff]
      %v2156 = vld [vmem:[#allocation2 + $0x35] sm:$0xff]
      %v2157 = vld [vmem:[#allocation2 + $0x3d] sm:$0xff]
      %v2158 = vld [vmem:[#allocation2 + $0x45] sm:$0xff]
      %v2159 = vld [vmem:[#allocation2 + $0x4d] sm:$0xff]
      %v2160 = vld [vmem:[#allocation2 + $0x55] sm:$0xff]
      %v2161 = vld [vmem:[#allocation2 + $0x5d] sm:$0xff]
      %v2162 = vld [vmem:[#allocation2 + $0x65] sm:$0xff]
      %v2163 = vld [vmem:[#allocation2 + $0x6d] sm:$0xff]
      %v2164 = vld [vmem:[#allocation2 + $0x75] sm:$0xff]
      %v2165 = vld [vmem:[#allocation2 + $0x7d] sm:$0xff]
      %v2166 = vld [vmem:[#allocation2 + $0x85] sm:$0xff]
      %v2167 = vld [vmem:[#allocation2 + $0x8d] sm:$0xff]
      %v2168 = vld [vmem:[#allocation2 + $0x95] sm:$0xff]
      %v2169 = vld [vmem:[#allocation2 + $0x9d] sm:$0xff]
      %v2170 = vld [vmem:[#allocation2 + $0xa5] sm:$0xff]
      %v2171 = vld [vmem:[#allocation2 + $0xad] sm:$0xff]
      %v2172 = vld [vmem:[#allocation2 + $0xb5] sm:$0xff]
      %v2173 = vld [vmem:[#allocation2 + $0xbd] sm:$0xff]
      %v2174 = vld [vmem:[#allocation2 + $0xc5] sm:$0xff]
      %v2175 = vld [vmem:[#allocation2 + $0xcd] sm:$0xff]
      %v2176 = vld [vmem:[#allocation2 + $0xd5] sm:$0xff]
      %v2177 = vld [vmem:[#allocation2 + $0xdd] sm:$0xff]
      %v2178 = vld [vmem:[#allocation2 + $0xe5] sm:$0xff]
      %v2179 = vld [vmem:[#allocation2 + $0xed] sm:$0xff]
      %v2180 = vld [vmem:[#allocation2 + $0xf5] sm:$0xff]
      %v2181 = vld [vmem:[#allocation2 + $0xfd] sm:$0xff]
      %v2182 = vld [vmem:[#allocation2 + $0x105] sm:$0xff]
      %v2183 = vld [vmem:[#allocation2 + $0x10d] sm:$0xff]
      %v2184 = vld [vmem:[#allocation2 + $0x115] sm:$0xff]
      %v2185 = vld [vmem:[#allocation2 + $0x11d] sm:$0xff]
      %v2186 = vpack.c.bf16 %v2150, %v2150
      %v2187 = vpack.c.bf16 %v2151, %v2151
      %v2188 = vpack.c.bf16 %v2152, %v2152
      %v2189 = vpack.c.bf16 %v2153, %v2153
      %v2190 = vpack.c.bf16 %v2154, %v2154
      %v2191 = vpack.c.bf16 %v2155, %v2155
      %v2192 = vpack.c.bf16 %v2156, %v2156
      %v2193 = vpack.c.bf16 %v2157, %v2157
      %v2194 = vpack.c.bf16 %v2158, %v2158
      %v2195 = vpack.c.bf16 %v2159, %v2159
      %v2196 = vpack.c.bf16 %v2160, %v2160
      %v2197 = vpack.c.bf16 %v2161, %v2161
      %v2198 = vpack.c.bf16 %v2162, %v2162
      %v2199 = vpack.c.bf16 %v2163, %v2163
      %v2200 = vpack.c.bf16 %v2164, %v2164
      %v2201 = vpack.c.bf16 %v2165, %v2165
      %v2202 = vpack.c.bf16 %v2166, %v2166
      %v2203 = vpack.c.bf16 %v2167, %v2167
      %v2204 = vpack.c.bf16 %v2168, %v2168
      %v2205 = vpack.c.bf16 %v2169, %v2169
      %v2206 = vpack.c.bf16 %v2170, %v2170
      %v2207 = vpack.c.bf16 %v2171, %v2171
      %v2208 = vpack.c.bf16 %v2172, %v2172
      %v2209 = vpack.c.bf16 %v2173, %v2173
      %v2210 = vpack.c.bf16 %v2174, %v2174
      %v2211 = vpack.c.bf16 %v2175, %v2175
      %v2212 = vpack.c.bf16 %v2176, %v2176
      %v2213 = vpack.c.bf16 %v2177, %v2177
      %v2214 = vpack.c.bf16 %v2178, %v2178
      %v2215 = vpack.c.bf16 %v2179, %v2179
      %v2216 = vpack.c.bf16 %v2180, %v2180
      %v2217 = vpack.c.bf16 %v2181, %v2181
      %v2218 = vpack.c.bf16 %v2182, %v2182
      %v2219 = vpack.c.bf16 %v2183, %v2183
      %v2220 = vpack.c.bf16 %v2184, %v2184
      %v2221 = vpack.c.bf16 %v2185, %v2185
      %vm2222 = vcmask 257024
      %2223 = vst.msk [vmem:[#allocation3] sm:$0xf] %vm2222, %v2186
      %2224 = vst.msk [vmem:[#allocation3 + $0xc] sm:$0xf] %vm2222, %v2187
      %2225 = vst.msk [vmem:[#allocation3 + $0x18] sm:$0xf] %vm2222, %v2188
      %2226 = vst.msk [vmem:[#allocation3 + $0x24] sm:$0xf] %vm2222, %v2189
      %2227 = vst.msk [vmem:[#allocation3 + $0x30] sm:$0xf] %vm2222, %v2190
      %2228 = vst.msk [vmem:[#allocation3 + $0x3c] sm:$0xf] %vm2222, %v2191
      %2229 = vst.msk [vmem:[#allocation3 + $0x48] sm:$0xf] %vm2222, %v2192
      %2230 = vst.msk [vmem:[#allocation3 + $0x54] sm:$0xf] %vm2222, %v2193
      %2231 = vst.msk [vmem:[#allocation3 + $0x60] sm:$0xf] %vm2222, %v2194
      %2232 = vst.msk [vmem:[#allocation3 + $0x6c] sm:$0xf] %vm2222, %v2195
      %2233 = vst.msk [vmem:[#allocation3 + $0x78] sm:$0xf] %vm2222, %v2196
      %2234 = vst.msk [vmem:[#allocation3 + $0x84] sm:$0xf] %vm2222, %v2197
      %2235 = vst.msk [vmem:[#allocation3 + $0x90] sm:$0xf] %vm2222, %v2198
      %2236 = vst.msk [vmem:[#allocation3 + $0x9c] sm:$0xf] %vm2222, %v2199
      %2237 = vst.msk [vmem:[#allocation3 + $0xa8] sm:$0xf] %vm2222, %v2200
      %2238 = vst.msk [vmem:[#allocation3 + $0xb4] sm:$0xf] %vm2222, %v2201
      %2239 = vst.msk [vmem:[#allocation3 + $0xc0] sm:$0xf] %vm2222, %v2202
      %2240 = vst.msk [vmem:[#allocation3 + $0xcc] sm:$0xf] %vm2222, %v2203
      %2241 = vst.msk [vmem:[#allocation3 + $0xd8] sm:$0xf] %vm2222, %v2204
      %2242 = vst.msk [vmem:[#allocation3 + $0xe4] sm:$0xf] %vm2222, %v2205
      %2243 = vst.msk [vmem:[#allocation3 + $0xf0] sm:$0xf] %vm2222, %v2206
      %2244 = vst.msk [vmem:[#allocation3 + $0xfc] sm:$0xf] %vm2222, %v2207
      %2245 = vst.msk [vmem:[#allocation3 + $0x108] sm:$0xf] %vm2222, %v2208
      %2246 = vst.msk [vmem:[#allocation3 + $0x114] sm:$0xf] %vm2222, %v2209
      %2247 = vst.msk [vmem:[#allocation3 + $0x120] sm:$0xf] %vm2222, %v2210
      %2248 = vst.msk [vmem:[#allocation3 + $0x12c] sm:$0xf] %vm2222, %v2211
      %2249 = vst.msk [vmem:[#allocation3 + $0x138] sm:$0xf] %vm2222, %v2212
      %2250 = vst.msk [vmem:[#allocation3 + $0x144] sm:$0xf] %vm2222, %v2213
      %2251 = vst.msk [vmem:[#allocation3 + $0x150] sm:$0xf] %vm2222, %v2214
      %2252 = vst.msk [vmem:[#allocation3 + $0x15c] sm:$0xf] %vm2222, %v2215
      %2253 = vst.msk [vmem:[#allocation3 + $0x168] sm:$0xf] %vm2222, %v2216
      %2254 = vst.msk [vmem:[#allocation3 + $0x174] sm:$0xf] %vm2222, %v2217
      %2255 = vst.msk [vmem:[#allocation3 + $0x180] sm:$0xf] %vm2222, %v2218
      %2256 = vst.msk [vmem:[#allocation3 + $0x18c] sm:$0xf] %vm2222, %v2219
      %2257 = vst.msk [vmem:[#allocation3 + $0x198] sm:$0xf] %vm2222, %v2220
      %2258 = vst.msk [vmem:[#allocation3 + $0x1a4] sm:$0xf] %vm2222, %v2221
      %v2259 = vld [vmem:[#allocation2 + $0x6] sm:$0xff]
      %v2260 = vld [vmem:[#allocation2 + $0xe] sm:$0xff]
      %v2261 = vld [vmem:[#allocation2 + $0x16] sm:$0xff]
      %v2262 = vld [vmem:[#allocation2 + $0x1e] sm:$0xff]
      %v2263 = vld [vmem:[#allocation2 + $0x26] sm:$0xff]
      %v2264 = vld [vmem:[#allocation2 + $0x2e] sm:$0xff]
      %v2265 = vld [vmem:[#allocation2 + $0x36] sm:$0xff]
      %v2266 = vld [vmem:[#allocation2 + $0x3e] sm:$0xff]
      %v2267 = vld [vmem:[#allocation2 + $0x46] sm:$0xff]
      %v2268 = vld [vmem:[#allocation2 + $0x4e] sm:$0xff]
      %v2269 = vld [vmem:[#allocation2 + $0x56] sm:$0xff]
      %v2270 = vld [vmem:[#allocation2 + $0x5e] sm:$0xff]
      %v2271 = vld [vmem:[#allocation2 + $0x66] sm:$0xff]
      %v2272 = vld [vmem:[#allocation2 + $0x6e] sm:$0xff]
      %v2273 = vld [vmem:[#allocation2 + $0x76] sm:$0xff]
      %v2274 = vld [vmem:[#allocation2 + $0x7e] sm:$0xff]
      %v2275 = vld [vmem:[#allocation2 + $0x86] sm:$0xff]
      %v2276 = vld [vmem:[#allocation2 + $0x8e] sm:$0xff]
      %v2277 = vld [vmem:[#allocation2 + $0x96] sm:$0xff]
      %v2278 = vld [vmem:[#allocation2 + $0x9e] sm:$0xff]
      %v2279 = vld [vmem:[#allocation2 + $0xa6] sm:$0xff]
      %v2280 = vld [vmem:[#allocation2 + $0xae] sm:$0xff]
      %v2281 = vld [vmem:[#allocation2 + $0xb6] sm:$0xff]
      %v2282 = vld [vmem:[#allocation2 + $0xbe] sm:$0xff]
      %v2283 = vld [vmem:[#allocation2 + $0xc6] sm:$0xff]
      %v2284 = vld [vmem:[#allocation2 + $0xce] sm:$0xff]
      %v2285 = vld [vmem:[#allocation2 + $0xd6] sm:$0xff]
      %v2286 = vld [vmem:[#allocation2 + $0xde] sm:$0xff]
      %v2287 = vld [vmem:[#allocation2 + $0xe6] sm:$0xff]
      %v2288 = vld [vmem:[#allocation2 + $0xee] sm:$0xff]
      %v2289 = vld [vmem:[#allocation2 + $0xf6] sm:$0xff]
      %v2290 = vld [vmem:[#allocation2 + $0xfe] sm:$0xff]
      %v2291 = vld [vmem:[#allocation2 + $0x106] sm:$0xff]
      %v2292 = vld [vmem:[#allocation2 + $0x10e] sm:$0xff]
      %v2293 = vld [vmem:[#allocation2 + $0x116] sm:$0xff]
      %v2294 = vld [vmem:[#allocation2 + $0x11e] sm:$0xff]
      %v2295 = vpack.c.bf16 %v2259, %v2259
      %v2296 = vpack.c.bf16 %v2260, %v2260
      %v2297 = vpack.c.bf16 %v2261, %v2261
      %v2298 = vpack.c.bf16 %v2262, %v2262
      %v2299 = vpack.c.bf16 %v2263, %v2263
      %v2300 = vpack.c.bf16 %v2264, %v2264
      %v2301 = vpack.c.bf16 %v2265, %v2265
      %v2302 = vpack.c.bf16 %v2266, %v2266
      %v2303 = vpack.c.bf16 %v2267, %v2267
      %v2304 = vpack.c.bf16 %v2268, %v2268
      %v2305 = vpack.c.bf16 %v2269, %v2269
      %v2306 = vpack.c.bf16 %v2270, %v2270
      %v2307 = vpack.c.bf16 %v2271, %v2271
      %v2308 = vpack.c.bf16 %v2272, %v2272
      %v2309 = vpack.c.bf16 %v2273, %v2273
      %v2310 = vpack.c.bf16 %v2274, %v2274
      %v2311 = vpack.c.bf16 %v2275, %v2275
      %v2312 = vpack.c.bf16 %v2276, %v2276
      %v2313 = vpack.c.bf16 %v2277, %v2277
      %v2314 = vpack.c.bf16 %v2278, %v2278
      %v2315 = vpack.c.bf16 %v2279, %v2279
      %v2316 = vpack.c.bf16 %v2280, %v2280
      %v2317 = vpack.c.bf16 %v2281, %v2281
      %v2318 = vpack.c.bf16 %v2282, %v2282
      %v2319 = vpack.c.bf16 %v2283, %v2283
      %v2320 = vpack.c.bf16 %v2284, %v2284
      %v2321 = vpack.c.bf16 %v2285, %v2285
      %v2322 = vpack.c.bf16 %v2286, %v2286
      %v2323 = vpack.c.bf16 %v2287, %v2287
      %v2324 = vpack.c.bf16 %v2288, %v2288
      %v2325 = vpack.c.bf16 %v2289, %v2289
      %v2326 = vpack.c.bf16 %v2290, %v2290
      %v2327 = vpack.c.bf16 %v2291, %v2291
      %v2328 = vpack.c.bf16 %v2292, %v2292
      %v2329 = vpack.c.bf16 %v2293, %v2293
      %v2330 = vpack.c.bf16 %v2294, %v2294
      %2367 = vrot.lane.b32.xlu0 %v2295, 32
      %v2368 = vpop.permute.xlu0 %2367
      %2369 = vrot.lane.b32.xlu0 %v2296, 32
      %v2370 = vpop.permute.xlu0 %2369
      %2371 = vrot.lane.b32.xlu0 %v2297, 32
      %v2372 = vpop.permute.xlu0 %2371
      %2373 = vrot.lane.b32.xlu0 %v2298, 32
      %v2374 = vpop.permute.xlu0 %2373
      %2375 = vrot.lane.b32.xlu0 %v2299, 32
      %v2376 = vpop.permute.xlu0 %2375
      %2377 = vrot.lane.b32.xlu0 %v2300, 32
      %v2378 = vpop.permute.xlu0 %2377
      %2379 = vrot.lane.b32.xlu0 %v2301, 32
      %v2380 = vpop.permute.xlu0 %2379
      %2381 = vrot.lane.b32.xlu0 %v2302, 32
      %v2382 = vpop.permute.xlu0 %2381
      %2383 = vrot.lane.b32.xlu0 %v2303, 32
      %v2384 = vpop.permute.xlu0 %2383
      %2385 = vrot.lane.b32.xlu0 %v2304, 32
      %v2386 = vpop.permute.xlu0 %2385
      %2387 = vrot.lane.b32.xlu0 %v2305, 32
      %v2388 = vpop.permute.xlu0 %2387
      %2389 = vrot.lane.b32.xlu0 %v2306, 32
      %v2390 = vpop.permute.xlu0 %2389
      %2391 = vrot.lane.b32.xlu0 %v2307, 32
      %v2392 = vpop.permute.xlu0 %2391
      %2393 = vrot.lane.b32.xlu0 %v2308, 32
      %v2394 = vpop.permute.xlu0 %2393
      %2395 = vrot.lane.b32.xlu0 %v2309, 32
      %v2396 = vpop.permute.xlu0 %2395
      %2397 = vrot.lane.b32.xlu0 %v2310, 32
      %v2398 = vpop.permute.xlu0 %2397
      %2399 = vrot.lane.b32.xlu0 %v2311, 32
      %v2400 = vpop.permute.xlu0 %2399
      %2401 = vrot.lane.b32.xlu0 %v2312, 32
      %v2402 = vpop.permute.xlu0 %2401
      %2403 = vrot.lane.b32.xlu0 %v2313, 32
      %v2404 = vpop.permute.xlu0 %2403
      %2405 = vrot.lane.b32.xlu0 %v2314, 32
      %v2406 = vpop.permute.xlu0 %2405
      %2407 = vrot.lane.b32.xlu0 %v2315, 32
      %v2408 = vpop.permute.xlu0 %2407
      %2409 = vrot.lane.b32.xlu0 %v2316, 32
      %v2410 = vpop.permute.xlu0 %2409
      %2411 = vrot.lane.b32.xlu0 %v2317, 32
      %v2412 = vpop.permute.xlu0 %2411
      %2413 = vrot.lane.b32.xlu0 %v2318, 32
      %v2414 = vpop.permute.xlu0 %2413
      %2415 = vrot.lane.b32.xlu0 %v2319, 32
      %v2416 = vpop.permute.xlu0 %2415
      %2417 = vrot.lane.b32.xlu0 %v2320, 32
      %v2418 = vpop.permute.xlu0 %2417
      %2419 = vrot.lane.b32.xlu0 %v2321, 32
      %v2420 = vpop.permute.xlu0 %2419
      %2421 = vrot.lane.b32.xlu0 %v2322, 32
      %v2422 = vpop.permute.xlu0 %2421
      %2423 = vrot.lane.b32.xlu0 %v2323, 32
      %v2424 = vpop.permute.xlu0 %2423
      %2425 = vrot.lane.b32.xlu0 %v2324, 32
      %v2426 = vpop.permute.xlu0 %2425
      %2427 = vrot.lane.b32.xlu0 %v2325, 32
      %v2428 = vpop.permute.xlu0 %2427
      %2429 = vrot.lane.b32.xlu0 %v2326, 32
      %v2430 = vpop.permute.xlu0 %2429
      %2431 = vrot.lane.b32.xlu0 %v2327, 32
      %v2432 = vpop.permute.xlu0 %2431
      %2433 = vrot.lane.b32.xlu0 %v2328, 32
      %v2434 = vpop.permute.xlu0 %2433
      %2435 = vrot.lane.b32.xlu0 %v2329, 32
      %v2436 = vpop.permute.xlu0 %2435
      %2437 = vrot.lane.b32.xlu0 %v2330, 32
      %v2438 = vpop.permute.xlu0 %2437
      %vm2475 = vcmask 519424
      %2476 = vst.msk [vmem:[#allocation3] sm:$0xf] %vm2475, %v2368
      %2477 = vst.msk [vmem:[#allocation3 + $0xc] sm:$0xf] %vm2475, %v2370
      %2478 = vst.msk [vmem:[#allocation3 + $0x18] sm:$0xf] %vm2475, %v2372
      %2479 = vst.msk [vmem:[#allocation3 + $0x24] sm:$0xf] %vm2475, %v2374
      %2480 = vst.msk [vmem:[#allocation3 + $0x30] sm:$0xf] %vm2475, %v2376
      %2481 = vst.msk [vmem:[#allocation3 + $0x3c] sm:$0xf] %vm2475, %v2378
      %2482 = vst.msk [vmem:[#allocation3 + $0x48] sm:$0xf] %vm2475, %v2380
      %2483 = vst.msk [vmem:[#allocation3 + $0x54] sm:$0xf] %vm2475, %v2382
      %2484 = vst.msk [vmem:[#allocation3 + $0x60] sm:$0xf] %vm2475, %v2384
      %2485 = vst.msk [vmem:[#allocation3 + $0x6c] sm:$0xf] %vm2475, %v2386
      %2486 = vst.msk [vmem:[#allocation3 + $0x78] sm:$0xf] %vm2475, %v2388
      %2487 = vst.msk [vmem:[#allocation3 + $0x84] sm:$0xf] %vm2475, %v2390
      %2488 = vst.msk [vmem:[#allocation3 + $0x90] sm:$0xf] %vm2475, %v2392
      %2489 = vst.msk [vmem:[#allocation3 + $0x9c] sm:$0xf] %vm2475, %v2394
      %2490 = vst.msk [vmem:[#allocation3 + $0xa8] sm:$0xf] %vm2475, %v2396
      %2491 = vst.msk [vmem:[#allocation3 + $0xb4] sm:$0xf] %vm2475, %v2398
      %2492 = vst.msk [vmem:[#allocation3 + $0xc0] sm:$0xf] %vm2475, %v2400
      %2493 = vst.msk [vmem:[#allocation3 + $0xcc] sm:$0xf] %vm2475, %v2402
      %2494 = vst.msk [vmem:[#allocation3 + $0xd8] sm:$0xf] %vm2475, %v2404
      %2495 = vst.msk [vmem:[#allocation3 + $0xe4] sm:$0xf] %vm2475, %v2406
      %2496 = vst.msk [vmem:[#allocation3 + $0xf0] sm:$0xf] %vm2475, %v2408
      %2497 = vst.msk [vmem:[#allocation3 + $0xfc] sm:$0xf] %vm2475, %v2410
      %2498 = vst.msk [vmem:[#allocation3 + $0x108] sm:$0xf] %vm2475, %v2412
      %2499 = vst.msk [vmem:[#allocation3 + $0x114] sm:$0xf] %vm2475, %v2414
      %2500 = vst.msk [vmem:[#allocation3 + $0x120] sm:$0xf] %vm2475, %v2416
      %2501 = vst.msk [vmem:[#allocation3 + $0x12c] sm:$0xf] %vm2475, %v2418
      %2502 = vst.msk [vmem:[#allocation3 + $0x138] sm:$0xf] %vm2475, %v2420
      %2503 = vst.msk [vmem:[#allocation3 + $0x144] sm:$0xf] %vm2475, %v2422
      %2504 = vst.msk [vmem:[#allocation3 + $0x150] sm:$0xf] %vm2475, %v2424
      %2505 = vst.msk [vmem:[#allocation3 + $0x15c] sm:$0xf] %vm2475, %v2426
      %2506 = vst.msk [vmem:[#allocation3 + $0x168] sm:$0xf] %vm2475, %v2428
      %2507 = vst.msk [vmem:[#allocation3 + $0x174] sm:$0xf] %vm2475, %v2430
      %2508 = vst.msk [vmem:[#allocation3 + $0x180] sm:$0xf] %vm2475, %v2432
      %2509 = vst.msk [vmem:[#allocation3 + $0x18c] sm:$0xf] %vm2475, %v2434
      %2510 = vst.msk [vmem:[#allocation3 + $0x198] sm:$0xf] %vm2475, %v2436
      %2511 = vst.msk [vmem:[#allocation3 + $0x1a4] sm:$0xf] %vm2475, %v2438
      %v2512 = vld [vmem:[#allocation2 + $0x7] sm:$0xff]
      %v2513 = vld [vmem:[#allocation2 + $0xf] sm:$0xff]
      %v2514 = vld [vmem:[#allocation2 + $0x17] sm:$0xff]
      %v2515 = vld [vmem:[#allocation2 + $0x1f] sm:$0xff]
      %v2516 = vld [vmem:[#allocation2 + $0x27] sm:$0xff]
      %v2517 = vld [vmem:[#allocation2 + $0x2f] sm:$0xff]
      %v2518 = vld [vmem:[#allocation2 + $0x37] sm:$0xff]
      %v2519 = vld [vmem:[#allocation2 + $0x3f] sm:$0xff]
      %v2520 = vld [vmem:[#allocation2 + $0x47] sm:$0xff]
      %v2521 = vld [vmem:[#allocation2 + $0x4f] sm:$0xff]
      %v2522 = vld [vmem:[#allocation2 + $0x57] sm:$0xff]
      %v2523 = vld [vmem:[#allocation2 + $0x5f] sm:$0xff]
      %v2524 = vld [vmem:[#allocation2 + $0x67] sm:$0xff]
      %v2525 = vld [vmem:[#allocation2 + $0x6f] sm:$0xff]
      %v2526 = vld [vmem:[#allocation2 + $0x77] sm:$0xff]
      %v2527 = vld [vmem:[#allocation2 + $0x7f] sm:$0xff]
      %v2528 = vld [vmem:[#allocation2 + $0x87] sm:$0xff]
      %v2529 = vld [vmem:[#allocation2 + $0x8f] sm:$0xff]
      %v2530 = vld [vmem:[#allocation2 + $0x97] sm:$0xff]
      %v2531 = vld [vmem:[#allocation2 + $0x9f] sm:$0xff]
      %v2532 = vld [vmem:[#allocation2 + $0xa7] sm:$0xff]
      %v2533 = vld [vmem:[#allocation2 + $0xaf] sm:$0xff]
      %v2534 = vld [vmem:[#allocation2 + $0xb7] sm:$0xff]
      %v2535 = vld [vmem:[#allocation2 + $0xbf] sm:$0xff]
      %v2536 = vld [vmem:[#allocation2 + $0xc7] sm:$0xff]
      %v2537 = vld [vmem:[#allocation2 + $0xcf] sm:$0xff]
      %v2538 = vld [vmem:[#allocation2 + $0xd7] sm:$0xff]
      %v2539 = vld [vmem:[#allocation2 + $0xdf] sm:$0xff]
      %v2540 = vld [vmem:[#allocation2 + $0xe7] sm:$0xff]
      %v2541 = vld [vmem:[#allocation2 + $0xef] sm:$0xff]
      %v2542 = vld [vmem:[#allocation2 + $0xf7] sm:$0xff]
      %v2543 = vld [vmem:[#allocation2 + $0xff] sm:$0xff]
      %v2544 = vld [vmem:[#allocation2 + $0x107] sm:$0xff]
      %v2545 = vld [vmem:[#allocation2 + $0x10f] sm:$0xff]
      %v2546 = vld [vmem:[#allocation2 + $0x117] sm:$0xff]
      %v2547 = vld [vmem:[#allocation2 + $0x11f] sm:$0xff]
      %v2548 = vpack.c.bf16 %v2512, %v2512
      %v2549 = vpack.c.bf16 %v2513, %v2513
      %v2550 = vpack.c.bf16 %v2514, %v2514
      %v2551 = vpack.c.bf16 %v2515, %v2515
      %v2552 = vpack.c.bf16 %v2516, %v2516
      %v2553 = vpack.c.bf16 %v2517, %v2517
      %v2554 = vpack.c.bf16 %v2518, %v2518
      %v2555 = vpack.c.bf16 %v2519, %v2519
      %v2556 = vpack.c.bf16 %v2520, %v2520
      %v2557 = vpack.c.bf16 %v2521, %v2521
      %v2558 = vpack.c.bf16 %v2522, %v2522
      %v2559 = vpack.c.bf16 %v2523, %v2523
      %v2560 = vpack.c.bf16 %v2524, %v2524
      %v2561 = vpack.c.bf16 %v2525, %v2525
      %v2562 = vpack.c.bf16 %v2526, %v2526
      %v2563 = vpack.c.bf16 %v2527, %v2527
      %v2564 = vpack.c.bf16 %v2528, %v2528
      %v2565 = vpack.c.bf16 %v2529, %v2529
      %v2566 = vpack.c.bf16 %v2530, %v2530
      %v2567 = vpack.c.bf16 %v2531, %v2531
      %v2568 = vpack.c.bf16 %v2532, %v2532
      %v2569 = vpack.c.bf16 %v2533, %v2533
      %v2570 = vpack.c.bf16 %v2534, %v2534
      %v2571 = vpack.c.bf16 %v2535, %v2535
      %v2572 = vpack.c.bf16 %v2536, %v2536
      %v2573 = vpack.c.bf16 %v2537, %v2537
      %v2574 = vpack.c.bf16 %v2538, %v2538
      %v2575 = vpack.c.bf16 %v2539, %v2539
      %v2576 = vpack.c.bf16 %v2540, %v2540
      %v2577 = vpack.c.bf16 %v2541, %v2541
      %v2578 = vpack.c.bf16 %v2542, %v2542
      %v2579 = vpack.c.bf16 %v2543, %v2543
      %v2580 = vpack.c.bf16 %v2544, %v2544
      %v2581 = vpack.c.bf16 %v2545, %v2545
      %v2582 = vpack.c.bf16 %v2546, %v2546
      %v2583 = vpack.c.bf16 %v2547, %v2547
      %2620 = vrot.lane.b32.xlu0 %v2548, 64
      %v2621 = vpop.permute.xlu0 %2620
      %2622 = vrot.lane.b32.xlu0 %v2549, 64
      %v2623 = vpop.permute.xlu0 %2622
      %2624 = vrot.lane.b32.xlu0 %v2550, 64
      %v2625 = vpop.permute.xlu0 %2624
      %2626 = vrot.lane.b32.xlu0 %v2551, 64
      %v2627 = vpop.permute.xlu0 %2626
      %2628 = vrot.lane.b32.xlu0 %v2552, 64
      %v2629 = vpop.permute.xlu0 %2628
      %2630 = vrot.lane.b32.xlu0 %v2553, 64
      %v2631 = vpop.permute.xlu0 %2630
      %2632 = vrot.lane.b32.xlu0 %v2554, 64
      %v2633 = vpop.permute.xlu0 %2632
      %2634 = vrot.lane.b32.xlu0 %v2555, 64
      %v2635 = vpop.permute.xlu0 %2634
      %2636 = vrot.lane.b32.xlu0 %v2556, 64
      %v2637 = vpop.permute.xlu0 %2636
      %2638 = vrot.lane.b32.xlu0 %v2557, 64
      %v2639 = vpop.permute.xlu0 %2638
      %2640 = vrot.lane.b32.xlu0 %v2558, 64
      %v2641 = vpop.permute.xlu0 %2640
      %2642 = vrot.lane.b32.xlu0 %v2559, 64
      %v2643 = vpop.permute.xlu0 %2642
      %2644 = vrot.lane.b32.xlu0 %v2560, 64
      %v2645 = vpop.permute.xlu0 %2644
      %2646 = vrot.lane.b32.xlu0 %v2561, 64
      %v2647 = vpop.permute.xlu0 %2646
      %2648 = vrot.lane.b32.xlu0 %v2562, 64
      %v2649 = vpop.permute.xlu0 %2648
      %2650 = vrot.lane.b32.xlu0 %v2563, 64
      %v2651 = vpop.permute.xlu0 %2650
      %2652 = vrot.lane.b32.xlu0 %v2564, 64
      %v2653 = vpop.permute.xlu0 %2652
      %2654 = vrot.lane.b32.xlu0 %v2565, 64
      %v2655 = vpop.permute.xlu0 %2654
      %2656 = vrot.lane.b32.xlu0 %v2566, 64
      %v2657 = vpop.permute.xlu0 %2656
      %2658 = vrot.lane.b32.xlu0 %v2567, 64
      %v2659 = vpop.permute.xlu0 %2658
      %2660 = vrot.lane.b32.xlu0 %v2568, 64
      %v2661 = vpop.permute.xlu0 %2660
      %2662 = vrot.lane.b32.xlu0 %v2569, 64
      %v2663 = vpop.permute.xlu0 %2662
      %2664 = vrot.lane.b32.xlu0 %v2570, 64
      %v2665 = vpop.permute.xlu0 %2664
      %2666 = vrot.lane.b32.xlu0 %v2571, 64
      %v2667 = vpop.permute.xlu0 %2666
      %2668 = vrot.lane.b32.xlu0 %v2572, 64
      %v2669 = vpop.permute.xlu0 %2668
      %2670 = vrot.lane.b32.xlu0 %v2573, 64
      %v2671 = vpop.permute.xlu0 %2670
      %2672 = vrot.lane.b32.xlu0 %v2574, 64
      %v2673 = vpop.permute.xlu0 %2672
      %2674 = vrot.lane.b32.xlu0 %v2575, 64
      %v2675 = vpop.permute.xlu0 %2674
      %2676 = vrot.lane.b32.xlu0 %v2576, 64
      %v2677 = vpop.permute.xlu0 %2676
      %2678 = vrot.lane.b32.xlu0 %v2577, 64
      %v2679 = vpop.permute.xlu0 %2678
      %2680 = vrot.lane.b32.xlu0 %v2578, 64
      %v2681 = vpop.permute.xlu0 %2680
      %2682 = vrot.lane.b32.xlu0 %v2579, 64
      %v2683 = vpop.permute.xlu0 %2682
      %2684 = vrot.lane.b32.xlu0 %v2580, 64
      %v2685 = vpop.permute.xlu0 %2684
      %2686 = vrot.lane.b32.xlu0 %v2581, 64
      %v2687 = vpop.permute.xlu0 %2686
      %2688 = vrot.lane.b32.xlu0 %v2582, 64
      %v2689 = vpop.permute.xlu0 %2688
      %2690 = vrot.lane.b32.xlu0 %v2583, 64
      %v2691 = vpop.permute.xlu0 %2690
      %vm2728 = vcmask 781824
      %2729 = vst.msk [vmem:[#allocation3] sm:$0xf] %vm2728, %v2621
      %2730 = vst.msk [vmem:[#allocation3 + $0xc] sm:$0xf] %vm2728, %v2623
      %2731 = vst.msk [vmem:[#allocation3 + $0x18] sm:$0xf] %vm2728, %v2625
      %2732 = vst.msk [vmem:[#allocation3 + $0x24] sm:$0xf] %vm2728, %v2627
      %2733 = vst.msk [vmem:[#allocation3 + $0x30] sm:$0xf] %vm2728, %v2629
      %2734 = vst.msk [vmem:[#allocation3 + $0x3c] sm:$0xf] %vm2728, %v2631
      %2735 = vst.msk [vmem:[#allocation3 + $0x48] sm:$0xf] %vm2728, %v2633
      %2736 = vst.msk [vmem:[#allocation3 + $0x54] sm:$0xf] %vm2728, %v2635
      %2737 = vst.msk [vmem:[#allocation3 + $0x60] sm:$0xf] %vm2728, %v2637
      %2738 = vst.msk [vmem:[#allocation3 + $0x6c] sm:$0xf] %vm2728, %v2639
      %2739 = vst.msk [vmem:[#allocation3 + $0x78] sm:$0xf] %vm2728, %v2641
      %2740 = vst.msk [vmem:[#allocation3 + $0x84] sm:$0xf] %vm2728, %v2643
      %2741 = vst.msk [vmem:[#allocation3 + $0x90] sm:$0xf] %vm2728, %v2645
      %2742 = vst.msk [vmem:[#allocation3 + $0x9c] sm:$0xf] %vm2728, %v2647
      %2743 = vst.msk [vmem:[#allocation3 + $0xa8] sm:$0xf] %vm2728, %v2649
      %2744 = vst.msk [vmem:[#allocation3 + $0xb4] sm:$0xf] %vm2728, %v2651
      %2745 = vst.msk [vmem:[#allocation3 + $0xc0] sm:$0xf] %vm2728, %v2653
      %2746 = vst.msk [vmem:[#allocation3 + $0xcc] sm:$0xf] %vm2728, %v2655
      %2747 = vst.msk [vmem:[#allocation3 + $0xd8] sm:$0xf] %vm2728, %v2657
      %2748 = vst.msk [vmem:[#allocation3 + $0xe4] sm:$0xf] %vm2728, %v2659
      %2749 = vst.msk [vmem:[#allocation3 + $0xf0] sm:$0xf] %vm2728, %v2661
      %2750 = vst.msk [vmem:[#allocation3 + $0xfc] sm:$0xf] %vm2728, %v2663
      %2751 = vst.msk [vmem:[#allocation3 + $0x108] sm:$0xf] %vm2728, %v2665
      %2752 = vst.msk [vmem:[#allocation3 + $0x114] sm:$0xf] %vm2728, %v2667
      %2753 = vst.msk [vmem:[#allocation3 + $0x120] sm:$0xf] %vm2728, %v2669
      %2754 = vst.msk [vmem:[#allocation3 + $0x12c] sm:$0xf] %vm2728, %v2671
      %2755 = vst.msk [vmem:[#allocation3 + $0x138] sm:$0xf] %vm2728, %v2673
      %2756 = vst.msk [vmem:[#allocation3 + $0x144] sm:$0xf] %vm2728, %v2675
      %2757 = vst.msk [vmem:[#allocation3 + $0x150] sm:$0xf] %vm2728, %v2677
      %2758 = vst.msk [vmem:[#allocation3 + $0x15c] sm:$0xf] %vm2728, %v2679
      %2759 = vst.msk [vmem:[#allocation3 + $0x168] sm:$0xf] %vm2728, %v2681
      %2760 = vst.msk [vmem:[#allocation3 + $0x174] sm:$0xf] %vm2728, %v2683
      %2761 = vst.msk [vmem:[#allocation3 + $0x180] sm:$0xf] %vm2728, %v2685
      %2762 = vst.msk [vmem:[#allocation3 + $0x18c] sm:$0xf] %vm2728, %v2687
      %2763 = vst.msk [vmem:[#allocation3 + $0x198] sm:$0xf] %vm2728, %v2689
      %2764 = vst.msk [vmem:[#allocation3 + $0x1a4] sm:$0xf] %vm2728, %v2691
      %v2765 = vld [vmem:[#allocation2 + $0x17] sm:$0xff]
      %v2766 = vld [vmem:[#allocation2 + $0x1f] sm:$0xff]
      %v2767 = vld [vmem:[#allocation2 + $0x27] sm:$0xff]
      %v2768 = vld [vmem:[#allocation2 + $0x2f] sm:$0xff]
      %v2769 = vld [vmem:[#allocation2 + $0x37] sm:$0xff]
      %v2770 = vld [vmem:[#allocation2 + $0x3f] sm:$0xff]
      %v2771 = vld [vmem:[#allocation2 + $0x47] sm:$0xff]
      %v2772 = vld [vmem:[#allocation2 + $0x4f] sm:$0xff]
      %v2773 = vld [vmem:[#allocation2 + $0x57] sm:$0xff]
      %v2774 = vld [vmem:[#allocation2 + $0x5f] sm:$0xff]
      %v2775 = vld [vmem:[#allocation2 + $0x67] sm:$0xff]
      %v2776 = vld [vmem:[#allocation2 + $0x6f] sm:$0xff]
      %v2777 = vld [vmem:[#allocation2 + $0x77] sm:$0xff]
      %v2778 = vld [vmem:[#allocation2 + $0x7f] sm:$0xff]
      %v2779 = vld [vmem:[#allocation2 + $0x87] sm:$0xff]
      %v2780 = vld [vmem:[#allocation2 + $0x8f] sm:$0xff]
      %v2781 = vld [vmem:[#allocation2 + $0x97] sm:$0xff]
      %v2782 = vld [vmem:[#allocation2 + $0x9f] sm:$0xff]
      %v2783 = vld [vmem:[#allocation2 + $0xa7] sm:$0xff]
      %v2784 = vld [vmem:[#allocation2 + $0xaf] sm:$0xff]
      %v2785 = vld [vmem:[#allocation2 + $0xb7] sm:$0xff]
      %v2786 = vld [vmem:[#allocation2 + $0xbf] sm:$0xff]
      %v2787 = vld [vmem:[#allocation2 + $0xc7] sm:$0xff]
      %v2788 = vld [vmem:[#allocation2 + $0xcf] sm:$0xff]
      %v2789 = vld [vmem:[#allocation2 + $0xd7] sm:$0xff]
      %v2790 = vld [vmem:[#allocation2 + $0xdf] sm:$0xff]
      %v2791 = vld [vmem:[#allocation2 + $0xe7] sm:$0xff]
      %v2792 = vld [vmem:[#allocation2 + $0xef] sm:$0xff]
      %v2793 = vld [vmem:[#allocation2 + $0xf7] sm:$0xff]
      %v2794 = vld [vmem:[#allocation2 + $0xff] sm:$0xff]
      %v2795 = vld [vmem:[#allocation2 + $0x107] sm:$0xff]
      %v2796 = vld [vmem:[#allocation2 + $0x10f] sm:$0xff]
      %v2797 = vld [vmem:[#allocation2 + $0x117] sm:$0xff]
      %v2798 = vld [vmem:[#allocation2 + $0x11f] sm:$0xff]
      %v2799 = vld [vmem:[#allocation2 + $0x127] sm:$0xff]
      %v2800 = vld [vmem:[#allocation2 + $0x12f] sm:$0xff]
      %v2801 = vpack.c.bf16 %v2765, %v2765
      %v2802 = vpack.c.bf16 %v2766, %v2766
      %v2803 = vpack.c.bf16 %v2767, %v2767
      %v2804 = vpack.c.bf16 %v2768, %v2768
      %v2805 = vpack.c.bf16 %v2769, %v2769
      %v2806 = vpack.c.bf16 %v2770, %v2770
      %v2807 = vpack.c.bf16 %v2771, %v2771
      %v2808 = vpack.c.bf16 %v2772, %v2772
      %v2809 = vpack.c.bf16 %v2773, %v2773
      %v2810 = vpack.c.bf16 %v2774, %v2774
      %v2811 = vpack.c.bf16 %v2775, %v2775
      %v2812 = vpack.c.bf16 %v2776, %v2776
      %v2813 = vpack.c.bf16 %v2777, %v2777
      %v2814 = vpack.c.bf16 %v2778, %v2778
      %v2815 = vpack.c.bf16 %v2779, %v2779
      %v2816 = vpack.c.bf16 %v2780, %v2780
      %v2817 = vpack.c.bf16 %v2781, %v2781
      %v2818 = vpack.c.bf16 %v2782, %v2782
      %v2819 = vpack.c.bf16 %v2783, %v2783
      %v2820 = vpack.c.bf16 %v2784, %v2784
      %v2821 = vpack.c.bf16 %v2785, %v2785
      %v2822 = vpack.c.bf16 %v2786, %v2786
      %v2823 = vpack.c.bf16 %v2787, %v2787
      %v2824 = vpack.c.bf16 %v2788, %v2788
      %v2825 = vpack.c.bf16 %v2789, %v2789
      %v2826 = vpack.c.bf16 %v2790, %v2790
      %v2827 = vpack.c.bf16 %v2791, %v2791
      %v2828 = vpack.c.bf16 %v2792, %v2792
      %v2829 = vpack.c.bf16 %v2793, %v2793
      %v2830 = vpack.c.bf16 %v2794, %v2794
      %v2831 = vpack.c.bf16 %v2795, %v2795
      %v2832 = vpack.c.bf16 %v2796, %v2796
      %v2833 = vpack.c.bf16 %v2797, %v2797
      %v2834 = vpack.c.bf16 %v2798, %v2798
      %v2835 = vpack.c.bf16 %v2799, %v2799
      %v2836 = vpack.c.bf16 %v2800, %v2800
      %2873 = vrot.lane.b32.xlu0 %v2801, 96
      %v2874 = vpop.permute.xlu0 %2873
      %2875 = vrot.lane.b32.xlu0 %v2802, 96
      %v2876 = vpop.permute.xlu0 %2875
      %2877 = vrot.lane.b32.xlu0 %v2803, 96
      %v2878 = vpop.permute.xlu0 %2877
      %2879 = vrot.lane.b32.xlu0 %v2804, 96
      %v2880 = vpop.permute.xlu0 %2879
      %2881 = vrot.lane.b32.xlu0 %v2805, 96
      %v2882 = vpop.permute.xlu0 %2881
      %2883 = vrot.lane.b32.xlu0 %v2806, 96
      %v2884 = vpop.permute.xlu0 %2883
      %2885 = vrot.lane.b32.xlu0 %v2807, 96
      %v2886 = vpop.permute.xlu0 %2885
      %2887 = vrot.lane.b32.xlu0 %v2808, 96
      %v2888 = vpop.permute.xlu0 %2887
      %2889 = vrot.lane.b32.xlu0 %v2809, 96
      %v2890 = vpop.permute.xlu0 %2889
      %2891 = vrot.lane.b32.xlu0 %v2810, 96
      %v2892 = vpop.permute.xlu0 %2891
      %2893 = vrot.lane.b32.xlu0 %v2811, 96
      %v2894 = vpop.permute.xlu0 %2893
      %2895 = vrot.lane.b32.xlu0 %v2812, 96
      %v2896 = vpop.permute.xlu0 %2895
      %2897 = vrot.lane.b32.xlu0 %v2813, 96
      %v2898 = vpop.permute.xlu0 %2897
      %2899 = vrot.lane.b32.xlu0 %v2814, 96
      %v2900 = vpop.permute.xlu0 %2899
      %2901 = vrot.lane.b32.xlu0 %v2815, 96
      %v2902 = vpop.permute.xlu0 %2901
      %2903 = vrot.lane.b32.xlu0 %v2816, 96
      %v2904 = vpop.permute.xlu0 %2903
      %2905 = vrot.lane.b32.xlu0 %v2817, 96
      %v2906 = vpop.permute.xlu0 %2905
      %2907 = vrot.lane.b32.xlu0 %v2818, 96
      %v2908 = vpop.permute.xlu0 %2907
      %2909 = vrot.lane.b32.xlu0 %v2819, 96
      %v2910 = vpop.permute.xlu0 %2909
      %2911 = vrot.lane.b32.xlu0 %v2820, 96
      %v2912 = vpop.permute.xlu0 %2911
      %2913 = vrot.lane.b32.xlu0 %v2821, 96
      %v2914 = vpop.permute.xlu0 %2913
      %2915 = vrot.lane.b32.xlu0 %v2822, 96
      %v2916 = vpop.permute.xlu0 %2915
      %2917 = vrot.lane.b32.xlu0 %v2823, 96
      %v2918 = vpop.permute.xlu0 %2917
      %2919 = vrot.lane.b32.xlu0 %v2824, 96
      %v2920 = vpop.permute.xlu0 %2919
      %2921 = vrot.lane.b32.xlu0 %v2825, 96
      %v2922 = vpop.permute.xlu0 %2921
      %2923 = vrot.lane.b32.xlu0 %v2826, 96
      %v2924 = vpop.permute.xlu0 %2923
      %2925 = vrot.lane.b32.xlu0 %v2827, 96
      %v2926 = vpop.permute.xlu0 %2925
      %2927 = vrot.lane.b32.xlu0 %v2828, 96
      %v2928 = vpop.permute.xlu0 %2927
      %2929 = vrot.lane.b32.xlu0 %v2829, 96
      %v2930 = vpop.permute.xlu0 %2929
      %2931 = vrot.lane.b32.xlu0 %v2830, 96
      %v2932 = vpop.permute.xlu0 %2931
      %2933 = vrot.lane.b32.xlu0 %v2831, 96
      %v2934 = vpop.permute.xlu0 %2933
      %2935 = vrot.lane.b32.xlu0 %v2832, 96
      %v2936 = vpop.permute.xlu0 %2935
      %2937 = vrot.lane.b32.xlu0 %v2833, 96
      %v2938 = vpop.permute.xlu0 %2937
      %2939 = vrot.lane.b32.xlu0 %v2834, 96
      %v2940 = vpop.permute.xlu0 %2939
      %2941 = vrot.lane.b32.xlu0 %v2835, 96
      %v2942 = vpop.permute.xlu0 %2941
      %2943 = vrot.lane.b32.xlu0 %v2836, 96
      %v2944 = vpop.permute.xlu0 %2943
      %vm2981 = vcmask 1044224
      %2982 = vst.msk [vmem:[#allocation3] sm:$0xf] %vm2981, %v2874
      %2983 = vst.msk [vmem:[#allocation3 + $0xc] sm:$0xf] %vm2981, %v2876
      %2984 = vst.msk [vmem:[#allocation3 + $0x18] sm:$0xf] %vm2981, %v2878
      %2985 = vst.msk [vmem:[#allocation3 + $0x24] sm:$0xf] %vm2981, %v2880
      %2986 = vst.msk [vmem:[#allocation3 + $0x30] sm:$0xf] %vm2981, %v2882
      %2987 = vst.msk [vmem:[#allocation3 + $0x3c] sm:$0xf] %vm2981, %v2884
      %2988 = vst.msk [vmem:[#allocation3 + $0x48] sm:$0xf] %vm2981, %v2886
      %2989 = vst.msk [vmem:[#allocation3 + $0x54] sm:$0xf] %vm2981, %v2888
      %2990 = vst.msk [vmem:[#allocation3 + $0x60] sm:$0xf] %vm2981, %v2890
      %2991 = vst.msk [vmem:[#allocation3 + $0x6c] sm:$0xf] %vm2981, %v2892
      %2992 = vst.msk [vmem:[#allocation3 + $0x78] sm:$0xf] %vm2981, %v2894
      %2993 = vst.msk [vmem:[#allocation3 + $0x84] sm:$0xf] %vm2981, %v2896
      %2994 = vst.msk [vmem:[#allocation3 + $0x90] sm:$0xf] %vm2981, %v2898
      %2995 = vst.msk [vmem:[#allocation3 + $0x9c] sm:$0xf] %vm2981, %v2900
      %2996 = vst.msk [vmem:[#allocation3 + $0xa8] sm:$0xf] %vm2981, %v2902
      %2997 = vst.msk [vmem:[#allocation3 + $0xb4] sm:$0xf] %vm2981, %v2904
      %2998 = vst.msk [vmem:[#allocation3 + $0xc0] sm:$0xf] %vm2981, %v2906
      %2999 = vst.msk [vmem:[#allocation3 + $0xcc] sm:$0xf] %vm2981, %v2908
      %3000 = vst.msk [vmem:[#allocation3 + $0xd8] sm:$0xf] %vm2981, %v2910
      %3001 = vst.msk [vmem:[#allocation3 + $0xe4] sm:$0xf] %vm2981, %v2912
      %3002 = vst.msk [vmem:[#allocation3 + $0xf0] sm:$0xf] %vm2981, %v2914
      %3003 = vst.msk [vmem:[#allocation3 + $0xfc] sm:$0xf] %vm2981, %v2916
      %3004 = vst.msk [vmem:[#allocation3 + $0x108] sm:$0xf] %vm2981, %v2918
      %3005 = vst.msk [vmem:[#allocation3 + $0x114] sm:$0xf] %vm2981, %v2920
      %3006 = vst.msk [vmem:[#allocation3 + $0x120] sm:$0xf] %vm2981, %v2922
      %3007 = vst.msk [vmem:[#allocation3 + $0x12c] sm:$0xf] %vm2981, %v2924
      %3008 = vst.msk [vmem:[#allocation3 + $0x138] sm:$0xf] %vm2981, %v2926
      %3009 = vst.msk [vmem:[#allocation3 + $0x144] sm:$0xf] %vm2981, %v2928
      %3010 = vst.msk [vmem:[#allocation3 + $0x150] sm:$0xf] %vm2981, %v2930
      %3011 = vst.msk [vmem:[#allocation3 + $0x15c] sm:$0xf] %vm2981, %v2932
      %3012 = vst.msk [vmem:[#allocation3 + $0x168] sm:$0xf] %vm2981, %v2934
      %3013 = vst.msk [vmem:[#allocation3 + $0x174] sm:$0xf] %vm2981, %v2936
      %3014 = vst.msk [vmem:[#allocation3 + $0x180] sm:$0xf] %vm2981, %v2938
      %3015 = vst.msk [vmem:[#allocation3 + $0x18c] sm:$0xf] %vm2981, %v2940
      %3016 = vst.msk [vmem:[#allocation3 + $0x198] sm:$0xf] %vm2981, %v2942
      %3017 = vst.msk [vmem:[#allocation3 + $0x1a4] sm:$0xf] %vm2981, %v2944
      %v3018 = vld [vmem:[#allocation2 + $0x18] sm:$0xff]
      %v3019 = vld [vmem:[#allocation2 + $0x20] sm:$0xff]
      %v3020 = vld [vmem:[#allocation2 + $0x28] sm:$0xff]
      %v3021 = vld [vmem:[#allocation2 + $0x30] sm:$0xff]
      %v3022 = vld [vmem:[#allocation2 + $0x38] sm:$0xff]
      %v3023 = vld [vmem:[#allocation2 + $0x40] sm:$0xff]
      %v3024 = vld [vmem:[#allocation2 + $0x48] sm:$0xff]
      %v3025 = vld [vmem:[#allocation2 + $0x50] sm:$0xff]
      %v3026 = vld [vmem:[#allocation2 + $0x58] sm:$0xff]
      %v3027 = vld [vmem:[#allocation2 + $0x60] sm:$0xff]
      %v3028 = vld [vmem:[#allocation2 + $0x68] sm:$0xff]
      %v3029 = vld [vmem:[#allocation2 + $0x70] sm:$0xff]
      %v3030 = vld [vmem:[#allocation2 + $0x78] sm:$0xff]
      %v3031 = vld [vmem:[#allocation2 + $0x80] sm:$0xff]
      %v3032 = vld [vmem:[#allocation2 + $0x88] sm:$0xff]
      %v3033 = vld [vmem:[#allocation2 + $0x90] sm:$0xff]
      %v3034 = vld [vmem:[#allocation2 + $0x98] sm:$0xff]
      %v3035 = vld [vmem:[#allocation2 + $0xa0] sm:$0xff]
      %v3036 = vld [vmem:[#allocation2 + $0xa8] sm:$0xff]
      %v3037 = vld [vmem:[#allocation2 + $0xb0] sm:$0xff]
      %v3038 = vld [vmem:[#allocation2 + $0xb8] sm:$0xff]
      %v3039 = vld [vmem:[#allocation2 + $0xc0] sm:$0xff]
      %v3040 = vld [vmem:[#allocation2 + $0xc8] sm:$0xff]
      %v3041 = vld [vmem:[#allocation2 + $0xd0] sm:$0xff]
      %v3042 = vld [vmem:[#allocation2 + $0xd8] sm:$0xff]
      %v3043 = vld [vmem:[#allocation2 + $0xe0] sm:$0xff]
      %v3044 = vld [vmem:[#allocation2 + $0xe8] sm:$0xff]
      %v3045 = vld [vmem:[#allocation2 + $0xf0] sm:$0xff]
      %v3046 = vld [vmem:[#allocation2 + $0xf8] sm:$0xff]
      %v3047 = vld [vmem:[#allocation2 + $0x100] sm:$0xff]
      %v3048 = vld [vmem:[#allocation2 + $0x108] sm:$0xff]
      %v3049 = vld [vmem:[#allocation2 + $0x110] sm:$0xff]
      %v3050 = vld [vmem:[#allocation2 + $0x118] sm:$0xff]
      %v3051 = vld [vmem:[#allocation2 + $0x120] sm:$0xff]
      %v3052 = vld [vmem:[#allocation2 + $0x128] sm:$0xff]
      %v3053 = vld [vmem:[#allocation2 + $0x130] sm:$0xff]
      %v3054 = vpack.c.bf16 %v3018, %v3018
      %v3055 = vpack.c.bf16 %v3019, %v3019
      %v3056 = vpack.c.bf16 %v3020, %v3020
      %v3057 = vpack.c.bf16 %v3021, %v3021
      %v3058 = vpack.c.bf16 %v3022, %v3022
      %v3059 = vpack.c.bf16 %v3023, %v3023
      %v3060 = vpack.c.bf16 %v3024, %v3024
      %v3061 = vpack.c.bf16 %v3025, %v3025
      %v3062 = vpack.c.bf16 %v3026, %v3026
      %v3063 = vpack.c.bf16 %v3027, %v3027
      %v3064 = vpack.c.bf16 %v3028, %v3028
      %v3065 = vpack.c.bf16 %v3029, %v3029
      %v3066 = vpack.c.bf16 %v3030, %v3030
      %v3067 = vpack.c.bf16 %v3031, %v3031
      %v3068 = vpack.c.bf16 %v3032, %v3032
      %v3069 = vpack.c.bf16 %v3033, %v3033
      %v3070 = vpack.c.bf16 %v3034, %v3034
      %v3071 = vpack.c.bf16 %v3035, %v3035
      %v3072 = vpack.c.bf16 %v3036, %v3036
      %v3073 = vpack.c.bf16 %v3037, %v3037
      %v3074 = vpack.c.bf16 %v3038, %v3038
      %v3075 = vpack.c.bf16 %v3039, %v3039
      %v3076 = vpack.c.bf16 %v3040, %v3040
      %v3077 = vpack.c.bf16 %v3041, %v3041
      %v3078 = vpack.c.bf16 %v3042, %v3042
      %v3079 = vpack.c.bf16 %v3043, %v3043
      %v3080 = vpack.c.bf16 %v3044, %v3044
      %v3081 = vpack.c.bf16 %v3045, %v3045
      %v3082 = vpack.c.bf16 %v3046, %v3046
      %v3083 = vpack.c.bf16 %v3047, %v3047
      %v3084 = vpack.c.bf16 %v3048, %v3048
      %v3085 = vpack.c.bf16 %v3049, %v3049
      %v3086 = vpack.c.bf16 %v3050, %v3050
      %v3087 = vpack.c.bf16 %v3051, %v3051
      %v3088 = vpack.c.bf16 %v3052, %v3052
      %v3089 = vpack.c.bf16 %v3053, %v3053
      %3090 = vst.msk [vmem:[#allocation3 + $0x4] sm:$0xf] %vm2222, %v3054
      %3091 = vst.msk [vmem:[#allocation3 + $0x10] sm:$0xf] %vm2222, %v3055
      %3092 = vst.msk [vmem:[#allocation3 + $0x1c] sm:$0xf] %vm2222, %v3056
      %3093 = vst.msk [vmem:[#allocation3 + $0x28] sm:$0xf] %vm2222, %v3057
      %3094 = vst.msk [vmem:[#allocation3 + $0x34] sm:$0xf] %vm2222, %v3058
      %3095 = vst.msk [vmem:[#allocation3 + $0x40] sm:$0xf] %vm2222, %v3059
      %3096 = vst.msk [vmem:[#allocation3 + $0x4c] sm:$0xf] %vm2222, %v3060
      %3097 = vst.msk [vmem:[#allocation3 + $0x58] sm:$0xf] %vm2222, %v3061
      %3098 = vst.msk [vmem:[#allocation3 + $0x64] sm:$0xf] %vm2222, %v3062
      %3099 = vst.msk [vmem:[#allocation3 + $0x70] sm:$0xf] %vm2222, %v3063
      %3100 = vst.msk [vmem:[#allocation3 + $0x7c] sm:$0xf] %vm2222, %v3064
      %3101 = vst.msk [vmem:[#allocation3 + $0x88] sm:$0xf] %vm2222, %v3065
      %3102 = vst.msk [vmem:[#allocation3 + $0x94] sm:$0xf] %vm2222, %v3066
      %3103 = vst.msk [vmem:[#allocation3 + $0xa0] sm:$0xf] %vm2222, %v3067
      %3104 = vst.msk [vmem:[#allocation3 + $0xac] sm:$0xf] %vm2222, %v3068
      %3105 = vst.msk [vmem:[#allocation3 + $0xb8] sm:$0xf] %vm2222, %v3069
      %3106 = vst.msk [vmem:[#allocation3 + $0xc4] sm:$0xf] %vm2222, %v3070
      %3107 = vst.msk [vmem:[#allocation3 + $0xd0] sm:$0xf] %vm2222, %v3071
      %3108 = vst.msk [vmem:[#allocation3 + $0xdc] sm:$0xf] %vm2222, %v3072
      %3109 = vst.msk [vmem:[#allocation3 + $0xe8] sm:$0xf] %vm2222, %v3073
      %3110 = vst.msk [vmem:[#allocation3 + $0xf4] sm:$0xf] %vm2222, %v3074
      %3111 = vst.msk [vmem:[#allocation3 + $0x100] sm:$0xf] %vm2222, %v3075
      %3112 = vst.msk [vmem:[#allocation3 + $0x10c] sm:$0xf] %vm2222, %v3076
      %3113 = vst.msk [vmem:[#allocation3 + $0x118] sm:$0xf] %vm2222, %v3077
      %3114 = vst.msk [vmem:[#allocation3 + $0x124] sm:$0xf] %vm2222, %v3078
      %3115 = vst.msk [vmem:[#allocation3 + $0x130] sm:$0xf] %vm2222, %v3079
      %3116 = vst.msk [vmem:[#allocation3 + $0x13c] sm:$0xf] %vm2222, %v3080
      %3117 = vst.msk [vmem:[#allocation3 + $0x148] sm:$0xf] %vm2222, %v3081
      %3118 = vst.msk [vmem:[#allocation3 + $0x154] sm:$0xf] %vm2222, %v3082
      %3119 = vst.msk [vmem:[#allocation3 + $0x160] sm:$0xf] %vm2222, %v3083
      %3120 = vst.msk [vmem:[#allocation3 + $0x16c] sm:$0xf] %vm2222, %v3084
      %3121 = vst.msk [vmem:[#allocation3 + $0x178] sm:$0xf] %vm2222, %v3085
      %3122 = vst.msk [vmem:[#allocation3 + $0x184] sm:$0xf] %vm2222, %v3086
      %3123 = vst.msk [vmem:[#allocation3 + $0x190] sm:$0xf] %vm2222, %v3087
      %3124 = vst.msk [vmem:[#allocation3 + $0x19c] sm:$0xf] %vm2222, %v3088
      %3125 = vst.msk [vmem:[#allocation3 + $0x1a8] sm:$0xf] %vm2222, %v3089
      %v3126 = vld [vmem:[#allocation2 + $0x19] sm:$0xff]
      %v3127 = vld [vmem:[#allocation2 + $0x21] sm:$0xff]
      %v3128 = vld [vmem:[#allocation2 + $0x29] sm:$0xff]
      %v3129 = vld [vmem:[#allocation2 + $0x31] sm:$0xff]
      %v3130 = vld [vmem:[#allocation2 + $0x39] sm:$0xff]
      %v3131 = vld [vmem:[#allocation2 + $0x41] sm:$0xff]
      %v3132 = vld [vmem:[#allocation2 + $0x49] sm:$0xff]
      %v3133 = vld [vmem:[#allocation2 + $0x51] sm:$0xff]
      %v3134 = vld [vmem:[#allocation2 + $0x59] sm:$0xff]
      %v3135 = vld [vmem:[#allocation2 + $0x61] sm:$0xff]
      %v3136 = vld [vmem:[#allocation2 + $0x69] sm:$0xff]
      %v3137 = vld [vmem:[#allocation2 + $0x71] sm:$0xff]
      %v3138 = vld [vmem:[#allocation2 + $0x79] sm:$0xff]
      %v3139 = vld [vmem:[#allocation2 + $0x81] sm:$0xff]
      %v3140 = vld [vmem:[#allocation2 + $0x89] sm:$0xff]
      %v3141 = vld [vmem:[#allocation2 + $0x91] sm:$0xff]
      %v3142 = vld [vmem:[#allocation2 + $0x99] sm:$0xff]
      %v3143 = vld [vmem:[#allocation2 + $0xa1] sm:$0xff]
      %v3144 = vld [vmem:[#allocation2 + $0xa9] sm:$0xff]
      %v3145 = vld [vmem:[#allocation2 + $0xb1] sm:$0xff]
      %v3146 = vld [vmem:[#allocation2 + $0xb9] sm:$0xff]
      %v3147 = vld [vmem:[#allocation2 + $0xc1] sm:$0xff]
      %v3148 = vld [vmem:[#allocation2 + $0xc9] sm:$0xff]
      %v3149 = vld [vmem:[#allocation2 + $0xd1] sm:$0xff]
      %v3150 = vld [vmem:[#allocation2 + $0xd9] sm:$0xff]
      %v3151 = vld [vmem:[#allocation2 + $0xe1] sm:$0xff]
      %v3152 = vld [vmem:[#allocation2 + $0xe9] sm:$0xff]
      %v3153 = vld [vmem:[#allocation2 + $0xf1] sm:$0xff]
      %v3154 = vld [vmem:[#allocation2 + $0xf9] sm:$0xff]
      %v3155 = vld [vmem:[#allocation2 + $0x101] sm:$0xff]
      %v3156 = vld [vmem:[#allocation2 + $0x109] sm:$0xff]
      %v3157 = vld [vmem:[#allocation2 + $0x111] sm:$0xff]
      %v3158 = vld [vmem:[#allocation2 + $0x119] sm:$0xff]
      %v3159 = vld [vmem:[#allocation2 + $0x121] sm:$0xff]
      %v3160 = vld [vmem:[#allocation2 + $0x129] sm:$0xff]
      %v3161 = vld [vmem:[#allocation2 + $0x131] sm:$0xff]
      %v3162 = vpack.c.bf16 %v3126, %v3126
      %v3163 = vpack.c.bf16 %v3127, %v3127
      %v3164 = vpack.c.bf16 %v3128, %v3128
      %v3165 = vpack.c.bf16 %v3129, %v3129
      %v3166 = vpack.c.bf16 %v3130, %v3130
      %v3167 = vpack.c.bf16 %v3131, %v3131
      %v3168 = vpack.c.bf16 %v3132, %v3132
      %v3169 = vpack.c.bf16 %v3133, %v3133
      %v3170 = vpack.c.bf16 %v3134, %v3134
      %v3171 = vpack.c.bf16 %v3135, %v3135
      %v3172 = vpack.c.bf16 %v3136, %v3136
      %v3173 = vpack.c.bf16 %v3137, %v3137
      %v3174 = vpack.c.bf16 %v3138, %v3138
      %v3175 = vpack.c.bf16 %v3139, %v3139
      %v3176 = vpack.c.bf16 %v3140, %v3140
      %v3177 = vpack.c.bf16 %v3141, %v3141
      %v3178 = vpack.c.bf16 %v3142, %v3142
      %v3179 = vpack.c.bf16 %v3143, %v3143
      %v3180 = vpack.c.bf16 %v3144, %v3144
      %v3181 = vpack.c.bf16 %v3145, %v3145
      %v3182 = vpack.c.bf16 %v3146, %v3146
      %v3183 = vpack.c.bf16 %v3147, %v3147
      %v3184 = vpack.c.bf16 %v3148, %v3148
      %v3185 = vpack.c.bf16 %v3149, %v3149
      %v3186 = vpack.c.bf16 %v3150, %v3150
      %v3187 = vpack.c.bf16 %v3151, %v3151
      %v3188 = vpack.c.bf16 %v3152, %v3152
      %v3189 = vpack.c.bf16 %v3153, %v3153
      %v3190 = vpack.c.bf16 %v3154, %v3154
      %v3191 = vpack.c.bf16 %v3155, %v3155
      %v3192 = vpack.c.bf16 %v3156, %v3156
      %v3193 = vpack.c.bf16 %v3157, %v3157
      %v3194 = vpack.c.bf16 %v3158, %v3158
      %v3195 = vpack.c.bf16 %v3159, %v3159
      %v3196 = vpack.c.bf16 %v3160, %v3160
      %v3197 = vpack.c.bf16 %v3161, %v3161
      %3234 = vrot.lane.b32.xlu0 %v3162, 32
      %v3235 = vpop.permute.xlu0 %3234
      %3236 = vrot.lane.b32.xlu0 %v3163, 32
      %v3237 = vpop.permute.xlu0 %3236
      %3238 = vrot.lane.b32.xlu0 %v3164, 32
      %v3239 = vpop.permute.xlu0 %3238
      %3240 = vrot.lane.b32.xlu0 %v3165, 32
      %v3241 = vpop.permute.xlu0 %3240
      %3242 = vrot.lane.b32.xlu0 %v3166, 32
      %v3243 = vpop.permute.xlu0 %3242
      %3244 = vrot.lane.b32.xlu0 %v3167, 32
      %v3245 = vpop.permute.xlu0 %3244
      %3246 = vrot.lane.b32.xlu0 %v3168, 32
      %v3247 = vpop.permute.xlu0 %3246
      %3248 = vrot.lane.b32.xlu0 %v3169, 32
      %v3249 = vpop.permute.xlu0 %3248
      %3250 = vrot.lane.b32.xlu0 %v3170, 32
      %v3251 = vpop.permute.xlu0 %3250
      %3252 = vrot.lane.b32.xlu0 %v3171, 32
      %v3253 = vpop.permute.xlu0 %3252
      %3254 = vrot.lane.b32.xlu0 %v3172, 32
      %v3255 = vpop.permute.xlu0 %3254
      %3256 = vrot.lane.b32.xlu0 %v3173, 32
      %v3257 = vpop.permute.xlu0 %3256
      %3258 = vrot.lane.b32.xlu0 %v3174, 32
      %v3259 = vpop.permute.xlu0 %3258
      %3260 = vrot.lane.b32.xlu0 %v3175, 32
      %v3261 = vpop.permute.xlu0 %3260
      %3262 = vrot.lane.b32.xlu0 %v3176, 32
      %v3263 = vpop.permute.xlu0 %3262
      %3264 = vrot.lane.b32.xlu0 %v3177, 32
      %v3265 = vpop.permute.xlu0 %3264
      %3266 = vrot.lane.b32.xlu0 %v3178, 32
      %v3267 = vpop.permute.xlu0 %3266
      %3268 = vrot.lane.b32.xlu0 %v3179, 32
      %v3269 = vpop.permute.xlu0 %3268
      %3270 = vrot.lane.b32.xlu0 %v3180, 32
      %v3271 = vpop.permute.xlu0 %3270
      %3272 = vrot.lane.b32.xlu0 %v3181, 32
      %v3273 = vpop.permute.xlu0 %3272
      %3274 = vrot.lane.b32.xlu0 %v3182, 32
      %v3275 = vpop.permute.xlu0 %3274
      %3276 = vrot.lane.b32.xlu0 %v3183, 32
      %v3277 = vpop.permute.xlu0 %3276
      %3278 = vrot.lane.b32.xlu0 %v3184, 32
      %v3279 = vpop.permute.xlu0 %3278
      %3280 = vrot.lane.b32.xlu0 %v3185, 32
      %v3281 = vpop.permute.xlu0 %3280
      %3282 = vrot.lane.b32.xlu0 %v3186, 32
      %v3283 = vpop.permute.xlu0 %3282
      %3284 = vrot.lane.b32.xlu0 %v3187, 32
      %v3285 = vpop.permute.xlu0 %3284
      %3286 = vrot.lane.b32.xlu0 %v3188, 32
      %v3287 = vpop.permute.xlu0 %3286
      %3288 = vrot.lane.b32.xlu0 %v3189, 32
      %v3289 = vpop.permute.xlu0 %3288
      %3290 = vrot.lane.b32.xlu0 %v3190, 32
      %v3291 = vpop.permute.xlu0 %3290
      %3292 = vrot.lane.b32.xlu0 %v3191, 32
      %v3293 = vpop.permute.xlu0 %3292
      %3294 = vrot.lane.b32.xlu0 %v3192, 32
      %v3295 = vpop.permute.xlu0 %3294
      %3296 = vrot.lane.b32.xlu0 %v3193, 32
      %v3297 = vpop.permute.xlu0 %3296
      %3298 = vrot.lane.b32.xlu0 %v3194, 32
      %v3299 = vpop.permute.xlu0 %3298
      %3300 = vrot.lane.b32.xlu0 %v3195, 32
      %v3301 = vpop.permute.xlu0 %3300
      %3302 = vrot.lane.b32.xlu0 %v3196, 32
      %v3303 = vpop.permute.xlu0 %3302
      %3304 = vrot.lane.b32.xlu0 %v3197, 32
      %v3305 = vpop.permute.xlu0 %3304
      %3342 = vst.msk [vmem:[#allocation3 + $0x4] sm:$0xf] %vm2475, %v3235
      %3343 = vst.msk [vmem:[#allocation3 + $0x10] sm:$0xf] %vm2475, %v3237
      %3344 = vst.msk [vmem:[#allocation3 + $0x1c] sm:$0xf] %vm2475, %v3239
      %3345 = vst.msk [vmem:[#allocation3 + $0x28] sm:$0xf] %vm2475, %v3241
      %3346 = vst.msk [vmem:[#allocation3 + $0x34] sm:$0xf] %vm2475, %v3243
      %3347 = vst.msk [vmem:[#allocation3 + $0x40] sm:$0xf] %vm2475, %v3245
      %3348 = vst.msk [vmem:[#allocation3 + $0x4c] sm:$0xf] %vm2475, %v3247
      %3349 = vst.msk [vmem:[#allocation3 + $0x58] sm:$0xf] %vm2475, %v3249
      %3350 = vst.msk [vmem:[#allocation3 + $0x64] sm:$0xf] %vm2475, %v3251
      %3351 = vst.msk [vmem:[#allocation3 + $0x70] sm:$0xf] %vm2475, %v3253
      %3352 = vst.msk [vmem:[#allocation3 + $0x7c] sm:$0xf] %vm2475, %v3255
      %3353 = vst.msk [vmem:[#allocation3 + $0x88] sm:$0xf] %vm2475, %v3257
      %3354 = vst.msk [vmem:[#allocation3 + $0x94] sm:$0xf] %vm2475, %v3259
      %3355 = vst.msk [vmem:[#allocation3 + $0xa0] sm:$0xf] %vm2475, %v3261
      %3356 = vst.msk [vmem:[#allocation3 + $0xac] sm:$0xf] %vm2475, %v3263
      %3357 = vst.msk [vmem:[#allocation3 + $0xb8] sm:$0xf] %vm2475, %v3265
      %3358 = vst.msk [vmem:[#allocation3 + $0xc4] sm:$0xf] %vm2475, %v3267
      %3359 = vst.msk [vmem:[#allocation3 + $0xd0] sm:$0xf] %vm2475, %v3269
      %3360 = vst.msk [vmem:[#allocation3 + $0xdc] sm:$0xf] %vm2475, %v3271
      %3361 = vst.msk [vmem:[#allocation3 + $0xe8] sm:$0xf] %vm2475, %v3273
      %3362 = vst.msk [vmem:[#allocation3 + $0xf4] sm:$0xf] %vm2475, %v3275
      %3363 = vst.msk [vmem:[#allocation3 + $0x100] sm:$0xf] %vm2475, %v3277
      %3364 = vst.msk [vmem:[#allocation3 + $0x10c] sm:$0xf] %vm2475, %v3279
      %3365 = vst.msk [vmem:[#allocation3 + $0x118] sm:$0xf] %vm2475, %v3281
      %3366 = vst.msk [vmem:[#allocation3 + $0x124] sm:$0xf] %vm2475, %v3283
      %3367 = vst.msk [vmem:[#allocation3 + $0x130] sm:$0xf] %vm2475, %v3285
      %3368 = vst.msk [vmem:[#allocation3 + $0x13c] sm:$0xf] %vm2475, %v3287
      %3369 = vst.msk [vmem:[#allocation3 + $0x148] sm:$0xf] %vm2475, %v3289
      %3370 = vst.msk [vmem:[#allocation3 + $0x154] sm:$0xf] %vm2475, %v3291
      %3371 = vst.msk [vmem:[#allocation3 + $0x160] sm:$0xf] %vm2475, %v3293
      %3372 = vst.msk [vmem:[#allocation3 + $0x16c] sm:$0xf] %vm2475, %v3295
      %3373 = vst.msk [vmem:[#allocation3 + $0x178] sm:$0xf] %vm2475, %v3297
      %3374 = vst.msk [vmem:[#allocation3 + $0x184] sm:$0xf] %vm2475, %v3299
      %3375 = vst.msk [vmem:[#allocation3 + $0x190] sm:$0xf] %vm2475, %v3301
      %3376 = vst.msk [vmem:[#allocation3 + $0x19c] sm:$0xf] %vm2475, %v3303
      %3377 = vst.msk [vmem:[#allocation3 + $0x1a8] sm:$0xf] %vm2475, %v3305
      %v3378 = vld [vmem:[#allocation2 + $0x29] sm:$0xff]
      %v3379 = vld [vmem:[#allocation2 + $0x31] sm:$0xff]
      %v3380 = vld [vmem:[#allocation2 + $0x39] sm:$0xff]
      %v3381 = vld [vmem:[#allocation2 + $0x41] sm:$0xff]
      %v3382 = vld [vmem:[#allocation2 + $0x49] sm:$0xff]
      %v3383 = vld [vmem:[#allocation2 + $0x51] sm:$0xff]
      %v3384 = vld [vmem:[#allocation2 + $0x59] sm:$0xff]
      %v3385 = vld [vmem:[#allocation2 + $0x61] sm:$0xff]
      %v3386 = vld [vmem:[#allocation2 + $0x69] sm:$0xff]
      %v3387 = vld [vmem:[#allocation2 + $0x71] sm:$0xff]
      %v3388 = vld [vmem:[#allocation2 + $0x79] sm:$0xff]
      %v3389 = vld [vmem:[#allocation2 + $0x81] sm:$0xff]
      %v3390 = vld [vmem:[#allocation2 + $0x89] sm:$0xff]
      %v3391 = vld [vmem:[#allocation2 + $0x91] sm:$0xff]
      %v3392 = vld [vmem:[#allocation2 + $0x99] sm:$0xff]
      %v3393 = vld [vmem:[#allocation2 + $0xa1] sm:$0xff]
      %v3394 = vld [vmem:[#allocation2 + $0xa9] sm:$0xff]
      %v3395 = vld [vmem:[#allocation2 + $0xb1] sm:$0xff]
      %v3396 = vld [vmem:[#allocation2 + $0xb9] sm:$0xff]
      %v3397 = vld [vmem:[#allocation2 + $0xc1] sm:$0xff]
      %v3398 = vld [vmem:[#allocation2 + $0xc9] sm:$0xff]
      %v3399 = vld [vmem:[#allocation2 + $0xd1] sm:$0xff]
      %v3400 = vld [vmem:[#allocation2 + $0xd9] sm:$0xff]
      %v3401 = vld [vmem:[#allocation2 + $0xe1] sm:$0xff]
      %v3402 = vld [vmem:[#allocation2 + $0xe9] sm:$0xff]
      %v3403 = vld [vmem:[#allocation2 + $0xf1] sm:$0xff]
      %v3404 = vld [vmem:[#allocation2 + $0xf9] sm:$0xff]
      %v3405 = vld [vmem:[#allocation2 + $0x101] sm:$0xff]
      %v3406 = vld [vmem:[#allocation2 + $0x109] sm:$0xff]
      %v3407 = vld [vmem:[#allocation2 + $0x111] sm:$0xff]
      %v3408 = vld [vmem:[#allocation2 + $0x119] sm:$0xff]
      %v3409 = vld [vmem:[#allocation2 + $0x121] sm:$0xff]
      %v3410 = vld [vmem:[#allocation2 + $0x129] sm:$0xff]
      %v3411 = vld [vmem:[#allocation2 + $0x131] sm:$0xff]
      %v3412 = vld [vmem:[#allocation2 + $0x139] sm:$0xff]
      %v3413 = vld [vmem:[#allocation2 + $0x141] sm:$0xff]
      %v3414 = vpack.c.bf16 %v3378, %v3378
      %v3415 = vpack.c.bf16 %v3379, %v3379
      %v3416 = vpack.c.bf16 %v3380, %v3380
      %v3417 = vpack.c.bf16 %v3381, %v3381
      %v3418 = vpack.c.bf16 %v3382, %v3382
      %v3419 = vpack.c.bf16 %v3383, %v3383
      %v3420 = vpack.c.bf16 %v3384, %v3384
      %v3421 = vpack.c.bf16 %v3385, %v3385
      %v3422 = vpack.c.bf16 %v3386, %v3386
      %v3423 = vpack.c.bf16 %v3387, %v3387
      %v3424 = vpack.c.bf16 %v3388, %v3388
      %v3425 = vpack.c.bf16 %v3389, %v3389
      %v3426 = vpack.c.bf16 %v3390, %v3390
      %v3427 = vpack.c.bf16 %v3391, %v3391
      %v3428 = vpack.c.bf16 %v3392, %v3392
      %v3429 = vpack.c.bf16 %v3393, %v3393
      %v3430 = vpack.c.bf16 %v3394, %v3394
      %v3431 = vpack.c.bf16 %v3395, %v3395
      %v3432 = vpack.c.bf16 %v3396, %v3396
      %v3433 = vpack.c.bf16 %v3397, %v3397
      %v3434 = vpack.c.bf16 %v3398, %v3398
      %v3435 = vpack.c.bf16 %v3399, %v3399
      %v3436 = vpack.c.bf16 %v3400, %v3400
      %v3437 = vpack.c.bf16 %v3401, %v3401
      %v3438 = vpack.c.bf16 %v3402, %v3402
      %v3439 = vpack.c.bf16 %v3403, %v3403
      %v3440 = vpack.c.bf16 %v3404, %v3404
      %v3441 = vpack.c.bf16 %v3405, %v3405
      %v3442 = vpack.c.bf16 %v3406, %v3406
      %v3443 = vpack.c.bf16 %v3407, %v3407
      %v3444 = vpack.c.bf16 %v3408, %v3408
      %v3445 = vpack.c.bf16 %v3409, %v3409
      %v3446 = vpack.c.bf16 %v3410, %v3410
      %v3447 = vpack.c.bf16 %v3411, %v3411
      %v3448 = vpack.c.bf16 %v3412, %v3412
      %v3449 = vpack.c.bf16 %v3413, %v3413
      %3486 = vrot.lane.b32.xlu0 %v3414, 64
      %v3487 = vpop.permute.xlu0 %3486
      %3488 = vrot.lane.b32.xlu0 %v3415, 64
      %v3489 = vpop.permute.xlu0 %3488
      %3490 = vrot.lane.b32.xlu0 %v3416, 64
      %v3491 = vpop.permute.xlu0 %3490
      %3492 = vrot.lane.b32.xlu0 %v3417, 64
      %v3493 = vpop.permute.xlu0 %3492
      %3494 = vrot.lane.b32.xlu0 %v3418, 64
      %v3495 = vpop.permute.xlu0 %3494
      %3496 = vrot.lane.b32.xlu0 %v3419, 64
      %v3497 = vpop.permute.xlu0 %3496
      %3498 = vrot.lane.b32.xlu0 %v3420, 64
      %v3499 = vpop.permute.xlu0 %3498
      %3500 = vrot.lane.b32.xlu0 %v3421, 64
      %v3501 = vpop.permute.xlu0 %3500
      %3502 = vrot.lane.b32.xlu0 %v3422, 64
      %v3503 = vpop.permute.xlu0 %3502
      %3504 = vrot.lane.b32.xlu0 %v3423, 64
      %v3505 = vpop.permute.xlu0 %3504
      %3506 = vrot.lane.b32.xlu0 %v3424, 64
      %v3507 = vpop.permute.xlu0 %3506
      %3508 = vrot.lane.b32.xlu0 %v3425, 64
      %v3509 = vpop.permute.xlu0 %3508
      %3510 = vrot.lane.b32.xlu0 %v3426, 64
      %v3511 = vpop.permute.xlu0 %3510
      %3512 = vrot.lane.b32.xlu0 %v3427, 64
      %v3513 = vpop.permute.xlu0 %3512
      %3514 = vrot.lane.b32.xlu0 %v3428, 64
      %v3515 = vpop.permute.xlu0 %3514
      %3516 = vrot.lane.b32.xlu0 %v3429, 64
      %v3517 = vpop.permute.xlu0 %3516
      %3518 = vrot.lane.b32.xlu0 %v3430, 64
      %v3519 = vpop.permute.xlu0 %3518
      %3520 = vrot.lane.b32.xlu0 %v3431, 64
      %v3521 = vpop.permute.xlu0 %3520
      %3522 = vrot.lane.b32.xlu0 %v3432, 64
      %v3523 = vpop.permute.xlu0 %3522
      %3524 = vrot.lane.b32.xlu0 %v3433, 64
      %v3525 = vpop.permute.xlu0 %3524
      %3526 = vrot.lane.b32.xlu0 %v3434, 64
      %v3527 = vpop.permute.xlu0 %3526
      %3528 = vrot.lane.b32.xlu0 %v3435, 64
      %v3529 = vpop.permute.xlu0 %3528
      %3530 = vrot.lane.b32.xlu0 %v3436, 64
      %v3531 = vpop.permute.xlu0 %3530
      %3532 = vrot.lane.b32.xlu0 %v3437, 64
      %v3533 = vpop.permute.xlu0 %3532
      %3534 = vrot.lane.b32.xlu0 %v3438, 64
      %v3535 = vpop.permute.xlu0 %3534
      %3536 = vrot.lane.b32.xlu0 %v3439, 64
      %v3537 = vpop.permute.xlu0 %3536
      %3538 = vrot.lane.b32.xlu0 %v3440, 64
      %v3539 = vpop.permute.xlu0 %3538
      %3540 = vrot.lane.b32.xlu0 %v3441, 64
      %v3541 = vpop.permute.xlu0 %3540
      %3542 = vrot.lane.b32.xlu0 %v3442, 64
      %v3543 = vpop.permute.xlu0 %3542
      %3544 = vrot.lane.b32.xlu0 %v3443, 64
      %v3545 = vpop.permute.xlu0 %3544
      %3546 = vrot.lane.b32.xlu0 %v3444, 64
      %v3547 = vpop.permute.xlu0 %3546
      %3548 = vrot.lane.b32.xlu0 %v3445, 64
      %v3549 = vpop.permute.xlu0 %3548
      %3550 = vrot.lane.b32.xlu0 %v3446, 64
      %v3551 = vpop.permute.xlu0 %3550
      %3552 = vrot.lane.b32.xlu0 %v3447, 64
      %v3553 = vpop.permute.xlu0 %3552
      %3554 = vrot.lane.b32.xlu0 %v3448, 64
      %v3555 = vpop.permute.xlu0 %3554
      %3556 = vrot.lane.b32.xlu0 %v3449, 64
      %v3557 = vpop.permute.xlu0 %3556
      %3594 = vst.msk [vmem:[#allocation3 + $0x4] sm:$0xf] %vm2728, %v3487
      %3595 = vst.msk [vmem:[#allocation3 + $0x10] sm:$0xf] %vm2728, %v3489
      %3596 = vst.msk [vmem:[#allocation3 + $0x1c] sm:$0xf] %vm2728, %v3491
      %3597 = vst.msk [vmem:[#allocation3 + $0x28] sm:$0xf] %vm2728, %v3493
      %3598 = vst.msk [vmem:[#allocation3 + $0x34] sm:$0xf] %vm2728, %v3495
      %3599 = vst.msk [vmem:[#allocation3 + $0x40] sm:$0xf] %vm2728, %v3497
      %3600 = vst.msk [vmem:[#allocation3 + $0x4c] sm:$0xf] %vm2728, %v3499
      %3601 = vst.msk [vmem:[#allocation3 + $0x58] sm:$0xf] %vm2728, %v3501
      %3602 = vst.msk [vmem:[#allocation3 + $0x64] sm:$0xf] %vm2728, %v3503
      %3603 = vst.msk [vmem:[#allocation3 + $0x70] sm:$0xf] %vm2728, %v3505
      %3604 = vst.msk [vmem:[#allocation3 + $0x7c] sm:$0xf] %vm2728, %v3507
      %3605 = vst.msk [vmem:[#allocation3 + $0x88] sm:$0xf] %vm2728, %v3509
      %3606 = vst.msk [vmem:[#allocation3 + $0x94] sm:$0xf] %vm2728, %v3511
      %3607 = vst.msk [vmem:[#allocation3 + $0xa0] sm:$0xf] %vm2728, %v3513
      %3608 = vst.msk [vmem:[#allocation3 + $0xac] sm:$0xf] %vm2728, %v3515
      %3609 = vst.msk [vmem:[#allocation3 + $0xb8] sm:$0xf] %vm2728, %v3517
      %3610 = vst.msk [vmem:[#allocation3 + $0xc4] sm:$0xf] %vm2728, %v3519
      %3611 = vst.msk [vmem:[#allocation3 + $0xd0] sm:$0xf] %vm2728, %v3521
      %3612 = vst.msk [vmem:[#allocation3 + $0xdc] sm:$0xf] %vm2728, %v3523
      %3613 = vst.msk [vmem:[#allocation3 + $0xe8] sm:$0xf] %vm2728, %v3525
      %3614 = vst.msk [vmem:[#allocation3 + $0xf4] sm:$0xf] %vm2728, %v3527
      %3615 = vst.msk [vmem:[#allocation3 + $0x100] sm:$0xf] %vm2728, %v3529
      %3616 = vst.msk [vmem:[#allocation3 + $0x10c] sm:$0xf] %vm2728, %v3531
      %3617 = vst.msk [vmem:[#allocation3 + $0x118] sm:$0xf] %vm2728, %v3533
      %3618 = vst.msk [vmem:[#allocation3 + $0x124] sm:$0xf] %vm2728, %v3535
      %3619 = vst.msk [vmem:[#allocation3 + $0x130] sm:$0xf] %vm2728, %v3537
      %3620 = vst.msk [vmem:[#allocation3 + $0x13c] sm:$0xf] %vm2728, %v3539
      %3621 = vst.msk [vmem:[#allocation3 + $0x148] sm:$0xf] %vm2728, %v3541
      %3622 = vst.msk [vmem:[#allocation3 + $0x154] sm:$0xf] %vm2728, %v3543
      %3623 = vst.msk [vmem:[#allocation3 + $0x160] sm:$0xf] %vm2728, %v3545
      %3624 = vst.msk [vmem:[#allocation3 + $0x16c] sm:$0xf] %vm2728, %v3547
      %3625 = vst.msk [vmem:[#allocation3 + $0x178] sm:$0xf] %vm2728, %v3549
      %3626 = vst.msk [vmem:[#allocation3 + $0x184] sm:$0xf] %vm2728, %v3551
      %3627 = vst.msk [vmem:[#allocation3 + $0x190] sm:$0xf] %vm2728, %v3553
      %3628 = vst.msk [vmem:[#allocation3 + $0x19c] sm:$0xf] %vm2728, %v3555
      %3629 = vst.msk [vmem:[#allocation3 + $0x1a8] sm:$0xf] %vm2728, %v3557
      %v3630 = vld [vmem:[#allocation2 + $0x2a] sm:$0xff]
      %v3631 = vld [vmem:[#allocation2 + $0x32] sm:$0xff]
      %v3632 = vld [vmem:[#allocation2 + $0x3a] sm:$0xff]
      %v3633 = vld [vmem:[#allocation2 + $0x42] sm:$0xff]
      %v3634 = vld [vmem:[#allocation2 + $0x4a] sm:$0xff]
      %v3635 = vld [vmem:[#allocation2 + $0x52] sm:$0xff]
      %v3636 = vld [vmem:[#allocation2 + $0x5a] sm:$0xff]
      %v3637 = vld [vmem:[#allocation2 + $0x62] sm:$0xff]
      %v3638 = vld [vmem:[#allocation2 + $0x6a] sm:$0xff]
      %v3639 = vld [vmem:[#allocation2 + $0x72] sm:$0xff]
      %v3640 = vld [vmem:[#allocation2 + $0x7a] sm:$0xff]
      %v3641 = vld [vmem:[#allocation2 + $0x82] sm:$0xff]
      %v3642 = vld [vmem:[#allocation2 + $0x8a] sm:$0xff]
      %v3643 = vld [vmem:[#allocation2 + $0x92] sm:$0xff]
      %v3644 = vld [vmem:[#allocation2 + $0x9a] sm:$0xff]
      %v3645 = vld [vmem:[#allocation2 + $0xa2] sm:$0xff]
      %v3646 = vld [vmem:[#allocation2 + $0xaa] sm:$0xff]
      %v3647 = vld [vmem:[#allocation2 + $0xb2] sm:$0xff]
      %v3648 = vld [vmem:[#allocation2 + $0xba] sm:$0xff]
      %v3649 = vld [vmem:[#allocation2 + $0xc2] sm:$0xff]
      %v3650 = vld [vmem:[#allocation2 + $0xca] sm:$0xff]
      %v3651 = vld [vmem:[#allocation2 + $0xd2] sm:$0xff]
      %v3652 = vld [vmem:[#allocation2 + $0xda] sm:$0xff]
      %v3653 = vld [vmem:[#allocation2 + $0xe2] sm:$0xff]
      %v3654 = vld [vmem:[#allocation2 + $0xea] sm:$0xff]
      %v3655 = vld [vmem:[#allocation2 + $0xf2] sm:$0xff]
      %v3656 = vld [vmem:[#allocation2 + $0xfa] sm:$0xff]
      %v3657 = vld [vmem:[#allocation2 + $0x102] sm:$0xff]
      %v3658 = vld [vmem:[#allocation2 + $0x10a] sm:$0xff]
      %v3659 = vld [vmem:[#allocation2 + $0x112] sm:$0xff]
      %v3660 = vld [vmem:[#allocation2 + $0x11a] sm:$0xff]
      %v3661 = vld [vmem:[#allocation2 + $0x122] sm:$0xff]
      %v3662 = vld [vmem:[#allocation2 + $0x12a] sm:$0xff]
      %v3663 = vld [vmem:[#allocation2 + $0x132] sm:$0xff]
      %v3664 = vld [vmem:[#allocation2 + $0x13a] sm:$0xff]
      %v3665 = vld [vmem:[#allocation2 + $0x142] sm:$0xff]
      %v3666 = vpack.c.bf16 %v3630, %v3630
      %v3667 = vpack.c.bf16 %v3631, %v3631
      %v3668 = vpack.c.bf16 %v3632, %v3632
      %v3669 = vpack.c.bf16 %v3633, %v3633
      %v3670 = vpack.c.bf16 %v3634, %v3634
      %v3671 = vpack.c.bf16 %v3635, %v3635
      %v3672 = vpack.c.bf16 %v3636, %v3636
      %v3673 = vpack.c.bf16 %v3637, %v3637
      %v3674 = vpack.c.bf16 %v3638, %v3638
      %v3675 = vpack.c.bf16 %v3639, %v3639
      %v3676 = vpack.c.bf16 %v3640, %v3640
      %v3677 = vpack.c.bf16 %v3641, %v3641
      %v3678 = vpack.c.bf16 %v3642, %v3642
      %v3679 = vpack.c.bf16 %v3643, %v3643
      %v3680 = vpack.c.bf16 %v3644, %v3644
      %v3681 = vpack.c.bf16 %v3645, %v3645
      %v3682 = vpack.c.bf16 %v3646, %v3646
      %v3683 = vpack.c.bf16 %v3647, %v3647
      %v3684 = vpack.c.bf16 %v3648, %v3648
      %v3685 = vpack.c.bf16 %v3649, %v3649
      %v3686 = vpack.c.bf16 %v3650, %v3650
      %v3687 = vpack.c.bf16 %v3651, %v3651
      %v3688 = vpack.c.bf16 %v3652, %v3652
      %v3689 = vpack.c.bf16 %v3653, %v3653
      %v3690 = vpack.c.bf16 %v3654, %v3654
      %v3691 = vpack.c.bf16 %v3655, %v3655
      %v3692 = vpack.c.bf16 %v3656, %v3656
      %v3693 = vpack.c.bf16 %v3657, %v3657
      %v3694 = vpack.c.bf16 %v3658, %v3658
      %v3695 = vpack.c.bf16 %v3659, %v3659
      %v3696 = vpack.c.bf16 %v3660, %v3660
      %v3697 = vpack.c.bf16 %v3661, %v3661
      %v3698 = vpack.c.bf16 %v3662, %v3662
      %v3699 = vpack.c.bf16 %v3663, %v3663
      %v3700 = vpack.c.bf16 %v3664, %v3664
      %v3701 = vpack.c.bf16 %v3665, %v3665
      %3738 = vrot.lane.b32.xlu0 %v3666, 96
      %v3739 = vpop.permute.xlu0 %3738
      %3740 = vrot.lane.b32.xlu0 %v3667, 96
      %v3741 = vpop.permute.xlu0 %3740
      %3742 = vrot.lane.b32.xlu0 %v3668, 96
      %v3743 = vpop.permute.xlu0 %3742
      %3744 = vrot.lane.b32.xlu0 %v3669, 96
      %v3745 = vpop.permute.xlu0 %3744
      %3746 = vrot.lane.b32.xlu0 %v3670, 96
      %v3747 = vpop.permute.xlu0 %3746
      %3748 = vrot.lane.b32.xlu0 %v3671, 96
      %v3749 = vpop.permute.xlu0 %3748
      %3750 = vrot.lane.b32.xlu0 %v3672, 96
      %v3751 = vpop.permute.xlu0 %3750
      %3752 = vrot.lane.b32.xlu0 %v3673, 96
      %v3753 = vpop.permute.xlu0 %3752
      %3754 = vrot.lane.b32.xlu0 %v3674, 96
      %v3755 = vpop.permute.xlu0 %3754
      %3756 = vrot.lane.b32.xlu0 %v3675, 96
      %v3757 = vpop.permute.xlu0 %3756
      %3758 = vrot.lane.b32.xlu0 %v3676, 96
      %v3759 = vpop.permute.xlu0 %3758
      %3760 = vrot.lane.b32.xlu0 %v3677, 96
      %v3761 = vpop.permute.xlu0 %3760
      %3762 = vrot.lane.b32.xlu0 %v3678, 96
      %v3763 = vpop.permute.xlu0 %3762
      %3764 = vrot.lane.b32.xlu0 %v3679, 96
      %v3765 = vpop.permute.xlu0 %3764
      %3766 = vrot.lane.b32.xlu0 %v3680, 96
      %v3767 = vpop.permute.xlu0 %3766
      %3768 = vrot.lane.b32.xlu0 %v3681, 96
      %v3769 = vpop.permute.xlu0 %3768
      %3770 = vrot.lane.b32.xlu0 %v3682, 96
      %v3771 = vpop.permute.xlu0 %3770
      %3772 = vrot.lane.b32.xlu0 %v3683, 96
      %v3773 = vpop.permute.xlu0 %3772
      %3774 = vrot.lane.b32.xlu0 %v3684, 96
      %v3775 = vpop.permute.xlu0 %3774
      %3776 = vrot.lane.b32.xlu0 %v3685, 96
      %v3777 = vpop.permute.xlu0 %3776
      %3778 = vrot.lane.b32.xlu0 %v3686, 96
      %v3779 = vpop.permute.xlu0 %3778
      %3780 = vrot.lane.b32.xlu0 %v3687, 96
      %v3781 = vpop.permute.xlu0 %3780
      %3782 = vrot.lane.b32.xlu0 %v3688, 96
      %v3783 = vpop.permute.xlu0 %3782
      %3784 = vrot.lane.b32.xlu0 %v3689, 96
      %v3785 = vpop.permute.xlu0 %3784
      %3786 = vrot.lane.b32.xlu0 %v3690, 96
      %v3787 = vpop.permute.xlu0 %3786
      %3788 = vrot.lane.b32.xlu0 %v3691, 96
      %v3789 = vpop.permute.xlu0 %3788
      %3790 = vrot.lane.b32.xlu0 %v3692, 96
      %v3791 = vpop.permute.xlu0 %3790
      %3792 = vrot.lane.b32.xlu0 %v3693, 96
      %v3793 = vpop.permute.xlu0 %3792
      %3794 = vrot.lane.b32.xlu0 %v3694, 96
      %v3795 = vpop.permute.xlu0 %3794
      %3796 = vrot.lane.b32.xlu0 %v3695, 96
      %v3797 = vpop.permute.xlu0 %3796
      %3798 = vrot.lane.b32.xlu0 %v3696, 96
      %v3799 = vpop.permute.xlu0 %3798
      %3800 = vrot.lane.b32.xlu0 %v3697, 96
      %v3801 = vpop.permute.xlu0 %3800
      %3802 = vrot.lane.b32.xlu0 %v3698, 96
      %v3803 = vpop.permute.xlu0 %3802
      %3804 = vrot.lane.b32.xlu0 %v3699, 96
      %v3805 = vpop.permute.xlu0 %3804
      %3806 = vrot.lane.b32.xlu0 %v3700, 96
      %v3807 = vpop.permute.xlu0 %3806
      %3808 = vrot.lane.b32.xlu0 %v3701, 96
      %v3809 = vpop.permute.xlu0 %3808
      %3846 = vst.msk [vmem:[#allocation3 + $0x4] sm:$0xf] %vm2981, %v3739
      %3847 = vst.msk [vmem:[#allocation3 + $0x10] sm:$0xf] %vm2981, %v3741
      %3848 = vst.msk [vmem:[#allocation3 + $0x1c] sm:$0xf] %vm2981, %v3743
      %3849 = vst.msk [vmem:[#allocation3 + $0x28] sm:$0xf] %vm2981, %v3745
      %3850 = vst.msk [vmem:[#allocation3 + $0x34] sm:$0xf] %vm2981, %v3747
      %3851 = vst.msk [vmem:[#allocation3 + $0x40] sm:$0xf] %vm2981, %v3749
      %3852 = vst.msk [vmem:[#allocation3 + $0x4c] sm:$0xf] %vm2981, %v3751
      %3853 = vst.msk [vmem:[#allocation3 + $0x58] sm:$0xf] %vm2981, %v3753
      %3854 = vst.msk [vmem:[#allocation3 + $0x64] sm:$0xf] %vm2981, %v3755
      %3855 = vst.msk [vmem:[#allocation3 + $0x70] sm:$0xf] %vm2981, %v3757
      %3856 = vst.msk [vmem:[#allocation3 + $0x7c] sm:$0xf] %vm2981, %v3759
      %3857 = vst.msk [vmem:[#allocation3 + $0x88] sm:$0xf] %vm2981, %v3761
      %3858 = vst.msk [vmem:[#allocation3 + $0x94] sm:$0xf] %vm2981, %v3763
      %3859 = vst.msk [vmem:[#allocation3 + $0xa0] sm:$0xf] %vm2981, %v3765
      %3860 = vst.msk [vmem:[#allocation3 + $0xac] sm:$0xf] %vm2981, %v3767
      %3861 = vst.msk [vmem:[#allocation3 + $0xb8] sm:$0xf] %vm2981, %v3769
      %3862 = vst.msk [vmem:[#allocation3 + $0xc4] sm:$0xf] %vm2981, %v3771
      %3863 = vst.msk [vmem:[#allocation3 + $0xd0] sm:$0xf] %vm2981, %v3773
      %3864 = vst.msk [vmem:[#allocation3 + $0xdc] sm:$0xf] %vm2981, %v3775
      %3865 = vst.msk [vmem:[#allocation3 + $0xe8] sm:$0xf] %vm2981, %v3777
      %3866 = vst.msk [vmem:[#allocation3 + $0xf4] sm:$0xf] %vm2981, %v3779
      %3867 = vst.msk [vmem:[#allocation3 + $0x100] sm:$0xf] %vm2981, %v3781
      %3868 = vst.msk [vmem:[#allocation3 + $0x10c] sm:$0xf] %vm2981, %v3783
      %3869 = vst.msk [vmem:[#allocation3 + $0x118] sm:$0xf] %vm2981, %v3785
      %3870 = vst.msk [vmem:[#allocation3 + $0x124] sm:$0xf] %vm2981, %v3787
      %3871 = vst.msk [vmem:[#allocation3 + $0x130] sm:$0xf] %vm2981, %v3789
      %3872 = vst.msk [vmem:[#allocation3 + $0x13c] sm:$0xf] %vm2981, %v3791
      %3873 = vst.msk [vmem:[#allocation3 + $0x148] sm:$0xf] %vm2981, %v3793
      %3874 = vst.msk [vmem:[#allocation3 + $0x154] sm:$0xf] %vm2981, %v3795
      %3875 = vst.msk [vmem:[#allocation3 + $0x160] sm:$0xf] %vm2981, %v3797
      %3876 = vst.msk [vmem:[#allocation3 + $0x16c] sm:$0xf] %vm2981, %v3799
      %3877 = vst.msk [vmem:[#allocation3 + $0x178] sm:$0xf] %vm2981, %v3801
      %3878 = vst.msk [vmem:[#allocation3 + $0x184] sm:$0xf] %vm2981, %v3803
      %3879 = vst.msk [vmem:[#allocation3 + $0x190] sm:$0xf] %vm2981, %v3805
      %3880 = vst.msk [vmem:[#allocation3 + $0x19c] sm:$0xf] %vm2981, %v3807
      %3881 = vst.msk [vmem:[#allocation3 + $0x1a8] sm:$0xf] %vm2981, %v3809
      %v3882 = vld [vmem:[#allocation2 + $0x2b] sm:$0xff]
      %v3883 = vld [vmem:[#allocation2 + $0x33] sm:$0xff]
      %v3884 = vld [vmem:[#allocation2 + $0x3b] sm:$0xff]
      %v3885 = vld [vmem:[#allocation2 + $0x43] sm:$0xff]
      %v3886 = vld [vmem:[#allocation2 + $0x4b] sm:$0xff]
      %v3887 = vld [vmem:[#allocation2 + $0x53] sm:$0xff]
      %v3888 = vld [vmem:[#allocation2 + $0x5b] sm:$0xff]
      %v3889 = vld [vmem:[#allocation2 + $0x63] sm:$0xff]
      %v3890 = vld [vmem:[#allocation2 + $0x6b] sm:$0xff]
      %v3891 = vld [vmem:[#allocation2 + $0x73] sm:$0xff]
      %v3892 = vld [vmem:[#allocation2 + $0x7b] sm:$0xff]
      %v3893 = vld [vmem:[#allocation2 + $0x83] sm:$0xff]
      %v3894 = vld [vmem:[#allocation2 + $0x8b] sm:$0xff]
      %v3895 = vld [vmem:[#allocation2 + $0x93] sm:$0xff]
      %v3896 = vld [vmem:[#allocation2 + $0x9b] sm:$0xff]
      %v3897 = vld [vmem:[#allocation2 + $0xa3] sm:$0xff]
      %v3898 = vld [vmem:[#allocation2 + $0xab] sm:$0xff]
      %v3899 = vld [vmem:[#allocation2 + $0xb3] sm:$0xff]
      %v3900 = vld [vmem:[#allocation2 + $0xbb] sm:$0xff]
      %v3901 = vld [vmem:[#allocation2 + $0xc3] sm:$0xff]
      %v3902 = vld [vmem:[#allocation2 + $0xcb] sm:$0xff]
      %v3903 = vld [vmem:[#allocation2 + $0xd3] sm:$0xff]
      %v3904 = vld [vmem:[#allocation2 + $0xdb] sm:$0xff]
      %v3905 = vld [vmem:[#allocation2 + $0xe3] sm:$0xff]
      %v3906 = vld [vmem:[#allocation2 + $0xeb] sm:$0xff]
      %v3907 = vld [vmem:[#allocation2 + $0xf3] sm:$0xff]
      %v3908 = vld [vmem:[#allocation2 + $0xfb] sm:$0xff]
      %v3909 = vld [vmem:[#allocation2 + $0x103] sm:$0xff]
      %v3910 = vld [vmem:[#allocation2 + $0x10b] sm:$0xff]
      %v3911 = vld [vmem:[#allocation2 + $0x113] sm:$0xff]
      %v3912 = vld [vmem:[#allocation2 + $0x11b] sm:$0xff]
      %v3913 = vld [vmem:[#allocation2 + $0x123] sm:$0xff]
      %v3914 = vld [vmem:[#allocation2 + $0x12b] sm:$0xff]
      %v3915 = vld [vmem:[#allocation2 + $0x133] sm:$0xff]
      %v3916 = vld [vmem:[#allocation2 + $0x13b] sm:$0xff]
      %v3917 = vld [vmem:[#allocation2 + $0x143] sm:$0xff]
      %v3918 = vpack.c.bf16 %v3882, %v3882
      %v3919 = vpack.c.bf16 %v3883, %v3883
      %v3920 = vpack.c.bf16 %v3884, %v3884
      %v3921 = vpack.c.bf16 %v3885, %v3885
      %v3922 = vpack.c.bf16 %v3886, %v3886
      %v3923 = vpack.c.bf16 %v3887, %v3887
      %v3924 = vpack.c.bf16 %v3888, %v3888
      %v3925 = vpack.c.bf16 %v3889, %v3889
      %v3926 = vpack.c.bf16 %v3890, %v3890
      %v3927 = vpack.c.bf16 %v3891, %v3891
      %v3928 = vpack.c.bf16 %v3892, %v3892
      %v3929 = vpack.c.bf16 %v3893, %v3893
      %v3930 = vpack.c.bf16 %v3894, %v3894
      %v3931 = vpack.c.bf16 %v3895, %v3895
      %v3932 = vpack.c.bf16 %v3896, %v3896
      %v3933 = vpack.c.bf16 %v3897, %v3897
      %v3934 = vpack.c.bf16 %v3898, %v3898
      %v3935 = vpack.c.bf16 %v3899, %v3899
      %v3936 = vpack.c.bf16 %v3900, %v3900
      %v3937 = vpack.c.bf16 %v3901, %v3901
      %v3938 = vpack.c.bf16 %v3902, %v3902
      %v3939 = vpack.c.bf16 %v3903, %v3903
      %v3940 = vpack.c.bf16 %v3904, %v3904
      %v3941 = vpack.c.bf16 %v3905, %v3905
      %v3942 = vpack.c.bf16 %v3906, %v3906
      %v3943 = vpack.c.bf16 %v3907, %v3907
      %v3944 = vpack.c.bf16 %v3908, %v3908
      %v3945 = vpack.c.bf16 %v3909, %v3909
      %v3946 = vpack.c.bf16 %v3910, %v3910
      %v3947 = vpack.c.bf16 %v3911, %v3911
      %v3948 = vpack.c.bf16 %v3912, %v3912
      %v3949 = vpack.c.bf16 %v3913, %v3913
      %v3950 = vpack.c.bf16 %v3914, %v3914
      %v3951 = vpack.c.bf16 %v3915, %v3915
      %v3952 = vpack.c.bf16 %v3916, %v3916
      %v3953 = vpack.c.bf16 %v3917, %v3917
      %3954 = vst.msk [vmem:[#allocation3 + $0x8] sm:$0xf] %vm2222, %v3918
      %3955 = vst.msk [vmem:[#allocation3 + $0x14] sm:$0xf] %vm2222, %v3919
      %3956 = vst.msk [vmem:[#allocation3 + $0x20] sm:$0xf] %vm2222, %v3920
      %3957 = vst.msk [vmem:[#allocation3 + $0x2c] sm:$0xf] %vm2222, %v3921
      %3958 = vst.msk [vmem:[#allocation3 + $0x38] sm:$0xf] %vm2222, %v3922
      %3959 = vst.msk [vmem:[#allocation3 + $0x44] sm:$0xf] %vm2222, %v3923
      %3960 = vst.msk [vmem:[#allocation3 + $0x50] sm:$0xf] %vm2222, %v3924
      %3961 = vst.msk [vmem:[#allocation3 + $0x5c] sm:$0xf] %vm2222, %v3925
      %3962 = vst.msk [vmem:[#allocation3 + $0x68] sm:$0xf] %vm2222, %v3926
      %3963 = vst.msk [vmem:[#allocation3 + $0x74] sm:$0xf] %vm2222, %v3927
      %3964 = vst.msk [vmem:[#allocation3 + $0x80] sm:$0xf] %vm2222, %v3928
      %3965 = vst.msk [vmem:[#allocation3 + $0x8c] sm:$0xf] %vm2222, %v3929
      %3966 = vst.msk [vmem:[#allocation3 + $0x98] sm:$0xf] %vm2222, %v3930
      %3967 = vst.msk [vmem:[#allocation3 + $0xa4] sm:$0xf] %vm2222, %v3931
      %3968 = vst.msk [vmem:[#allocation3 + $0xb0] sm:$0xf] %vm2222, %v3932
      %3969 = vst.msk [vmem:[#allocation3 + $0xbc] sm:$0xf] %vm2222, %v3933
      %3970 = vst.msk [vmem:[#allocation3 + $0xc8] sm:$0xf] %vm2222, %v3934
      %3971 = vst.msk [vmem:[#allocation3 + $0xd4] sm:$0xf] %vm2222, %v3935
      %3972 = vst.msk [vmem:[#allocation3 + $0xe0] sm:$0xf] %vm2222, %v3936
      %3973 = vst.msk [vmem:[#allocation3 + $0xec] sm:$0xf] %vm2222, %v3937
      %3974 = vst.msk [vmem:[#allocation3 + $0xf8] sm:$0xf] %vm2222, %v3938
      %3975 = vst.msk [vmem:[#allocation3 + $0x104] sm:$0xf] %vm2222, %v3939
      %3976 = vst.msk [vmem:[#allocation3 + $0x110] sm:$0xf] %vm2222, %v3940
      %3977 = vst.msk [vmem:[#allocation3 + $0x11c] sm:$0xf] %vm2222, %v3941
      %3978 = vst.msk [vmem:[#allocation3 + $0x128] sm:$0xf] %vm2222, %v3942
      %3979 = vst.msk [vmem:[#allocation3 + $0x134] sm:$0xf] %vm2222, %v3943
      %3980 = vst.msk [vmem:[#allocation3 + $0x140] sm:$0xf] %vm2222, %v3944
      %3981 = vst.msk [vmem:[#allocation3 + $0x14c] sm:$0xf] %vm2222, %v3945
      %3982 = vst.msk [vmem:[#allocation3 + $0x158] sm:$0xf] %vm2222, %v3946
      %3983 = vst.msk [vmem:[#allocation3 + $0x164] sm:$0xf] %vm2222, %v3947
      %3984 = vst.msk [vmem:[#allocation3 + $0x170] sm:$0xf] %vm2222, %v3948
      %3985 = vst.msk [vmem:[#allocation3 + $0x17c] sm:$0xf] %vm2222, %v3949
      %3986 = vst.msk [vmem:[#allocation3 + $0x188] sm:$0xf] %vm2222, %v3950
      %3987 = vst.msk [vmem:[#allocation3 + $0x194] sm:$0xf] %vm2222, %v3951
      %3988 = vst.msk [vmem:[#allocation3 + $0x1a0] sm:$0xf] %vm2222, %v3952
      %3989 = vst.msk [vmem:[#allocation3 + $0x1ac] sm:$0xf] %vm2222, %v3953
      %v3990 = vld [vmem:[#allocation3] sm:$0xff]
      %v3991 = vld [vmem:[#allocation3 + $0x8] sm:$0xf]
      %v3992 = vld [vmem:[#allocation3 + $0xc] sm:$0xff]
      %v3993 = vld [vmem:[#allocation3 + $0x14] sm:$0xf]
      %v3994 = vld [vmem:[#allocation3 + $0x18] sm:$0xff]
      %v3995 = vld [vmem:[#allocation3 + $0x20] sm:$0xf]
      %v3996 = vld [vmem:[#allocation3 + $0x24] sm:$0xff]
      %v3997 = vld [vmem:[#allocation3 + $0x2c] sm:$0xf]
      %v3998 = vld [vmem:[#allocation3 + $0x30] sm:$0xff]
      %v3999 = vld [vmem:[#allocation3 + $0x38] sm:$0xf]
      %v4000 = vld [vmem:[#allocation3 + $0x3c] sm:$0xff]
      %v4001 = vld [vmem:[#allocation3 + $0x44] sm:$0xf]
      %v4002 = vld [vmem:[#allocation3 + $0x48] sm:$0xff]
      %v4003 = vld [vmem:[#allocation3 + $0x50] sm:$0xf]
      %v4004 = vld [vmem:[#allocation3 + $0x54] sm:$0xff]
      %v4005 = vld [vmem:[#allocation3 + $0x5c] sm:$0xf]
      %v4006 = vld [vmem:[#allocation3 + $0x60] sm:$0xff]
      %v4007 = vld [vmem:[#allocation3 + $0x68] sm:$0xf]
      %v4008 = vld [vmem:[#allocation3 + $0x6c] sm:$0xff]
      %v4009 = vld [vmem:[#allocation3 + $0x74] sm:$0xf]
      %v4010 = vld [vmem:[#allocation3 + $0x78] sm:$0xff]
      %v4011 = vld [vmem:[#allocation3 + $0x80] sm:$0xf]
      %v4012 = vld [vmem:[#allocation3 + $0x84] sm:$0xff]
      %v4013 = vld [vmem:[#allocation3 + $0x8c] sm:$0xf]
      %v4014 = vld [vmem:[#allocation3 + $0x90] sm:$0xff]
      %v4015 = vld [vmem:[#allocation3 + $0x98] sm:$0xf]
      %v4016 = vld [vmem:[#allocation3 + $0x9c] sm:$0xff]
      %v4017 = vld [vmem:[#allocation3 + $0xa4] sm:$0xf]
      %v4018 = vld [vmem:[#allocation3 + $0xa8] sm:$0xff]
      %v4019 = vld [vmem:[#allocation3 + $0xb0] sm:$0xf]
      %v4020 = vld [vmem:[#allocation3 + $0xb4] sm:$0xff]
      %v4021 = vld [vmem:[#allocation3 + $0xbc] sm:$0xf]
      %v4022 = vld [vmem:[#allocation3 + $0xc0] sm:$0xff]
      %v4023 = vld [vmem:[#allocation3 + $0xc8] sm:$0xf]
      %v4024 = vld [vmem:[#allocation3 + $0xcc] sm:$0xff]
      %v4025 = vld [vmem:[#allocation3 + $0xd4] sm:$0xf]
      %v4026 = vld [vmem:[#allocation3 + $0xd8] sm:$0xff]
      %v4027 = vld [vmem:[#allocation3 + $0xe0] sm:$0xf]
      %v4028 = vld [vmem:[#allocation3 + $0xe4] sm:$0xff]
      %v4029 = vld [vmem:[#allocation3 + $0xec] sm:$0xf]
      %v4030 = vld [vmem:[#allocation3 + $0xf0] sm:$0xff]
      %v4031 = vld [vmem:[#allocation3 + $0xf8] sm:$0xf]
      %v4032 = vld [vmem:[#allocation3 + $0xfc] sm:$0xff]
      %v4033 = vld [vmem:[#allocation3 + $0x104] sm:$0xf]
      %v4034 = vld [vmem:[#allocation3 + $0x108] sm:$0xff]
      %v4035 = vld [vmem:[#allocation3 + $0x110] sm:$0xf]
      %v4036 = vld [vmem:[#allocation3 + $0x114] sm:$0xff]
      %v4037 = vld [vmem:[#allocation3 + $0x11c] sm:$0xf]
      %v4038 = vld [vmem:[#allocation3 + $0x120] sm:$0xff]
      %v4039 = vld [vmem:[#allocation3 + $0x128] sm:$0xf]
      %v4040 = vld [vmem:[#allocation3 + $0x12c] sm:$0xff]
      %v4041 = vld [vmem:[#allocation3 + $0x134] sm:$0xf]
      %v4042 = vld [vmem:[#allocation3 + $0x138] sm:$0xff]
      %v4043 = vld [vmem:[#allocation3 + $0x140] sm:$0xf]
      %v4044 = vld [vmem:[#allocation3 + $0x144] sm:$0xff]
      %v4045 = vld [vmem:[#allocation3 + $0x14c] sm:$0xf]
      %v4046 = vld [vmem:[#allocation3 + $0x150] sm:$0xff]
      %v4047 = vld [vmem:[#allocation3 + $0x158] sm:$0xf]
      %v4048 = vld [vmem:[#allocation3 + $0x15c] sm:$0xff]
      %v4049 = vld [vmem:[#allocation3 + $0x164] sm:$0xf]
      %v4050 = vld [vmem:[#allocation3 + $0x168] sm:$0xff]
      %v4051 = vld [vmem:[#allocation3 + $0x170] sm:$0xf]
      %v4052 = vld [vmem:[#allocation3 + $0x174] sm:$0xff]
      %v4053 = vld [vmem:[#allocation3 + $0x17c] sm:$0xf]
      %v4054 = vld [vmem:[#allocation3 + $0x180] sm:$0xff]
      %v4055 = vld [vmem:[#allocation3 + $0x188] sm:$0xf]
      %v4056 = vld [vmem:[#allocation3 + $0x18c] sm:$0xff]
      %v4057 = vld [vmem:[#allocation3 + $0x194] sm:$0xf]
      %v4058 = vld [vmem:[#allocation3 + $0x198] sm:$0xff]
      %v4059 = vld [vmem:[#allocation3 + $0x1a0] sm:$0xf]
      %v4060 = vld [vmem:[#allocation3 + $0x1a4] sm:$0xff]
      %v4061 = vld [vmem:[#allocation3 + $0x1ac] sm:$0xf]
      %v4062 = vld [vmem:[%s5] sm:$0xf]
      %v4063 = vld [vmem:[%s5 + $0x4] sm:$0xf]
      %v4064 = vld [vmem:[%s5 + $0x8] sm:$0xf]
      %v4065 = vld [vmem:[%s5 + $0xc] sm:$0xf]
      %v4066 = vld [vmem:[%s5 + $0x10] sm:$0xf]
      %v4067 = vld [vmem:[%s5 + $0x14] sm:$0xf]
      %v4068 = vld [vmem:[%s5 + $0x18] sm:$0xf]
      %v4069 = vld [vmem:[%s5 + $0x1c] sm:$0xf]
      %v4070 = vld [vmem:[%s5 + $0x20] sm:$0xf]
      %v4071 = vld [vmem:[%s5 + $0x24] sm:$0xf]
      %v4072 = vld [vmem:[%s5 + $0x28] sm:$0xf]
      %v4073 = vld [vmem:[%s5 + $0x2c] sm:$0xf]
      %v4074 = vld [vmem:[%s5 + $0x30] sm:$0xf]
      %v4075 = vld [vmem:[%s5 + $0x34] sm:$0xf]
      %v4076 = vld [vmem:[%s5 + $0x38] sm:$0xf]
      %v4077 = vld [vmem:[%s5 + $0x3c] sm:$0xf]
      %v4078 = vld [vmem:[%s5 + $0x40] sm:$0xf]
      %v4079 = vld [vmem:[%s5 + $0x44] sm:$0xf]
      %v4080 = vld [vmem:[%s5 + $0x48] sm:$0xf]
      %v4081 = vld [vmem:[%s5 + $0x4c] sm:$0xf]
      %v4082 = vld [vmem:[%s5 + $0x50] sm:$0xf]
      %v4083 = vld [vmem:[%s5 + $0x54] sm:$0xf]
      %v4084 = vld [vmem:[%s5 + $0x58] sm:$0xf]
      %v4085 = vld [vmem:[%s5 + $0x5c] sm:$0xf]
      %v4086 = vld [vmem:[%s5 + $0x60] sm:$0xf]
      %v4087 = vld [vmem:[%s5 + $0x64] sm:$0xf]
      %v4088 = vld [vmem:[%s5 + $0x68] sm:$0xf]
      %v4089 = vld [vmem:[%s5 + $0x6c] sm:$0xf]
      %v4090 = vld [vmem:[%s5 + $0x70] sm:$0xf]
      %v4091 = vld [vmem:[%s5 + $0x74] sm:$0xf]
      %v4092 = vld [vmem:[%s5 + $0x78] sm:$0xf]
      %v4093 = vld [vmem:[%s5 + $0x7c] sm:$0xf]
      %v4094 = vld [vmem:[%s5 + $0x80] sm:$0xf]
      %v4095 = vld [vmem:[%s5 + $0x84] sm:$0xf]
      %v4096 = vld [vmem:[%s5 + $0x88] sm:$0xf]
      %v4097 = vld [vmem:[%s5 + $0x8c] sm:$0xf]
      %v4170 = vunpack.c.l.b16 %v3990
      %v4171 = vunpack.c.h.b16 %v3990
      %v4172 = vunpack.c.l.b16 %v3991
      %v4173 = vunpack.c.l.b16 %v3992
      %v4174 = vunpack.c.h.b16 %v3992
      %v4175 = vunpack.c.l.b16 %v3993
      %v4176 = vunpack.c.l.b16 %v3994
      %v4177 = vunpack.c.h.b16 %v3994
      %v4178 = vunpack.c.l.b16 %v3995
      %v4179 = vunpack.c.l.b16 %v3996
      %v4180 = vunpack.c.h.b16 %v3996
      %v4181 = vunpack.c.l.b16 %v3997
      %v4182 = vunpack.c.l.b16 %v3998
      %v4183 = vunpack.c.h.b16 %v3998
      %v4184 = vunpack.c.l.b16 %v3999
      %v4185 = vunpack.c.l.b16 %v4000
      %v4186 = vunpack.c.h.b16 %v4000
      %v4187 = vunpack.c.l.b16 %v4001
      %v4188 = vunpack.c.l.b16 %v4002
      %v4189 = vunpack.c.h.b16 %v4002
      %v4190 = vunpack.c.l.b16 %v4003
      %v4191 = vunpack.c.l.b16 %v4004
      %v4192 = vunpack.c.h.b16 %v4004
      %v4193 = vunpack.c.l.b16 %v4005
      %v4194 = vunpack.c.l.b16 %v4006
      %v4195 = vunpack.c.h.b16 %v4006
      %v4196 = vunpack.c.l.b16 %v4007
      %v4197 = vunpack.c.l.b16 %v4008
      %v4198 = vunpack.c.h.b16 %v4008
      %v4199 = vunpack.c.l.b16 %v4009
      %v4200 = vunpack.c.l.b16 %v4010
      %v4201 = vunpack.c.h.b16 %v4010
      %v4202 = vunpack.c.l.b16 %v4011
      %v4203 = vunpack.c.l.b16 %v4012
      %v4204 = vunpack.c.h.b16 %v4012
      %v4205 = vunpack.c.l.b16 %v4013
      %v4206 = vunpack.c.l.b16 %v4014
      %v4207 = vunpack.c.h.b16 %v4014
      %v4208 = vunpack.c.l.b16 %v4015
      %v4209 = vunpack.c.l.b16 %v4016
      %v4210 = vunpack.c.h.b16 %v4016
      %v4211 = vunpack.c.l.b16 %v4017
      %v4212 = vunpack.c.l.b16 %v4018
      %v4213 = vunpack.c.h.b16 %v4018
      %v4214 = vunpack.c.l.b16 %v4019
      %v4215 = vunpack.c.l.b16 %v4020
      %v4216 = vunpack.c.h.b16 %v4020
      %v4217 = vunpack.c.l.b16 %v4021
      %v4218 = vunpack.c.l.b16 %v4022
      %v4219 = vunpack.c.h.b16 %v4022
      %v4220 = vunpack.c.l.b16 %v4023
      %v4221 = vunpack.c.l.b16 %v4024
      %v4222 = vunpack.c.h.b16 %v4024
      %v4223 = vunpack.c.l.b16 %v4025
      %v4224 = vunpack.c.l.b16 %v4026
      %v4225 = vunpack.c.h.b16 %v4026
      %v4226 = vunpack.c.l.b16 %v4027
      %v4227 = vunpack.c.l.b16 %v4028
      %v4228 = vunpack.c.h.b16 %v4028
      %v4229 = vunpack.c.l.b16 %v4029
      %v4230 = vunpack.c.l.b16 %v4030
      %v4231 = vunpack.c.h.b16 %v4030
      %v4232 = vunpack.c.l.b16 %v4031
      %v4233 = vunpack.c.l.b16 %v4032
      %v4234 = vunpack.c.h.b16 %v4032
      %v4235 = vunpack.c.l.b16 %v4033
      %v4236 = vunpack.c.l.b16 %v4034
      %v4237 = vunpack.c.h.b16 %v4034
      %v4238 = vunpack.c.l.b16 %v4035
      %v4239 = vunpack.c.l.b16 %v4036
      %v4240 = vunpack.c.h.b16 %v4036
      %v4241 = vunpack.c.l.b16 %v4037
      %v4242 = vunpack.c.l.b16 %v4038
      %v4243 = vunpack.c.h.b16 %v4038
      %v4244 = vunpack.c.l.b16 %v4039
      %v4245 = vunpack.c.l.b16 %v4040
      %v4246 = vunpack.c.h.b16 %v4040
      %v4247 = vunpack.c.l.b16 %v4041
      %v4248 = vunpack.c.l.b16 %v4042
      %v4249 = vunpack.c.h.b16 %v4042
      %v4250 = vunpack.c.l.b16 %v4043
      %v4251 = vunpack.c.l.b16 %v4044
      %v4252 = vunpack.c.h.b16 %v4044
      %v4253 = vunpack.c.l.b16 %v4045
      %v4254 = vunpack.c.l.b16 %v4046
      %v4255 = vunpack.c.h.b16 %v4046
      %v4256 = vunpack.c.l.b16 %v4047
      %v4257 = vunpack.c.l.b16 %v4048
      %v4258 = vunpack.c.h.b16 %v4048
      %v4259 = vunpack.c.l.b16 %v4049
      %v4260 = vunpack.c.l.b16 %v4050
      %v4261 = vunpack.c.h.b16 %v4050
      %v4262 = vunpack.c.l.b16 %v4051
      %v4263 = vunpack.c.l.b16 %v4052
      %v4264 = vunpack.c.h.b16 %v4052
      %v4265 = vunpack.c.l.b16 %v4053
      %v4266 = vunpack.c.l.b16 %v4054
      %v4267 = vunpack.c.h.b16 %v4054
      %v4268 = vunpack.c.l.b16 %v4055
      %v4269 = vunpack.c.l.b16 %v4056
      %v4270 = vunpack.c.h.b16 %v4056
      %v4271 = vunpack.c.l.b16 %v4057
      %v4272 = vunpack.c.l.b16 %v4058
      %v4273 = vunpack.c.h.b16 %v4058
      %v4274 = vunpack.c.l.b16 %v4059
      %v4275 = vunpack.c.l.b16 %v4060
      %v4276 = vunpack.c.h.b16 %v4060
      %v4277 = vunpack.c.l.b16 %v4061
      %v4278 = vpack.c.b16 %v4173, %v4170
      %v4279 = vpack.c.b16 %v4174, %v4171
      %v4280 = vpack.c.b16 %v4175, %v4172
      %v4281 = vpack.c.b16 %v4179, %v4176
      %v4282 = vpack.c.b16 %v4180, %v4177
      %v4283 = vpack.c.b16 %v4181, %v4178
      %v4284 = vpack.c.b16 %v4185, %v4182
      %v4285 = vpack.c.b16 %v4186, %v4183
      %v4286 = vpack.c.b16 %v4187, %v4184
      %v4287 = vpack.c.b16 %v4191, %v4188
      %v4288 = vpack.c.b16 %v4192, %v4189
      %v4289 = vpack.c.b16 %v4193, %v4190
      %v4290 = vpack.c.b16 %v4197, %v4194
      %v4291 = vpack.c.b16 %v4198, %v4195
      %v4292 = vpack.c.b16 %v4199, %v4196
      %v4293 = vpack.c.b16 %v4203, %v4200
      %v4294 = vpack.c.b16 %v4204, %v4201
      %v4295 = vpack.c.b16 %v4205, %v4202
      %v4296 = vpack.c.b16 %v4209, %v4206
      %v4297 = vpack.c.b16 %v4210, %v4207
      %v4298 = vpack.c.b16 %v4211, %v4208
      %v4299 = vpack.c.b16 %v4215, %v4212
      %v4300 = vpack.c.b16 %v4216, %v4213
      %v4301 = vpack.c.b16 %v4217, %v4214
      %v4302 = vpack.c.b16 %v4221, %v4218
      %v4303 = vpack.c.b16 %v4222, %v4219
      %v4304 = vpack.c.b16 %v4223, %v4220
      %v4305 = vpack.c.b16 %v4227, %v4224
      %v4306 = vpack.c.b16 %v4228, %v4225
      %v4307 = vpack.c.b16 %v4229, %v4226
      %v4308 = vpack.c.b16 %v4233, %v4230
      %v4309 = vpack.c.b16 %v4234, %v4231
      %v4310 = vpack.c.b16 %v4235, %v4232
      %v4311 = vpack.c.b16 %v4239, %v4236
      %v4312 = vpack.c.b16 %v4240, %v4237
      %v4313 = vpack.c.b16 %v4241, %v4238
      %v4314 = vpack.c.b16 %v4245, %v4242
      %v4315 = vpack.c.b16 %v4246, %v4243
      %v4316 = vpack.c.b16 %v4247, %v4244
      %v4317 = vpack.c.b16 %v4251, %v4248
      %v4318 = vpack.c.b16 %v4252, %v4249
      %v4319 = vpack.c.b16 %v4253, %v4250
      %v4320 = vpack.c.b16 %v4257, %v4254
      %v4321 = vpack.c.b16 %v4258, %v4255
      %v4322 = vpack.c.b16 %v4259, %v4256
      %v4323 = vpack.c.b16 %v4263, %v4260
      %v4324 = vpack.c.b16 %v4264, %v4261
      %v4325 = vpack.c.b16 %v4265, %v4262
      %v4326 = vpack.c.b16 %v4269, %v4266
      %v4327 = vpack.c.b16 %v4270, %v4267
      %v4328 = vpack.c.b16 %v4271, %v4268
      %v4329 = vpack.c.b16 %v4275, %v4272
      %v4330 = vpack.c.b16 %v4276, %v4273
      %v4331 = vpack.c.b16 %v4277, %v4274
      %v4404 = vunpack.c.l.b16 %v4062
      %v4405 = vunpack.c.l.b16 %v4063
      %v4406 = vunpack.c.l.b16 %v4064
      %v4407 = vunpack.c.l.b16 %v4065
      %v4408 = vunpack.c.l.b16 %v4066
      %v4409 = vunpack.c.l.b16 %v4067
      %v4410 = vunpack.c.l.b16 %v4068
      %v4411 = vunpack.c.l.b16 %v4069
      %v4412 = vunpack.c.l.b16 %v4070
      %v4413 = vunpack.c.l.b16 %v4071
      %v4414 = vunpack.c.l.b16 %v4072
      %v4415 = vunpack.c.l.b16 %v4073
      %v4416 = vunpack.c.l.b16 %v4074
      %v4417 = vunpack.c.l.b16 %v4075
      %v4418 = vunpack.c.l.b16 %v4076
      %v4419 = vunpack.c.l.b16 %v4077
      %v4420 = vunpack.c.l.b16 %v4078
      %v4421 = vunpack.c.l.b16 %v4079
      %v4422 = vunpack.c.l.b16 %v4080
      %v4423 = vunpack.c.l.b16 %v4081
      %v4424 = vunpack.c.l.b16 %v4082
      %v4425 = vunpack.c.l.b16 %v4083
      %v4426 = vunpack.c.l.b16 %v4084
      %v4427 = vunpack.c.l.b16 %v4085
      %v4428 = vunpack.c.l.b16 %v4086
      %v4429 = vunpack.c.l.b16 %v4087
      %v4430 = vunpack.c.l.b16 %v4088
      %v4431 = vunpack.c.l.b16 %v4089
      %v4432 = vunpack.c.l.b16 %v4090
      %v4433 = vunpack.c.l.b16 %v4091
      %v4434 = vunpack.c.l.b16 %v4092
      %v4435 = vunpack.c.l.b16 %v4093
      %v4436 = vunpack.c.l.b16 %v4094
      %v4437 = vunpack.c.l.b16 %v4095
      %v4438 = vunpack.c.l.b16 %v4096
      %v4439 = vunpack.c.l.b16 %v4097
      %v4440 = vpack.c.b16 %v4405, %v4404
      %v4441 = vpack.c.b16 %v4407, %v4406
      %v4442 = vpack.c.b16 %v4409, %v4408
      %v4443 = vpack.c.b16 %v4411, %v4410
      %v4444 = vpack.c.b16 %v4413, %v4412
      %v4445 = vpack.c.b16 %v4415, %v4414
      %v4446 = vpack.c.b16 %v4417, %v4416
      %v4447 = vpack.c.b16 %v4419, %v4418
      %v4448 = vpack.c.b16 %v4421, %v4420
      %v4449 = vpack.c.b16 %v4423, %v4422
      %v4450 = vpack.c.b16 %v4425, %v4424
      %v4451 = vpack.c.b16 %v4427, %v4426
      %v4452 = vpack.c.b16 %v4429, %v4428
      %v4453 = vpack.c.b16 %v4431, %v4430
      %v4454 = vpack.c.b16 %v4433, %v4432
      %v4455 = vpack.c.b16 %v4435, %v4434
      %v4456 = vpack.c.b16 %v4437, %v4436
      %v4457 = vpack.c.b16 %v4439, %v4438
      %v4477 = vsel %vm554, %v4280, 0
      %v4480 = vsel %vm554, %v4283, 0
      %v4483 = vsel %vm554, %v4286, 0
      %v4486 = vsel %vm554, %v4289, 0
      %v4489 = vsel %vm554, %v4292, 0
      %v4492 = vsel %vm554, %v4295, 0
      %v4495 = vsel %vm554, %v4298, 0
      %v4498 = vsel %vm554, %v4301, 0
      %v4501 = vsel %vm554, %v4304, 0
      %v4504 = vsel %vm554, %v4307, 0
      %v4507 = vsel %vm554, %v4310, 0
      %v4510 = vsel %vm554, %v4313, 0
      %v4513 = vsel %vm554, %v4316, 0
      %v4516 = vsel %vm554, %v4319, 0
      %v4519 = vsel %vm554, %v4322, 0
      %v4522 = vsel %vm554, %v4325, 0
      %v4525 = vsel %vm554, %v4328, 0
      %v4528 = vsel %vm554, %v4331, 0
      %4530 = vmatpush.bf16.msra.mxu0 %v4447
      %4531 = vmatpush.bf16.msra.mxu0 %v4446
      %4532 = vmatpush.bf16.msra.mxu0 %v4445
      %4533 = vmatpush.bf16.msra.mxu0 %v4444
      %4534 = vmatpush.bf16.msra.mxu0 %v4443
      %4535 = vmatpush.bf16.msra.mxu0 %v4442
      %4536 = vmatpush.bf16.msra.mxu0 %v4441
      %4537 = vmatpush.bf16.msra.mxu0 %v4440
      %4538 = vmatmul.bf16.gmra.mxu0 %v4278
      %v4539 = vpop.f32.mrf.mxu0
      %v4540 = vadd.f32 0.0, %v4539
      %v4541 = vpop.f32.mrf.mxu0
      %v4542 = vadd.f32 0.0, %v4541
      %4543 = vmatmul.bf16.gmra.mxu0 %v4281
      %v4544 = vpop.f32.mrf.mxu0
      %v4545 = vadd.f32 0.0, %v4544
      %v4546 = vpop.f32.mrf.mxu0
      %v4547 = vadd.f32 0.0, %v4546
      %4548 = vmatmul.bf16.gmra.mxu0 %v4284
      %v4549 = vpop.f32.mrf.mxu0
      %v4550 = vadd.f32 0.0, %v4549
      %v4551 = vpop.f32.mrf.mxu0
      %v4552 = vadd.f32 0.0, %v4551
      %4553 = vmatmul.bf16.gmra.mxu0 %v4287
      %v4554 = vpop.f32.mrf.mxu0
      %v4555 = vadd.f32 0.0, %v4554
      %v4556 = vpop.f32.mrf.mxu0
      %v4557 = vadd.f32 0.0, %v4556
      %4558 = vmatmul.bf16.gmra.mxu0 %v4290
      %v4559 = vpop.f32.mrf.mxu0
      %v4560 = vadd.f32 0.0, %v4559
      %v4561 = vpop.f32.mrf.mxu0
      %v4562 = vadd.f32 0.0, %v4561
      %4563 = vmatmul.bf16.gmra.mxu0 %v4293
      %v4564 = vpop.f32.mrf.mxu0
      %v4565 = vadd.f32 0.0, %v4564
      %v4566 = vpop.f32.mrf.mxu0
      %v4567 = vadd.f32 0.0, %v4566
      %4568 = vmatmul.bf16.gmra.mxu0 %v4296
      %v4569 = vpop.f32.mrf.mxu0
      %v4570 = vadd.f32 0.0, %v4569
      %v4571 = vpop.f32.mrf.mxu0
      %v4572 = vadd.f32 0.0, %v4571
      %4573 = vmatmul.bf16.gmra.mxu0 %v4299
      %v4574 = vpop.f32.mrf.mxu0
      %v4575 = vadd.f32 0.0, %v4574
      %v4576 = vpop.f32.mrf.mxu0
      %v4577 = vadd.f32 0.0, %v4576
      %4578 = vmatmul.bf16.gmra.mxu0 %v4302
      %v4579 = vpop.f32.mrf.mxu0
      %v4580 = vadd.f32 0.0, %v4579
      %v4581 = vpop.f32.mrf.mxu0
      %v4582 = vadd.f32 0.0, %v4581
      %4583 = vmatmul.bf16.gmra.mxu0 %v4305
      %v4584 = vpop.f32.mrf.mxu0
      %v4585 = vadd.f32 0.0, %v4584
      %v4586 = vpop.f32.mrf.mxu0
      %v4587 = vadd.f32 0.0, %v4586
      %4588 = vmatmul.bf16.gmra.mxu0 %v4308
      %v4589 = vpop.f32.mrf.mxu0
      %v4590 = vadd.f32 0.0, %v4589
      %v4591 = vpop.f32.mrf.mxu0
      %v4592 = vadd.f32 0.0, %v4591
      %4593 = vmatmul.bf16.gmra.mxu0 %v4311
      %v4594 = vpop.f32.mrf.mxu0
      %v4595 = vadd.f32 0.0, %v4594
      %v4596 = vpop.f32.mrf.mxu0
      %v4597 = vadd.f32 0.0, %v4596
      %4598 = vmatmul.bf16.gmra.mxu0 %v4314
      %v4599 = vpop.f32.mrf.mxu0
      %v4600 = vadd.f32 0.0, %v4599
      %v4601 = vpop.f32.mrf.mxu0
      %v4602 = vadd.f32 0.0, %v4601
      %4603 = vmatmul.bf16.gmra.mxu0 %v4317
      %v4604 = vpop.f32.mrf.mxu0
      %v4605 = vadd.f32 0.0, %v4604
      %v4606 = vpop.f32.mrf.mxu0
      %v4607 = vadd.f32 0.0, %v4606
      %4608 = vmatmul.bf16.gmra.mxu0 %v4320
      %v4609 = vpop.f32.mrf.mxu0
      %v4610 = vadd.f32 0.0, %v4609
      %v4611 = vpop.f32.mrf.mxu0
      %v4612 = vadd.f32 0.0, %v4611
      %4613 = vmatmul.bf16.gmra.mxu0 %v4323
      %v4614 = vpop.f32.mrf.mxu0
      %v4615 = vadd.f32 0.0, %v4614
      %v4616 = vpop.f32.mrf.mxu0
      %v4617 = vadd.f32 0.0, %v4616
      %4618 = vmatmul.bf16.gmra.mxu0 %v4326
      %v4619 = vpop.f32.mrf.mxu0
      %v4620 = vadd.f32 0.0, %v4619
      %v4621 = vpop.f32.mrf.mxu0
      %v4622 = vadd.f32 0.0, %v4621
      %4623 = vmatmul.bf16.gmra.mxu0 %v4329
      %v4624 = vpop.f32.mrf.mxu0
      %v4625 = vadd.f32 0.0, %v4624
      %v4626 = vpop.f32.mrf.mxu0
      %v4627 = vadd.f32 0.0, %v4626
      %4628 = vdwg.mxu0
      %4629 = vmatpush.bf16.msra.mxu0 %v4455
      %4630 = vmatpush.bf16.msra.mxu0 %v4454
      %4631 = vmatpush.bf16.msra.mxu0 %v4453
      %4632 = vmatpush.bf16.msra.mxu0 %v4452
      %4633 = vmatpush.bf16.msra.mxu0 %v4451
      %4634 = vmatpush.bf16.msra.mxu0 %v4450
      %4635 = vmatpush.bf16.msra.mxu0 %v4449
      %4636 = vmatpush.bf16.msra.mxu0 %v4448
      %4637 = vmatmul.bf16.gmra.mxu0 %v4279
      %v4638 = vpop.f32.mrf.mxu0
      %v4639 = vadd.f32 %v4540, %v4638
      %v4640 = vpop.f32.mrf.mxu0
      %v4641 = vadd.f32 %v4542, %v4640
      %4642 = vmatmul.bf16.gmra.mxu0 %v4282
      %v4643 = vpop.f32.mrf.mxu0
      %v4644 = vadd.f32 %v4545, %v4643
      %v4645 = vpop.f32.mrf.mxu0
      %v4646 = vadd.f32 %v4547, %v4645
      %4647 = vmatmul.bf16.gmra.mxu0 %v4285
      %v4648 = vpop.f32.mrf.mxu0
      %v4649 = vadd.f32 %v4550, %v4648
      %v4650 = vpop.f32.mrf.mxu0
      %v4651 = vadd.f32 %v4552, %v4650
      %4652 = vmatmul.bf16.gmra.mxu0 %v4288
      %v4653 = vpop.f32.mrf.mxu0
      %v4654 = vadd.f32 %v4555, %v4653
      %v4655 = vpop.f32.mrf.mxu0
      %v4656 = vadd.f32 %v4557, %v4655
      %4657 = vmatmul.bf16.gmra.mxu0 %v4291
      %v4658 = vpop.f32.mrf.mxu0
      %v4659 = vadd.f32 %v4560, %v4658
      %v4660 = vpop.f32.mrf.mxu0
      %v4661 = vadd.f32 %v4562, %v4660
      %4662 = vmatmul.bf16.gmra.mxu0 %v4294
      %v4663 = vpop.f32.mrf.mxu0
      %v4664 = vadd.f32 %v4565, %v4663
      %v4665 = vpop.f32.mrf.mxu0
      %v4666 = vadd.f32 %v4567, %v4665
      %4667 = vmatmul.bf16.gmra.mxu0 %v4297
      %v4668 = vpop.f32.mrf.mxu0
      %v4669 = vadd.f32 %v4570, %v4668
      %v4670 = vpop.f32.mrf.mxu0
      %v4671 = vadd.f32 %v4572, %v4670
      %4672 = vmatmul.bf16.gmra.mxu0 %v4300
      %v4673 = vpop.f32.mrf.mxu0
      %v4674 = vadd.f32 %v4575, %v4673
      %v4675 = vpop.f32.mrf.mxu0
      %v4676 = vadd.f32 %v4577, %v4675
      %4677 = vmatmul.bf16.gmra.mxu0 %v4303
      %v4678 = vpop.f32.mrf.mxu0
      %v4679 = vadd.f32 %v4580, %v4678
      %v4680 = vpop.f32.mrf.mxu0
      %v4681 = vadd.f32 %v4582, %v4680
      %4682 = vmatmul.bf16.gmra.mxu0 %v4306
      %v4683 = vpop.f32.mrf.mxu0
      %v4684 = vadd.f32 %v4585, %v4683
      %v4685 = vpop.f32.mrf.mxu0
      %v4686 = vadd.f32 %v4587, %v4685
      %4687 = vmatmul.bf16.gmra.mxu0 %v4309
      %v4688 = vpop.f32.mrf.mxu0
      %v4689 = vadd.f32 %v4590, %v4688
      %v4690 = vpop.f32.mrf.mxu0
      %v4691 = vadd.f32 %v4592, %v4690
      %4692 = vmatmul.bf16.gmra.mxu0 %v4312
      %v4693 = vpop.f32.mrf.mxu0
      %v4694 = vadd.f32 %v4595, %v4693
      %v4695 = vpop.f32.mrf.mxu0
      %v4696 = vadd.f32 %v4597, %v4695
      %4697 = vmatmul.bf16.gmra.mxu0 %v4315
      %v4698 = vpop.f32.mrf.mxu0
      %v4699 = vadd.f32 %v4600, %v4698
      %v4700 = vpop.f32.mrf.mxu0
      %v4701 = vadd.f32 %v4602, %v4700
      %4702 = vmatmul.bf16.gmra.mxu0 %v4318
      %v4703 = vpop.f32.mrf.mxu0
      %v4704 = vadd.f32 %v4605, %v4703
      %v4705 = vpop.f32.mrf.mxu0
      %v4706 = vadd.f32 %v4607, %v4705
      %4707 = vmatmul.bf16.gmra.mxu0 %v4321
      %v4708 = vpop.f32.mrf.mxu0
      %v4709 = vadd.f32 %v4610, %v4708
      %v4710 = vpop.f32.mrf.mxu0
      %v4711 = vadd.f32 %v4612, %v4710
      %4712 = vmatmul.bf16.gmra.mxu0 %v4324
      %v4713 = vpop.f32.mrf.mxu0
      %v4714 = vadd.f32 %v4615, %v4713
      %v4715 = vpop.f32.mrf.mxu0
      %v4716 = vadd.f32 %v4617, %v4715
      %4717 = vmatmul.bf16.gmra.mxu0 %v4327
      %v4718 = vpop.f32.mrf.mxu0
      %v4719 = vadd.f32 %v4620, %v4718
      %v4720 = vpop.f32.mrf.mxu0
      %v4721 = vadd.f32 %v4622, %v4720
      %4722 = vmatmul.bf16.gmra.mxu0 %v4330
      %v4723 = vpop.f32.mrf.mxu0
      %v4724 = vadd.f32 %v4625, %v4723
      %v4725 = vpop.f32.mrf.mxu0
      %v4726 = vadd.f32 %v4627, %v4725
      %4727 = vdwg.mxu0
      %4728 = vmatpush.bf16.msra.mxu0 0
      %4729 = vmatpush.bf16.msra.mxu0 0
      %4730 = vmatpush.bf16.msra.mxu0 0
      %4731 = vmatpush.bf16.msra.mxu0 0
      %4732 = vmatpush.bf16.msra.mxu0 0
      %4733 = vmatpush.bf16.msra.mxu0 0
      %4734 = vmatpush.bf16.msra.mxu0 %v4457
      %4735 = vmatpush.bf16.msra.mxu0 %v4456
      %4736 = vmatmul.bf16.gmra.mxu0 %v4477
      %v4737 = vpop.f32.mrf.mxu0
      %v4738 = vadd.f32 %v4639, %v4737
      %v4739 = vpop.f32.mrf.mxu0
      %v4740 = vadd.f32 %v4641, %v4739
      %4741 = vmatmul.bf16.gmra.mxu0 %v4480
      %v4742 = vpop.f32.mrf.mxu0
      %v4743 = vadd.f32 %v4644, %v4742
      %v4744 = vpop.f32.mrf.mxu0
      %v4745 = vadd.f32 %v4646, %v4744
      %4746 = vmatmul.bf16.gmra.mxu0 %v4483
      %v4747 = vpop.f32.mrf.mxu0
      %v4748 = vadd.f32 %v4649, %v4747
      %v4749 = vpop.f32.mrf.mxu0
      %v4750 = vadd.f32 %v4651, %v4749
      %4751 = vmatmul.bf16.gmra.mxu0 %v4486
      %v4752 = vpop.f32.mrf.mxu0
      %v4753 = vadd.f32 %v4654, %v4752
      %v4754 = vpop.f32.mrf.mxu0
      %v4755 = vadd.f32 %v4656, %v4754
      %4756 = vmatmul.bf16.gmra.mxu0 %v4489
      %v4757 = vpop.f32.mrf.mxu0
      %v4758 = vadd.f32 %v4659, %v4757
      %v4759 = vpop.f32.mrf.mxu0
      %v4760 = vadd.f32 %v4661, %v4759
      %4761 = vmatmul.bf16.gmra.mxu0 %v4492
      %v4762 = vpop.f32.mrf.mxu0
      %v4763 = vadd.f32 %v4664, %v4762
      %v4764 = vpop.f32.mrf.mxu0
      %v4765 = vadd.f32 %v4666, %v4764
      %4766 = vmatmul.bf16.gmra.mxu0 %v4495
      %v4767 = vpop.f32.mrf.mxu0
      %v4768 = vadd.f32 %v4669, %v4767
      %v4769 = vpop.f32.mrf.mxu0
      %v4770 = vadd.f32 %v4671, %v4769
      %4771 = vmatmul.bf16.gmra.mxu0 %v4498
      %v4772 = vpop.f32.mrf.mxu0
      %v4773 = vadd.f32 %v4674, %v4772
      %v4774 = vpop.f32.mrf.mxu0
      %v4775 = vadd.f32 %v4676, %v4774
      %4776 = vmatmul.bf16.gmra.mxu0 %v4501
      %v4777 = vpop.f32.mrf.mxu0
      %v4778 = vadd.f32 %v4679, %v4777
      %v4779 = vpop.f32.mrf.mxu0
      %v4780 = vadd.f32 %v4681, %v4779
      %4781 = vmatmul.bf16.gmra.mxu0 %v4504
      %v4782 = vpop.f32.mrf.mxu0
      %v4783 = vadd.f32 %v4684, %v4782
      %v4784 = vpop.f32.mrf.mxu0
      %v4785 = vadd.f32 %v4686, %v4784
      %4786 = vmatmul.bf16.gmra.mxu0 %v4507
      %v4787 = vpop.f32.mrf.mxu0
      %v4788 = vadd.f32 %v4689, %v4787
      %v4789 = vpop.f32.mrf.mxu0
      %v4790 = vadd.f32 %v4691, %v4789
      %4791 = vmatmul.bf16.gmra.mxu0 %v4510
      %v4792 = vpop.f32.mrf.mxu0
      %v4793 = vadd.f32 %v4694, %v4792
      %v4794 = vpop.f32.mrf.mxu0
      %v4795 = vadd.f32 %v4696, %v4794
      %4796 = vmatmul.bf16.gmra.mxu0 %v4513
      %v4797 = vpop.f32.mrf.mxu0
      %v4798 = vadd.f32 %v4699, %v4797
      %v4799 = vpop.f32.mrf.mxu0
      %v4800 = vadd.f32 %v4701, %v4799
      %4801 = vmatmul.bf16.gmra.mxu0 %v4516
      %v4802 = vpop.f32.mrf.mxu0
      %v4803 = vadd.f32 %v4704, %v4802
      %v4804 = vpop.f32.mrf.mxu0
      %v4805 = vadd.f32 %v4706, %v4804
      %4806 = vmatmul.bf16.gmra.mxu0 %v4519
      %v4807 = vpop.f32.mrf.mxu0
      %v4808 = vadd.f32 %v4709, %v4807
      %v4809 = vpop.f32.mrf.mxu0
      %v4810 = vadd.f32 %v4711, %v4809
      %4811 = vmatmul.bf16.gmra.mxu0 %v4522
      %v4812 = vpop.f32.mrf.mxu0
      %v4813 = vadd.f32 %v4714, %v4812
      %v4814 = vpop.f32.mrf.mxu0
      %v4815 = vadd.f32 %v4716, %v4814
      %4816 = vmatmul.bf16.gmra.mxu0 %v4525
      %v4817 = vpop.f32.mrf.mxu0
      %v4818 = vadd.f32 %v4719, %v4817
      %v4819 = vpop.f32.mrf.mxu0
      %v4820 = vadd.f32 %v4721, %v4819
      %4821 = vmatmul.bf16.gmra.mxu0 %v4528
      %v4822 = vpop.f32.mrf.mxu0
      %v4823 = vadd.f32 %v4724, %v4822
      %v4824 = vpop.f32.mrf.mxu0
      %v4825 = vadd.f32 %v4726, %v4824
      %4826 = vdwg.mxu0
      %v4827 = vld [vmem:[%s460] sm:$0x1]
      %v4829 = vperm.slane %v4827, 0
      %v4831 = vmul.f32 %v4738, %v4829
      %v4832 = vmul.f32 %v4740, %v4829
      %v4833 = vmul.f32 %v4743, %v4829
      %v4834 = vmul.f32 %v4745, %v4829
      %v4835 = vmul.f32 %v4748, %v4829
      %v4836 = vmul.f32 %v4750, %v4829
      %v4837 = vmul.f32 %v4753, %v4829
      %v4838 = vmul.f32 %v4755, %v4829
      %v4839 = vmul.f32 %v4758, %v4829
      %v4840 = vmul.f32 %v4760, %v4829
      %v4841 = vmul.f32 %v4763, %v4829
      %v4842 = vmul.f32 %v4765, %v4829
      %v4843 = vmul.f32 %v4768, %v4829
      %v4844 = vmul.f32 %v4770, %v4829
      %v4845 = vmul.f32 %v4773, %v4829
      %v4846 = vmul.f32 %v4775, %v4829
      %v4847 = vmul.f32 %v4778, %v4829
      %v4848 = vmul.f32 %v4780, %v4829
      %v4849 = vmul.f32 %v4783, %v4829
      %v4850 = vmul.f32 %v4785, %v4829
      %v4851 = vmul.f32 %v4788, %v4829
      %v4852 = vmul.f32 %v4790, %v4829
      %v4853 = vmul.f32 %v4793, %v4829
      %v4854 = vmul.f32 %v4795, %v4829
      %v4855 = vmul.f32 %v4798, %v4829
      %v4856 = vmul.f32 %v4800, %v4829
      %v4857 = vmul.f32 %v4803, %v4829
      %v4858 = vmul.f32 %v4805, %v4829
      %v4859 = vmul.f32 %v4808, %v4829
      %v4860 = vmul.f32 %v4810, %v4829
      %v4861 = vmul.f32 %v4813, %v4829
      %v4862 = vmul.f32 %v4815, %v4829
      %v4863 = vmul.f32 %v4818, %v4829
      %v4864 = vmul.f32 %v4820, %v4829
      %v4865 = vmul.f32 %v4823, %v4829
      %v4866 = vmul.f32 %v4825, %v4829
      %v4867 = vld [vmem:[%s463] sm:$0x1]
      %v4869 = vperm.slane %v4867, 0
      %v4871 = vadd.f32 %v4831, %v4869
      %v4872 = vadd.f32 %v4832, %v4869
      %v4873 = vadd.f32 %v4833, %v4869
      %v4874 = vadd.f32 %v4834, %v4869
      %v4875 = vadd.f32 %v4835, %v4869
      %v4876 = vadd.f32 %v4836, %v4869
      %v4877 = vadd.f32 %v4837, %v4869
      %v4878 = vadd.f32 %v4838, %v4869
      %v4879 = vadd.f32 %v4839, %v4869
      %v4880 = vadd.f32 %v4840, %v4869
      %v4881 = vadd.f32 %v4841, %v4869
      %v4882 = vadd.f32 %v4842, %v4869
      %v4883 = vadd.f32 %v4843, %v4869
      %v4884 = vadd.f32 %v4844, %v4869
      %v4885 = vadd.f32 %v4845, %v4869
      %v4886 = vadd.f32 %v4846, %v4869
      %v4887 = vadd.f32 %v4847, %v4869
      %v4888 = vadd.f32 %v4848, %v4869
      %v4889 = vadd.f32 %v4849, %v4869
      %v4890 = vadd.f32 %v4850, %v4869
      %v4891 = vadd.f32 %v4851, %v4869
      %v4892 = vadd.f32 %v4852, %v4869
      %v4893 = vadd.f32 %v4853, %v4869
      %v4894 = vadd.f32 %v4854, %v4869
      %v4895 = vadd.f32 %v4855, %v4869
      %v4896 = vadd.f32 %v4856, %v4869
      %v4897 = vadd.f32 %v4857, %v4869
      %v4898 = vadd.f32 %v4858, %v4869
      %v4899 = vadd.f32 %v4859, %v4869
      %v4900 = vadd.f32 %v4860, %v4869
      %v4901 = vadd.f32 %v4861, %v4869
      %v4902 = vadd.f32 %v4862, %v4869
      %v4903 = vadd.f32 %v4863, %v4869
      %v4904 = vadd.f32 %v4864, %v4869
      %v4905 = vadd.f32 %v4865, %v4869
      %v4906 = vadd.f32 %v4866, %v4869
      %4907 = vset.pattern.permute.xlu0 0
      %4908 = vperm.xlu0 %4907, %v515
      %v4909 = vpop.permute.xlu0 %4908
      %4911 = vset.pattern.permute.xlu0 0
      %4912 = vperm.xlu0 %4911, %v516
      %v4913 = vpop.permute.xlu0 %4912
      %4915 = vset.pattern.permute.xlu0 0
      %4916 = vperm.xlu0 %4915, %v517
      %v4917 = vpop.permute.xlu0 %4916
      %4919 = vset.pattern.permute.xlu0 0
      %4920 = vperm.xlu0 %4919, %v518
      %v4921 = vpop.permute.xlu0 %4920
      %4923 = vset.pattern.permute.xlu0 0
      %4924 = vperm.xlu0 %4923, %v519
      %v4925 = vpop.permute.xlu0 %4924
      %4927 = vset.pattern.permute.xlu0 0
      %4928 = vperm.xlu0 %4927, %v520
      %v4929 = vpop.permute.xlu0 %4928
      %4931 = vset.pattern.permute.xlu0 0
      %4932 = vperm.xlu0 %4931, %v521
      %v4933 = vpop.permute.xlu0 %4932
      %4935 = vset.pattern.permute.xlu0 0
      %4936 = vperm.xlu0 %4935, %v522
      %v4937 = vpop.permute.xlu0 %4936
      %4939 = vset.pattern.permute.xlu0 0
      %4940 = vperm.xlu0 %4939, %v523
      %v4941 = vpop.permute.xlu0 %4940
      %4943 = vset.pattern.permute.xlu0 0
      %4944 = vperm.xlu0 %4943, %v524
      %v4945 = vpop.permute.xlu0 %4944
      %4947 = vset.pattern.permute.xlu0 0
      %4948 = vperm.xlu0 %4947, %v525
      %v4949 = vpop.permute.xlu0 %4948
      %4951 = vset.pattern.permute.xlu0 0
      %4952 = vperm.xlu0 %4951, %v526
      %v4953 = vpop.permute.xlu0 %4952
      %4955 = vset.pattern.permute.xlu0 0
      %4956 = vperm.xlu0 %4955, %v527
      %v4957 = vpop.permute.xlu0 %4956
      %4959 = vset.pattern.permute.xlu0 0
      %4960 = vperm.xlu0 %4959, %v528
      %v4961 = vpop.permute.xlu0 %4960
      %4963 = vset.pattern.permute.xlu0 0
      %4964 = vperm.xlu0 %4963, %v529
      %v4965 = vpop.permute.xlu0 %4964
      %4967 = vset.pattern.permute.xlu0 0
      %4968 = vperm.xlu0 %4967, %v530
      %v4969 = vpop.permute.xlu0 %4968
      %4971 = vset.pattern.permute.xlu0 0
      %4972 = vperm.xlu0 %4971, %v531
      %v4973 = vpop.permute.xlu0 %4972
      %4975 = vset.pattern.permute.xlu0 0
      %4976 = vperm.xlu0 %4975, %v532
      %v4977 = vpop.permute.xlu0 %4976
      %4979 = vset.pattern.permute.xlu0 0
      %4980 = vperm.xlu0 %4979, %v533
      %v4981 = vpop.permute.xlu0 %4980
      %4983 = vset.pattern.permute.xlu0 0
      %4984 = vperm.xlu0 %4983, %v534
      %v4985 = vpop.permute.xlu0 %4984
      %4987 = vset.pattern.permute.xlu0 0
      %4988 = vperm.xlu0 %4987, %v535
      %v4989 = vpop.permute.xlu0 %4988
      %4991 = vset.pattern.permute.xlu0 0
      %4992 = vperm.xlu0 %4991, %v536
      %v4993 = vpop.permute.xlu0 %4992
      %4995 = vset.pattern.permute.xlu0 0
      %4996 = vperm.xlu0 %4995, %v537
      %v4997 = vpop.permute.xlu0 %4996
      %4999 = vset.pattern.permute.xlu0 0
      %5000 = vperm.xlu0 %4999, %v538
      %v5001 = vpop.permute.xlu0 %5000
      %5003 = vset.pattern.permute.xlu0 0
      %5004 = vperm.xlu0 %5003, %v539
      %v5005 = vpop.permute.xlu0 %5004
      %5007 = vset.pattern.permute.xlu0 0
      %5008 = vperm.xlu0 %5007, %v540
      %v5009 = vpop.permute.xlu0 %5008
      %5011 = vset.pattern.permute.xlu0 0
      %5012 = vperm.xlu0 %5011, %v541
      %v5013 = vpop.permute.xlu0 %5012
      %5015 = vset.pattern.permute.xlu0 0
      %5016 = vperm.xlu0 %5015, %v542
      %v5017 = vpop.permute.xlu0 %5016
      %5019 = vset.pattern.permute.xlu0 0
      %5020 = vperm.xlu0 %5019, %v543
      %v5021 = vpop.permute.xlu0 %5020
      %5023 = vset.pattern.permute.xlu0 0
      %5024 = vperm.xlu0 %5023, %v544
      %v5025 = vpop.permute.xlu0 %5024
      %5027 = vset.pattern.permute.xlu0 0
      %5028 = vperm.xlu0 %5027, %v545
      %v5029 = vpop.permute.xlu0 %5028
      %5031 = vset.pattern.permute.xlu0 0
      %5032 = vperm.xlu0 %5031, %v546
      %v5033 = vpop.permute.xlu0 %5032
      %5035 = vset.pattern.permute.xlu0 0
      %5036 = vperm.xlu0 %5035, %v547
      %v5037 = vpop.permute.xlu0 %5036
      %5039 = vset.pattern.permute.xlu0 0
      %5040 = vperm.xlu0 %5039, %v548
      %v5041 = vpop.permute.xlu0 %5040
      %5043 = vset.pattern.permute.xlu0 0
      %5044 = vperm.xlu0 %5043, %v549
      %v5045 = vpop.permute.xlu0 %5044
      %5047 = vset.pattern.permute.xlu0 0
      %5048 = vperm.xlu0 %5047, %v550
      %v5049 = vpop.permute.xlu0 %5048
      %v5051 = vmul.f32 %v4871, %v4909
      %v5052 = vmul.f32 %v4872, %v4913
      %v5053 = vmul.f32 %v4873, %v4917
      %v5054 = vmul.f32 %v4874, %v4921
      %v5055 = vmul.f32 %v4875, %v4925
      %v5056 = vmul.f32 %v4876, %v4929
      %v5057 = vmul.f32 %v4877, %v4933
      %v5058 = vmul.f32 %v4878, %v4937
      %v5059 = vmul.f32 %v4879, %v4941
      %v5060 = vmul.f32 %v4880, %v4945
      %v5061 = vmul.f32 %v4881, %v4949
      %v5062 = vmul.f32 %v4882, %v4953
      %v5063 = vmul.f32 %v4883, %v4957
      %v5064 = vmul.f32 %v4884, %v4961
      %v5065 = vmul.f32 %v4885, %v4965
      %v5066 = vmul.f32 %v4886, %v4969
      %v5067 = vmul.f32 %v4887, %v4973
      %v5068 = vmul.f32 %v4888, %v4977
      %v5069 = vmul.f32 %v4889, %v4981
      %v5070 = vmul.f32 %v4890, %v4985
      %v5071 = vmul.f32 %v4891, %v4989
      %v5072 = vmul.f32 %v4892, %v4993
      %v5073 = vmul.f32 %v4893, %v4997
      %v5074 = vmul.f32 %v4894, %v5001
      %v5075 = vmul.f32 %v4895, %v5005
      %v5076 = vmul.f32 %v4896, %v5009
      %v5077 = vmul.f32 %v4897, %v5013
      %v5078 = vmul.f32 %v4898, %v5017
      %v5079 = vmul.f32 %v4899, %v5021
      %v5080 = vmul.f32 %v4900, %v5025
      %v5081 = vmul.f32 %v4901, %v5029
      %v5082 = vmul.f32 %v4902, %v5033
      %v5083 = vmul.f32 %v4903, %v5037
      %v5084 = vmul.f32 %v4904, %v5041
      %v5085 = vmul.f32 %v4905, %v5045
      %v5086 = vmul.f32 %v4906, %v5049
      %vm5087 = vcmask 523264
      %v5088 = vsel %vm5087, %v5051, 0.0
      %v5089 = vsel %vm5087, %v5052, 0.0
      %v5090 = vadd.f32 %v5088, %v5089
      %v5091 = vsel %vm5087, %v5053, 0.0
      %v5092 = vadd.f32 %v5090, %v5091
      %v5093 = vsel %vm5087, %v5054, 0.0
      %v5094 = vadd.f32 %v5092, %v5093
      %v5095 = vsel %vm5087, %v5055, 0.0
      %v5096 = vadd.f32 %v5094, %v5095
      %v5097 = vsel %vm5087, %v5056, 0.0
      %v5098 = vadd.f32 %v5096, %v5097
      %v5099 = vsel %vm5087, %v5057, 0.0
      %v5100 = vadd.f32 %v5098, %v5099
      %v5101 = vsel %vm5087, %v5058, 0.0
      %v5102 = vadd.f32 %v5100, %v5101
      %v5103 = vsel %vm5087, %v5059, 0.0
      %v5104 = vadd.f32 %v5102, %v5103
      %v5105 = vsel %vm5087, %v5060, 0.0
      %v5106 = vadd.f32 %v5104, %v5105
      %v5107 = vsel %vm5087, %v5061, 0.0
      %v5108 = vadd.f32 %v5106, %v5107
      %v5109 = vsel %vm5087, %v5062, 0.0
      %v5110 = vadd.f32 %v5108, %v5109
      %v5111 = vsel %vm5087, %v5063, 0.0
      %v5112 = vadd.f32 %v5110, %v5111
      %v5113 = vsel %vm5087, %v5064, 0.0
      %v5114 = vadd.f32 %v5112, %v5113
      %v5115 = vsel %vm5087, %v5065, 0.0
      %v5116 = vadd.f32 %v5114, %v5115
      %v5117 = vsel %vm5087, %v5066, 0.0
      %v5118 = vadd.f32 %v5116, %v5117
      %v5119 = vsel %vm5087, %v5067, 0.0
      %v5120 = vadd.f32 %v5118, %v5119
      %v5121 = vsel %vm5087, %v5068, 0.0
      %v5122 = vadd.f32 %v5120, %v5121
      %v5123 = vsel %vm5087, %v5069, 0.0
      %v5124 = vadd.f32 %v5122, %v5123
      %v5125 = vsel %vm5087, %v5070, 0.0
      %v5126 = vadd.f32 %v5124, %v5125
      %v5127 = vsel %vm5087, %v5071, 0.0
      %v5128 = vadd.f32 %v5126, %v5127
      %v5129 = vsel %vm5087, %v5072, 0.0
      %v5130 = vadd.f32 %v5128, %v5129
      %v5131 = vsel %vm5087, %v5073, 0.0
      %v5132 = vadd.f32 %v5130, %v5131
      %v5133 = vsel %vm5087, %v5074, 0.0
      %v5134 = vadd.f32 %v5132, %v5133
      %v5135 = vsel %vm5087, %v5075, 0.0
      %v5136 = vadd.f32 %v5134, %v5135
      %v5137 = vsel %vm5087, %v5076, 0.0
      %v5138 = vadd.f32 %v5136, %v5137
      %v5139 = vsel %vm5087, %v5077, 0.0
      %v5140 = vadd.f32 %v5138, %v5139
      %v5141 = vsel %vm5087, %v5078, 0.0
      %v5142 = vadd.f32 %v5140, %v5141
      %v5143 = vsel %vm5087, %v5079, 0.0
      %v5144 = vadd.f32 %v5142, %v5143
      %v5145 = vsel %vm5087, %v5080, 0.0
      %v5146 = vadd.f32 %v5144, %v5145
      %v5147 = vsel %vm5087, %v5081, 0.0
      %v5148 = vadd.f32 %v5146, %v5147
      %v5149 = vsel %vm5087, %v5082, 0.0
      %v5150 = vadd.f32 %v5148, %v5149
      %v5151 = vsel %vm5087, %v5083, 0.0
      %v5152 = vadd.f32 %v5150, %v5151
      %v5153 = vsel %vm5087, %v5084, 0.0
      %v5154 = vadd.f32 %v5152, %v5153
      %v5155 = vsel %vm5087, %v5085, 0.0
      %v5156 = vadd.f32 %v5154, %v5155
      %v5157 = vsel %vm5087, %v5086, 0.0
      %v5158 = vadd.f32 %v5156, %v5157
      %v5159 = vrot.slane %v5158, 4
      %v5160 = vadd.f32 %v5158, %v5159
      %v5161 = vrot.slane %v5160, 2
      %v5162 = vadd.f32 %v5160, %v5161
      %v5163 = vrot.slane %v5162, 1
      %v5164 = vadd.f32 %v5162, %v5163
      %v5165 = vmul.f32 %v5051, %v4871
      %v5166 = vmul.f32 %v5052, %v4872
      %v5167 = vmul.f32 %v5053, %v4873
      %v5168 = vmul.f32 %v5054, %v4874
      %v5169 = vmul.f32 %v5055, %v4875
      %v5170 = vmul.f32 %v5056, %v4876
      %v5171 = vmul.f32 %v5057, %v4877
      %v5172 = vmul.f32 %v5058, %v4878
      %v5173 = vmul.f32 %v5059, %v4879
      %v5174 = vmul.f32 %v5060, %v4880
      %v5175 = vmul.f32 %v5061, %v4881
      %v5176 = vmul.f32 %v5062, %v4882
      %v5177 = vmul.f32 %v5063, %v4883
      %v5178 = vmul.f32 %v5064, %v4884
      %v5179 = vmul.f32 %v5065, %v4885
      %v5180 = vmul.f32 %v5066, %v4886
      %v5181 = vmul.f32 %v5067, %v4887
      %v5182 = vmul.f32 %v5068, %v4888
      %v5183 = vmul.f32 %v5069, %v4889
      %v5184 = vmul.f32 %v5070, %v4890
      %v5185 = vmul.f32 %v5071, %v4891
      %v5186 = vmul.f32 %v5072, %v4892
      %v5187 = vmul.f32 %v5073, %v4893
      %v5188 = vmul.f32 %v5074, %v4894
      %v5189 = vmul.f32 %v5075, %v4895
      %v5190 = vmul.f32 %v5076, %v4896
      %v5191 = vmul.f32 %v5077, %v4897
      %v5192 = vmul.f32 %v5078, %v4898
      %v5193 = vmul.f32 %v5079, %v4899
      %v5194 = vmul.f32 %v5080, %v4900
      %v5195 = vmul.f32 %v5081, %v4901
      %v5196 = vmul.f32 %v5082, %v4902
      %v5197 = vmul.f32 %v5083, %v4903
      %v5198 = vmul.f32 %v5084, %v4904
      %v5199 = vmul.f32 %v5085, %v4905
      %v5200 = vmul.f32 %v5086, %v4906
      %v5201 = vsel %vm5087, %v5165, 0.0
      %v5202 = vsel %vm5087, %v5166, 0.0
      %v5203 = vadd.f32 %v5201, %v5202
      %v5204 = vsel %vm5087, %v5167, 0.0
      %v5205 = vadd.f32 %v5203, %v5204
      %v5206 = vsel %vm5087, %v5168, 0.0
      %v5207 = vadd.f32 %v5205, %v5206
      %v5208 = vsel %vm5087, %v5169, 0.0
      %v5209 = vadd.f32 %v5207, %v5208
      %v5210 = vsel %vm5087, %v5170, 0.0
      %v5211 = vadd.f32 %v5209, %v5210
      %v5212 = vsel %vm5087, %v5171, 0.0
      %v5213 = vadd.f32 %v5211, %v5212
      %v5214 = vsel %vm5087, %v5172, 0.0
      %v5215 = vadd.f32 %v5213, %v5214
      %v5216 = vsel %vm5087, %v5173, 0.0
      %v5217 = vadd.f32 %v5215, %v5216
      %v5218 = vsel %vm5087, %v5174, 0.0
      %v5219 = vadd.f32 %v5217, %v5218
      %v5220 = vsel %vm5087, %v5175, 0.0
      %v5221 = vadd.f32 %v5219, %v5220
      %v5222 = vsel %vm5087, %v5176, 0.0
      %v5223 = vadd.f32 %v5221, %v5222
      %v5224 = vsel %vm5087, %v5177, 0.0
      %v5225 = vadd.f32 %v5223, %v5224
      %v5226 = vsel %vm5087, %v5178, 0.0
      %v5227 = vadd.f32 %v5225, %v5226
      %v5228 = vsel %vm5087, %v5179, 0.0
      %v5229 = vadd.f32 %v5227, %v5228
      %v5230 = vsel %vm5087, %v5180, 0.0
      %v5231 = vadd.f32 %v5229, %v5230
      %v5232 = vsel %vm5087, %v5181, 0.0
      %v5233 = vadd.f32 %v5231, %v5232
      %v5234 = vsel %vm5087, %v5182, 0.0
      %v5235 = vadd.f32 %v5233, %v5234
      %v5236 = vsel %vm5087, %v5183, 0.0
      %v5237 = vadd.f32 %v5235, %v5236
      %v5238 = vsel %vm5087, %v5184, 0.0
      %v5239 = vadd.f32 %v5237, %v5238
      %v5240 = vsel %vm5087, %v5185, 0.0
      %v5241 = vadd.f32 %v5239, %v5240
      %v5242 = vsel %vm5087, %v5186, 0.0
      %v5243 = vadd.f32 %v5241, %v5242
      %v5244 = vsel %vm5087, %v5187, 0.0
      %v5245 = vadd.f32 %v5243, %v5244
      %v5246 = vsel %vm5087, %v5188, 0.0
      %v5247 = vadd.f32 %v5245, %v5246
      %v5248 = vsel %vm5087, %v5189, 0.0
      %v5249 = vadd.f32 %v5247, %v5248
      %v5250 = vsel %vm5087, %v5190, 0.0
      %v5251 = vadd.f32 %v5249, %v5250
      %v5252 = vsel %vm5087, %v5191, 0.0
      %v5253 = vadd.f32 %v5251, %v5252
      %v5254 = vsel %vm5087, %v5192, 0.0
      %v5255 = vadd.f32 %v5253, %v5254
      %v5256 = vsel %vm5087, %v5193, 0.0
      %v5257 = vadd.f32 %v5255, %v5256
      %v5258 = vsel %vm5087, %v5194, 0.0
      %v5259 = vadd.f32 %v5257, %v5258
      %v5260 = vsel %vm5087, %v5195, 0.0
      %v5261 = vadd.f32 %v5259, %v5260
      %v5262 = vsel %vm5087, %v5196, 0.0
      %v5263 = vadd.f32 %v5261, %v5262
      %v5264 = vsel %vm5087, %v5197, 0.0
      %v5265 = vadd.f32 %v5263, %v5264
      %v5266 = vsel %vm5087, %v5198, 0.0
      %v5267 = vadd.f32 %v5265, %v5266
      %v5268 = vsel %vm5087, %v5199, 0.0
      %v5269 = vadd.f32 %v5267, %v5268
      %v5270 = vsel %vm5087, %v5200, 0.0
      %v5271 = vadd.f32 %v5269, %v5270
      %v5272 = vrot.slane %v5271, 4
      %v5273 = vadd.f32 %v5271, %v5272
      %v5274 = vrot.slane %v5273, 2
      %v5275 = vadd.f32 %v5273, %v5274
      %v5276 = vrot.slane %v5275, 1
      %v5277 = vadd.f32 %v5275, %v5276
      %v5278 = vld [vmem:[%s8] sm:$0xff]
      %v5279 = vld [vmem:[%s8 + $0x8] sm:$0xff]
      %v5280 = vld [vmem:[%s8 + $0x10] sm:$0xff]
      %v5281 = vld [vmem:[%s8 + $0x18] sm:$0xff]
      %v5282 = vld [vmem:[%s8 + $0x20] sm:$0xff]
      %v5283 = vld [vmem:[%s8 + $0x28] sm:$0xff]
      %v5284 = vld [vmem:[%s8 + $0x30] sm:$0xff]
      %v5285 = vld [vmem:[%s8 + $0x38] sm:$0xff]
      %v5287 = vsel %vm5087, %v5164, 0
      %5289 = vmatpush.msra.mxu0 0.0
      %5290 = vmatpush.msra.mxu0 0.0
      %5291 = vmatpush.msra.mxu0 0.0
      %5292 = vmatpush.msra.mxu0 0.0
      %5293 = vmatpush.msra.mxu0 0.0
      %5294 = vmatpush.msra.mxu0 0.0
      %5295 = vmatpush.msra.mxu0 0.0
      %5296 = vmatpush.msra.mxu0 0.0
      %5297 = vmatpush.msra.mxu0 %v5285
      %5298 = vmatpush.msra.mxu0 %v5284
      %5299 = vmatpush.msra.mxu0 %v5283
      %5300 = vmatpush.msra.mxu0 %v5282
      %5301 = vmatpush.msra.mxu0 %v5281
      %5302 = vmatpush.msra.mxu0 %v5280
      %5303 = vmatpush.msra.mxu0 %v5279
      %5304 = vmatpush.msra.mxu0 %v5278
      %5305 = vmatmul.f32.gmra.mxu0 %v5287
      %v5306 = vpop.f32.mrf.mxu0
      %v5307 = vadd.f32 0.0, %v5306
      %5308 = vdwg.mxu0
      %v5310 = vsel %vm5087, %v5277, 0
      %5312 = vmatpush.msra.mxu0 0.0
      %5313 = vmatpush.msra.mxu0 0.0
      %5314 = vmatpush.msra.mxu0 0.0
      %5315 = vmatpush.msra.mxu0 0.0
      %5316 = vmatpush.msra.mxu0 0.0
      %5317 = vmatpush.msra.mxu0 0.0
      %5318 = vmatpush.msra.mxu0 0.0
      %5319 = vmatpush.msra.mxu0 0.0
      %5320 = vmatpush.msra.mxu0 %v5285
      %5321 = vmatpush.msra.mxu0 %v5284
      %5322 = vmatpush.msra.mxu0 %v5283
      %5323 = vmatpush.msra.mxu0 %v5282
      %5324 = vmatpush.msra.mxu0 %v5281
      %5325 = vmatpush.msra.mxu0 %v5280
      %5326 = vmatpush.msra.mxu0 %v5279
      %5327 = vmatpush.msra.mxu0 %v5278
      %5328 = vmatmul.f32.gmra.mxu0 %v5310
      %v5329 = vpop.f32.mrf.mxu0
      %v5330 = vadd.f32 0.0, %v5329
      %5331 = vdwg.mxu0
      %v5332 = vmul.f32 %v5307, %v5307
      %v5333 = vsub.f32 %v5330, %v5332
      %v5334 = vadd.f32 %v5333, 1e-05
      %v5335 = vrsqrt.pop %v5334
      %v5336 = vmul.f32 %v5335, %v5334
      %v5337 = vmul.f32 %v5336, %v5335
      %v5338 = vmul.f32 0.5, %v5337
      %v5339 = vsub.f32 1.5, %v5338
      %v5340 = vmul.f32 %v5335, %v5339
      %vm5341 = vweird.f32 %v5334
      %vm5342 = vweird.f32 %v5335
      %vm5343 = vmor %vm5341, %vm5342
      %v5344 = vsel %vm5343, %v5335, %v5340
      %v5345 = vperm.slane %v5307, 0
      %v5346 = vsub.f32 %v4871, %v5345
      %v5347 = vsub.f32 %v4872, %v5345
      %v5348 = vsub.f32 %v4873, %v5345
      %v5349 = vsub.f32 %v4874, %v5345
      %v5350 = vsub.f32 %v4875, %v5345
      %v5351 = vsub.f32 %v4876, %v5345
      %v5352 = vsub.f32 %v4877, %v5345
      %v5353 = vsub.f32 %v4878, %v5345
      %v5354 = vsub.f32 %v4879, %v5345
      %v5355 = vsub.f32 %v4880, %v5345
      %v5356 = vsub.f32 %v4881, %v5345
      %v5357 = vsub.f32 %v4882, %v5345
      %v5358 = vsub.f32 %v4883, %v5345
      %v5359 = vsub.f32 %v4884, %v5345
      %v5360 = vsub.f32 %v4885, %v5345
      %v5361 = vsub.f32 %v4886, %v5345
      %v5362 = vsub.f32 %v4887, %v5345
      %v5363 = vsub.f32 %v4888, %v5345
      %v5364 = vsub.f32 %v4889, %v5345
      %v5365 = vsub.f32 %v4890, %v5345
      %v5366 = vsub.f32 %v4891, %v5345
      %v5367 = vsub.f32 %v4892, %v5345
      %v5368 = vsub.f32 %v4893, %v5345
      %v5369 = vsub.f32 %v4894, %v5345
      %v5370 = vsub.f32 %v4895, %v5345
      %v5371 = vsub.f32 %v4896, %v5345
      %v5372 = vsub.f32 %v4897, %v5345
      %v5373 = vsub.f32 %v4898, %v5345
      %v5374 = vsub.f32 %v4899, %v5345
      %v5375 = vsub.f32 %v4900, %v5345
      %v5376 = vsub.f32 %v4901, %v5345
      %v5377 = vsub.f32 %v4902, %v5345
      %v5378 = vsub.f32 %v4903, %v5345
      %v5379 = vsub.f32 %v4904, %v5345
      %v5380 = vsub.f32 %v4905, %v5345
      %v5381 = vsub.f32 %v4906, %v5345
      %v5382 = vperm.slane %v5344, 0
      %v5383 = vmul.f32 %v5346, %v5382
      %v5384 = vmul.f32 %v5347, %v5382
      %v5385 = vmul.f32 %v5348, %v5382
      %v5386 = vmul.f32 %v5349, %v5382
      %v5387 = vmul.f32 %v5350, %v5382
      %v5388 = vmul.f32 %v5351, %v5382
      %v5389 = vmul.f32 %v5352, %v5382
      %v5390 = vmul.f32 %v5353, %v5382
      %v5391 = vmul.f32 %v5354, %v5382
      %v5392 = vmul.f32 %v5355, %v5382
      %v5393 = vmul.f32 %v5356, %v5382
      %v5394 = vmul.f32 %v5357, %v5382
      %v5395 = vmul.f32 %v5358, %v5382
      %v5396 = vmul.f32 %v5359, %v5382
      %v5397 = vmul.f32 %v5360, %v5382
      %v5398 = vmul.f32 %v5361, %v5382
      %v5399 = vmul.f32 %v5362, %v5382
      %v5400 = vmul.f32 %v5363, %v5382
      %v5401 = vmul.f32 %v5364, %v5382
      %v5402 = vmul.f32 %v5365, %v5382
      %v5403 = vmul.f32 %v5366, %v5382
      %v5404 = vmul.f32 %v5367, %v5382
      %v5405 = vmul.f32 %v5368, %v5382
      %v5406 = vmul.f32 %v5369, %v5382
      %v5407 = vmul.f32 %v5370, %v5382
      %v5408 = vmul.f32 %v5371, %v5382
      %v5409 = vmul.f32 %v5372, %v5382
      %v5410 = vmul.f32 %v5373, %v5382
      %v5411 = vmul.f32 %v5374, %v5382
      %v5412 = vmul.f32 %v5375, %v5382
      %v5413 = vmul.f32 %v5376, %v5382
      %v5414 = vmul.f32 %v5377, %v5382
      %v5415 = vmul.f32 %v5378, %v5382
      %v5416 = vmul.f32 %v5379, %v5382
      %v5417 = vmul.f32 %v5380, %v5382
      %v5418 = vmul.f32 %v5381, %v5382
      %v5419 = vld [vmem:[%s9] sm:$0x1]
      %v5421 = vperm.slane %v5419, 0
      %v5423 = vmul.f32 %v5383, %v5421
      %v5424 = vmul.f32 %v5384, %v5421
      %v5425 = vmul.f32 %v5385, %v5421
      %v5426 = vmul.f32 %v5386, %v5421
      %v5427 = vmul.f32 %v5387, %v5421
      %v5428 = vmul.f32 %v5388, %v5421
      %v5429 = vmul.f32 %v5389, %v5421
      %v5430 = vmul.f32 %v5390, %v5421
      %v5431 = vmul.f32 %v5391, %v5421
      %v5432 = vmul.f32 %v5392, %v5421
      %v5433 = vmul.f32 %v5393, %v5421
      %v5434 = vmul.f32 %v5394, %v5421
      %v5435 = vmul.f32 %v5395, %v5421
      %v5436 = vmul.f32 %v5396, %v5421
      %v5437 = vmul.f32 %v5397, %v5421
      %v5438 = vmul.f32 %v5398, %v5421
      %v5439 = vmul.f32 %v5399, %v5421
      %v5440 = vmul.f32 %v5400, %v5421
      %v5441 = vmul.f32 %v5401, %v5421
      %v5442 = vmul.f32 %v5402, %v5421
      %v5443 = vmul.f32 %v5403, %v5421
      %v5444 = vmul.f32 %v5404, %v5421
      %v5445 = vmul.f32 %v5405, %v5421
      %v5446 = vmul.f32 %v5406, %v5421
      %v5447 = vmul.f32 %v5407, %v5421
      %v5448 = vmul.f32 %v5408, %v5421
      %v5449 = vmul.f32 %v5409, %v5421
      %v5450 = vmul.f32 %v5410, %v5421
      %v5451 = vmul.f32 %v5411, %v5421
      %v5452 = vmul.f32 %v5412, %v5421
      %v5453 = vmul.f32 %v5413, %v5421
      %v5454 = vmul.f32 %v5414, %v5421
      %v5455 = vmul.f32 %v5415, %v5421
      %v5456 = vmul.f32 %v5416, %v5421
      %v5457 = vmul.f32 %v5417, %v5421
      %v5458 = vmul.f32 %v5418, %v5421
      %v5459 = vld [vmem:[%s10] sm:$0x1]
      %v5461 = vperm.slane %v5459, 0
      %v5463 = vadd.f32 %v5423, %v5461
      %v5464 = vadd.f32 %v5424, %v5461
      %v5465 = vadd.f32 %v5425, %v5461
      %v5466 = vadd.f32 %v5426, %v5461
      %v5467 = vadd.f32 %v5427, %v5461
      %v5468 = vadd.f32 %v5428, %v5461
      %v5469 = vadd.f32 %v5429, %v5461
      %v5470 = vadd.f32 %v5430, %v5461
      %v5471 = vadd.f32 %v5431, %v5461
      %v5472 = vadd.f32 %v5432, %v5461
      %v5473 = vadd.f32 %v5433, %v5461
      %v5474 = vadd.f32 %v5434, %v5461
      %v5475 = vadd.f32 %v5435, %v5461
      %v5476 = vadd.f32 %v5436, %v5461
      %v5477 = vadd.f32 %v5437, %v5461
      %v5478 = vadd.f32 %v5438, %v5461
      %v5479 = vadd.f32 %v5439, %v5461
      %v5480 = vadd.f32 %v5440, %v5461
      %v5481 = vadd.f32 %v5441, %v5461
      %v5482 = vadd.f32 %v5442, %v5461
      %v5483 = vadd.f32 %v5443, %v5461
      %v5484 = vadd.f32 %v5444, %v5461
      %v5485 = vadd.f32 %v5445, %v5461
      %v5486 = vadd.f32 %v5446, %v5461
      %v5487 = vadd.f32 %v5447, %v5461
      %v5488 = vadd.f32 %v5448, %v5461
      %v5489 = vadd.f32 %v5449, %v5461
      %v5490 = vadd.f32 %v5450, %v5461
      %v5491 = vadd.f32 %v5451, %v5461
      %v5492 = vadd.f32 %v5452, %v5461
      %v5493 = vadd.f32 %v5453, %v5461
      %v5494 = vadd.f32 %v5454, %v5461
      %v5495 = vadd.f32 %v5455, %v5461
      %v5496 = vadd.f32 %v5456, %v5461
      %v5497 = vadd.f32 %v5457, %v5461
      %v5498 = vadd.f32 %v5458, %v5461
      %v5499 = vxor.u32 %v5463, 2147483648
      %v5500 = vxor.u32 %v5464, 2147483648
      %v5501 = vxor.u32 %v5465, 2147483648
      %v5502 = vxor.u32 %v5466, 2147483648
      %v5503 = vxor.u32 %v5467, 2147483648
      %v5504 = vxor.u32 %v5468, 2147483648
      %v5505 = vxor.u32 %v5469, 2147483648
      %v5506 = vxor.u32 %v5470, 2147483648
      %v5507 = vxor.u32 %v5471, 2147483648
      %v5508 = vxor.u32 %v5472, 2147483648
      %v5509 = vxor.u32 %v5473, 2147483648
      %v5510 = vxor.u32 %v5474, 2147483648
      %v5511 = vxor.u32 %v5475, 2147483648
      %v5512 = vxor.u32 %v5476, 2147483648
      %v5513 = vxor.u32 %v5477, 2147483648
      %v5514 = vxor.u32 %v5478, 2147483648
      %v5515 = vxor.u32 %v5479, 2147483648
      %v5516 = vxor.u32 %v5480, 2147483648
      %v5517 = vxor.u32 %v5481, 2147483648
      %v5518 = vxor.u32 %v5482, 2147483648
      %v5519 = vxor.u32 %v5483, 2147483648
      %v5520 = vxor.u32 %v5484, 2147483648
      %v5521 = vxor.u32 %v5485, 2147483648
      %v5522 = vxor.u32 %v5486, 2147483648
      %v5523 = vxor.u32 %v5487, 2147483648
      %v5524 = vxor.u32 %v5488, 2147483648
      %v5525 = vxor.u32 %v5489, 2147483648
      %v5526 = vxor.u32 %v5490, 2147483648
      %v5527 = vxor.u32 %v5491, 2147483648
      %v5528 = vxor.u32 %v5492, 2147483648
      %v5529 = vxor.u32 %v5493, 2147483648
      %v5530 = vxor.u32 %v5494, 2147483648
      %v5531 = vxor.u32 %v5495, 2147483648
      %v5532 = vxor.u32 %v5496, 2147483648
      %v5533 = vxor.u32 %v5497, 2147483648
      %v5534 = vxor.u32 %v5498, 2147483648
      %v5535 = vmul.f32 %v5499, 1.442695
      %v5536 = vpow.pop %v5535
      %v5537 = vmul.f32 %v5500, 1.442695
      %v5538 = vpow.pop %v5537
      %v5539 = vmul.f32 %v5501, 1.442695
      %v5540 = vpow.pop %v5539
      %v5541 = vmul.f32 %v5502, 1.442695
      %v5542 = vpow.pop %v5541
      %v5543 = vmul.f32 %v5503, 1.442695
      %v5544 = vpow.pop %v5543
      %v5545 = vmul.f32 %v5504, 1.442695
      %v5546 = vpow.pop %v5545
      %v5547 = vmul.f32 %v5505, 1.442695
      %v5548 = vpow.pop %v5547
      %v5549 = vmul.f32 %v5506, 1.442695
      %v5550 = vpow.pop %v5549
      %v5551 = vmul.f32 %v5507, 1.442695
      %v5552 = vpow.pop %v5551
      %v5553 = vmul.f32 %v5508, 1.442695
      %v5554 = vpow.pop %v5553
      %v5555 = vmul.f32 %v5509, 1.442695
      %v5556 = vpow.pop %v5555
      %v5557 = vmul.f32 %v5510, 1.442695
      %v5558 = vpow.pop %v5557
      %v5559 = vmul.f32 %v5511, 1.442695
      %v5560 = vpow.pop %v5559
      %v5561 = vmul.f32 %v5512, 1.442695
      %v5562 = vpow.pop %v5561
      %v5563 = vmul.f32 %v5513, 1.442695
      %v5564 = vpow.pop %v5563
      %v5565 = vmul.f32 %v5514, 1.442695
      %v5566 = vpow.pop %v5565
      %v5567 = vmul.f32 %v5515, 1.442695
      %v5568 = vpow.pop %v5567
      %v5569 = vmul.f32 %v5516, 1.442695
      %v5570 = vpow.pop %v5569
      %v5571 = vmul.f32 %v5517, 1.442695
      %v5572 = vpow.pop %v5571
      %v5573 = vmul.f32 %v5518, 1.442695
      %v5574 = vpow.pop %v5573
      %v5575 = vmul.f32 %v5519, 1.442695
      %v5576 = vpow.pop %v5575
      %v5577 = vmul.f32 %v5520, 1.442695
      %v5578 = vpow.pop %v5577
      %v5579 = vmul.f32 %v5521, 1.442695
      %v5580 = vpow.pop %v5579
      %v5581 = vmul.f32 %v5522, 1.442695
      %v5582 = vpow.pop %v5581
      %v5583 = vmul.f32 %v5523, 1.442695
      %v5584 = vpow.pop %v5583
      %v5585 = vmul.f32 %v5524, 1.442695
      %v5586 = vpow.pop %v5585
      %v5587 = vmul.f32 %v5525, 1.442695
      %v5588 = vpow.pop %v5587
      %v5589 = vmul.f32 %v5526, 1.442695
      %v5590 = vpow.pop %v5589
      %v5591 = vmul.f32 %v5527, 1.442695
      %v5592 = vpow.pop %v5591
      %v5593 = vmul.f32 %v5528, 1.442695
      %v5594 = vpow.pop %v5593
      %v5595 = vmul.f32 %v5529, 1.442695
      %v5596 = vpow.pop %v5595
      %v5597 = vmul.f32 %v5530, 1.442695
      %v5598 = vpow.pop %v5597
      %v5599 = vmul.f32 %v5531, 1.442695
      %v5600 = vpow.pop %v5599
      %v5601 = vmul.f32 %v5532, 1.442695
      %v5602 = vpow.pop %v5601
      %v5603 = vmul.f32 %v5533, 1.442695
      %v5604 = vpow.pop %v5603
      %v5605 = vmul.f32 %v5534, 1.442695
      %v5606 = vpow.pop %v5605
      %v5607 = vadd.f32 %v5536, 1.0
      %v5608 = vadd.f32 %v5538, 1.0
      %v5609 = vadd.f32 %v5540, 1.0
      %v5610 = vadd.f32 %v5542, 1.0
      %v5611 = vadd.f32 %v5544, 1.0
      %v5612 = vadd.f32 %v5546, 1.0
      %v5613 = vadd.f32 %v5548, 1.0
      %v5614 = vadd.f32 %v5550, 1.0
      %v5615 = vadd.f32 %v5552, 1.0
      %v5616 = vadd.f32 %v5554, 1.0
      %v5617 = vadd.f32 %v5556, 1.0
      %v5618 = vadd.f32 %v5558, 1.0
      %v5619 = vadd.f32 %v5560, 1.0
      %v5620 = vadd.f32 %v5562, 1.0
      %v5621 = vadd.f32 %v5564, 1.0
      %v5622 = vadd.f32 %v5566, 1.0
      %v5623 = vadd.f32 %v5568, 1.0
      %v5624 = vadd.f32 %v5570, 1.0
      %v5625 = vadd.f32 %v5572, 1.0
      %v5626 = vadd.f32 %v5574, 1.0
      %v5627 = vadd.f32 %v5576, 1.0
      %v5628 = vadd.f32 %v5578, 1.0
      %v5629 = vadd.f32 %v5580, 1.0
      %v5630 = vadd.f32 %v5582, 1.0
      %v5631 = vadd.f32 %v5584, 1.0
      %v5632 = vadd.f32 %v5586, 1.0
      %v5633 = vadd.f32 %v5588, 1.0
      %v5634 = vadd.f32 %v5590, 1.0
      %v5635 = vadd.f32 %v5592, 1.0
      %v5636 = vadd.f32 %v5594, 1.0
      %v5637 = vadd.f32 %v5596, 1.0
      %v5638 = vadd.f32 %v5598, 1.0
      %v5639 = vadd.f32 %v5600, 1.0
      %v5640 = vadd.f32 %v5602, 1.0
      %v5641 = vadd.f32 %v5604, 1.0
      %v5642 = vadd.f32 %v5606, 1.0
      %v5643 = vrcp.pop %v5607
      %v5644 = vmul.f32 %v5607, %v5643
      %v5645 = vsub.f32 1.0, %v5644
      %v5646 = vmul.f32 %v5643, %v5645
      %v5647 = vadd.f32 %v5643, %v5646
      %vm5648 = vweird.f32 %v5607
      %vm5649 = vweird.f32 %v5643
      %vm5650 = vmor %vm5648, %vm5649
      %v5651 = vsel %vm5650, %v5643, %v5647
      %v5652 = vand.u32 2147483647, %v5607
      %vm5653 = vcmp.eq.f32.partialorder %v5652, 8.507059e+37
      %v5654 = vand.u32 %v5607, 2147483648
      %v5655 = vor.u32 1.1754944e-38, %v5654
      %v5656 = vsel %vm5653, %v5655, %v5651
      %v5657 = vmul.f32 1.0, %v5656
      %v5658 = vrcp.pop %v5608
      %v5659 = vmul.f32 %v5608, %v5658
      %v5660 = vsub.f32 1.0, %v5659
      %v5661 = vmul.f32 %v5658, %v5660
      %v5662 = vadd.f32 %v5658, %v5661
      %vm5663 = vweird.f32 %v5608
      %vm5664 = vweird.f32 %v5658
      %vm5665 = vmor %vm5663, %vm5664
      %v5666 = vsel %vm5665, %v5658, %v5662
      %v5667 = vand.u32 2147483647, %v5608
      %vm5668 = vcmp.eq.f32.partialorder %v5667, 8.507059e+37
      %v5669 = vand.u32 %v5608, 2147483648
      %v5670 = vor.u32 1.1754944e-38, %v5669
      %v5671 = vsel %vm5668, %v5670, %v5666
      %v5672 = vmul.f32 1.0, %v5671
      %v5673 = vrcp.pop %v5609
      %v5674 = vmul.f32 %v5609, %v5673
      %v5675 = vsub.f32 1.0, %v5674
      %v5676 = vmul.f32 %v5673, %v5675
      %v5677 = vadd.f32 %v5673, %v5676
      %vm5678 = vweird.f32 %v5609
      %vm5679 = vweird.f32 %v5673
      %vm5680 = vmor %vm5678, %vm5679
      %v5681 = vsel %vm5680, %v5673, %v5677
      %v5682 = vand.u32 2147483647, %v5609
      %vm5683 = vcmp.eq.f32.partialorder %v5682, 8.507059e+37
      %v5684 = vand.u32 %v5609, 2147483648
      %v5685 = vor.u32 1.1754944e-38, %v5684
      %v5686 = vsel %vm5683, %v5685, %v5681
      %v5687 = vmul.f32 1.0, %v5686
      %v5688 = vrcp.pop %v5610
      %v5689 = vmul.f32 %v5610, %v5688
      %v5690 = vsub.f32 1.0, %v5689
      %v5691 = vmul.f32 %v5688, %v5690
      %v5692 = vadd.f32 %v5688, %v5691
      %vm5693 = vweird.f32 %v5610
      %vm5694 = vweird.f32 %v5688
      %vm5695 = vmor %vm5693, %vm5694
      %v5696 = vsel %vm5695, %v5688, %v5692
      %v5697 = vand.u32 2147483647, %v5610
      %vm5698 = vcmp.eq.f32.partialorder %v5697, 8.507059e+37
      %v5699 = vand.u32 %v5610, 2147483648
      %v5700 = vor.u32 1.1754944e-38, %v5699
      %v5701 = vsel %vm5698, %v5700, %v5696
      %v5702 = vmul.f32 1.0, %v5701
      %v5703 = vrcp.pop %v5611
      %v5704 = vmul.f32 %v5611, %v5703
      %v5705 = vsub.f32 1.0, %v5704
      %v5706 = vmul.f32 %v5703, %v5705
      %v5707 = vadd.f32 %v5703, %v5706
      %vm5708 = vweird.f32 %v5611
      %vm5709 = vweird.f32 %v5703
      %vm5710 = vmor %vm5708, %vm5709
      %v5711 = vsel %vm5710, %v5703, %v5707
      %v5712 = vand.u32 2147483647, %v5611
      %vm5713 = vcmp.eq.f32.partialorder %v5712, 8.507059e+37
      %v5714 = vand.u32 %v5611, 2147483648
      %v5715 = vor.u32 1.1754944e-38, %v5714
      %v5716 = vsel %vm5713, %v5715, %v5711
      %v5717 = vmul.f32 1.0, %v5716
      %v5718 = vrcp.pop %v5612
      %v5719 = vmul.f32 %v5612, %v5718
      %v5720 = vsub.f32 1.0, %v5719
      %v5721 = vmul.f32 %v5718, %v5720
      %v5722 = vadd.f32 %v5718, %v5721
      %vm5723 = vweird.f32 %v5612
      %vm5724 = vweird.f32 %v5718
      %vm5725 = vmor %vm5723, %vm5724
      %v5726 = vsel %vm5725, %v5718, %v5722
      %v5727 = vand.u32 2147483647, %v5612
      %vm5728 = vcmp.eq.f32.partialorder %v5727, 8.507059e+37
      %v5729 = vand.u32 %v5612, 2147483648
      %v5730 = vor.u32 1.1754944e-38, %v5729
      %v5731 = vsel %vm5728, %v5730, %v5726
      %v5732 = vmul.f32 1.0, %v5731
      %v5733 = vrcp.pop %v5613
      %v5734 = vmul.f32 %v5613, %v5733
      %v5735 = vsub.f32 1.0, %v5734
      %v5736 = vmul.f32 %v5733, %v5735
      %v5737 = vadd.f32 %v5733, %v5736
      %vm5738 = vweird.f32 %v5613
      %vm5739 = vweird.f32 %v5733
      %vm5740 = vmor %vm5738, %vm5739
      %v5741 = vsel %vm5740, %v5733, %v5737
      %v5742 = vand.u32 2147483647, %v5613
      %vm5743 = vcmp.eq.f32.partialorder %v5742, 8.507059e+37
      %v5744 = vand.u32 %v5613, 2147483648
      %v5745 = vor.u32 1.1754944e-38, %v5744
      %v5746 = vsel %vm5743, %v5745, %v5741
      %v5747 = vmul.f32 1.0, %v5746
      %v5748 = vrcp.pop %v5614
      %v5749 = vmul.f32 %v5614, %v5748
      %v5750 = vsub.f32 1.0, %v5749
      %v5751 = vmul.f32 %v5748, %v5750
      %v5752 = vadd.f32 %v5748, %v5751
      %vm5753 = vweird.f32 %v5614
      %vm5754 = vweird.f32 %v5748
      %vm5755 = vmor %vm5753, %vm5754
      %v5756 = vsel %vm5755, %v5748, %v5752
      %v5757 = vand.u32 2147483647, %v5614
      %vm5758 = vcmp.eq.f32.partialorder %v5757, 8.507059e+37
      %v5759 = vand.u32 %v5614, 2147483648
      %v5760 = vor.u32 1.1754944e-38, %v5759
      %v5761 = vsel %vm5758, %v5760, %v5756
      %v5762 = vmul.f32 1.0, %v5761
      %v5763 = vrcp.pop %v5615
      %v5764 = vmul.f32 %v5615, %v5763
      %v5765 = vsub.f32 1.0, %v5764
      %v5766 = vmul.f32 %v5763, %v5765
      %v5767 = vadd.f32 %v5763, %v5766
      %vm5768 = vweird.f32 %v5615
      %vm5769 = vweird.f32 %v5763
      %vm5770 = vmor %vm5768, %vm5769
      %v5771 = vsel %vm5770, %v5763, %v5767
      %v5772 = vand.u32 2147483647, %v5615
      %vm5773 = vcmp.eq.f32.partialorder %v5772, 8.507059e+37
      %v5774 = vand.u32 %v5615, 2147483648
      %v5775 = vor.u32 1.1754944e-38, %v5774
      %v5776 = vsel %vm5773, %v5775, %v5771
      %v5777 = vmul.f32 1.0, %v5776
      %v5778 = vrcp.pop %v5616
      %v5779 = vmul.f32 %v5616, %v5778
      %v5780 = vsub.f32 1.0, %v5779
      %v5781 = vmul.f32 %v5778, %v5780
      %v5782 = vadd.f32 %v5778, %v5781
      %vm5783 = vweird.f32 %v5616
      %vm5784 = vweird.f32 %v5778
      %vm5785 = vmor %vm5783, %vm5784
      %v5786 = vsel %vm5785, %v5778, %v5782
      %v5787 = vand.u32 2147483647, %v5616
      %vm5788 = vcmp.eq.f32.partialorder %v5787, 8.507059e+37
      %v5789 = vand.u32 %v5616, 2147483648
      %v5790 = vor.u32 1.1754944e-38, %v5789
      %v5791 = vsel %vm5788, %v5790, %v5786
      %v5792 = vmul.f32 1.0, %v5791
      %v5793 = vrcp.pop %v5617
      %v5794 = vmul.f32 %v5617, %v5793
      %v5795 = vsub.f32 1.0, %v5794
      %v5796 = vmul.f32 %v5793, %v5795
      %v5797 = vadd.f32 %v5793, %v5796
      %vm5798 = vweird.f32 %v5617
      %vm5799 = vweird.f32 %v5793
      %vm5800 = vmor %vm5798, %vm5799
      %v5801 = vsel %vm5800, %v5793, %v5797
      %v5802 = vand.u32 2147483647, %v5617
      %vm5803 = vcmp.eq.f32.partialorder %v5802, 8.507059e+37
      %v5804 = vand.u32 %v5617, 2147483648
      %v5805 = vor.u32 1.1754944e-38, %v5804
      %v5806 = vsel %vm5803, %v5805, %v5801
      %v5807 = vmul.f32 1.0, %v5806
      %v5808 = vrcp.pop %v5618
      %v5809 = vmul.f32 %v5618, %v5808
      %v5810 = vsub.f32 1.0, %v5809
      %v5811 = vmul.f32 %v5808, %v5810
      %v5812 = vadd.f32 %v5808, %v5811
      %vm5813 = vweird.f32 %v5618
      %vm5814 = vweird.f32 %v5808
      %vm5815 = vmor %vm5813, %vm5814
      %v5816 = vsel %vm5815, %v5808, %v5812
      %v5817 = vand.u32 2147483647, %v5618
      %vm5818 = vcmp.eq.f32.partialorder %v5817, 8.507059e+37
      %v5819 = vand.u32 %v5618, 2147483648
      %v5820 = vor.u32 1.1754944e-38, %v5819
      %v5821 = vsel %vm5818, %v5820, %v5816
      %v5822 = vmul.f32 1.0, %v5821
      %v5823 = vrcp.pop %v5619
      %v5824 = vmul.f32 %v5619, %v5823
      %v5825 = vsub.f32 1.0, %v5824
      %v5826 = vmul.f32 %v5823, %v5825
      %v5827 = vadd.f32 %v5823, %v5826
      %vm5828 = vweird.f32 %v5619
      %vm5829 = vweird.f32 %v5823
      %vm5830 = vmor %vm5828, %vm5829
      %v5831 = vsel %vm5830, %v5823, %v5827
      %v5832 = vand.u32 2147483647, %v5619
      %vm5833 = vcmp.eq.f32.partialorder %v5832, 8.507059e+37
      %v5834 = vand.u32 %v5619, 2147483648
      %v5835 = vor.u32 1.1754944e-38, %v5834
      %v5836 = vsel %vm5833, %v5835, %v5831
      %v5837 = vmul.f32 1.0, %v5836
      %v5838 = vrcp.pop %v5620
      %v5839 = vmul.f32 %v5620, %v5838
      %v5840 = vsub.f32 1.0, %v5839
      %v5841 = vmul.f32 %v5838, %v5840
      %v5842 = vadd.f32 %v5838, %v5841
      %vm5843 = vweird.f32 %v5620
      %vm5844 = vweird.f32 %v5838
      %vm5845 = vmor %vm5843, %vm5844
      %v5846 = vsel %vm5845, %v5838, %v5842
      %v5847 = vand.u32 2147483647, %v5620
      %vm5848 = vcmp.eq.f32.partialorder %v5847, 8.507059e+37
      %v5849 = vand.u32 %v5620, 2147483648
      %v5850 = vor.u32 1.1754944e-38, %v5849
      %v5851 = vsel %vm5848, %v5850, %v5846
      %v5852 = vmul.f32 1.0, %v5851
      %v5853 = vrcp.pop %v5621
      %v5854 = vmul.f32 %v5621, %v5853
      %v5855 = vsub.f32 1.0, %v5854
      %v5856 = vmul.f32 %v5853, %v5855
      %v5857 = vadd.f32 %v5853, %v5856
      %vm5858 = vweird.f32 %v5621
      %vm5859 = vweird.f32 %v5853
      %vm5860 = vmor %vm5858, %vm5859
      %v5861 = vsel %vm5860, %v5853, %v5857
      %v5862 = vand.u32 2147483647, %v5621
      %vm5863 = vcmp.eq.f32.partialorder %v5862, 8.507059e+37
      %v5864 = vand.u32 %v5621, 2147483648
      %v5865 = vor.u32 1.1754944e-38, %v5864
      %v5866 = vsel %vm5863, %v5865, %v5861
      %v5867 = vmul.f32 1.0, %v5866
      %v5868 = vrcp.pop %v5622
      %v5869 = vmul.f32 %v5622, %v5868
      %v5870 = vsub.f32 1.0, %v5869
      %v5871 = vmul.f32 %v5868, %v5870
      %v5872 = vadd.f32 %v5868, %v5871
      %vm5873 = vweird.f32 %v5622
      %vm5874 = vweird.f32 %v5868
      %vm5875 = vmor %vm5873, %vm5874
      %v5876 = vsel %vm5875, %v5868, %v5872
      %v5877 = vand.u32 2147483647, %v5622
      %vm5878 = vcmp.eq.f32.partialorder %v5877, 8.507059e+37
      %v5879 = vand.u32 %v5622, 2147483648
      %v5880 = vor.u32 1.1754944e-38, %v5879
      %v5881 = vsel %vm5878, %v5880, %v5876
      %v5882 = vmul.f32 1.0, %v5881
      %v5883 = vrcp.pop %v5623
      %v5884 = vmul.f32 %v5623, %v5883
      %v5885 = vsub.f32 1.0, %v5884
      %v5886 = vmul.f32 %v5883, %v5885
      %v5887 = vadd.f32 %v5883, %v5886
      %vm5888 = vweird.f32 %v5623
      %vm5889 = vweird.f32 %v5883
      %vm5890 = vmor %vm5888, %vm5889
      %v5891 = vsel %vm5890, %v5883, %v5887
      %v5892 = vand.u32 2147483647, %v5623
      %vm5893 = vcmp.eq.f32.partialorder %v5892, 8.507059e+37
      %v5894 = vand.u32 %v5623, 2147483648
      %v5895 = vor.u32 1.1754944e-38, %v5894
      %v5896 = vsel %vm5893, %v5895, %v5891
      %v5897 = vmul.f32 1.0, %v5896
      %v5898 = vrcp.pop %v5624
      %v5899 = vmul.f32 %v5624, %v5898
      %v5900 = vsub.f32 1.0, %v5899
      %v5901 = vmul.f32 %v5898, %v5900
      %v5902 = vadd.f32 %v5898, %v5901
      %vm5903 = vweird.f32 %v5624
      %vm5904 = vweird.f32 %v5898
      %vm5905 = vmor %vm5903, %vm5904
      %v5906 = vsel %vm5905, %v5898, %v5902
      %v5907 = vand.u32 2147483647, %v5624
      %vm5908 = vcmp.eq.f32.partialorder %v5907, 8.507059e+37
      %v5909 = vand.u32 %v5624, 2147483648
      %v5910 = vor.u32 1.1754944e-38, %v5909
      %v5911 = vsel %vm5908, %v5910, %v5906
      %v5912 = vmul.f32 1.0, %v5911
      %v5913 = vrcp.pop %v5625
      %v5914 = vmul.f32 %v5625, %v5913
      %v5915 = vsub.f32 1.0, %v5914
      %v5916 = vmul.f32 %v5913, %v5915
      %v5917 = vadd.f32 %v5913, %v5916
      %vm5918 = vweird.f32 %v5625
      %vm5919 = vweird.f32 %v5913
      %vm5920 = vmor %vm5918, %vm5919
      %v5921 = vsel %vm5920, %v5913, %v5917
      %v5922 = vand.u32 2147483647, %v5625
      %vm5923 = vcmp.eq.f32.partialorder %v5922, 8.507059e+37
      %v5924 = vand.u32 %v5625, 2147483648
      %v5925 = vor.u32 1.1754944e-38, %v5924
      %v5926 = vsel %vm5923, %v5925, %v5921
      %v5927 = vmul.f32 1.0, %v5926
      %v5928 = vrcp.pop %v5626
      %v5929 = vmul.f32 %v5626, %v5928
      %v5930 = vsub.f32 1.0, %v5929
      %v5931 = vmul.f32 %v5928, %v5930
      %v5932 = vadd.f32 %v5928, %v5931
      %vm5933 = vweird.f32 %v5626
      %vm5934 = vweird.f32 %v5928
      %vm5935 = vmor %vm5933, %vm5934
      %v5936 = vsel %vm5935, %v5928, %v5932
      %v5937 = vand.u32 2147483647, %v5626
      %vm5938 = vcmp.eq.f32.partialorder %v5937, 8.507059e+37
      %v5939 = vand.u32 %v5626, 2147483648
      %v5940 = vor.u32 1.1754944e-38, %v5939
      %v5941 = vsel %vm5938, %v5940, %v5936
      %v5942 = vmul.f32 1.0, %v5941
      %v5943 = vrcp.pop %v5627
      %v5944 = vmul.f32 %v5627, %v5943
      %v5945 = vsub.f32 1.0, %v5944
      %v5946 = vmul.f32 %v5943, %v5945
      %v5947 = vadd.f32 %v5943, %v5946
      %vm5948 = vweird.f32 %v5627
      %vm5949 = vweird.f32 %v5943
      %vm5950 = vmor %vm5948, %vm5949
      %v5951 = vsel %vm5950, %v5943, %v5947
      %v5952 = vand.u32 2147483647, %v5627
      %vm5953 = vcmp.eq.f32.partialorder %v5952, 8.507059e+37
      %v5954 = vand.u32 %v5627, 2147483648
      %v5955 = vor.u32 1.1754944e-38, %v5954
      %v5956 = vsel %vm5953, %v5955, %v5951
      %v5957 = vmul.f32 1.0, %v5956
      %v5958 = vrcp.pop %v5628
      %v5959 = vmul.f32 %v5628, %v5958
      %v5960 = vsub.f32 1.0, %v5959
      %v5961 = vmul.f32 %v5958, %v5960
      %v5962 = vadd.f32 %v5958, %v5961
      %vm5963 = vweird.f32 %v5628
      %vm5964 = vweird.f32 %v5958
      %vm5965 = vmor %vm5963, %vm5964
      %v5966 = vsel %vm5965, %v5958, %v5962
      %v5967 = vand.u32 2147483647, %v5628
      %vm5968 = vcmp.eq.f32.partialorder %v5967, 8.507059e+37
      %v5969 = vand.u32 %v5628, 2147483648
      %v5970 = vor.u32 1.1754944e-38, %v5969
      %v5971 = vsel %vm5968, %v5970, %v5966
      %v5972 = vmul.f32 1.0, %v5971
      %v5973 = vrcp.pop %v5629
      %v5974 = vmul.f32 %v5629, %v5973
      %v5975 = vsub.f32 1.0, %v5974
      %v5976 = vmul.f32 %v5973, %v5975
      %v5977 = vadd.f32 %v5973, %v5976
      %vm5978 = vweird.f32 %v5629
      %vm5979 = vweird.f32 %v5973
      %vm5980 = vmor %vm5978, %vm5979
      %v5981 = vsel %vm5980, %v5973, %v5977
      %v5982 = vand.u32 2147483647, %v5629
      %vm5983 = vcmp.eq.f32.partialorder %v5982, 8.507059e+37
      %v5984 = vand.u32 %v5629, 2147483648
      %v5985 = vor.u32 1.1754944e-38, %v5984
      %v5986 = vsel %vm5983, %v5985, %v5981
      %v5987 = vmul.f32 1.0, %v5986
      %v5988 = vrcp.pop %v5630
      %v5989 = vmul.f32 %v5630, %v5988
      %v5990 = vsub.f32 1.0, %v5989
      %v5991 = vmul.f32 %v5988, %v5990
      %v5992 = vadd.f32 %v5988, %v5991
      %vm5993 = vweird.f32 %v5630
      %vm5994 = vweird.f32 %v5988
      %vm5995 = vmor %vm5993, %vm5994
      %v5996 = vsel %vm5995, %v5988, %v5992
      %v5997 = vand.u32 2147483647, %v5630
      %vm5998 = vcmp.eq.f32.partialorder %v5997, 8.507059e+37
      %v5999 = vand.u32 %v5630, 2147483648
      %v6000 = vor.u32 1.1754944e-38, %v5999
      %v6001 = vsel %vm5998, %v6000, %v5996
      %v6002 = vmul.f32 1.0, %v6001
      %v6003 = vrcp.pop %v5631
      %v6004 = vmul.f32 %v5631, %v6003
      %v6005 = vsub.f32 1.0, %v6004
      %v6006 = vmul.f32 %v6003, %v6005
      %v6007 = vadd.f32 %v6003, %v6006
      %vm6008 = vweird.f32 %v5631
      %vm6009 = vweird.f32 %v6003
      %vm6010 = vmor %vm6008, %vm6009
      %v6011 = vsel %vm6010, %v6003, %v6007
      %v6012 = vand.u32 2147483647, %v5631
      %vm6013 = vcmp.eq.f32.partialorder %v6012, 8.507059e+37
      %v6014 = vand.u32 %v5631, 2147483648
      %v6015 = vor.u32 1.1754944e-38, %v6014
      %v6016 = vsel %vm6013, %v6015, %v6011
      %v6017 = vmul.f32 1.0, %v6016
      %v6018 = vrcp.pop %v5632
      %v6019 = vmul.f32 %v5632, %v6018
      %v6020 = vsub.f32 1.0, %v6019
      %v6021 = vmul.f32 %v6018, %v6020
      %v6022 = vadd.f32 %v6018, %v6021
      %vm6023 = vweird.f32 %v5632
      %vm6024 = vweird.f32 %v6018
      %vm6025 = vmor %vm6023, %vm6024
      %v6026 = vsel %vm6025, %v6018, %v6022
      %v6027 = vand.u32 2147483647, %v5632
      %vm6028 = vcmp.eq.f32.partialorder %v6027, 8.507059e+37
      %v6029 = vand.u32 %v5632, 2147483648
      %v6030 = vor.u32 1.1754944e-38, %v6029
      %v6031 = vsel %vm6028, %v6030, %v6026
      %v6032 = vmul.f32 1.0, %v6031
      %v6033 = vrcp.pop %v5633
      %v6034 = vmul.f32 %v5633, %v6033
      %v6035 = vsub.f32 1.0, %v6034
      %v6036 = vmul.f32 %v6033, %v6035
      %v6037 = vadd.f32 %v6033, %v6036
      %vm6038 = vweird.f32 %v5633
      %vm6039 = vweird.f32 %v6033
      %vm6040 = vmor %vm6038, %vm6039
      %v6041 = vsel %vm6040, %v6033, %v6037
      %v6042 = vand.u32 2147483647, %v5633
      %vm6043 = vcmp.eq.f32.partialorder %v6042, 8.507059e+37
      %v6044 = vand.u32 %v5633, 2147483648
      %v6045 = vor.u32 1.1754944e-38, %v6044
      %v6046 = vsel %vm6043, %v6045, %v6041
      %v6047 = vmul.f32 1.0, %v6046
      %v6048 = vrcp.pop %v5634
      %v6049 = vmul.f32 %v5634, %v6048
      %v6050 = vsub.f32 1.0, %v6049
      %v6051 = vmul.f32 %v6048, %v6050
      %v6052 = vadd.f32 %v6048, %v6051
      %vm6053 = vweird.f32 %v5634
      %vm6054 = vweird.f32 %v6048
      %vm6055 = vmor %vm6053, %vm6054
      %v6056 = vsel %vm6055, %v6048, %v6052
      %v6057 = vand.u32 2147483647, %v5634
      %vm6058 = vcmp.eq.f32.partialorder %v6057, 8.507059e+37
      %v6059 = vand.u32 %v5634, 2147483648
      %v6060 = vor.u32 1.1754944e-38, %v6059
      %v6061 = vsel %vm6058, %v6060, %v6056
      %v6062 = vmul.f32 1.0, %v6061
      %v6063 = vrcp.pop %v5635
      %v6064 = vmul.f32 %v5635, %v6063
      %v6065 = vsub.f32 1.0, %v6064
      %v6066 = vmul.f32 %v6063, %v6065
      %v6067 = vadd.f32 %v6063, %v6066
      %vm6068 = vweird.f32 %v5635
      %vm6069 = vweird.f32 %v6063
      %vm6070 = vmor %vm6068, %vm6069
      %v6071 = vsel %vm6070, %v6063, %v6067
      %v6072 = vand.u32 2147483647, %v5635
      %vm6073 = vcmp.eq.f32.partialorder %v6072, 8.507059e+37
      %v6074 = vand.u32 %v5635, 2147483648
      %v6075 = vor.u32 1.1754944e-38, %v6074
      %v6076 = vsel %vm6073, %v6075, %v6071
      %v6077 = vmul.f32 1.0, %v6076
      %v6078 = vrcp.pop %v5636
      %v6079 = vmul.f32 %v5636, %v6078
      %v6080 = vsub.f32 1.0, %v6079
      %v6081 = vmul.f32 %v6078, %v6080
      %v6082 = vadd.f32 %v6078, %v6081
      %vm6083 = vweird.f32 %v5636
      %vm6084 = vweird.f32 %v6078
      %vm6085 = vmor %vm6083, %vm6084
      %v6086 = vsel %vm6085, %v6078, %v6082
      %v6087 = vand.u32 2147483647, %v5636
      %vm6088 = vcmp.eq.f32.partialorder %v6087, 8.507059e+37
      %v6089 = vand.u32 %v5636, 2147483648
      %v6090 = vor.u32 1.1754944e-38, %v6089
      %v6091 = vsel %vm6088, %v6090, %v6086
      %v6092 = vmul.f32 1.0, %v6091
      %v6093 = vrcp.pop %v5637
      %v6094 = vmul.f32 %v5637, %v6093
      %v6095 = vsub.f32 1.0, %v6094
      %v6096 = vmul.f32 %v6093, %v6095
      %v6097 = vadd.f32 %v6093, %v6096
      %vm6098 = vweird.f32 %v5637
      %vm6099 = vweird.f32 %v6093
      %vm6100 = vmor %vm6098, %vm6099
      %v6101 = vsel %vm6100, %v6093, %v6097
      %v6102 = vand.u32 2147483647, %v5637
      %vm6103 = vcmp.eq.f32.partialorder %v6102, 8.507059e+37
      %v6104 = vand.u32 %v5637, 2147483648
      %v6105 = vor.u32 1.1754944e-38, %v6104
      %v6106 = vsel %vm6103, %v6105, %v6101
      %v6107 = vmul.f32 1.0, %v6106
      %v6108 = vrcp.pop %v5638
      %v6109 = vmul.f32 %v5638, %v6108
      %v6110 = vsub.f32 1.0, %v6109
      %v6111 = vmul.f32 %v6108, %v6110
      %v6112 = vadd.f32 %v6108, %v6111
      %vm6113 = vweird.f32 %v5638
      %vm6114 = vweird.f32 %v6108
      %vm6115 = vmor %vm6113, %vm6114
      %v6116 = vsel %vm6115, %v6108, %v6112
      %v6117 = vand.u32 2147483647, %v5638
      %vm6118 = vcmp.eq.f32.partialorder %v6117, 8.507059e+37
      %v6119 = vand.u32 %v5638, 2147483648
      %v6120 = vor.u32 1.1754944e-38, %v6119
      %v6121 = vsel %vm6118, %v6120, %v6116
      %v6122 = vmul.f32 1.0, %v6121
      %v6123 = vrcp.pop %v5639
      %v6124 = vmul.f32 %v5639, %v6123
      %v6125 = vsub.f32 1.0, %v6124
      %v6126 = vmul.f32 %v6123, %v6125
      %v6127 = vadd.f32 %v6123, %v6126
      %vm6128 = vweird.f32 %v5639
      %vm6129 = vweird.f32 %v6123
      %vm6130 = vmor %vm6128, %vm6129
      %v6131 = vsel %vm6130, %v6123, %v6127
      %v6132 = vand.u32 2147483647, %v5639
      %vm6133 = vcmp.eq.f32.partialorder %v6132, 8.507059e+37
      %v6134 = vand.u32 %v5639, 2147483648
      %v6135 = vor.u32 1.1754944e-38, %v6134
      %v6136 = vsel %vm6133, %v6135, %v6131
      %v6137 = vmul.f32 1.0, %v6136
      %v6138 = vrcp.pop %v5640
      %v6139 = vmul.f32 %v5640, %v6138
      %v6140 = vsub.f32 1.0, %v6139
      %v6141 = vmul.f32 %v6138, %v6140
      %v6142 = vadd.f32 %v6138, %v6141
      %vm6143 = vweird.f32 %v5640
      %vm6144 = vweird.f32 %v6138
      %vm6145 = vmor %vm6143, %vm6144
      %v6146 = vsel %vm6145, %v6138, %v6142
      %v6147 = vand.u32 2147483647, %v5640
      %vm6148 = vcmp.eq.f32.partialorder %v6147, 8.507059e+37
      %v6149 = vand.u32 %v5640, 2147483648
      %v6150 = vor.u32 1.1754944e-38, %v6149
      %v6151 = vsel %vm6148, %v6150, %v6146
      %v6152 = vmul.f32 1.0, %v6151
      %v6153 = vrcp.pop %v5641
      %v6154 = vmul.f32 %v5641, %v6153
      %v6155 = vsub.f32 1.0, %v6154
      %v6156 = vmul.f32 %v6153, %v6155
      %v6157 = vadd.f32 %v6153, %v6156
      %vm6158 = vweird.f32 %v5641
      %vm6159 = vweird.f32 %v6153
      %vm6160 = vmor %vm6158, %vm6159
      %v6161 = vsel %vm6160, %v6153, %v6157
      %v6162 = vand.u32 2147483647, %v5641
      %vm6163 = vcmp.eq.f32.partialorder %v6162, 8.507059e+37
      %v6164 = vand.u32 %v5641, 2147483648
      %v6165 = vor.u32 1.1754944e-38, %v6164
      %v6166 = vsel %vm6163, %v6165, %v6161
      %v6167 = vmul.f32 1.0, %v6166
      %v6168 = vrcp.pop %v5642
      %v6169 = vmul.f32 %v5642, %v6168
      %v6170 = vsub.f32 1.0, %v6169
      %v6171 = vmul.f32 %v6168, %v6170
      %v6172 = vadd.f32 %v6168, %v6171
      %vm6173 = vweird.f32 %v5642
      %vm6174 = vweird.f32 %v6168
      %vm6175 = vmor %vm6173, %vm6174
      %v6176 = vsel %vm6175, %v6168, %v6172
      %v6177 = vand.u32 2147483647, %v5642
      %vm6178 = vcmp.eq.f32.partialorder %v6177, 8.507059e+37
      %v6179 = vand.u32 %v5642, 2147483648
      %v6180 = vor.u32 1.1754944e-38, %v6179
      %v6181 = vsel %vm6178, %v6180, %v6176
      %v6182 = vmul.f32 1.0, %v6181
      %v6183 = vmul.f32 %v5463, %v5657
      %v6184 = vmul.f32 %v5464, %v5672
      %v6185 = vmul.f32 %v5465, %v5687
      %v6186 = vmul.f32 %v5466, %v5702
      %v6187 = vmul.f32 %v5467, %v5717
      %v6188 = vmul.f32 %v5468, %v5732
      %v6189 = vmul.f32 %v5469, %v5747
      %v6190 = vmul.f32 %v5470, %v5762
      %v6191 = vmul.f32 %v5471, %v5777
      %v6192 = vmul.f32 %v5472, %v5792
      %v6193 = vmul.f32 %v5473, %v5807
      %v6194 = vmul.f32 %v5474, %v5822
      %v6195 = vmul.f32 %v5475, %v5837
      %v6196 = vmul.f32 %v5476, %v5852
      %v6197 = vmul.f32 %v5477, %v5867
      %v6198 = vmul.f32 %v5478, %v5882
      %v6199 = vmul.f32 %v5479, %v5897
      %v6200 = vmul.f32 %v5480, %v5912
      %v6201 = vmul.f32 %v5481, %v5927
      %v6202 = vmul.f32 %v5482, %v5942
      %v6203 = vmul.f32 %v5483, %v5957
      %v6204 = vmul.f32 %v5484, %v5972
      %v6205 = vmul.f32 %v5485, %v5987
      %v6206 = vmul.f32 %v5486, %v6002
      %v6207 = vmul.f32 %v5487, %v6017
      %v6208 = vmul.f32 %v5488, %v6032
      %v6209 = vmul.f32 %v5489, %v6047
      %v6210 = vmul.f32 %v5490, %v6062
      %v6211 = vmul.f32 %v5491, %v6077
      %v6212 = vmul.f32 %v5492, %v6092
      %v6213 = vmul.f32 %v5493, %v6107
      %v6214 = vmul.f32 %v5494, %v6122
      %v6215 = vmul.f32 %v5495, %v6137
      %v6216 = vmul.f32 %v5496, %v6152
      %v6217 = vmul.f32 %v5497, %v6167
      %v6218 = vmul.f32 %v5498, %v6182
      %v6219 = vmul.f32 %v4909, %v6183
      %v6220 = vmul.f32 %v4913, %v6184
      %v6221 = vmul.f32 %v4917, %v6185
      %v6222 = vmul.f32 %v4921, %v6186
      %v6223 = vmul.f32 %v4925, %v6187
      %v6224 = vmul.f32 %v4929, %v6188
      %v6225 = vmul.f32 %v4933, %v6189
      %v6226 = vmul.f32 %v4937, %v6190
      %v6227 = vmul.f32 %v4941, %v6191
      %v6228 = vmul.f32 %v4945, %v6192
      %v6229 = vmul.f32 %v4949, %v6193
      %v6230 = vmul.f32 %v4953, %v6194
      %v6231 = vmul.f32 %v4957, %v6195
      %v6232 = vmul.f32 %v4961, %v6196
      %v6233 = vmul.f32 %v4965, %v6197
      %v6234 = vmul.f32 %v4969, %v6198
      %v6235 = vmul.f32 %v4973, %v6199
      %v6236 = vmul.f32 %v4977, %v6200
      %v6237 = vmul.f32 %v4981, %v6201
      %v6238 = vmul.f32 %v4985, %v6202
      %v6239 = vmul.f32 %v4989, %v6203
      %v6240 = vmul.f32 %v4993, %v6204
      %v6241 = vmul.f32 %v4997, %v6205
      %v6242 = vmul.f32 %v5001, %v6206
      %v6243 = vmul.f32 %v5005, %v6207
      %v6244 = vmul.f32 %v5009, %v6208
      %v6245 = vmul.f32 %v5013, %v6209
      %v6246 = vmul.f32 %v5017, %v6210
      %v6247 = vmul.f32 %v5021, %v6211
      %v6248 = vmul.f32 %v5025, %v6212
      %v6249 = vmul.f32 %v5029, %v6213
      %v6250 = vmul.f32 %v5033, %v6214
      %v6251 = vmul.f32 %v5037, %v6215
      %v6252 = vmul.f32 %v5041, %v6216
      %v6253 = vmul.f32 %v5045, %v6217
      %v6254 = vmul.f32 %v5049, %v6218
      %6255 = vst.msk [vmem:[#allocation4] sm:$0xff] %vm5087, 0.0
      %6256 = vst.msk [vmem:[#allocation4 + $0x8] sm:$0xff] %vm5087, 0.0
      %6257 = vst.msk [vmem:[#allocation4 + $0x10] sm:$0xff] %vm5087, 0.0
      %6258 = vst.msk [vmem:[#allocation4 + $0x138] sm:$0xff] %vm5087, 0.0
      %6259 = vst.msk [vmem:[#allocation4 + $0x140] sm:$0xff] %vm5087, 0.0
      %6260 = vst.msk [vmem:[#allocation4 + $0x148] sm:$0xff] %vm5087, 0.0
      %6261 = vst.msk [vmem:[#allocation4 + $0x18] sm:$0xff] %vm5087, %v6219
      %6262 = vst.msk [vmem:[#allocation4 + $0x20] sm:$0xff] %vm5087, %v6220
      %6263 = vst.msk [vmem:[#allocation4 + $0x28] sm:$0xff] %vm5087, %v6221
      %6264 = vst.msk [vmem:[#allocation4 + $0x30] sm:$0xff] %vm5087, %v6222
      %6265 = vst.msk [vmem:[#allocation4 + $0x38] sm:$0xff] %vm5087, %v6223
      %6266 = vst.msk [vmem:[#allocation4 + $0x40] sm:$0xff] %vm5087, %v6224
      %6267 = vst.msk [vmem:[#allocation4 + $0x48] sm:$0xff] %vm5087, %v6225
      %6268 = vst.msk [vmem:[#allocation4 + $0x50] sm:$0xff] %vm5087, %v6226
      %6269 = vst.msk [vmem:[#allocation4 + $0x58] sm:$0xff] %vm5087, %v6227
      %6270 = vst.msk [vmem:[#allocation4 + $0x60] sm:$0xff] %vm5087, %v6228
      %6271 = vst.msk [vmem:[#allocation4 + $0x68] sm:$0xff] %vm5087, %v6229
      %6272 = vst.msk [vmem:[#allocation4 + $0x70] sm:$0xff] %vm5087, %v6230
      %6273 = vst.msk [vmem:[#allocation4 + $0x78] sm:$0xff] %vm5087, %v6231
      %6274 = vst.msk [vmem:[#allocation4 + $0x80] sm:$0xff] %vm5087, %v6232
      %6275 = vst.msk [vmem:[#allocation4 + $0x88] sm:$0xff] %vm5087, %v6233
      %6276 = vst.msk [vmem:[#allocation4 + $0x90] sm:$0xff] %vm5087, %v6234
      %6277 = vst.msk [vmem:[#allocation4 + $0x98] sm:$0xff] %vm5087, %v6235
      %6278 = vst.msk [vmem:[#allocation4 + $0xa0] sm:$0xff] %vm5087, %v6236
      %6279 = vst.msk [vmem:[#allocation4 + $0xa8] sm:$0xff] %vm5087, %v6237
      %6280 = vst.msk [vmem:[#allocation4 + $0xb0] sm:$0xff] %vm5087, %v6238
      %6281 = vst.msk [vmem:[#allocation4 + $0xb8] sm:$0xff] %vm5087, %v6239
      %6282 = vst.msk [vmem:[#allocation4 + $0xc0] sm:$0xff] %vm5087, %v6240
      %6283 = vst.msk [vmem:[#allocation4 + $0xc8] sm:$0xff] %vm5087, %v6241
      %6284 = vst.msk [vmem:[#allocation4 + $0xd0] sm:$0xff] %vm5087, %v6242
      %6285 = vst.msk [vmem:[#allocation4 + $0xd8] sm:$0xff] %vm5087, %v6243
      %6286 = vst.msk [vmem:[#allocation4 + $0xe0] sm:$0xff] %vm5087, %v6244
      %6287 = vst.msk [vmem:[#allocation4 + $0xe8] sm:$0xff] %vm5087, %v6245
      %6288 = vst.msk [vmem:[#allocation4 + $0xf0] sm:$0xff] %vm5087, %v6246
      %6289 = vst.msk [vmem:[#allocation4 + $0xf8] sm:$0xff] %vm5087, %v6247
      %6290 = vst.msk [vmem:[#allocation4 + $0x100] sm:$0xff] %vm5087, %v6248
      %6291 = vst.msk [vmem:[#allocation4 + $0x108] sm:$0xff] %vm5087, %v6249
      %6292 = vst.msk [vmem:[#allocation4 + $0x110] sm:$0xff] %vm5087, %v6250
      %6293 = vst.msk [vmem:[#allocation4 + $0x118] sm:$0xff] %vm5087, %v6251
      %6294 = vst.msk [vmem:[#allocation4 + $0x120] sm:$0xff] %vm5087, %v6252
      %6295 = vst.msk [vmem:[#allocation4 + $0x128] sm:$0xff] %vm5087, %v6253
      %6296 = vst.msk [vmem:[#allocation4 + $0x130] sm:$0xff] %vm5087, %v6254
      %v6297 = vld [vmem:[#allocation4 + $0x5] sm:$0xff]
      %v6298 = vld [vmem:[#allocation4 + $0xd] sm:$0xff]
      %v6299 = vld [vmem:[#allocation4 + $0x15] sm:$0xff]
      %v6300 = vld [vmem:[#allocation4 + $0x1d] sm:$0xff]
      %v6301 = vld [vmem:[#allocation4 + $0x25] sm:$0xff]
      %v6302 = vld [vmem:[#allocation4 + $0x2d] sm:$0xff]
      %v6303 = vld [vmem:[#allocation4 + $0x35] sm:$0xff]
      %v6304 = vld [vmem:[#allocation4 + $0x3d] sm:$0xff]
      %v6305 = vld [vmem:[#allocation4 + $0x45] sm:$0xff]
      %v6306 = vld [vmem:[#allocation4 + $0x4d] sm:$0xff]
      %v6307 = vld [vmem:[#allocation4 + $0x55] sm:$0xff]
      %v6308 = vld [vmem:[#allocation4 + $0x5d] sm:$0xff]
      %v6309 = vld [vmem:[#allocation4 + $0x65] sm:$0xff]
      %v6310 = vld [vmem:[#allocation4 + $0x6d] sm:$0xff]
      %v6311 = vld [vmem:[#allocation4 + $0x75] sm:$0xff]
      %v6312 = vld [vmem:[#allocation4 + $0x7d] sm:$0xff]
      %v6313 = vld [vmem:[#allocation4 + $0x85] sm:$0xff]
      %v6314 = vld [vmem:[#allocation4 + $0x8d] sm:$0xff]
      %v6315 = vld [vmem:[#allocation4 + $0x95] sm:$0xff]
      %v6316 = vld [vmem:[#allocation4 + $0x9d] sm:$0xff]
      %v6317 = vld [vmem:[#allocation4 + $0xa5] sm:$0xff]
      %v6318 = vld [vmem:[#allocation4 + $0xad] sm:$0xff]
      %v6319 = vld [vmem:[#allocation4 + $0xb5] sm:$0xff]
      %v6320 = vld [vmem:[#allocation4 + $0xbd] sm:$0xff]
      %v6321 = vld [vmem:[#allocation4 + $0xc5] sm:$0xff]
      %v6322 = vld [vmem:[#allocation4 + $0xcd] sm:$0xff]
      %v6323 = vld [vmem:[#allocation4 + $0xd5] sm:$0xff]
      %v6324 = vld [vmem:[#allocation4 + $0xdd] sm:$0xff]
      %v6325 = vld [vmem:[#allocation4 + $0xe5] sm:$0xff]
      %v6326 = vld [vmem:[#allocation4 + $0xed] sm:$0xff]
      %v6327 = vld [vmem:[#allocation4 + $0xf5] sm:$0xff]
      %v6328 = vld [vmem:[#allocation4 + $0xfd] sm:$0xff]
      %v6329 = vld [vmem:[#allocation4 + $0x105] sm:$0xff]
      %v6330 = vld [vmem:[#allocation4 + $0x10d] sm:$0xff]
      %v6331 = vld [vmem:[#allocation4 + $0x115] sm:$0xff]
      %v6332 = vld [vmem:[#allocation4 + $0x11d] sm:$0xff]
      %v6333 = vpack.c.bf16 %v6297, %v6297
      %v6334 = vpack.c.bf16 %v6298, %v6298
      %v6335 = vpack.c.bf16 %v6299, %v6299
      %v6336 = vpack.c.bf16 %v6300, %v6300
      %v6337 = vpack.c.bf16 %v6301, %v6301
      %v6338 = vpack.c.bf16 %v6302, %v6302
      %v6339 = vpack.c.bf16 %v6303, %v6303
      %v6340 = vpack.c.bf16 %v6304, %v6304
      %v6341 = vpack.c.bf16 %v6305, %v6305
      %v6342 = vpack.c.bf16 %v6306, %v6306
      %v6343 = vpack.c.bf16 %v6307, %v6307
      %v6344 = vpack.c.bf16 %v6308, %v6308
      %v6345 = vpack.c.bf16 %v6309, %v6309
      %v6346 = vpack.c.bf16 %v6310, %v6310
      %v6347 = vpack.c.bf16 %v6311, %v6311
      %v6348 = vpack.c.bf16 %v6312, %v6312
      %v6349 = vpack.c.bf16 %v6313, %v6313
      %v6350 = vpack.c.bf16 %v6314, %v6314
      %v6351 = vpack.c.bf16 %v6315, %v6315
      %v6352 = vpack.c.bf16 %v6316, %v6316
      %v6353 = vpack.c.bf16 %v6317, %v6317
      %v6354 = vpack.c.bf16 %v6318, %v6318
      %v6355 = vpack.c.bf16 %v6319, %v6319
      %v6356 = vpack.c.bf16 %v6320, %v6320
      %v6357 = vpack.c.bf16 %v6321, %v6321
      %v6358 = vpack.c.bf16 %v6322, %v6322
      %v6359 = vpack.c.bf16 %v6323, %v6323
      %v6360 = vpack.c.bf16 %v6324, %v6324
      %v6361 = vpack.c.bf16 %v6325, %v6325
      %v6362 = vpack.c.bf16 %v6326, %v6326
      %v6363 = vpack.c.bf16 %v6327, %v6327
      %v6364 = vpack.c.bf16 %v6328, %v6328
      %v6365 = vpack.c.bf16 %v6329, %v6329
      %v6366 = vpack.c.bf16 %v6330, %v6330
      %v6367 = vpack.c.bf16 %v6331, %v6331
      %v6368 = vpack.c.bf16 %v6332, %v6332
      %vm6369 = vcmask 519168
      %6370 = vst.msk [vmem:[#allocation5] sm:$0xf] %vm6369, %v6333
      %6371 = vst.msk [vmem:[#allocation5 + $0x14] sm:$0xf] %vm6369, %v6334
      %6372 = vst.msk [vmem:[#allocation5 + $0x28] sm:$0xf] %vm6369, %v6335
      %6373 = vst.msk [vmem:[#allocation5 + $0x3c] sm:$0xf] %vm6369, %v6336
      %6374 = vst.msk [vmem:[#allocation5 + $0x50] sm:$0xf] %vm6369, %v6337
      %6375 = vst.msk [vmem:[#allocation5 + $0x64] sm:$0xf] %vm6369, %v6338
      %6376 = vst.msk [vmem:[#allocation5 + $0x78] sm:$0xf] %vm6369, %v6339
      %6377 = vst.msk [vmem:[#allocation5 + $0x8c] sm:$0xf] %vm6369, %v6340
      %6378 = vst.msk [vmem:[#allocation5 + $0xa0] sm:$0xf] %vm6369, %v6341
      %6379 = vst.msk [vmem:[#allocation5 + $0xb4] sm:$0xf] %vm6369, %v6342
      %6380 = vst.msk [vmem:[#allocation5 + $0xc8] sm:$0xf] %vm6369, %v6343
      %6381 = vst.msk [vmem:[#allocation5 + $0xdc] sm:$0xf] %vm6369, %v6344
      %6382 = vst.msk [vmem:[#allocation5 + $0xf0] sm:$0xf] %vm6369, %v6345
      %6383 = vst.msk [vmem:[#allocation5 + $0x104] sm:$0xf] %vm6369, %v6346
      %6384 = vst.msk [vmem:[#allocation5 + $0x118] sm:$0xf] %vm6369, %v6347
      %6385 = vst.msk [vmem:[#allocation5 + $0x12c] sm:$0xf] %vm6369, %v6348
      %6386 = vst.msk [vmem:[#allocation5 + $0x140] sm:$0xf] %vm6369, %v6349
      %6387 = vst.msk [vmem:[#allocation5 + $0x154] sm:$0xf] %vm6369, %v6350
      %6388 = vst.msk [vmem:[#allocation5 + $0x168] sm:$0xf] %vm6369, %v6351
      %6389 = vst.msk [vmem:[#allocation5 + $0x17c] sm:$0xf] %vm6369, %v6352
      %6390 = vst.msk [vmem:[#allocation5 + $0x190] sm:$0xf] %vm6369, %v6353
      %6391 = vst.msk [vmem:[#allocation5 + $0x1a4] sm:$0xf] %vm6369, %v6354
      %6392 = vst.msk [vmem:[#allocation5 + $0x1b8] sm:$0xf] %vm6369, %v6355
      %6393 = vst.msk [vmem:[#allocation5 + $0x1cc] sm:$0xf] %vm6369, %v6356
      %6394 = vst.msk [vmem:[#allocation5 + $0x1e0] sm:$0xf] %vm6369, %v6357
      %6395 = vst.msk [vmem:[#allocation5 + $0x1f4] sm:$0xf] %vm6369, %v6358
      %6396 = vst.msk [vmem:[#allocation5 + $0x208] sm:$0xf] %vm6369, %v6359
      %6397 = vst.msk [vmem:[#allocation5 + $0x21c] sm:$0xf] %vm6369, %v6360
      %6398 = vst.msk [vmem:[#allocation5 + $0x230] sm:$0xf] %vm6369, %v6361
      %6399 = vst.msk [vmem:[#allocation5 + $0x244] sm:$0xf] %vm6369, %v6362
      %6400 = vst.msk [vmem:[#allocation5 + $0x258] sm:$0xf] %vm6369, %v6363
      %6401 = vst.msk [vmem:[#allocation5 + $0x26c] sm:$0xf] %vm6369, %v6364
      %6402 = vst.msk [vmem:[#allocation5 + $0x280] sm:$0xf] %vm6369, %v6365
      %6403 = vst.msk [vmem:[#allocation5 + $0x294] sm:$0xf] %vm6369, %v6366
      %6404 = vst.msk [vmem:[#allocation5 + $0x2a8] sm:$0xf] %vm6369, %v6367
      %6405 = vst.msk [vmem:[#allocation5 + $0x2bc] sm:$0xf] %vm6369, %v6368
      %v6406 = vld [vmem:[#allocation4 + $0x6] sm:$0xff]
      %v6407 = vld [vmem:[#allocation4 + $0xe] sm:$0xff]
      %v6408 = vld [vmem:[#allocation4 + $0x16] sm:$0xff]
      %v6409 = vld [vmem:[#allocation4 + $0x1e] sm:$0xff]
      %v6410 = vld [vmem:[#allocation4 + $0x26] sm:$0xff]
      %v6411 = vld [vmem:[#allocation4 + $0x2e] sm:$0xff]
      %v6412 = vld [vmem:[#allocation4 + $0x36] sm:$0xff]
      %v6413 = vld [vmem:[#allocation4 + $0x3e] sm:$0xff]
      %v6414 = vld [vmem:[#allocation4 + $0x46] sm:$0xff]
      %v6415 = vld [vmem:[#allocation4 + $0x4e] sm:$0xff]
      %v6416 = vld [vmem:[#allocation4 + $0x56] sm:$0xff]
      %v6417 = vld [vmem:[#allocation4 + $0x5e] sm:$0xff]
      %v6418 = vld [vmem:[#allocation4 + $0x66] sm:$0xff]
      %v6419 = vld [vmem:[#allocation4 + $0x6e] sm:$0xff]
      %v6420 = vld [vmem:[#allocation4 + $0x76] sm:$0xff]
      %v6421 = vld [vmem:[#allocation4 + $0x7e] sm:$0xff]
      %v6422 = vld [vmem:[#allocation4 + $0x86] sm:$0xff]
      %v6423 = vld [vmem:[#allocation4 + $0x8e] sm:$0xff]
      %v6424 = vld [vmem:[#allocation4 + $0x96] sm:$0xff]
      %v6425 = vld [vmem:[#allocation4 + $0x9e] sm:$0xff]
      %v6426 = vld [vmem:[#allocation4 + $0xa6] sm:$0xff]
      %v6427 = vld [vmem:[#allocation4 + $0xae] sm:$0xff]
      %v6428 = vld [vmem:[#allocation4 + $0xb6] sm:$0xff]
      %v6429 = vld [vmem:[#allocation4 + $0xbe] sm:$0xff]
      %v6430 = vld [vmem:[#allocation4 + $0xc6] sm:$0xff]
      %v6431 = vld [vmem:[#allocation4 + $0xce] sm:$0xff]
      %v6432 = vld [vmem:[#allocation4 + $0xd6] sm:$0xff]
      %v6433 = vld [vmem:[#allocation4 + $0xde] sm:$0xff]
      %v6434 = vld [vmem:[#allocation4 + $0xe6] sm:$0xff]
      %v6435 = vld [vmem:[#allocation4 + $0xee] sm:$0xff]
      %v6436 = vld [vmem:[#allocation4 + $0xf6] sm:$0xff]
      %v6437 = vld [vmem:[#allocation4 + $0xfe] sm:$0xff]
      %v6438 = vld [vmem:[#allocation4 + $0x106] sm:$0xff]
      %v6439 = vld [vmem:[#allocation4 + $0x10e] sm:$0xff]
      %v6440 = vld [vmem:[#allocation4 + $0x116] sm:$0xff]
      %v6441 = vld [vmem:[#allocation4 + $0x11e] sm:$0xff]
      %v6442 = vpack.c.bf16 %v6406, %v6406
      %v6443 = vpack.c.bf16 %v6407, %v6407
      %v6444 = vpack.c.bf16 %v6408, %v6408
      %v6445 = vpack.c.bf16 %v6409, %v6409
      %v6446 = vpack.c.bf16 %v6410, %v6410
      %v6447 = vpack.c.bf16 %v6411, %v6411
      %v6448 = vpack.c.bf16 %v6412, %v6412
      %v6449 = vpack.c.bf16 %v6413, %v6413
      %v6450 = vpack.c.bf16 %v6414, %v6414
      %v6451 = vpack.c.bf16 %v6415, %v6415
      %v6452 = vpack.c.bf16 %v6416, %v6416
      %v6453 = vpack.c.bf16 %v6417, %v6417
      %v6454 = vpack.c.bf16 %v6418, %v6418
      %v6455 = vpack.c.bf16 %v6419, %v6419
      %v6456 = vpack.c.bf16 %v6420, %v6420
      %v6457 = vpack.c.bf16 %v6421, %v6421
      %v6458 = vpack.c.bf16 %v6422, %v6422
      %v6459 = vpack.c.bf16 %v6423, %v6423
      %v6460 = vpack.c.bf16 %v6424, %v6424
      %v6461 = vpack.c.bf16 %v6425, %v6425
      %v6462 = vpack.c.bf16 %v6426, %v6426
      %v6463 = vpack.c.bf16 %v6427, %v6427
      %v6464 = vpack.c.bf16 %v6428, %v6428
      %v6465 = vpack.c.bf16 %v6429, %v6429
      %v6466 = vpack.c.bf16 %v6430, %v6430
      %v6467 = vpack.c.bf16 %v6431, %v6431
      %v6468 = vpack.c.bf16 %v6432, %v6432
      %v6469 = vpack.c.bf16 %v6433, %v6433
      %v6470 = vpack.c.bf16 %v6434, %v6434
      %v6471 = vpack.c.bf16 %v6435, %v6435
      %v6472 = vpack.c.bf16 %v6436, %v6436
      %v6473 = vpack.c.bf16 %v6437, %v6437
      %v6474 = vpack.c.bf16 %v6438, %v6438
      %v6475 = vpack.c.bf16 %v6439, %v6439
      %v6476 = vpack.c.bf16 %v6440, %v6440
      %v6477 = vpack.c.bf16 %v6441, %v6441
      %6514 = vrot.lane.b32.xlu0 %v6442, 64
      %v6515 = vpop.permute.xlu0 %6514
      %6516 = vrot.lane.b32.xlu0 %v6443, 64
      %v6517 = vpop.permute.xlu0 %6516
      %6518 = vrot.lane.b32.xlu0 %v6444, 64
      %v6519 = vpop.permute.xlu0 %6518
      %6520 = vrot.lane.b32.xlu0 %v6445, 64
      %v6521 = vpop.permute.xlu0 %6520
      %6522 = vrot.lane.b32.xlu0 %v6446, 64
      %v6523 = vpop.permute.xlu0 %6522
      %6524 = vrot.lane.b32.xlu0 %v6447, 64
      %v6525 = vpop.permute.xlu0 %6524
      %6526 = vrot.lane.b32.xlu0 %v6448, 64
      %v6527 = vpop.permute.xlu0 %6526
      %6528 = vrot.lane.b32.xlu0 %v6449, 64
      %v6529 = vpop.permute.xlu0 %6528
      %6530 = vrot.lane.b32.xlu0 %v6450, 64
      %v6531 = vpop.permute.xlu0 %6530
      %6532 = vrot.lane.b32.xlu0 %v6451, 64
      %v6533 = vpop.permute.xlu0 %6532
      %6534 = vrot.lane.b32.xlu0 %v6452, 64
      %v6535 = vpop.permute.xlu0 %6534
      %6536 = vrot.lane.b32.xlu0 %v6453, 64
      %v6537 = vpop.permute.xlu0 %6536
      %6538 = vrot.lane.b32.xlu0 %v6454, 64
      %v6539 = vpop.permute.xlu0 %6538
      %6540 = vrot.lane.b32.xlu0 %v6455, 64
      %v6541 = vpop.permute.xlu0 %6540
      %6542 = vrot.lane.b32.xlu0 %v6456, 64
      %v6543 = vpop.permute.xlu0 %6542
      %6544 = vrot.lane.b32.xlu0 %v6457, 64
      %v6545 = vpop.permute.xlu0 %6544
      %6546 = vrot.lane.b32.xlu0 %v6458, 64
      %v6547 = vpop.permute.xlu0 %6546
      %6548 = vrot.lane.b32.xlu0 %v6459, 64
      %v6549 = vpop.permute.xlu0 %6548
      %6550 = vrot.lane.b32.xlu0 %v6460, 64
      %v6551 = vpop.permute.xlu0 %6550
      %6552 = vrot.lane.b32.xlu0 %v6461, 64
      %v6553 = vpop.permute.xlu0 %6552
      %6554 = vrot.lane.b32.xlu0 %v6462, 64
      %v6555 = vpop.permute.xlu0 %6554
      %6556 = vrot.lane.b32.xlu0 %v6463, 64
      %v6557 = vpop.permute.xlu0 %6556
      %6558 = vrot.lane.b32.xlu0 %v6464, 64
      %v6559 = vpop.permute.xlu0 %6558
      %6560 = vrot.lane.b32.xlu0 %v6465, 64
      %v6561 = vpop.permute.xlu0 %6560
      %6562 = vrot.lane.b32.xlu0 %v6466, 64
      %v6563 = vpop.permute.xlu0 %6562
      %6564 = vrot.lane.b32.xlu0 %v6467, 64
      %v6565 = vpop.permute.xlu0 %6564
      %6566 = vrot.lane.b32.xlu0 %v6468, 64
      %v6567 = vpop.permute.xlu0 %6566
      %6568 = vrot.lane.b32.xlu0 %v6469, 64
      %v6569 = vpop.permute.xlu0 %6568
      %6570 = vrot.lane.b32.xlu0 %v6470, 64
      %v6571 = vpop.permute.xlu0 %6570
      %6572 = vrot.lane.b32.xlu0 %v6471, 64
      %v6573 = vpop.permute.xlu0 %6572
      %6574 = vrot.lane.b32.xlu0 %v6472, 64
      %v6575 = vpop.permute.xlu0 %6574
      %6576 = vrot.lane.b32.xlu0 %v6473, 64
      %v6577 = vpop.permute.xlu0 %6576
      %6578 = vrot.lane.b32.xlu0 %v6474, 64
      %v6579 = vpop.permute.xlu0 %6578
      %6580 = vrot.lane.b32.xlu0 %v6475, 64
      %v6581 = vpop.permute.xlu0 %6580
      %6582 = vrot.lane.b32.xlu0 %v6476, 64
      %v6583 = vpop.permute.xlu0 %6582
      %6584 = vrot.lane.b32.xlu0 %v6477, 64
      %v6585 = vpop.permute.xlu0 %6584
      %vm6622 = vcmask 1043968
      %6623 = vst.msk [vmem:[#allocation5] sm:$0xf] %vm6622, %v6515
      %6624 = vst.msk [vmem:[#allocation5 + $0x14] sm:$0xf] %vm6622, %v6517
      %6625 = vst.msk [vmem:[#allocation5 + $0x28] sm:$0xf] %vm6622, %v6519
      %6626 = vst.msk [vmem:[#allocation5 + $0x3c] sm:$0xf] %vm6622, %v6521
      %6627 = vst.msk [vmem:[#allocation5 + $0x50] sm:$0xf] %vm6622, %v6523
      %6628 = vst.msk [vmem:[#allocation5 + $0x64] sm:$0xf] %vm6622, %v6525
      %6629 = vst.msk [vmem:[#allocation5 + $0x78] sm:$0xf] %vm6622, %v6527
      %6630 = vst.msk [vmem:[#allocation5 + $0x8c] sm:$0xf] %vm6622, %v6529
      %6631 = vst.msk [vmem:[#allocation5 + $0xa0] sm:$0xf] %vm6622, %v6531
      %6632 = vst.msk [vmem:[#allocation5 + $0xb4] sm:$0xf] %vm6622, %v6533
      %6633 = vst.msk [vmem:[#allocation5 + $0xc8] sm:$0xf] %vm6622, %v6535
      %6634 = vst.msk [vmem:[#allocation5 + $0xdc] sm:$0xf] %vm6622, %v6537
      %6635 = vst.msk [vmem:[#allocation5 + $0xf0] sm:$0xf] %vm6622, %v6539
      %6636 = vst.msk [vmem:[#allocation5 + $0x104] sm:$0xf] %vm6622, %v6541
      %6637 = vst.msk [vmem:[#allocation5 + $0x118] sm:$0xf] %vm6622, %v6543
      %6638 = vst.msk [vmem:[#allocation5 + $0x12c] sm:$0xf] %vm6622, %v6545
      %6639 = vst.msk [vmem:[#allocation5 + $0x140] sm:$0xf] %vm6622, %v6547
      %6640 = vst.msk [vmem:[#allocation5 + $0x154] sm:$0xf] %vm6622, %v6549
      %6641 = vst.msk [vmem:[#allocation5 + $0x168] sm:$0xf] %vm6622, %v6551
      %6642 = vst.msk [vmem:[#allocation5 + $0x17c] sm:$0xf] %vm6622, %v6553
      %6643 = vst.msk [vmem:[#allocation5 + $0x190] sm:$0xf] %vm6622, %v6555
      %6644 = vst.msk [vmem:[#allocation5 + $0x1a4] sm:$0xf] %vm6622, %v6557
      %6645 = vst.msk [vmem:[#allocation5 + $0x1b8] sm:$0xf] %vm6622, %v6559
      %6646 = vst.msk [vmem:[#allocation5 + $0x1cc] sm:$0xf] %vm6622, %v6561
      %6647 = vst.msk [vmem:[#allocation5 + $0x1e0] sm:$0xf] %vm6622, %v6563
      %6648 = vst.msk [vmem:[#allocation5 + $0x1f4] sm:$0xf] %vm6622, %v6565
      %6649 = vst.msk [vmem:[#allocation5 + $0x208] sm:$0xf] %vm6622, %v6567
      %6650 = vst.msk [vmem:[#allocation5 + $0x21c] sm:$0xf] %vm6622, %v6569
      %6651 = vst.msk [vmem:[#allocation5 + $0x230] sm:$0xf] %vm6622, %v6571
      %6652 = vst.msk [vmem:[#allocation5 + $0x244] sm:$0xf] %vm6622, %v6573
      %6653 = vst.msk [vmem:[#allocation5 + $0x258] sm:$0xf] %vm6622, %v6575
      %6654 = vst.msk [vmem:[#allocation5 + $0x26c] sm:$0xf] %vm6622, %v6577
      %6655 = vst.msk [vmem:[#allocation5 + $0x280] sm:$0xf] %vm6622, %v6579
      %6656 = vst.msk [vmem:[#allocation5 + $0x294] sm:$0xf] %vm6622, %v6581
      %6657 = vst.msk [vmem:[#allocation5 + $0x2a8] sm:$0xf] %vm6622, %v6583
      %6658 = vst.msk [vmem:[#allocation5 + $0x2bc] sm:$0xf] %vm6622, %v6585
      %v6659 = vld [vmem:[#allocation4 + $0x7] sm:$0xff]
      %v6660 = vld [vmem:[#allocation4 + $0xf] sm:$0xff]
      %v6661 = vld [vmem:[#allocation4 + $0x17] sm:$0xff]
      %v6662 = vld [vmem:[#allocation4 + $0x1f] sm:$0xff]
      %v6663 = vld [vmem:[#allocation4 + $0x27] sm:$0xff]
      %v6664 = vld [vmem:[#allocation4 + $0x2f] sm:$0xff]
      %v6665 = vld [vmem:[#allocation4 + $0x37] sm:$0xff]
      %v6666 = vld [vmem:[#allocation4 + $0x3f] sm:$0xff]
      %v6667 = vld [vmem:[#allocation4 + $0x47] sm:$0xff]
      %v6668 = vld [vmem:[#allocation4 + $0x4f] sm:$0xff]
      %v6669 = vld [vmem:[#allocation4 + $0x57] sm:$0xff]
      %v6670 = vld [vmem:[#allocation4 + $0x5f] sm:$0xff]
      %v6671 = vld [vmem:[#allocation4 + $0x67] sm:$0xff]
      %v6672 = vld [vmem:[#allocation4 + $0x6f] sm:$0xff]
      %v6673 = vld [vmem:[#allocation4 + $0x77] sm:$0xff]
      %v6674 = vld [vmem:[#allocation4 + $0x7f] sm:$0xff]
      %v6675 = vld [vmem:[#allocation4 + $0x87] sm:$0xff]
      %v6676 = vld [vmem:[#allocation4 + $0x8f] sm:$0xff]
      %v6677 = vld [vmem:[#allocation4 + $0x97] sm:$0xff]
      %v6678 = vld [vmem:[#allocation4 + $0x9f] sm:$0xff]
      %v6679 = vld [vmem:[#allocation4 + $0xa7] sm:$0xff]
      %v6680 = vld [vmem:[#allocation4 + $0xaf] sm:$0xff]
      %v6681 = vld [vmem:[#allocation4 + $0xb7] sm:$0xff]
      %v6682 = vld [vmem:[#allocation4 + $0xbf] sm:$0xff]
      %v6683 = vld [vmem:[#allocation4 + $0xc7] sm:$0xff]
      %v6684 = vld [vmem:[#allocation4 + $0xcf] sm:$0xff]
      %v6685 = vld [vmem:[#allocation4 + $0xd7] sm:$0xff]
      %v6686 = vld [vmem:[#allocation4 + $0xdf] sm:$0xff]
      %v6687 = vld [vmem:[#allocation4 + $0xe7] sm:$0xff]
      %v6688 = vld [vmem:[#allocation4 + $0xef] sm:$0xff]
      %v6689 = vld [vmem:[#allocation4 + $0xf7] sm:$0xff]
      %v6690 = vld [vmem:[#allocation4 + $0xff] sm:$0xff]
      %v6691 = vld [vmem:[#allocation4 + $0x107] sm:$0xff]
      %v6692 = vld [vmem:[#allocation4 + $0x10f] sm:$0xff]
      %v6693 = vld [vmem:[#allocation4 + $0x117] sm:$0xff]
      %v6694 = vld [vmem:[#allocation4 + $0x11f] sm:$0xff]
      %v6695 = vpack.c.bf16 %v6659, %v6659
      %v6696 = vpack.c.bf16 %v6660, %v6660
      %v6697 = vpack.c.bf16 %v6661, %v6661
      %v6698 = vpack.c.bf16 %v6662, %v6662
      %v6699 = vpack.c.bf16 %v6663, %v6663
      %v6700 = vpack.c.bf16 %v6664, %v6664
      %v6701 = vpack.c.bf16 %v6665, %v6665
      %v6702 = vpack.c.bf16 %v6666, %v6666
      %v6703 = vpack.c.bf16 %v6667, %v6667
      %v6704 = vpack.c.bf16 %v6668, %v6668
      %v6705 = vpack.c.bf16 %v6669, %v6669
      %v6706 = vpack.c.bf16 %v6670, %v6670
      %v6707 = vpack.c.bf16 %v6671, %v6671
      %v6708 = vpack.c.bf16 %v6672, %v6672
      %v6709 = vpack.c.bf16 %v6673, %v6673
      %v6710 = vpack.c.bf16 %v6674, %v6674
      %v6711 = vpack.c.bf16 %v6675, %v6675
      %v6712 = vpack.c.bf16 %v6676, %v6676
      %v6713 = vpack.c.bf16 %v6677, %v6677
      %v6714 = vpack.c.bf16 %v6678, %v6678
      %v6715 = vpack.c.bf16 %v6679, %v6679
      %v6716 = vpack.c.bf16 %v6680, %v6680
      %v6717 = vpack.c.bf16 %v6681, %v6681
      %v6718 = vpack.c.bf16 %v6682, %v6682
      %v6719 = vpack.c.bf16 %v6683, %v6683
      %v6720 = vpack.c.bf16 %v6684, %v6684
      %v6721 = vpack.c.bf16 %v6685, %v6685
      %v6722 = vpack.c.bf16 %v6686, %v6686
      %v6723 = vpack.c.bf16 %v6687, %v6687
      %v6724 = vpack.c.bf16 %v6688, %v6688
      %v6725 = vpack.c.bf16 %v6689, %v6689
      %v6726 = vpack.c.bf16 %v6690, %v6690
      %v6727 = vpack.c.bf16 %v6691, %v6691
      %v6728 = vpack.c.bf16 %v6692, %v6692
      %v6729 = vpack.c.bf16 %v6693, %v6693
      %v6730 = vpack.c.bf16 %v6694, %v6694
      %6731 = vst.msk [vmem:[#allocation5 + $0x4] sm:$0xf] %vm6369, %v6695
      %6732 = vst.msk [vmem:[#allocation5 + $0x18] sm:$0xf] %vm6369, %v6696
      %6733 = vst.msk [vmem:[#allocation5 + $0x2c] sm:$0xf] %vm6369, %v6697
      %6734 = vst.msk [vmem:[#allocation5 + $0x40] sm:$0xf] %vm6369, %v6698
      %6735 = vst.msk [vmem:[#allocation5 + $0x54] sm:$0xf] %vm6369, %v6699
      %6736 = vst.msk [vmem:[#allocation5 + $0x68] sm:$0xf] %vm6369, %v6700
      %6737 = vst.msk [vmem:[#allocation5 + $0x7c] sm:$0xf] %vm6369, %v6701
      %6738 = vst.msk [vmem:[#allocation5 + $0x90] sm:$0xf] %vm6369, %v6702
      %6739 = vst.msk [vmem:[#allocation5 + $0xa4] sm:$0xf] %vm6369, %v6703
      %6740 = vst.msk [vmem:[#allocation5 + $0xb8] sm:$0xf] %vm6369, %v6704
      %6741 = vst.msk [vmem:[#allocation5 + $0xcc] sm:$0xf] %vm6369, %v6705
      %6742 = vst.msk [vmem:[#allocation5 + $0xe0] sm:$0xf] %vm6369, %v6706
      %6743 = vst.msk [vmem:[#allocation5 + $0xf4] sm:$0xf] %vm6369, %v6707
      %6744 = vst.msk [vmem:[#allocation5 + $0x108] sm:$0xf] %vm6369, %v6708
      %6745 = vst.msk [vmem:[#allocation5 + $0x11c] sm:$0xf] %vm6369, %v6709
      %6746 = vst.msk [vmem:[#allocation5 + $0x130] sm:$0xf] %vm6369, %v6710
      %6747 = vst.msk [vmem:[#allocation5 + $0x144] sm:$0xf] %vm6369, %v6711
      %6748 = vst.msk [vmem:[#allocation5 + $0x158] sm:$0xf] %vm6369, %v6712
      %6749 = vst.msk [vmem:[#allocation5 + $0x16c] sm:$0xf] %vm6369, %v6713
      %6750 = vst.msk [vmem:[#allocation5 + $0x180] sm:$0xf] %vm6369, %v6714
      %6751 = vst.msk [vmem:[#allocation5 + $0x194] sm:$0xf] %vm6369, %v6715
      %6752 = vst.msk [vmem:[#allocation5 + $0x1a8] sm:$0xf] %vm6369, %v6716
      %6753 = vst.msk [vmem:[#allocation5 + $0x1bc] sm:$0xf] %vm6369, %v6717
      %6754 = vst.msk [vmem:[#allocation5 + $0x1d0] sm:$0xf] %vm6369, %v6718
      %6755 = vst.msk [vmem:[#allocation5 + $0x1e4] sm:$0xf] %vm6369, %v6719
      %6756 = vst.msk [vmem:[#allocation5 + $0x1f8] sm:$0xf] %vm6369, %v6720
      %6757 = vst.msk [vmem:[#allocation5 + $0x20c] sm:$0xf] %vm6369, %v6721
      %6758 = vst.msk [vmem:[#allocation5 + $0x220] sm:$0xf] %vm6369, %v6722
      %6759 = vst.msk [vmem:[#allocation5 + $0x234] sm:$0xf] %vm6369, %v6723
      %6760 = vst.msk [vmem:[#allocation5 + $0x248] sm:$0xf] %vm6369, %v6724
      %6761 = vst.msk [vmem:[#allocation5 + $0x25c] sm:$0xf] %vm6369, %v6725
      %6762 = vst.msk [vmem:[#allocation5 + $0x270] sm:$0xf] %vm6369, %v6726
      %6763 = vst.msk [vmem:[#allocation5 + $0x284] sm:$0xf] %vm6369, %v6727
      %6764 = vst.msk [vmem:[#allocation5 + $0x298] sm:$0xf] %vm6369, %v6728
      %6765 = vst.msk [vmem:[#allocation5 + $0x2ac] sm:$0xf] %vm6369, %v6729
      %6766 = vst.msk [vmem:[#allocation5 + $0x2c0] sm:$0xf] %vm6369, %v6730
      %v6767 = vld [vmem:[#allocation4 + $0x17] sm:$0xff]
      %v6768 = vld [vmem:[#allocation4 + $0x1f] sm:$0xff]
      %v6769 = vld [vmem:[#allocation4 + $0x27] sm:$0xff]
      %v6770 = vld [vmem:[#allocation4 + $0x2f] sm:$0xff]
      %v6771 = vld [vmem:[#allocation4 + $0x37] sm:$0xff]
      %v6772 = vld [vmem:[#allocation4 + $0x3f] sm:$0xff]
      %v6773 = vld [vmem:[#allocation4 + $0x47] sm:$0xff]
      %v6774 = vld [vmem:[#allocation4 + $0x4f] sm:$0xff]
      %v6775 = vld [vmem:[#allocation4 + $0x57] sm:$0xff]
      %v6776 = vld [vmem:[#allocation4 + $0x5f] sm:$0xff]
      %v6777 = vld [vmem:[#allocation4 + $0x67] sm:$0xff]
      %v6778 = vld [vmem:[#allocation4 + $0x6f] sm:$0xff]
      %v6779 = vld [vmem:[#allocation4 + $0x77] sm:$0xff]
      %v6780 = vld [vmem:[#allocation4 + $0x7f] sm:$0xff]
      %v6781 = vld [vmem:[#allocation4 + $0x87] sm:$0xff]
      %v6782 = vld [vmem:[#allocation4 + $0x8f] sm:$0xff]
      %v6783 = vld [vmem:[#allocation4 + $0x97] sm:$0xff]
      %v6784 = vld [vmem:[#allocation4 + $0x9f] sm:$0xff]
      %v6785 = vld [vmem:[#allocation4 + $0xa7] sm:$0xff]
      %v6786 = vld [vmem:[#allocation4 + $0xaf] sm:$0xff]
      %v6787 = vld [vmem:[#allocation4 + $0xb7] sm:$0xff]
      %v6788 = vld [vmem:[#allocation4 + $0xbf] sm:$0xff]
      %v6789 = vld [vmem:[#allocation4 + $0xc7] sm:$0xff]
      %v6790 = vld [vmem:[#allocation4 + $0xcf] sm:$0xff]
      %v6791 = vld [vmem:[#allocation4 + $0xd7] sm:$0xff]
      %v6792 = vld [vmem:[#allocation4 + $0xdf] sm:$0xff]
      %v6793 = vld [vmem:[#allocation4 + $0xe7] sm:$0xff]
      %v6794 = vld [vmem:[#allocation4 + $0xef] sm:$0xff]
      %v6795 = vld [vmem:[#allocation4 + $0xf7] sm:$0xff]
      %v6796 = vld [vmem:[#allocation4 + $0xff] sm:$0xff]
      %v6797 = vld [vmem:[#allocation4 + $0x107] sm:$0xff]
      %v6798 = vld [vmem:[#allocation4 + $0x10f] sm:$0xff]
      %v6799 = vld [vmem:[#allocation4 + $0x117] sm:$0xff]
      %v6800 = vld [vmem:[#allocation4 + $0x11f] sm:$0xff]
      %v6801 = vld [vmem:[#allocation4 + $0x127] sm:$0xff]
      %v6802 = vld [vmem:[#allocation4 + $0x12f] sm:$0xff]
      %v6803 = vpack.c.bf16 %v6767, %v6767
      %v6804 = vpack.c.bf16 %v6768, %v6768
      %v6805 = vpack.c.bf16 %v6769, %v6769
      %v6806 = vpack.c.bf16 %v6770, %v6770
      %v6807 = vpack.c.bf16 %v6771, %v6771
      %v6808 = vpack.c.bf16 %v6772, %v6772
      %v6809 = vpack.c.bf16 %v6773, %v6773
      %v6810 = vpack.c.bf16 %v6774, %v6774
      %v6811 = vpack.c.bf16 %v6775, %v6775
      %v6812 = vpack.c.bf16 %v6776, %v6776
      %v6813 = vpack.c.bf16 %v6777, %v6777
      %v6814 = vpack.c.bf16 %v6778, %v6778
      %v6815 = vpack.c.bf16 %v6779, %v6779
      %v6816 = vpack.c.bf16 %v6780, %v6780
      %v6817 = vpack.c.bf16 %v6781, %v6781
      %v6818 = vpack.c.bf16 %v6782, %v6782
      %v6819 = vpack.c.bf16 %v6783, %v6783
      %v6820 = vpack.c.bf16 %v6784, %v6784
      %v6821 = vpack.c.bf16 %v6785, %v6785
      %v6822 = vpack.c.bf16 %v6786, %v6786
      %v6823 = vpack.c.bf16 %v6787, %v6787
      %v6824 = vpack.c.bf16 %v6788, %v6788
      %v6825 = vpack.c.bf16 %v6789, %v6789
      %v6826 = vpack.c.bf16 %v6790, %v6790
      %v6827 = vpack.c.bf16 %v6791, %v6791
      %v6828 = vpack.c.bf16 %v6792, %v6792
      %v6829 = vpack.c.bf16 %v6793, %v6793
      %v6830 = vpack.c.bf16 %v6794, %v6794
      %v6831 = vpack.c.bf16 %v6795, %v6795
      %v6832 = vpack.c.bf16 %v6796, %v6796
      %v6833 = vpack.c.bf16 %v6797, %v6797
      %v6834 = vpack.c.bf16 %v6798, %v6798
      %v6835 = vpack.c.bf16 %v6799, %v6799
      %v6836 = vpack.c.bf16 %v6800, %v6800
      %v6837 = vpack.c.bf16 %v6801, %v6801
      %v6838 = vpack.c.bf16 %v6802, %v6802
      %6875 = vrot.lane.b32.xlu0 %v6803, 64
      %v6876 = vpop.permute.xlu0 %6875
      %6877 = vrot.lane.b32.xlu0 %v6804, 64
      %v6878 = vpop.permute.xlu0 %6877
      %6879 = vrot.lane.b32.xlu0 %v6805, 64
      %v6880 = vpop.permute.xlu0 %6879
      %6881 = vrot.lane.b32.xlu0 %v6806, 64
      %v6882 = vpop.permute.xlu0 %6881
      %6883 = vrot.lane.b32.xlu0 %v6807, 64
      %v6884 = vpop.permute.xlu0 %6883
      %6885 = vrot.lane.b32.xlu0 %v6808, 64
      %v6886 = vpop.permute.xlu0 %6885
      %6887 = vrot.lane.b32.xlu0 %v6809, 64
      %v6888 = vpop.permute.xlu0 %6887
      %6889 = vrot.lane.b32.xlu0 %v6810, 64
      %v6890 = vpop.permute.xlu0 %6889
      %6891 = vrot.lane.b32.xlu0 %v6811, 64
      %v6892 = vpop.permute.xlu0 %6891
      %6893 = vrot.lane.b32.xlu0 %v6812, 64
      %v6894 = vpop.permute.xlu0 %6893
      %6895 = vrot.lane.b32.xlu0 %v6813, 64
      %v6896 = vpop.permute.xlu0 %6895
      %6897 = vrot.lane.b32.xlu0 %v6814, 64
      %v6898 = vpop.permute.xlu0 %6897
      %6899 = vrot.lane.b32.xlu0 %v6815, 64
      %v6900 = vpop.permute.xlu0 %6899
      %6901 = vrot.lane.b32.xlu0 %v6816, 64
      %v6902 = vpop.permute.xlu0 %6901
      %6903 = vrot.lane.b32.xlu0 %v6817, 64
      %v6904 = vpop.permute.xlu0 %6903
      %6905 = vrot.lane.b32.xlu0 %v6818, 64
      %v6906 = vpop.permute.xlu0 %6905
      %6907 = vrot.lane.b32.xlu0 %v6819, 64
      %v6908 = vpop.permute.xlu0 %6907
      %6909 = vrot.lane.b32.xlu0 %v6820, 64
      %v6910 = vpop.permute.xlu0 %6909
      %6911 = vrot.lane.b32.xlu0 %v6821, 64
      %v6912 = vpop.permute.xlu0 %6911
      %6913 = vrot.lane.b32.xlu0 %v6822, 64
      %v6914 = vpop.permute.xlu0 %6913
      %6915 = vrot.lane.b32.xlu0 %v6823, 64
      %v6916 = vpop.permute.xlu0 %6915
      %6917 = vrot.lane.b32.xlu0 %v6824, 64
      %v6918 = vpop.permute.xlu0 %6917
      %6919 = vrot.lane.b32.xlu0 %v6825, 64
      %v6920 = vpop.permute.xlu0 %6919
      %6921 = vrot.lane.b32.xlu0 %v6826, 64
      %v6922 = vpop.permute.xlu0 %6921
      %6923 = vrot.lane.b32.xlu0 %v6827, 64
      %v6924 = vpop.permute.xlu0 %6923
      %6925 = vrot.lane.b32.xlu0 %v6828, 64
      %v6926 = vpop.permute.xlu0 %6925
      %6927 = vrot.lane.b32.xlu0 %v6829, 64
      %v6928 = vpop.permute.xlu0 %6927
      %6929 = vrot.lane.b32.xlu0 %v6830, 64
      %v6930 = vpop.permute.xlu0 %6929
      %6931 = vrot.lane.b32.xlu0 %v6831, 64
      %v6932 = vpop.permute.xlu0 %6931
      %6933 = vrot.lane.b32.xlu0 %v6832, 64
      %v6934 = vpop.permute.xlu0 %6933
      %6935 = vrot.lane.b32.xlu0 %v6833, 64
      %v6936 = vpop.permute.xlu0 %6935
      %6937 = vrot.lane.b32.xlu0 %v6834, 64
      %v6938 = vpop.permute.xlu0 %6937
      %6939 = vrot.lane.b32.xlu0 %v6835, 64
      %v6940 = vpop.permute.xlu0 %6939
      %6941 = vrot.lane.b32.xlu0 %v6836, 64
      %v6942 = vpop.permute.xlu0 %6941
      %6943 = vrot.lane.b32.xlu0 %v6837, 64
      %v6944 = vpop.permute.xlu0 %6943
      %6945 = vrot.lane.b32.xlu0 %v6838, 64
      %v6946 = vpop.permute.xlu0 %6945
      %6983 = vst.msk [vmem:[#allocation5 + $0x4] sm:$0xf] %vm6622, %v6876
      %6984 = vst.msk [vmem:[#allocation5 + $0x18] sm:$0xf] %vm6622, %v6878
      %6985 = vst.msk [vmem:[#allocation5 + $0x2c] sm:$0xf] %vm6622, %v6880
      %6986 = vst.msk [vmem:[#allocation5 + $0x40] sm:$0xf] %vm6622, %v6882
      %6987 = vst.msk [vmem:[#allocation5 + $0x54] sm:$0xf] %vm6622, %v6884
      %6988 = vst.msk [vmem:[#allocation5 + $0x68] sm:$0xf] %vm6622, %v6886
      %6989 = vst.msk [vmem:[#allocation5 + $0x7c] sm:$0xf] %vm6622, %v6888
      %6990 = vst.msk [vmem:[#allocation5 + $0x90] sm:$0xf] %vm6622, %v6890
      %6991 = vst.msk [vmem:[#allocation5 + $0xa4] sm:$0xf] %vm6622, %v6892
      %6992 = vst.msk [vmem:[#allocation5 + $0xb8] sm:$0xf] %vm6622, %v6894
      %6993 = vst.msk [vmem:[#allocation5 + $0xcc] sm:$0xf] %vm6622, %v6896
      %6994 = vst.msk [vmem:[#allocation5 + $0xe0] sm:$0xf] %vm6622, %v6898
      %6995 = vst.msk [vmem:[#allocation5 + $0xf4] sm:$0xf] %vm6622, %v6900
      %6996 = vst.msk [vmem:[#allocation5 + $0x108] sm:$0xf] %vm6622, %v6902
      %6997 = vst.msk [vmem:[#allocation5 + $0x11c] sm:$0xf] %vm6622, %v6904
      %6998 = vst.msk [vmem:[#allocation5 + $0x130] sm:$0xf] %vm6622, %v6906
      %6999 = vst.msk [vmem:[#allocation5 + $0x144] sm:$0xf] %vm6622, %v6908
      %7000 = vst.msk [vmem:[#allocation5 + $0x158] sm:$0xf] %vm6622, %v6910
      %7001 = vst.msk [vmem:[#allocation5 + $0x16c] sm:$0xf] %vm6622, %v6912
      %7002 = vst.msk [vmem:[#allocation5 + $0x180] sm:$0xf] %vm6622, %v6914
      %7003 = vst.msk [vmem:[#allocation5 + $0x194] sm:$0xf] %vm6622, %v6916
      %7004 = vst.msk [vmem:[#allocation5 + $0x1a8] sm:$0xf] %vm6622, %v6918
      %7005 = vst.msk [vmem:[#allocation5 + $0x1bc] sm:$0xf] %vm6622, %v6920
      %7006 = vst.msk [vmem:[#allocation5 + $0x1d0] sm:$0xf] %vm6622, %v6922
      %7007 = vst.msk [vmem:[#allocation5 + $0x1e4] sm:$0xf] %vm6622, %v6924
      %7008 = vst.msk [vmem:[#allocation5 + $0x1f8] sm:$0xf] %vm6622, %v6926
      %7009 = vst.msk [vmem:[#allocation5 + $0x20c] sm:$0xf] %vm6622, %v6928
      %7010 = vst.msk [vmem:[#allocation5 + $0x220] sm:$0xf] %vm6622, %v6930
      %7011 = vst.msk [vmem:[#allocation5 + $0x234] sm:$0xf] %vm6622, %v6932
      %7012 = vst.msk [vmem:[#allocation5 + $0x248] sm:$0xf] %vm6622, %v6934
      %7013 = vst.msk [vmem:[#allocation5 + $0x25c] sm:$0xf] %vm6622, %v6936
      %7014 = vst.msk [vmem:[#allocation5 + $0x270] sm:$0xf] %vm6622, %v6938
      %7015 = vst.msk [vmem:[#allocation5 + $0x284] sm:$0xf] %vm6622, %v6940
      %7016 = vst.msk [vmem:[#allocation5 + $0x298] sm:$0xf] %vm6622, %v6942
      %7017 = vst.msk [vmem:[#allocation5 + $0x2ac] sm:$0xf] %vm6622, %v6944
      %7018 = vst.msk [vmem:[#allocation5 + $0x2c0] sm:$0xf] %vm6622, %v6946
      %v7019 = vld [vmem:[#allocation4 + $0x18] sm:$0xff]
      %v7020 = vld [vmem:[#allocation4 + $0x20] sm:$0xff]
      %v7021 = vld [vmem:[#allocation4 + $0x28] sm:$0xff]
      %v7022 = vld [vmem:[#allocation4 + $0x30] sm:$0xff]
      %v7023 = vld [vmem:[#allocation4 + $0x38] sm:$0xff]
      %v7024 = vld [vmem:[#allocation4 + $0x40] sm:$0xff]
      %v7025 = vld [vmem:[#allocation4 + $0x48] sm:$0xff]
      %v7026 = vld [vmem:[#allocation4 + $0x50] sm:$0xff]
      %v7027 = vld [vmem:[#allocation4 + $0x58] sm:$0xff]
      %v7028 = vld [vmem:[#allocation4 + $0x60] sm:$0xff]
      %v7029 = vld [vmem:[#allocation4 + $0x68] sm:$0xff]
      %v7030 = vld [vmem:[#allocation4 + $0x70] sm:$0xff]
      %v7031 = vld [vmem:[#allocation4 + $0x78] sm:$0xff]
      %v7032 = vld [vmem:[#allocation4 + $0x80] sm:$0xff]
      %v7033 = vld [vmem:[#allocation4 + $0x88] sm:$0xff]
      %v7034 = vld [vmem:[#allocation4 + $0x90] sm:$0xff]
      %v7035 = vld [vmem:[#allocation4 + $0x98] sm:$0xff]
      %v7036 = vld [vmem:[#allocation4 + $0xa0] sm:$0xff]
      %v7037 = vld [vmem:[#allocation4 + $0xa8] sm:$0xff]
      %v7038 = vld [vmem:[#allocation4 + $0xb0] sm:$0xff]
      %v7039 = vld [vmem:[#allocation4 + $0xb8] sm:$0xff]
      %v7040 = vld [vmem:[#allocation4 + $0xc0] sm:$0xff]
      %v7041 = vld [vmem:[#allocation4 + $0xc8] sm:$0xff]
      %v7042 = vld [vmem:[#allocation4 + $0xd0] sm:$0xff]
      %v7043 = vld [vmem:[#allocation4 + $0xd8] sm:$0xff]
      %v7044 = vld [vmem:[#allocation4 + $0xe0] sm:$0xff]
      %v7045 = vld [vmem:[#allocation4 + $0xe8] sm:$0xff]
      %v7046 = vld [vmem:[#allocation4 + $0xf0] sm:$0xff]
      %v7047 = vld [vmem:[#allocation4 + $0xf8] sm:$0xff]
      %v7048 = vld [vmem:[#allocation4 + $0x100] sm:$0xff]
      %v7049 = vld [vmem:[#allocation4 + $0x108] sm:$0xff]
      %v7050 = vld [vmem:[#allocation4 + $0x110] sm:$0xff]
      %v7051 = vld [vmem:[#allocation4 + $0x118] sm:$0xff]
      %v7052 = vld [vmem:[#allocation4 + $0x120] sm:$0xff]
      %v7053 = vld [vmem:[#allocation4 + $0x128] sm:$0xff]
      %v7054 = vld [vmem:[#allocation4 + $0x130] sm:$0xff]
      %v7055 = vpack.c.bf16 %v7019, %v7019
      %v7056 = vpack.c.bf16 %v7020, %v7020
      %v7057 = vpack.c.bf16 %v7021, %v7021
      %v7058 = vpack.c.bf16 %v7022, %v7022
      %v7059 = vpack.c.bf16 %v7023, %v7023
      %v7060 = vpack.c.bf16 %v7024, %v7024
      %v7061 = vpack.c.bf16 %v7025, %v7025
      %v7062 = vpack.c.bf16 %v7026, %v7026
      %v7063 = vpack.c.bf16 %v7027, %v7027
      %v7064 = vpack.c.bf16 %v7028, %v7028
      %v7065 = vpack.c.bf16 %v7029, %v7029
      %v7066 = vpack.c.bf16 %v7030, %v7030
      %v7067 = vpack.c.bf16 %v7031, %v7031
      %v7068 = vpack.c.bf16 %v7032, %v7032
      %v7069 = vpack.c.bf16 %v7033, %v7033
      %v7070 = vpack.c.bf16 %v7034, %v7034
      %v7071 = vpack.c.bf16 %v7035, %v7035
      %v7072 = vpack.c.bf16 %v7036, %v7036
      %v7073 = vpack.c.bf16 %v7037, %v7037
      %v7074 = vpack.c.bf16 %v7038, %v7038
      %v7075 = vpack.c.bf16 %v7039, %v7039
      %v7076 = vpack.c.bf16 %v7040, %v7040
      %v7077 = vpack.c.bf16 %v7041, %v7041
      %v7078 = vpack.c.bf16 %v7042, %v7042
      %v7079 = vpack.c.bf16 %v7043, %v7043
      %v7080 = vpack.c.bf16 %v7044, %v7044
      %v7081 = vpack.c.bf16 %v7045, %v7045
      %v7082 = vpack.c.bf16 %v7046, %v7046
      %v7083 = vpack.c.bf16 %v7047, %v7047
      %v7084 = vpack.c.bf16 %v7048, %v7048
      %v7085 = vpack.c.bf16 %v7049, %v7049
      %v7086 = vpack.c.bf16 %v7050, %v7050
      %v7087 = vpack.c.bf16 %v7051, %v7051
      %v7088 = vpack.c.bf16 %v7052, %v7052
      %v7089 = vpack.c.bf16 %v7053, %v7053
      %v7090 = vpack.c.bf16 %v7054, %v7054
      %7091 = vst.msk [vmem:[#allocation5 + $0x8] sm:$0xf] %vm6369, %v7055
      %7092 = vst.msk [vmem:[#allocation5 + $0x1c] sm:$0xf] %vm6369, %v7056
      %7093 = vst.msk [vmem:[#allocation5 + $0x30] sm:$0xf] %vm6369, %v7057
      %7094 = vst.msk [vmem:[#allocation5 + $0x44] sm:$0xf] %vm6369, %v7058
      %7095 = vst.msk [vmem:[#allocation5 + $0x58] sm:$0xf] %vm6369, %v7059
      %7096 = vst.msk [vmem:[#allocation5 + $0x6c] sm:$0xf] %vm6369, %v7060
      %7097 = vst.msk [vmem:[#allocation5 + $0x80] sm:$0xf] %vm6369, %v7061
      %7098 = vst.msk [vmem:[#allocation5 + $0x94] sm:$0xf] %vm6369, %v7062
      %7099 = vst.msk [vmem:[#allocation5 + $0xa8] sm:$0xf] %vm6369, %v7063
      %7100 = vst.msk [vmem:[#allocation5 + $0xbc] sm:$0xf] %vm6369, %v7064
      %7101 = vst.msk [vmem:[#allocation5 + $0xd0] sm:$0xf] %vm6369, %v7065
      %7102 = vst.msk [vmem:[#allocation5 + $0xe4] sm:$0xf] %vm6369, %v7066
      %7103 = vst.msk [vmem:[#allocation5 + $0xf8] sm:$0xf] %vm6369, %v7067
      %7104 = vst.msk [vmem:[#allocation5 + $0x10c] sm:$0xf] %vm6369, %v7068
      %7105 = vst.msk [vmem:[#allocation5 + $0x120] sm:$0xf] %vm6369, %v7069
      %7106 = vst.msk [vmem:[#allocation5 + $0x134] sm:$0xf] %vm6369, %v7070
      %7107 = vst.msk [vmem:[#allocation5 + $0x148] sm:$0xf] %vm6369, %v7071
      %7108 = vst.msk [vmem:[#allocation5 + $0x15c] sm:$0xf] %vm6369, %v7072
      %7109 = vst.msk [vmem:[#allocation5 + $0x170] sm:$0xf] %vm6369, %v7073
      %7110 = vst.msk [vmem:[#allocation5 + $0x184] sm:$0xf] %vm6369, %v7074
      %7111 = vst.msk [vmem:[#allocation5 + $0x198] sm:$0xf] %vm6369, %v7075
      %7112 = vst.msk [vmem:[#allocation5 + $0x1ac] sm:$0xf] %vm6369, %v7076
      %7113 = vst.msk [vmem:[#allocation5 + $0x1c0] sm:$0xf] %vm6369, %v7077
      %7114 = vst.msk [vmem:[#allocation5 + $0x1d4] sm:$0xf] %vm6369, %v7078
      %7115 = vst.msk [vmem:[#allocation5 + $0x1e8] sm:$0xf] %vm6369, %v7079
      %7116 = vst.msk [vmem:[#allocation5 + $0x1fc] sm:$0xf] %vm6369, %v7080
      %7117 = vst.msk [vmem:[#allocation5 + $0x210] sm:$0xf] %vm6369, %v7081
      %7118 = vst.msk [vmem:[#allocation5 + $0x224] sm:$0xf] %vm6369, %v7082
      %7119 = vst.msk [vmem:[#allocation5 + $0x238] sm:$0xf] %vm6369, %v7083
      %7120 = vst.msk [vmem:[#allocation5 + $0x24c] sm:$0xf] %vm6369, %v7084
      %7121 = vst.msk [vmem:[#allocation5 + $0x260] sm:$0xf] %vm6369, %v7085
      %7122 = vst.msk [vmem:[#allocation5 + $0x274] sm:$0xf] %vm6369, %v7086
      %7123 = vst.msk [vmem:[#allocation5 + $0x288] sm:$0xf] %vm6369, %v7087
      %7124 = vst.msk [vmem:[#allocation5 + $0x29c] sm:$0xf] %vm6369, %v7088
      %7125 = vst.msk [vmem:[#allocation5 + $0x2b0] sm:$0xf] %vm6369, %v7089
      %7126 = vst.msk [vmem:[#allocation5 + $0x2c4] sm:$0xf] %vm6369, %v7090
      %v7127 = vld [vmem:[#allocation4 + $0x19] sm:$0xff]
      %v7128 = vld [vmem:[#allocation4 + $0x21] sm:$0xff]
      %v7129 = vld [vmem:[#allocation4 + $0x29] sm:$0xff]
      %v7130 = vld [vmem:[#allocation4 + $0x31] sm:$0xff]
      %v7131 = vld [vmem:[#allocation4 + $0x39] sm:$0xff]
      %v7132 = vld [vmem:[#allocation4 + $0x41] sm:$0xff]
      %v7133 = vld [vmem:[#allocation4 + $0x49] sm:$0xff]
      %v7134 = vld [vmem:[#allocation4 + $0x51] sm:$0xff]
      %v7135 = vld [vmem:[#allocation4 + $0x59] sm:$0xff]
      %v7136 = vld [vmem:[#allocation4 + $0x61] sm:$0xff]
      %v7137 = vld [vmem:[#allocation4 + $0x69] sm:$0xff]
      %v7138 = vld [vmem:[#allocation4 + $0x71] sm:$0xff]
      %v7139 = vld [vmem:[#allocation4 + $0x79] sm:$0xff]
      %v7140 = vld [vmem:[#allocation4 + $0x81] sm:$0xff]
      %v7141 = vld [vmem:[#allocation4 + $0x89] sm:$0xff]
      %v7142 = vld [vmem:[#allocation4 + $0x91] sm:$0xff]
      %v7143 = vld [vmem:[#allocation4 + $0x99] sm:$0xff]
      %v7144 = vld [vmem:[#allocation4 + $0xa1] sm:$0xff]
      %v7145 = vld [vmem:[#allocation4 + $0xa9] sm:$0xff]
      %v7146 = vld [vmem:[#allocation4 + $0xb1] sm:$0xff]
      %v7147 = vld [vmem:[#allocation4 + $0xb9] sm:$0xff]
      %v7148 = vld [vmem:[#allocation4 + $0xc1] sm:$0xff]
      %v7149 = vld [vmem:[#allocation4 + $0xc9] sm:$0xff]
      %v7150 = vld [vmem:[#allocation4 + $0xd1] sm:$0xff]
      %v7151 = vld [vmem:[#allocation4 + $0xd9] sm:$0xff]
      %v7152 = vld [vmem:[#allocation4 + $0xe1] sm:$0xff]
      %v7153 = vld [vmem:[#allocation4 + $0xe9] sm:$0xff]
      %v7154 = vld [vmem:[#allocation4 + $0xf1] sm:$0xff]
      %v7155 = vld [vmem:[#allocation4 + $0xf9] sm:$0xff]
      %v7156 = vld [vmem:[#allocation4 + $0x101] sm:$0xff]
      %v7157 = vld [vmem:[#allocation4 + $0x109] sm:$0xff]
      %v7158 = vld [vmem:[#allocation4 + $0x111] sm:$0xff]
      %v7159 = vld [vmem:[#allocation4 + $0x119] sm:$0xff]
      %v7160 = vld [vmem:[#allocation4 + $0x121] sm:$0xff]
      %v7161 = vld [vmem:[#allocation4 + $0x129] sm:$0xff]
      %v7162 = vld [vmem:[#allocation4 + $0x131] sm:$0xff]
      %v7163 = vpack.c.bf16 %v7127, %v7127
      %v7164 = vpack.c.bf16 %v7128, %v7128
      %v7165 = vpack.c.bf16 %v7129, %v7129
      %v7166 = vpack.c.bf16 %v7130, %v7130
      %v7167 = vpack.c.bf16 %v7131, %v7131
      %v7168 = vpack.c.bf16 %v7132, %v7132
      %v7169 = vpack.c.bf16 %v7133, %v7133
      %v7170 = vpack.c.bf16 %v7134, %v7134
      %v7171 = vpack.c.bf16 %v7135, %v7135
      %v7172 = vpack.c.bf16 %v7136, %v7136
      %v7173 = vpack.c.bf16 %v7137, %v7137
      %v7174 = vpack.c.bf16 %v7138, %v7138
      %v7175 = vpack.c.bf16 %v7139, %v7139
      %v7176 = vpack.c.bf16 %v7140, %v7140
      %v7177 = vpack.c.bf16 %v7141, %v7141
      %v7178 = vpack.c.bf16 %v7142, %v7142
      %v7179 = vpack.c.bf16 %v7143, %v7143
      %v7180 = vpack.c.bf16 %v7144, %v7144
      %v7181 = vpack.c.bf16 %v7145, %v7145
      %v7182 = vpack.c.bf16 %v7146, %v7146
      %v7183 = vpack.c.bf16 %v7147, %v7147
      %v7184 = vpack.c.bf16 %v7148, %v7148
      %v7185 = vpack.c.bf16 %v7149, %v7149
      %v7186 = vpack.c.bf16 %v7150, %v7150
      %v7187 = vpack.c.bf16 %v7151, %v7151
      %v7188 = vpack.c.bf16 %v7152, %v7152
      %v7189 = vpack.c.bf16 %v7153, %v7153
      %v7190 = vpack.c.bf16 %v7154, %v7154
      %v7191 = vpack.c.bf16 %v7155, %v7155
      %v7192 = vpack.c.bf16 %v7156, %v7156
      %v7193 = vpack.c.bf16 %v7157, %v7157
      %v7194 = vpack.c.bf16 %v7158, %v7158
      %v7195 = vpack.c.bf16 %v7159, %v7159
      %v7196 = vpack.c.bf16 %v7160, %v7160
      %v7197 = vpack.c.bf16 %v7161, %v7161
      %v7198 = vpack.c.bf16 %v7162, %v7162
      %7235 = vrot.lane.b32.xlu0 %v7163, 64
      %v7236 = vpop.permute.xlu0 %7235
      %7237 = vrot.lane.b32.xlu0 %v7164, 64
      %v7238 = vpop.permute.xlu0 %7237
      %7239 = vrot.lane.b32.xlu0 %v7165, 64
      %v7240 = vpop.permute.xlu0 %7239
      %7241 = vrot.lane.b32.xlu0 %v7166, 64
      %v7242 = vpop.permute.xlu0 %7241
      %7243 = vrot.lane.b32.xlu0 %v7167, 64
      %v7244 = vpop.permute.xlu0 %7243
      %7245 = vrot.lane.b32.xlu0 %v7168, 64
      %v7246 = vpop.permute.xlu0 %7245
      %7247 = vrot.lane.b32.xlu0 %v7169, 64
      %v7248 = vpop.permute.xlu0 %7247
      %7249 = vrot.lane.b32.xlu0 %v7170, 64
      %v7250 = vpop.permute.xlu0 %7249
      %7251 = vrot.lane.b32.xlu0 %v7171, 64
      %v7252 = vpop.permute.xlu0 %7251
      %7253 = vrot.lane.b32.xlu0 %v7172, 64
      %v7254 = vpop.permute.xlu0 %7253
      %7255 = vrot.lane.b32.xlu0 %v7173, 64
      %v7256 = vpop.permute.xlu0 %7255
      %7257 = vrot.lane.b32.xlu0 %v7174, 64
      %v7258 = vpop.permute.xlu0 %7257
      %7259 = vrot.lane.b32.xlu0 %v7175, 64
      %v7260 = vpop.permute.xlu0 %7259
      %7261 = vrot.lane.b32.xlu0 %v7176, 64
      %v7262 = vpop.permute.xlu0 %7261
      %7263 = vrot.lane.b32.xlu0 %v7177, 64
      %v7264 = vpop.permute.xlu0 %7263
      %7265 = vrot.lane.b32.xlu0 %v7178, 64
      %v7266 = vpop.permute.xlu0 %7265
      %7267 = vrot.lane.b32.xlu0 %v7179, 64
      %v7268 = vpop.permute.xlu0 %7267
      %7269 = vrot.lane.b32.xlu0 %v7180, 64
      %v7270 = vpop.permute.xlu0 %7269
      %7271 = vrot.lane.b32.xlu0 %v7181, 64
      %v7272 = vpop.permute.xlu0 %7271
      %7273 = vrot.lane.b32.xlu0 %v7182, 64
      %v7274 = vpop.permute.xlu0 %7273
      %7275 = vrot.lane.b32.xlu0 %v7183, 64
      %v7276 = vpop.permute.xlu0 %7275
      %7277 = vrot.lane.b32.xlu0 %v7184, 64
      %v7278 = vpop.permute.xlu0 %7277
      %7279 = vrot.lane.b32.xlu0 %v7185, 64
      %v7280 = vpop.permute.xlu0 %7279
      %7281 = vrot.lane.b32.xlu0 %v7186, 64
      %v7282 = vpop.permute.xlu0 %7281
      %7283 = vrot.lane.b32.xlu0 %v7187, 64
      %v7284 = vpop.permute.xlu0 %7283
      %7285 = vrot.lane.b32.xlu0 %v7188, 64
      %v7286 = vpop.permute.xlu0 %7285
      %7287 = vrot.lane.b32.xlu0 %v7189, 64
      %v7288 = vpop.permute.xlu0 %7287
      %7289 = vrot.lane.b32.xlu0 %v7190, 64
      %v7290 = vpop.permute.xlu0 %7289
      %7291 = vrot.lane.b32.xlu0 %v7191, 64
      %v7292 = vpop.permute.xlu0 %7291
      %7293 = vrot.lane.b32.xlu0 %v7192, 64
      %v7294 = vpop.permute.xlu0 %7293
      %7295 = vrot.lane.b32.xlu0 %v7193, 64
      %v7296 = vpop.permute.xlu0 %7295
      %7297 = vrot.lane.b32.xlu0 %v7194, 64
      %v7298 = vpop.permute.xlu0 %7297
      %7299 = vrot.lane.b32.xlu0 %v7195, 64
      %v7300 = vpop.permute.xlu0 %7299
      %7301 = vrot.lane.b32.xlu0 %v7196, 64
      %v7302 = vpop.permute.xlu0 %7301
      %7303 = vrot.lane.b32.xlu0 %v7197, 64
      %v7304 = vpop.permute.xlu0 %7303
      %7305 = vrot.lane.b32.xlu0 %v7198, 64
      %v7306 = vpop.permute.xlu0 %7305
      %7343 = vst.msk [vmem:[#allocation5 + $0x8] sm:$0xf] %vm6622, %v7236
      %7344 = vst.msk [vmem:[#allocation5 + $0x1c] sm:$0xf] %vm6622, %v7238
      %7345 = vst.msk [vmem:[#allocation5 + $0x30] sm:$0xf] %vm6622, %v7240
      %7346 = vst.msk [vmem:[#allocation5 + $0x44] sm:$0xf] %vm6622, %v7242
      %7347 = vst.msk [vmem:[#allocation5 + $0x58] sm:$0xf] %vm6622, %v7244
      %7348 = vst.msk [vmem:[#allocation5 + $0x6c] sm:$0xf] %vm6622, %v7246
      %7349 = vst.msk [vmem:[#allocation5 + $0x80] sm:$0xf] %vm6622, %v7248
      %7350 = vst.msk [vmem:[#allocation5 + $0x94] sm:$0xf] %vm6622, %v7250
      %7351 = vst.msk [vmem:[#allocation5 + $0xa8] sm:$0xf] %vm6622, %v7252
      %7352 = vst.msk [vmem:[#allocation5 + $0xbc] sm:$0xf] %vm6622, %v7254
      %7353 = vst.msk [vmem:[#allocation5 + $0xd0] sm:$0xf] %vm6622, %v7256
      %7354 = vst.msk [vmem:[#allocation5 + $0xe4] sm:$0xf] %vm6622, %v7258
      %7355 = vst.msk [vmem:[#allocation5 + $0xf8] sm:$0xf] %vm6622, %v7260
      %7356 = vst.msk [vmem:[#allocation5 + $0x10c] sm:$0xf] %vm6622, %v7262
      %7357 = vst.msk [vmem:[#allocation5 + $0x120] sm:$0xf] %vm6622, %v7264
      %7358 = vst.msk [vmem:[#allocation5 + $0x134] sm:$0xf] %vm6622, %v7266
      %7359 = vst.msk [vmem:[#allocation5 + $0x148] sm:$0xf] %vm6622, %v7268
      %7360 = vst.msk [vmem:[#allocation5 + $0x15c] sm:$0xf] %vm6622, %v7270
      %7361 = vst.msk [vmem:[#allocation5 + $0x170] sm:$0xf] %vm6622, %v7272
      %7362 = vst.msk [vmem:[#allocation5 + $0x184] sm:$0xf] %vm6622, %v7274
      %7363 = vst.msk [vmem:[#allocation5 + $0x198] sm:$0xf] %vm6622, %v7276
      %7364 = vst.msk [vmem:[#allocation5 + $0x1ac] sm:$0xf] %vm6622, %v7278
      %7365 = vst.msk [vmem:[#allocation5 + $0x1c0] sm:$0xf] %vm6622, %v7280
      %7366 = vst.msk [vmem:[#allocation5 + $0x1d4] sm:$0xf] %vm6622, %v7282
      %7367 = vst.msk [vmem:[#allocation5 + $0x1e8] sm:$0xf] %vm6622, %v7284
      %7368 = vst.msk [vmem:[#allocation5 + $0x1fc] sm:$0xf] %vm6622, %v7286
      %7369 = vst.msk [vmem:[#allocation5 + $0x210] sm:$0xf] %vm6622, %v7288
      %7370 = vst.msk [vmem:[#allocation5 + $0x224] sm:$0xf] %vm6622, %v7290
      %7371 = vst.msk [vmem:[#allocation5 + $0x238] sm:$0xf] %vm6622, %v7292
      %7372 = vst.msk [vmem:[#allocation5 + $0x24c] sm:$0xf] %vm6622, %v7294
      %7373 = vst.msk [vmem:[#allocation5 + $0x260] sm:$0xf] %vm6622, %v7296
      %7374 = vst.msk [vmem:[#allocation5 + $0x274] sm:$0xf] %vm6622, %v7298
      %7375 = vst.msk [vmem:[#allocation5 + $0x288] sm:$0xf] %vm6622, %v7300
      %7376 = vst.msk [vmem:[#allocation5 + $0x29c] sm:$0xf] %vm6622, %v7302
      %7377 = vst.msk [vmem:[#allocation5 + $0x2b0] sm:$0xf] %vm6622, %v7304
      %7378 = vst.msk [vmem:[#allocation5 + $0x2c4] sm:$0xf] %vm6622, %v7306
      %v7379 = vld [vmem:[#allocation4 + $0x29] sm:$0xff]
      %v7380 = vld [vmem:[#allocation4 + $0x31] sm:$0xff]
      %v7381 = vld [vmem:[#allocation4 + $0x39] sm:$0xff]
      %v7382 = vld [vmem:[#allocation4 + $0x41] sm:$0xff]
      %v7383 = vld [vmem:[#allocation4 + $0x49] sm:$0xff]
      %v7384 = vld [vmem:[#allocation4 + $0x51] sm:$0xff]
      %v7385 = vld [vmem:[#allocation4 + $0x59] sm:$0xff]
      %v7386 = vld [vmem:[#allocation4 + $0x61] sm:$0xff]
      %v7387 = vld [vmem:[#allocation4 + $0x69] sm:$0xff]
      %v7388 = vld [vmem:[#allocation4 + $0x71] sm:$0xff]
      %v7389 = vld [vmem:[#allocation4 + $0x79] sm:$0xff]
      %v7390 = vld [vmem:[#allocation4 + $0x81] sm:$0xff]
      %v7391 = vld [vmem:[#allocation4 + $0x89] sm:$0xff]
      %v7392 = vld [vmem:[#allocation4 + $0x91] sm:$0xff]
      %v7393 = vld [vmem:[#allocation4 + $0x99] sm:$0xff]
      %v7394 = vld [vmem:[#allocation4 + $0xa1] sm:$0xff]
      %v7395 = vld [vmem:[#allocation4 + $0xa9] sm:$0xff]
      %v7396 = vld [vmem:[#allocation4 + $0xb1] sm:$0xff]
      %v7397 = vld [vmem:[#allocation4 + $0xb9] sm:$0xff]
      %v7398 = vld [vmem:[#allocation4 + $0xc1] sm:$0xff]
      %v7399 = vld [vmem:[#allocation4 + $0xc9] sm:$0xff]
      %v7400 = vld [vmem:[#allocation4 + $0xd1] sm:$0xff]
      %v7401 = vld [vmem:[#allocation4 + $0xd9] sm:$0xff]
      %v7402 = vld [vmem:[#allocation4 + $0xe1] sm:$0xff]
      %v7403 = vld [vmem:[#allocation4 + $0xe9] sm:$0xff]
      %v7404 = vld [vmem:[#allocation4 + $0xf1] sm:$0xff]
      %v7405 = vld [vmem:[#allocation4 + $0xf9] sm:$0xff]
      %v7406 = vld [vmem:[#allocation4 + $0x101] sm:$0xff]
      %v7407 = vld [vmem:[#allocation4 + $0x109] sm:$0xff]
      %v7408 = vld [vmem:[#allocation4 + $0x111] sm:$0xff]
      %v7409 = vld [vmem:[#allocation4 + $0x119] sm:$0xff]
      %v7410 = vld [vmem:[#allocation4 + $0x121] sm:$0xff]
      %v7411 = vld [vmem:[#allocation4 + $0x129] sm:$0xff]
      %v7412 = vld [vmem:[#allocation4 + $0x131] sm:$0xff]
      %v7413 = vld [vmem:[#allocation4 + $0x139] sm:$0xff]
      %v7414 = vld [vmem:[#allocation4 + $0x141] sm:$0xff]
      %v7415 = vpack.c.bf16 %v7379, %v7379
      %v7416 = vpack.c.bf16 %v7380, %v7380
      %v7417 = vpack.c.bf16 %v7381, %v7381
      %v7418 = vpack.c.bf16 %v7382, %v7382
      %v7419 = vpack.c.bf16 %v7383, %v7383
      %v7420 = vpack.c.bf16 %v7384, %v7384
      %v7421 = vpack.c.bf16 %v7385, %v7385
      %v7422 = vpack.c.bf16 %v7386, %v7386
      %v7423 = vpack.c.bf16 %v7387, %v7387
      %v7424 = vpack.c.bf16 %v7388, %v7388
      %v7425 = vpack.c.bf16 %v7389, %v7389
      %v7426 = vpack.c.bf16 %v7390, %v7390
      %v7427 = vpack.c.bf16 %v7391, %v7391
      %v7428 = vpack.c.bf16 %v7392, %v7392
      %v7429 = vpack.c.bf16 %v7393, %v7393
      %v7430 = vpack.c.bf16 %v7394, %v7394
      %v7431 = vpack.c.bf16 %v7395, %v7395
      %v7432 = vpack.c.bf16 %v7396, %v7396
      %v7433 = vpack.c.bf16 %v7397, %v7397
      %v7434 = vpack.c.bf16 %v7398, %v7398
      %v7435 = vpack.c.bf16 %v7399, %v7399
      %v7436 = vpack.c.bf16 %v7400, %v7400
      %v7437 = vpack.c.bf16 %v7401, %v7401
      %v7438 = vpack.c.bf16 %v7402, %v7402
      %v7439 = vpack.c.bf16 %v7403, %v7403
      %v7440 = vpack.c.bf16 %v7404, %v7404
      %v7441 = vpack.c.bf16 %v7405, %v7405
      %v7442 = vpack.c.bf16 %v7406, %v7406
      %v7443 = vpack.c.bf16 %v7407, %v7407
      %v7444 = vpack.c.bf16 %v7408, %v7408
      %v7445 = vpack.c.bf16 %v7409, %v7409
      %v7446 = vpack.c.bf16 %v7410, %v7410
      %v7447 = vpack.c.bf16 %v7411, %v7411
      %v7448 = vpack.c.bf16 %v7412, %v7412
      %v7449 = vpack.c.bf16 %v7413, %v7413
      %v7450 = vpack.c.bf16 %v7414, %v7414
      %7451 = vst.msk [vmem:[#allocation5 + $0xc] sm:$0xf] %vm6369, %v7415
      %7452 = vst.msk [vmem:[#allocation5 + $0x20] sm:$0xf] %vm6369, %v7416
      %7453 = vst.msk [vmem:[#allocation5 + $0x34] sm:$0xf] %vm6369, %v7417
      %7454 = vst.msk [vmem:[#allocation5 + $0x48] sm:$0xf] %vm6369, %v7418
      %7455 = vst.msk [vmem:[#allocation5 + $0x5c] sm:$0xf] %vm6369, %v7419
      %7456 = vst.msk [vmem:[#allocation5 + $0x70] sm:$0xf] %vm6369, %v7420
      %7457 = vst.msk [vmem:[#allocation5 + $0x84] sm:$0xf] %vm6369, %v7421
      %7458 = vst.msk [vmem:[#allocation5 + $0x98] sm:$0xf] %vm6369, %v7422
      %7459 = vst.msk [vmem:[#allocation5 + $0xac] sm:$0xf] %vm6369, %v7423
      %7460 = vst.msk [vmem:[#allocation5 + $0xc0] sm:$0xf] %vm6369, %v7424
      %7461 = vst.msk [vmem:[#allocation5 + $0xd4] sm:$0xf] %vm6369, %v7425
      %7462 = vst.msk [vmem:[#allocation5 + $0xe8] sm:$0xf] %vm6369, %v7426
      %7463 = vst.msk [vmem:[#allocation5 + $0xfc] sm:$0xf] %vm6369, %v7427
      %7464 = vst.msk [vmem:[#allocation5 + $0x110] sm:$0xf] %vm6369, %v7428
      %7465 = vst.msk [vmem:[#allocation5 + $0x124] sm:$0xf] %vm6369, %v7429
      %7466 = vst.msk [vmem:[#allocation5 + $0x138] sm:$0xf] %vm6369, %v7430
      %7467 = vst.msk [vmem:[#allocation5 + $0x14c] sm:$0xf] %vm6369, %v7431
      %7468 = vst.msk [vmem:[#allocation5 + $0x160] sm:$0xf] %vm6369, %v7432
      %7469 = vst.msk [vmem:[#allocation5 + $0x174] sm:$0xf] %vm6369, %v7433
      %7470 = vst.msk [vmem:[#allocation5 + $0x188] sm:$0xf] %vm6369, %v7434
      %7471 = vst.msk [vmem:[#allocation5 + $0x19c] sm:$0xf] %vm6369, %v7435
      %7472 = vst.msk [vmem:[#allocation5 + $0x1b0] sm:$0xf] %vm6369, %v7436
      %7473 = vst.msk [vmem:[#allocation5 + $0x1c4] sm:$0xf] %vm6369, %v7437
      %7474 = vst.msk [vmem:[#allocation5 + $0x1d8] sm:$0xf] %vm6369, %v7438
      %7475 = vst.msk [vmem:[#allocation5 + $0x1ec] sm:$0xf] %vm6369, %v7439
      %7476 = vst.msk [vmem:[#allocation5 + $0x200] sm:$0xf] %vm6369, %v7440
      %7477 = vst.msk [vmem:[#allocation5 + $0x214] sm:$0xf] %vm6369, %v7441
      %7478 = vst.msk [vmem:[#allocation5 + $0x228] sm:$0xf] %vm6369, %v7442
      %7479 = vst.msk [vmem:[#allocation5 + $0x23c] sm:$0xf] %vm6369, %v7443
      %7480 = vst.msk [vmem:[#allocation5 + $0x250] sm:$0xf] %vm6369, %v7444
      %7481 = vst.msk [vmem:[#allocation5 + $0x264] sm:$0xf] %vm6369, %v7445
      %7482 = vst.msk [vmem:[#allocation5 + $0x278] sm:$0xf] %vm6369, %v7446
      %7483 = vst.msk [vmem:[#allocation5 + $0x28c] sm:$0xf] %vm6369, %v7447
      %7484 = vst.msk [vmem:[#allocation5 + $0x2a0] sm:$0xf] %vm6369, %v7448
      %7485 = vst.msk [vmem:[#allocation5 + $0x2b4] sm:$0xf] %vm6369, %v7449
      %7486 = vst.msk [vmem:[#allocation5 + $0x2c8] sm:$0xf] %vm6369, %v7450
      %v7487 = vld [vmem:[#allocation4 + $0x2a] sm:$0xff]
      %v7488 = vld [vmem:[#allocation4 + $0x32] sm:$0xff]
      %v7489 = vld [vmem:[#allocation4 + $0x3a] sm:$0xff]
      %v7490 = vld [vmem:[#allocation4 + $0x42] sm:$0xff]
      %v7491 = vld [vmem:[#allocation4 + $0x4a] sm:$0xff]
      %v7492 = vld [vmem:[#allocation4 + $0x52] sm:$0xff]
      %v7493 = vld [vmem:[#allocation4 + $0x5a] sm:$0xff]
      %v7494 = vld [vmem:[#allocation4 + $0x62] sm:$0xff]
      %v7495 = vld [vmem:[#allocation4 + $0x6a] sm:$0xff]
      %v7496 = vld [vmem:[#allocation4 + $0x72] sm:$0xff]
      %v7497 = vld [vmem:[#allocation4 + $0x7a] sm:$0xff]
      %v7498 = vld [vmem:[#allocation4 + $0x82] sm:$0xff]
      %v7499 = vld [vmem:[#allocation4 + $0x8a] sm:$0xff]
      %v7500 = vld [vmem:[#allocation4 + $0x92] sm:$0xff]
      %v7501 = vld [vmem:[#allocation4 + $0x9a] sm:$0xff]
      %v7502 = vld [vmem:[#allocation4 + $0xa2] sm:$0xff]
      %v7503 = vld [vmem:[#allocation4 + $0xaa] sm:$0xff]
      %v7504 = vld [vmem:[#allocation4 + $0xb2] sm:$0xff]
      %v7505 = vld [vmem:[#allocation4 + $0xba] sm:$0xff]
      %v7506 = vld [vmem:[#allocation4 + $0xc2] sm:$0xff]
      %v7507 = vld [vmem:[#allocation4 + $0xca] sm:$0xff]
      %v7508 = vld [vmem:[#allocation4 + $0xd2] sm:$0xff]
      %v7509 = vld [vmem:[#allocation4 + $0xda] sm:$0xff]
      %v7510 = vld [vmem:[#allocation4 + $0xe2] sm:$0xff]
      %v7511 = vld [vmem:[#allocation4 + $0xea] sm:$0xff]
      %v7512 = vld [vmem:[#allocation4 + $0xf2] sm:$0xff]
      %v7513 = vld [vmem:[#allocation4 + $0xfa] sm:$0xff]
      %v7514 = vld [vmem:[#allocation4 + $0x102] sm:$0xff]
      %v7515 = vld [vmem:[#allocation4 + $0x10a] sm:$0xff]
      %v7516 = vld [vmem:[#allocation4 + $0x112] sm:$0xff]
      %v7517 = vld [vmem:[#allocation4 + $0x11a] sm:$0xff]
      %v7518 = vld [vmem:[#allocation4 + $0x122] sm:$0xff]
      %v7519 = vld [vmem:[#allocation4 + $0x12a] sm:$0xff]
      %v7520 = vld [vmem:[#allocation4 + $0x132] sm:$0xff]
      %v7521 = vld [vmem:[#allocation4 + $0x13a] sm:$0xff]
      %v7522 = vld [vmem:[#allocation4 + $0x142] sm:$0xff]
      %v7523 = vpack.c.bf16 %v7487, %v7487
      %v7524 = vpack.c.bf16 %v7488, %v7488
      %v7525 = vpack.c.bf16 %v7489, %v7489
      %v7526 = vpack.c.bf16 %v7490, %v7490
      %v7527 = vpack.c.bf16 %v7491, %v7491
      %v7528 = vpack.c.bf16 %v7492, %v7492
      %v7529 = vpack.c.bf16 %v7493, %v7493
      %v7530 = vpack.c.bf16 %v7494, %v7494
      %v7531 = vpack.c.bf16 %v7495, %v7495
      %v7532 = vpack.c.bf16 %v7496, %v7496
      %v7533 = vpack.c.bf16 %v7497, %v7497
      %v7534 = vpack.c.bf16 %v7498, %v7498
      %v7535 = vpack.c.bf16 %v7499, %v7499
      %v7536 = vpack.c.bf16 %v7500, %v7500
      %v7537 = vpack.c.bf16 %v7501, %v7501
      %v7538 = vpack.c.bf16 %v7502, %v7502
      %v7539 = vpack.c.bf16 %v7503, %v7503
      %v7540 = vpack.c.bf16 %v7504, %v7504
      %v7541 = vpack.c.bf16 %v7505, %v7505
      %v7542 = vpack.c.bf16 %v7506, %v7506
      %v7543 = vpack.c.bf16 %v7507, %v7507
      %v7544 = vpack.c.bf16 %v7508, %v7508
      %v7545 = vpack.c.bf16 %v7509, %v7509
      %v7546 = vpack.c.bf16 %v7510, %v7510
      %v7547 = vpack.c.bf16 %v7511, %v7511
      %v7548 = vpack.c.bf16 %v7512, %v7512
      %v7549 = vpack.c.bf16 %v7513, %v7513
      %v7550 = vpack.c.bf16 %v7514, %v7514
      %v7551 = vpack.c.bf16 %v7515, %v7515
      %v7552 = vpack.c.bf16 %v7516, %v7516
      %v7553 = vpack.c.bf16 %v7517, %v7517
      %v7554 = vpack.c.bf16 %v7518, %v7518
      %v7555 = vpack.c.bf16 %v7519, %v7519
      %v7556 = vpack.c.bf16 %v7520, %v7520
      %v7557 = vpack.c.bf16 %v7521, %v7521
      %v7558 = vpack.c.bf16 %v7522, %v7522
      %7595 = vrot.lane.b32.xlu0 %v7523, 64
      %v7596 = vpop.permute.xlu0 %7595
      %7597 = vrot.lane.b32.xlu0 %v7524, 64
      %v7598 = vpop.permute.xlu0 %7597
      %7599 = vrot.lane.b32.xlu0 %v7525, 64
      %v7600 = vpop.permute.xlu0 %7599
      %7601 = vrot.lane.b32.xlu0 %v7526, 64
      %v7602 = vpop.permute.xlu0 %7601
      %7603 = vrot.lane.b32.xlu0 %v7527, 64
      %v7604 = vpop.permute.xlu0 %7603
      %7605 = vrot.lane.b32.xlu0 %v7528, 64
      %v7606 = vpop.permute.xlu0 %7605
      %7607 = vrot.lane.b32.xlu0 %v7529, 64
      %v7608 = vpop.permute.xlu0 %7607
      %7609 = vrot.lane.b32.xlu0 %v7530, 64
      %v7610 = vpop.permute.xlu0 %7609
      %7611 = vrot.lane.b32.xlu0 %v7531, 64
      %v7612 = vpop.permute.xlu0 %7611
      %7613 = vrot.lane.b32.xlu0 %v7532, 64
      %v7614 = vpop.permute.xlu0 %7613
      %7615 = vrot.lane.b32.xlu0 %v7533, 64
      %v7616 = vpop.permute.xlu0 %7615
      %7617 = vrot.lane.b32.xlu0 %v7534, 64
      %v7618 = vpop.permute.xlu0 %7617
      %7619 = vrot.lane.b32.xlu0 %v7535, 64
      %v7620 = vpop.permute.xlu0 %7619
      %7621 = vrot.lane.b32.xlu0 %v7536, 64
      %v7622 = vpop.permute.xlu0 %7621
      %7623 = vrot.lane.b32.xlu0 %v7537, 64
      %v7624 = vpop.permute.xlu0 %7623
      %7625 = vrot.lane.b32.xlu0 %v7538, 64
      %v7626 = vpop.permute.xlu0 %7625
      %7627 = vrot.lane.b32.xlu0 %v7539, 64
      %v7628 = vpop.permute.xlu0 %7627
      %7629 = vrot.lane.b32.xlu0 %v7540, 64
      %v7630 = vpop.permute.xlu0 %7629
      %7631 = vrot.lane.b32.xlu0 %v7541, 64
      %v7632 = vpop.permute.xlu0 %7631
      %7633 = vrot.lane.b32.xlu0 %v7542, 64
      %v7634 = vpop.permute.xlu0 %7633
      %7635 = vrot.lane.b32.xlu0 %v7543, 64
      %v7636 = vpop.permute.xlu0 %7635
      %7637 = vrot.lane.b32.xlu0 %v7544, 64
      %v7638 = vpop.permute.xlu0 %7637
      %7639 = vrot.lane.b32.xlu0 %v7545, 64
      %v7640 = vpop.permute.xlu0 %7639
      %7641 = vrot.lane.b32.xlu0 %v7546, 64
      %v7642 = vpop.permute.xlu0 %7641
      %7643 = vrot.lane.b32.xlu0 %v7547, 64
      %v7644 = vpop.permute.xlu0 %7643
      %7645 = vrot.lane.b32.xlu0 %v7548, 64
      %v7646 = vpop.permute.xlu0 %7645
      %7647 = vrot.lane.b32.xlu0 %v7549, 64
      %v7648 = vpop.permute.xlu0 %7647
      %7649 = vrot.lane.b32.xlu0 %v7550, 64
      %v7650 = vpop.permute.xlu0 %7649
      %7651 = vrot.lane.b32.xlu0 %v7551, 64
      %v7652 = vpop.permute.xlu0 %7651
      %7653 = vrot.lane.b32.xlu0 %v7552, 64
      %v7654 = vpop.permute.xlu0 %7653
      %7655 = vrot.lane.b32.xlu0 %v7553, 64
      %v7656 = vpop.permute.xlu0 %7655
      %7657 = vrot.lane.b32.xlu0 %v7554, 64
      %v7658 = vpop.permute.xlu0 %7657
      %7659 = vrot.lane.b32.xlu0 %v7555, 64
      %v7660 = vpop.permute.xlu0 %7659
      %7661 = vrot.lane.b32.xlu0 %v7556, 64
      %v7662 = vpop.permute.xlu0 %7661
      %7663 = vrot.lane.b32.xlu0 %v7557, 64
      %v7664 = vpop.permute.xlu0 %7663
      %7665 = vrot.lane.b32.xlu0 %v7558, 64
      %v7666 = vpop.permute.xlu0 %7665
      %7703 = vst.msk [vmem:[#allocation5 + $0xc] sm:$0xf] %vm6622, %v7596
      %7704 = vst.msk [vmem:[#allocation5 + $0x20] sm:$0xf] %vm6622, %v7598
      %7705 = vst.msk [vmem:[#allocation5 + $0x34] sm:$0xf] %vm6622, %v7600
      %7706 = vst.msk [vmem:[#allocation5 + $0x48] sm:$0xf] %vm6622, %v7602
      %7707 = vst.msk [vmem:[#allocation5 + $0x5c] sm:$0xf] %vm6622, %v7604
      %7708 = vst.msk [vmem:[#allocation5 + $0x70] sm:$0xf] %vm6622, %v7606
      %7709 = vst.msk [vmem:[#allocation5 + $0x84] sm:$0xf] %vm6622, %v7608
      %7710 = vst.msk [vmem:[#allocation5 + $0x98] sm:$0xf] %vm6622, %v7610
      %7711 = vst.msk [vmem:[#allocation5 + $0xac] sm:$0xf] %vm6622, %v7612
      %7712 = vst.msk [vmem:[#allocation5 + $0xc0] sm:$0xf] %vm6622, %v7614
      %7713 = vst.msk [vmem:[#allocation5 + $0xd4] sm:$0xf] %vm6622, %v7616
      %7714 = vst.msk [vmem:[#allocation5 + $0xe8] sm:$0xf] %vm6622, %v7618
      %7715 = vst.msk [vmem:[#allocation5 + $0xfc] sm:$0xf] %vm6622, %v7620
      %7716 = vst.msk [vmem:[#allocation5 + $0x110] sm:$0xf] %vm6622, %v7622
      %7717 = vst.msk [vmem:[#allocation5 + $0x124] sm:$0xf] %vm6622, %v7624
      %7718 = vst.msk [vmem:[#allocation5 + $0x138] sm:$0xf] %vm6622, %v7626
      %7719 = vst.msk [vmem:[#allocation5 + $0x14c] sm:$0xf] %vm6622, %v7628
      %7720 = vst.msk [vmem:[#allocation5 + $0x160] sm:$0xf] %vm6622, %v7630
      %7721 = vst.msk [vmem:[#allocation5 + $0x174] sm:$0xf] %vm6622, %v7632
      %7722 = vst.msk [vmem:[#allocation5 + $0x188] sm:$0xf] %vm6622, %v7634
      %7723 = vst.msk [vmem:[#allocation5 + $0x19c] sm:$0xf] %vm6622, %v7636
      %7724 = vst.msk [vmem:[#allocation5 + $0x1b0] sm:$0xf] %vm6622, %v7638
      %7725 = vst.msk [vmem:[#allocation5 + $0x1c4] sm:$0xf] %vm6622, %v7640
      %7726 = vst.msk [vmem:[#allocation5 + $0x1d8] sm:$0xf] %vm6622, %v7642
      %7727 = vst.msk [vmem:[#allocation5 + $0x1ec] sm:$0xf] %vm6622, %v7644
      %7728 = vst.msk [vmem:[#allocation5 + $0x200] sm:$0xf] %vm6622, %v7646
      %7729 = vst.msk [vmem:[#allocation5 + $0x214] sm:$0xf] %vm6622, %v7648
      %7730 = vst.msk [vmem:[#allocation5 + $0x228] sm:$0xf] %vm6622, %v7650
      %7731 = vst.msk [vmem:[#allocation5 + $0x23c] sm:$0xf] %vm6622, %v7652
      %7732 = vst.msk [vmem:[#allocation5 + $0x250] sm:$0xf] %vm6622, %v7654
      %7733 = vst.msk [vmem:[#allocation5 + $0x264] sm:$0xf] %vm6622, %v7656
      %7734 = vst.msk [vmem:[#allocation5 + $0x278] sm:$0xf] %vm6622, %v7658
      %7735 = vst.msk [vmem:[#allocation5 + $0x28c] sm:$0xf] %vm6622, %v7660
      %7736 = vst.msk [vmem:[#allocation5 + $0x2a0] sm:$0xf] %vm6622, %v7662
      %7737 = vst.msk [vmem:[#allocation5 + $0x2b4] sm:$0xf] %vm6622, %v7664
      %7738 = vst.msk [vmem:[#allocation5 + $0x2c8] sm:$0xf] %vm6622, %v7666
      %v7739 = vld [vmem:[#allocation4 + $0x2b] sm:$0xff]
      %v7740 = vld [vmem:[#allocation4 + $0x33] sm:$0xff]
      %v7741 = vld [vmem:[#allocation4 + $0x3b] sm:$0xff]
      %v7742 = vld [vmem:[#allocation4 + $0x43] sm:$0xff]
      %v7743 = vld [vmem:[#allocation4 + $0x4b] sm:$0xff]
      %v7744 = vld [vmem:[#allocation4 + $0x53] sm:$0xff]
      %v7745 = vld [vmem:[#allocation4 + $0x5b] sm:$0xff]
      %v7746 = vld [vmem:[#allocation4 + $0x63] sm:$0xff]
      %v7747 = vld [vmem:[#allocation4 + $0x6b] sm:$0xff]
      %v7748 = vld [vmem:[#allocation4 + $0x73] sm:$0xff]
      %v7749 = vld [vmem:[#allocation4 + $0x7b] sm:$0xff]
      %v7750 = vld [vmem:[#allocation4 + $0x83] sm:$0xff]
      %v7751 = vld [vmem:[#allocation4 + $0x8b] sm:$0xff]
      %v7752 = vld [vmem:[#allocation4 + $0x93] sm:$0xff]
      %v7753 = vld [vmem:[#allocation4 + $0x9b] sm:$0xff]
      %v7754 = vld [vmem:[#allocation4 + $0xa3] sm:$0xff]
      %v7755 = vld [vmem:[#allocation4 + $0xab] sm:$0xff]
      %v7756 = vld [vmem:[#allocation4 + $0xb3] sm:$0xff]
      %v7757 = vld [vmem:[#allocation4 + $0xbb] sm:$0xff]
      %v7758 = vld [vmem:[#allocation4 + $0xc3] sm:$0xff]
      %v7759 = vld [vmem:[#allocation4 + $0xcb] sm:$0xff]
      %v7760 = vld [vmem:[#allocation4 + $0xd3] sm:$0xff]
      %v7761 = vld [vmem:[#allocation4 + $0xdb] sm:$0xff]
      %v7762 = vld [vmem:[#allocation4 + $0xe3] sm:$0xff]
      %v7763 = vld [vmem:[#allocation4 + $0xeb] sm:$0xff]
      %v7764 = vld [vmem:[#allocation4 + $0xf3] sm:$0xff]
      %v7765 = vld [vmem:[#allocation4 + $0xfb] sm:$0xff]
      %v7766 = vld [vmem:[#allocation4 + $0x103] sm:$0xff]
      %v7767 = vld [vmem:[#allocation4 + $0x10b] sm:$0xff]
      %v7768 = vld [vmem:[#allocation4 + $0x113] sm:$0xff]
      %v7769 = vld [vmem:[#allocation4 + $0x11b] sm:$0xff]
      %v7770 = vld [vmem:[#allocation4 + $0x123] sm:$0xff]
      %v7771 = vld [vmem:[#allocation4 + $0x12b] sm:$0xff]
      %v7772 = vld [vmem:[#allocation4 + $0x133] sm:$0xff]
      %v7773 = vld [vmem:[#allocation4 + $0x13b] sm:$0xff]
      %v7774 = vld [vmem:[#allocation4 + $0x143] sm:$0xff]
      %v7775 = vpack.c.bf16 %v7739, %v7739
      %v7776 = vpack.c.bf16 %v7740, %v7740
      %v7777 = vpack.c.bf16 %v7741, %v7741
      %v7778 = vpack.c.bf16 %v7742, %v7742
      %v7779 = vpack.c.bf16 %v7743, %v7743
      %v7780 = vpack.c.bf16 %v7744, %v7744
      %v7781 = vpack.c.bf16 %v7745, %v7745
      %v7782 = vpack.c.bf16 %v7746, %v7746
      %v7783 = vpack.c.bf16 %v7747, %v7747
      %v7784 = vpack.c.bf16 %v7748, %v7748
      %v7785 = vpack.c.bf16 %v7749, %v7749
      %v7786 = vpack.c.bf16 %v7750, %v7750
      %v7787 = vpack.c.bf16 %v7751, %v7751
      %v7788 = vpack.c.bf16 %v7752, %v7752
      %v7789 = vpack.c.bf16 %v7753, %v7753
      %v7790 = vpack.c.bf16 %v7754, %v7754
      %v7791 = vpack.c.bf16 %v7755, %v7755
      %v7792 = vpack.c.bf16 %v7756, %v7756
      %v7793 = vpack.c.bf16 %v7757, %v7757
      %v7794 = vpack.c.bf16 %v7758, %v7758
      %v7795 = vpack.c.bf16 %v7759, %v7759
      %v7796 = vpack.c.bf16 %v7760, %v7760
      %v7797 = vpack.c.bf16 %v7761, %v7761
      %v7798 = vpack.c.bf16 %v7762, %v7762
      %v7799 = vpack.c.bf16 %v7763, %v7763
      %v7800 = vpack.c.bf16 %v7764, %v7764
      %v7801 = vpack.c.bf16 %v7765, %v7765
      %v7802 = vpack.c.bf16 %v7766, %v7766
      %v7803 = vpack.c.bf16 %v7767, %v7767
      %v7804 = vpack.c.bf16 %v7768, %v7768
      %v7805 = vpack.c.bf16 %v7769, %v7769
      %v7806 = vpack.c.bf16 %v7770, %v7770
      %v7807 = vpack.c.bf16 %v7771, %v7771
      %v7808 = vpack.c.bf16 %v7772, %v7772
      %v7809 = vpack.c.bf16 %v7773, %v7773
      %v7810 = vpack.c.bf16 %v7774, %v7774
      %7811 = vst.msk [vmem:[#allocation5 + $0x10] sm:$0xf] %vm6369, %v7775
      %7812 = vst.msk [vmem:[#allocation5 + $0x24] sm:$0xf] %vm6369, %v7776
      %7813 = vst.msk [vmem:[#allocation5 + $0x38] sm:$0xf] %vm6369, %v7777
      %7814 = vst.msk [vmem:[#allocation5 + $0x4c] sm:$0xf] %vm6369, %v7778
      %7815 = vst.msk [vmem:[#allocation5 + $0x60] sm:$0xf] %vm6369, %v7779
      %7816 = vst.msk [vmem:[#allocation5 + $0x74] sm:$0xf] %vm6369, %v7780
      %7817 = vst.msk [vmem:[#allocation5 + $0x88] sm:$0xf] %vm6369, %v7781
      %7818 = vst.msk [vmem:[#allocation5 + $0x9c] sm:$0xf] %vm6369, %v7782
      %7819 = vst.msk [vmem:[#allocation5 + $0xb0] sm:$0xf] %vm6369, %v7783
      %7820 = vst.msk [vmem:[#allocation5 + $0xc4] sm:$0xf] %vm6369, %v7784
      %7821 = vst.msk [vmem:[#allocation5 + $0xd8] sm:$0xf] %vm6369, %v7785
      %7822 = vst.msk [vmem:[#allocation5 + $0xec] sm:$0xf] %vm6369, %v7786
      %7823 = vst.msk [vmem:[#allocation5 + $0x100] sm:$0xf] %vm6369, %v7787
      %7824 = vst.msk [vmem:[#allocation5 + $0x114] sm:$0xf] %vm6369, %v7788
      %7825 = vst.msk [vmem:[#allocation5 + $0x128] sm:$0xf] %vm6369, %v7789
      %7826 = vst.msk [vmem:[#allocation5 + $0x13c] sm:$0xf] %vm6369, %v7790
      %7827 = vst.msk [vmem:[#allocation5 + $0x150] sm:$0xf] %vm6369, %v7791
      %7828 = vst.msk [vmem:[#allocation5 + $0x164] sm:$0xf] %vm6369, %v7792
      %7829 = vst.msk [vmem:[#allocation5 + $0x178] sm:$0xf] %vm6369, %v7793
      %7830 = vst.msk [vmem:[#allocation5 + $0x18c] sm:$0xf] %vm6369, %v7794
      %7831 = vst.msk [vmem:[#allocation5 + $0x1a0] sm:$0xf] %vm6369, %v7795
      %7832 = vst.msk [vmem:[#allocation5 + $0x1b4] sm:$0xf] %vm6369, %v7796
      %7833 = vst.msk [vmem:[#allocation5 + $0x1c8] sm:$0xf] %vm6369, %v7797
      %7834 = vst.msk [vmem:[#allocation5 + $0x1dc] sm:$0xf] %vm6369, %v7798
      %7835 = vst.msk [vmem:[#allocation5 + $0x1f0] sm:$0xf] %vm6369, %v7799
      %7836 = vst.msk [vmem:[#allocation5 + $0x204] sm:$0xf] %vm6369, %v7800
      %7837 = vst.msk [vmem:[#allocation5 + $0x218] sm:$0xf] %vm6369, %v7801
      %7838 = vst.msk [vmem:[#allocation5 + $0x22c] sm:$0xf] %vm6369, %v7802
      %7839 = vst.msk [vmem:[#allocation5 + $0x240] sm:$0xf] %vm6369, %v7803
      %7840 = vst.msk [vmem:[#allocation5 + $0x254] sm:$0xf] %vm6369, %v7804
      %7841 = vst.msk [vmem:[#allocation5 + $0x268] sm:$0xf] %vm6369, %v7805
      %7842 = vst.msk [vmem:[#allocation5 + $0x27c] sm:$0xf] %vm6369, %v7806
      %7843 = vst.msk [vmem:[#allocation5 + $0x290] sm:$0xf] %vm6369, %v7807
      %7844 = vst.msk [vmem:[#allocation5 + $0x2a4] sm:$0xf] %vm6369, %v7808
      %7845 = vst.msk [vmem:[#allocation5 + $0x2b8] sm:$0xf] %vm6369, %v7809
      %7846 = vst.msk [vmem:[#allocation5 + $0x2cc] sm:$0xf] %vm6369, %v7810
      %v7847 = vld [vmem:[%s457 + $0x18] sm:$0xff]
      %v7848 = vld [vmem:[%s457 + $0x20] sm:$0xff]
      %v7849 = vld [vmem:[%s457 + $0x28] sm:$0xff]
      %v7850 = vld [vmem:[%s457 + $0x30] sm:$0xff]
      %v7851 = vld [vmem:[%s457 + $0x38] sm:$0xff]
      %v7852 = vld [vmem:[%s457 + $0x40] sm:$0xff]
      %v7853 = vld [vmem:[%s457 + $0x48] sm:$0xff]
      %v7854 = vld [vmem:[%s457 + $0x50] sm:$0xff]
      %v7855 = vld [vmem:[%s457 + $0x58] sm:$0xff]
      %v7856 = vld [vmem:[%s457 + $0x60] sm:$0xff]
      %v7857 = vld [vmem:[%s457 + $0x68] sm:$0xff]
      %v7858 = vld [vmem:[%s457 + $0x70] sm:$0xff]
      %v7859 = vld [vmem:[%s457 + $0x78] sm:$0xff]
      %v7860 = vld [vmem:[%s457 + $0x80] sm:$0xff]
      %v7861 = vld [vmem:[%s457 + $0x88] sm:$0xff]
      %v7862 = vld [vmem:[%s457 + $0x90] sm:$0xff]
      %v7863 = vld [vmem:[%s457 + $0x98] sm:$0xff]
      %v7864 = vld [vmem:[%s457 + $0xa0] sm:$0xff]
      %v7865 = vld [vmem:[%s457 + $0xa8] sm:$0xff]
      %v7866 = vld [vmem:[%s457 + $0xb0] sm:$0xff]
      %v7867 = vld [vmem:[%s457 + $0xb8] sm:$0xff]
      %v7868 = vld [vmem:[%s457 + $0xc0] sm:$0xff]
      %v7869 = vld [vmem:[%s457 + $0xc8] sm:$0xff]
      %v7870 = vld [vmem:[%s457 + $0xd0] sm:$0xff]
      %v7871 = vld [vmem:[%s457 + $0xd8] sm:$0xff]
      %v7872 = vld [vmem:[%s457 + $0xe0] sm:$0xff]
      %v7873 = vld [vmem:[%s457 + $0xe8] sm:$0xff]
      %v7874 = vld [vmem:[%s457 + $0xf0] sm:$0xff]
      %v7875 = vld [vmem:[%s457 + $0xf8] sm:$0xff]
      %v7876 = vld [vmem:[%s457 + $0x100] sm:$0xff]
      %v7877 = vld [vmem:[%s457 + $0x108] sm:$0xff]
      %v7878 = vld [vmem:[%s457 + $0x110] sm:$0xff]
      %v7879 = vld [vmem:[%s457 + $0x118] sm:$0xff]
      %v7880 = vld [vmem:[%s457 + $0x120] sm:$0xff]
      %v7881 = vld [vmem:[%s457 + $0x128] sm:$0xff]
      %v7882 = vld [vmem:[%s457 + $0x130] sm:$0xff]
      %v7883 = vpack.c.bf16 %v7847, %v7847
      %v7884 = vpack.c.bf16 %v7848, %v7848
      %v7885 = vpack.c.bf16 %v7849, %v7849
      %v7886 = vpack.c.bf16 %v7850, %v7850
      %v7887 = vpack.c.bf16 %v7851, %v7851
      %v7888 = vpack.c.bf16 %v7852, %v7852
      %v7889 = vpack.c.bf16 %v7853, %v7853
      %v7890 = vpack.c.bf16 %v7854, %v7854
      %v7891 = vpack.c.bf16 %v7855, %v7855
      %v7892 = vpack.c.bf16 %v7856, %v7856
      %v7893 = vpack.c.bf16 %v7857, %v7857
      %v7894 = vpack.c.bf16 %v7858, %v7858
      %v7895 = vpack.c.bf16 %v7859, %v7859
      %v7896 = vpack.c.bf16 %v7860, %v7860
      %v7897 = vpack.c.bf16 %v7861, %v7861
      %v7898 = vpack.c.bf16 %v7862, %v7862
      %v7899 = vpack.c.bf16 %v7863, %v7863
      %v7900 = vpack.c.bf16 %v7864, %v7864
      %v7901 = vpack.c.bf16 %v7865, %v7865
      %v7902 = vpack.c.bf16 %v7866, %v7866
      %v7903 = vpack.c.bf16 %v7867, %v7867
      %v7904 = vpack.c.bf16 %v7868, %v7868
      %v7905 = vpack.c.bf16 %v7869, %v7869
      %v7906 = vpack.c.bf16 %v7870, %v7870
      %v7907 = vpack.c.bf16 %v7871, %v7871
      %v7908 = vpack.c.bf16 %v7872, %v7872
      %v7909 = vpack.c.bf16 %v7873, %v7873
      %v7910 = vpack.c.bf16 %v7874, %v7874
      %v7911 = vpack.c.bf16 %v7875, %v7875
      %v7912 = vpack.c.bf16 %v7876, %v7876
      %v7913 = vpack.c.bf16 %v7877, %v7877
      %v7914 = vpack.c.bf16 %v7878, %v7878
      %v7915 = vpack.c.bf16 %v7879, %v7879
      %v7916 = vpack.c.bf16 %v7880, %v7880
      %v7917 = vpack.c.bf16 %v7881, %v7881
      %v7918 = vpack.c.bf16 %v7882, %v7882
      %7955 = vrot.lane.b32.xlu0 %v7883, 64
      %v7956 = vpop.permute.xlu0 %7955
      %7957 = vrot.lane.b32.xlu0 %v7884, 64
      %v7958 = vpop.permute.xlu0 %7957
      %7959 = vrot.lane.b32.xlu0 %v7885, 64
      %v7960 = vpop.permute.xlu0 %7959
      %7961 = vrot.lane.b32.xlu0 %v7886, 64
      %v7962 = vpop.permute.xlu0 %7961
      %7963 = vrot.lane.b32.xlu0 %v7887, 64
      %v7964 = vpop.permute.xlu0 %7963
      %7965 = vrot.lane.b32.xlu0 %v7888, 64
      %v7966 = vpop.permute.xlu0 %7965
      %7967 = vrot.lane.b32.xlu0 %v7889, 64
      %v7968 = vpop.permute.xlu0 %7967
      %7969 = vrot.lane.b32.xlu0 %v7890, 64
      %v7970 = vpop.permute.xlu0 %7969
      %7971 = vrot.lane.b32.xlu0 %v7891, 64
      %v7972 = vpop.permute.xlu0 %7971
      %7973 = vrot.lane.b32.xlu0 %v7892, 64
      %v7974 = vpop.permute.xlu0 %7973
      %7975 = vrot.lane.b32.xlu0 %v7893, 64
      %v7976 = vpop.permute.xlu0 %7975
      %7977 = vrot.lane.b32.xlu0 %v7894, 64
      %v7978 = vpop.permute.xlu0 %7977
      %7979 = vrot.lane.b32.xlu0 %v7895, 64
      %v7980 = vpop.permute.xlu0 %7979
      %7981 = vrot.lane.b32.xlu0 %v7896, 64
      %v7982 = vpop.permute.xlu0 %7981
      %7983 = vrot.lane.b32.xlu0 %v7897, 64
      %v7984 = vpop.permute.xlu0 %7983
      %7985 = vrot.lane.b32.xlu0 %v7898, 64
      %v7986 = vpop.permute.xlu0 %7985
      %7987 = vrot.lane.b32.xlu0 %v7899, 64
      %v7988 = vpop.permute.xlu0 %7987
      %7989 = vrot.lane.b32.xlu0 %v7900, 64
      %v7990 = vpop.permute.xlu0 %7989
      %7991 = vrot.lane.b32.xlu0 %v7901, 64
      %v7992 = vpop.permute.xlu0 %7991
      %7993 = vrot.lane.b32.xlu0 %v7902, 64
      %v7994 = vpop.permute.xlu0 %7993
      %7995 = vrot.lane.b32.xlu0 %v7903, 64
      %v7996 = vpop.permute.xlu0 %7995
      %7997 = vrot.lane.b32.xlu0 %v7904, 64
      %v7998 = vpop.permute.xlu0 %7997
      %7999 = vrot.lane.b32.xlu0 %v7905, 64
      %v8000 = vpop.permute.xlu0 %7999
      %8001 = vrot.lane.b32.xlu0 %v7906, 64
      %v8002 = vpop.permute.xlu0 %8001
      %8003 = vrot.lane.b32.xlu0 %v7907, 64
      %v8004 = vpop.permute.xlu0 %8003
      %8005 = vrot.lane.b32.xlu0 %v7908, 64
      %v8006 = vpop.permute.xlu0 %8005
      %8007 = vrot.lane.b32.xlu0 %v7909, 64
      %v8008 = vpop.permute.xlu0 %8007
      %8009 = vrot.lane.b32.xlu0 %v7910, 64
      %v8010 = vpop.permute.xlu0 %8009
      %8011 = vrot.lane.b32.xlu0 %v7911, 64
      %v8012 = vpop.permute.xlu0 %8011
      %8013 = vrot.lane.b32.xlu0 %v7912, 64
      %v8014 = vpop.permute.xlu0 %8013
      %8015 = vrot.lane.b32.xlu0 %v7913, 64
      %v8016 = vpop.permute.xlu0 %8015
      %8017 = vrot.lane.b32.xlu0 %v7914, 64
      %v8018 = vpop.permute.xlu0 %8017
      %8019 = vrot.lane.b32.xlu0 %v7915, 64
      %v8020 = vpop.permute.xlu0 %8019
      %8021 = vrot.lane.b32.xlu0 %v7916, 64
      %v8022 = vpop.permute.xlu0 %8021
      %8023 = vrot.lane.b32.xlu0 %v7917, 64
      %v8024 = vpop.permute.xlu0 %8023
      %8025 = vrot.lane.b32.xlu0 %v7918, 64
      %v8026 = vpop.permute.xlu0 %8025
      %8063 = vst.msk [vmem:[#allocation5 + $0x10] sm:$0xf] %vm2728, %v7956
      %8064 = vst.msk [vmem:[#allocation5 + $0x24] sm:$0xf] %vm2728, %v7958
      %8065 = vst.msk [vmem:[#allocation5 + $0x38] sm:$0xf] %vm2728, %v7960
      %8066 = vst.msk [vmem:[#allocation5 + $0x4c] sm:$0xf] %vm2728, %v7962
      %8067 = vst.msk [vmem:[#allocation5 + $0x60] sm:$0xf] %vm2728, %v7964
      %8068 = vst.msk [vmem:[#allocation5 + $0x74] sm:$0xf] %vm2728, %v7966
      %8069 = vst.msk [vmem:[#allocation5 + $0x88] sm:$0xf] %vm2728, %v7968
      %8070 = vst.msk [vmem:[#allocation5 + $0x9c] sm:$0xf] %vm2728, %v7970
      %8071 = vst.msk [vmem:[#allocation5 + $0xb0] sm:$0xf] %vm2728, %v7972
      %8072 = vst.msk [vmem:[#allocation5 + $0xc4] sm:$0xf] %vm2728, %v7974
      %8073 = vst.msk [vmem:[#allocation5 + $0xd8] sm:$0xf] %vm2728, %v7976
      %8074 = vst.msk [vmem:[#allocation5 + $0xec] sm:$0xf] %vm2728, %v7978
      %8075 = vst.msk [vmem:[#allocation5 + $0x100] sm:$0xf] %vm2728, %v7980
      %8076 = vst.msk [vmem:[#allocation5 + $0x114] sm:$0xf] %vm2728, %v7982
      %8077 = vst.msk [vmem:[#allocation5 + $0x128] sm:$0xf] %vm2728, %v7984
      %8078 = vst.msk [vmem:[#allocation5 + $0x13c] sm:$0xf] %vm2728, %v7986
      %8079 = vst.msk [vmem:[#allocation5 + $0x150] sm:$0xf] %vm2728, %v7988
      %8080 = vst.msk [vmem:[#allocation5 + $0x164] sm:$0xf] %vm2728, %v7990
      %8081 = vst.msk [vmem:[#allocation5 + $0x178] sm:$0xf] %vm2728, %v7992
      %8082 = vst.msk [vmem:[#allocation5 + $0x18c] sm:$0xf] %vm2728, %v7994
      %8083 = vst.msk [vmem:[#allocation5 + $0x1a0] sm:$0xf] %vm2728, %v7996
      %8084 = vst.msk [vmem:[#allocation5 + $0x1b4] sm:$0xf] %vm2728, %v7998
      %8085 = vst.msk [vmem:[#allocation5 + $0x1c8] sm:$0xf] %vm2728, %v8000
      %8086 = vst.msk [vmem:[#allocation5 + $0x1dc] sm:$0xf] %vm2728, %v8002
      %8087 = vst.msk [vmem:[#allocation5 + $0x1f0] sm:$0xf] %vm2728, %v8004
      %8088 = vst.msk [vmem:[#allocation5 + $0x204] sm:$0xf] %vm2728, %v8006
      %8089 = vst.msk [vmem:[#allocation5 + $0x218] sm:$0xf] %vm2728, %v8008
      %8090 = vst.msk [vmem:[#allocation5 + $0x22c] sm:$0xf] %vm2728, %v8010
      %8091 = vst.msk [vmem:[#allocation5 + $0x240] sm:$0xf] %vm2728, %v8012
      %8092 = vst.msk [vmem:[#allocation5 + $0x254] sm:$0xf] %vm2728, %v8014
      %8093 = vst.msk [vmem:[#allocation5 + $0x268] sm:$0xf] %vm2728, %v8016
      %8094 = vst.msk [vmem:[#allocation5 + $0x27c] sm:$0xf] %vm2728, %v8018
      %8095 = vst.msk [vmem:[#allocation5 + $0x290] sm:$0xf] %vm2728, %v8020
      %8096 = vst.msk [vmem:[#allocation5 + $0x2a4] sm:$0xf] %vm2728, %v8022
      %8097 = vst.msk [vmem:[#allocation5 + $0x2b8] sm:$0xf] %vm2728, %v8024
      %8098 = vst.msk [vmem:[#allocation5 + $0x2cc] sm:$0xf] %vm2728, %v8026
      %v8099 = vld [vmem:[#allocation5] sm:$0xff]
      %v8100 = vld [vmem:[#allocation5 + $0x8] sm:$0xff]
      %v8101 = vld [vmem:[#allocation5 + $0x10] sm:$0xf]
      %v8102 = vld [vmem:[#allocation5 + $0x14] sm:$0xff]
      %v8103 = vld [vmem:[#allocation5 + $0x1c] sm:$0xff]
      %v8104 = vld [vmem:[#allocation5 + $0x24] sm:$0xf]
      %v8105 = vld [vmem:[#allocation5 + $0x28] sm:$0xff]
      %v8106 = vld [vmem:[#allocation5 + $0x30] sm:$0xff]
      %v8107 = vld [vmem:[#allocation5 + $0x38] sm:$0xf]
      %v8108 = vld [vmem:[#allocation5 + $0x3c] sm:$0xff]
      %v8109 = vld [vmem:[#allocation5 + $0x44] sm:$0xff]
      %v8110 = vld [vmem:[#allocation5 + $0x4c] sm:$0xf]
      %v8111 = vld [vmem:[#allocation5 + $0x50] sm:$0xff]
      %v8112 = vld [vmem:[#allocation5 + $0x58] sm:$0xff]
      %v8113 = vld [vmem:[#allocation5 + $0x60] sm:$0xf]
      %v8114 = vld [vmem:[#allocation5 + $0x64] sm:$0xff]
      %v8115 = vld [vmem:[#allocation5 + $0x6c] sm:$0xff]
      %v8116 = vld [vmem:[#allocation5 + $0x74] sm:$0xf]
      %v8117 = vld [vmem:[#allocation5 + $0x78] sm:$0xff]
      %v8118 = vld [vmem:[#allocation5 + $0x80] sm:$0xff]
      %v8119 = vld [vmem:[#allocation5 + $0x88] sm:$0xf]
      %v8120 = vld [vmem:[#allocation5 + $0x8c] sm:$0xff]
      %v8121 = vld [vmem:[#allocation5 + $0x94] sm:$0xff]
      %v8122 = vld [vmem:[#allocation5 + $0x9c] sm:$0xf]
      %v8123 = vld [vmem:[#allocation5 + $0xa0] sm:$0xff]
      %v8124 = vld [vmem:[#allocation5 + $0xa8] sm:$0xff]
      %v8125 = vld [vmem:[#allocation5 + $0xb0] sm:$0xf]
      %v8126 = vld [vmem:[#allocation5 + $0xb4] sm:$0xff]
      %v8127 = vld [vmem:[#allocation5 + $0xbc] sm:$0xff]
      %v8128 = vld [vmem:[#allocation5 + $0xc4] sm:$0xf]
      %v8129 = vld [vmem:[#allocation5 + $0xc8] sm:$0xff]
      %v8130 = vld [vmem:[#allocation5 + $0xd0] sm:$0xff]
      %v8131 = vld [vmem:[#allocation5 + $0xd8] sm:$0xf]
      %v8132 = vld [vmem:[#allocation5 + $0xdc] sm:$0xff]
      %v8133 = vld [vmem:[#allocation5 + $0xe4] sm:$0xff]
      %v8134 = vld [vmem:[#allocation5 + $0xec] sm:$0xf]
      %v8135 = vld [vmem:[#allocation5 + $0xf0] sm:$0xff]
      %v8136 = vld [vmem:[#allocation5 + $0xf8] sm:$0xff]
      %v8137 = vld [vmem:[#allocation5 + $0x100] sm:$0xf]
      %v8138 = vld [vmem:[#allocation5 + $0x104] sm:$0xff]
      %v8139 = vld [vmem:[#allocation5 + $0x10c] sm:$0xff]
      %v8140 = vld [vmem:[#allocation5 + $0x114] sm:$0xf]
      %v8141 = vld [vmem:[#allocation5 + $0x118] sm:$0xff]
      %v8142 = vld [vmem:[#allocation5 + $0x120] sm:$0xff]
      %v8143 = vld [vmem:[#allocation5 + $0x128] sm:$0xf]
      %v8144 = vld [vmem:[#allocation5 + $0x12c] sm:$0xff]
      %v8145 = vld [vmem:[#allocation5 + $0x134] sm:$0xff]
      %v8146 = vld [vmem:[#allocation5 + $0x13c] sm:$0xf]
      %v8147 = vld [vmem:[#allocation5 + $0x140] sm:$0xff]
      %v8148 = vld [vmem:[#allocation5 + $0x148] sm:$0xff]
      %v8149 = vld [vmem:[#allocation5 + $0x150] sm:$0xf]
      %v8150 = vld [vmem:[#allocation5 + $0x154] sm:$0xff]
      %v8151 = vld [vmem:[#allocation5 + $0x15c] sm:$0xff]
      %v8152 = vld [vmem:[#allocation5 + $0x164] sm:$0xf]
      %v8153 = vld [vmem:[#allocation5 + $0x168] sm:$0xff]
      %v8154 = vld [vmem:[#allocation5 + $0x170] sm:$0xff]
      %v8155 = vld [vmem:[#allocation5 + $0x178] sm:$0xf]
      %v8156 = vld [vmem:[#allocation5 + $0x17c] sm:$0xff]
      %v8157 = vld [vmem:[#allocation5 + $0x184] sm:$0xff]
      %v8158 = vld [vmem:[#allocation5 + $0x18c] sm:$0xf]
      %v8159 = vld [vmem:[#allocation5 + $0x190] sm:$0xff]
      %v8160 = vld [vmem:[#allocation5 + $0x198] sm:$0xff]
      %v8161 = vld [vmem:[#allocation5 + $0x1a0] sm:$0xf]
      %v8162 = vld [vmem:[#allocation5 + $0x1a4] sm:$0xff]
      %v8163 = vld [vmem:[#allocation5 + $0x1ac] sm:$0xff]
      %v8164 = vld [vmem:[#allocation5 + $0x1b4] sm:$0xf]
      %v8165 = vld [vmem:[#allocation5 + $0x1b8] sm:$0xff]
      %v8166 = vld [vmem:[#allocation5 + $0x1c0] sm:$0xff]
      %v8167 = vld [vmem:[#allocation5 + $0x1c8] sm:$0xf]
      %v8168 = vld [vmem:[#allocation5 + $0x1cc] sm:$0xff]
      %v8169 = vld [vmem:[#allocation5 + $0x1d4] sm:$0xff]
      %v8170 = vld [vmem:[#allocation5 + $0x1dc] sm:$0xf]
      %v8171 = vld [vmem:[#allocation5 + $0x1e0] sm:$0xff]
      %v8172 = vld [vmem:[#allocation5 + $0x1e8] sm:$0xff]
      %v8173 = vld [vmem:[#allocation5 + $0x1f0] sm:$0xf]
      %v8174 = vld [vmem:[#allocation5 + $0x1f4] sm:$0xff]
      %v8175 = vld [vmem:[#allocation5 + $0x1fc] sm:$0xff]
      %v8176 = vld [vmem:[#allocation5 + $0x204] sm:$0xf]
      %v8177 = vld [vmem:[#allocation5 + $0x208] sm:$0xff]
      %v8178 = vld [vmem:[#allocation5 + $0x210] sm:$0xff]
      %v8179 = vld [vmem:[#allocation5 + $0x218] sm:$0xf]
      %v8180 = vld [vmem:[#allocation5 + $0x21c] sm:$0xff]
      %v8181 = vld [vmem:[#allocation5 + $0x224] sm:$0xff]
      %v8182 = vld [vmem:[#allocation5 + $0x22c] sm:$0xf]
      %v8183 = vld [vmem:[#allocation5 + $0x230] sm:$0xff]
      %v8184 = vld [vmem:[#allocation5 + $0x238] sm:$0xff]
      %v8185 = vld [vmem:[#allocation5 + $0x240] sm:$0xf]
      %v8186 = vld [vmem:[#allocation5 + $0x244] sm:$0xff]
      %v8187 = vld [vmem:[#allocation5 + $0x24c] sm:$0xff]
      %v8188 = vld [vmem:[#allocation5 + $0x254] sm:$0xf]
      %v8189 = vld [vmem:[#allocation5 + $0x258] sm:$0xff]
      %v8190 = vld [vmem:[#allocation5 + $0x260] sm:$0xff]
      %v8191 = vld [vmem:[#allocation5 + $0x268] sm:$0xf]
      %v8192 = vld [vmem:[#allocation5 + $0x26c] sm:$0xff]
      %v8193 = vld [vmem:[#allocation5 + $0x274] sm:$0xff]
      %v8194 = vld [vmem:[#allocation5 + $0x27c] sm:$0xf]
      %v8195 = vld [vmem:[#allocation5 + $0x280] sm:$0xff]
      %v8196 = vld [vmem:[#allocation5 + $0x288] sm:$0xff]
      %v8197 = vld [vmem:[#allocation5 + $0x290] sm:$0xf]
      %v8198 = vld [vmem:[#allocation5 + $0x294] sm:$0xff]
      %v8199 = vld [vmem:[#allocation5 + $0x29c] sm:$0xff]
      %v8200 = vld [vmem:[#allocation5 + $0x2a4] sm:$0xf]
      %v8201 = vld [vmem:[#allocation5 + $0x2a8] sm:$0xff]
      %v8202 = vld [vmem:[#allocation5 + $0x2b0] sm:$0xff]
      %v8203 = vld [vmem:[#allocation5 + $0x2b8] sm:$0xf]
      %v8204 = vld [vmem:[#allocation5 + $0x2bc] sm:$0xff]
      %v8205 = vld [vmem:[#allocation5 + $0x2c4] sm:$0xff]
      %v8206 = vld [vmem:[#allocation5 + $0x2cc] sm:$0xf]
      %v8207 = vld [vmem:[%s11] sm:$0xf]
      %v8208 = vld [vmem:[%s11 + $0x4] sm:$0xf]
      %v8209 = vld [vmem:[%s11 + $0x8] sm:$0xf]
      %v8210 = vld [vmem:[%s11 + $0xc] sm:$0xf]
      %v8211 = vld [vmem:[%s11 + $0x10] sm:$0xf]
      %v8212 = vld [vmem:[%s11 + $0x14] sm:$0xf]
      %v8213 = vld [vmem:[%s11 + $0x18] sm:$0xf]
      %v8214 = vld [vmem:[%s11 + $0x1c] sm:$0xf]
      %v8215 = vld [vmem:[%s11 + $0x20] sm:$0xf]
      %v8216 = vld [vmem:[%s11 + $0x24] sm:$0xf]
      %v8217 = vld [vmem:[%s11 + $0x28] sm:$0xf]
      %v8218 = vld [vmem:[%s11 + $0x2c] sm:$0xf]
      %v8219 = vld [vmem:[%s11 + $0x30] sm:$0xf]
      %v8220 = vld [vmem:[%s11 + $0x34] sm:$0xf]
      %v8221 = vld [vmem:[%s11 + $0x38] sm:$0xf]
      %v8222 = vld [vmem:[%s11 + $0x3c] sm:$0xf]
      %v8223 = vld [vmem:[%s11 + $0x40] sm:$0xf]
      %v8224 = vld [vmem:[%s11 + $0x44] sm:$0xf]
      %v8225 = vld [vmem:[%s11 + $0x48] sm:$0xf]
      %v8226 = vld [vmem:[%s11 + $0x4c] sm:$0xf]
      %v8227 = vld [vmem:[%s11 + $0x50] sm:$0xf]
      %v8228 = vld [vmem:[%s11 + $0x54] sm:$0xf]
      %v8229 = vld [vmem:[%s11 + $0x58] sm:$0xf]
      %v8230 = vld [vmem:[%s11 + $0x5c] sm:$0xf]
      %v8231 = vld [vmem:[%s11 + $0x60] sm:$0xf]
      %v8232 = vld [vmem:[%s11 + $0x64] sm:$0xf]
      %v8233 = vld [vmem:[%s11 + $0x68] sm:$0xf]
      %v8234 = vld [vmem:[%s11 + $0x6c] sm:$0xf]
      %v8235 = vld [vmem:[%s11 + $0x70] sm:$0xf]
      %v8236 = vld [vmem:[%s11 + $0x74] sm:$0xf]
      %v8237 = vld [vmem:[%s11 + $0x78] sm:$0xf]
      %v8238 = vld [vmem:[%s11 + $0x7c] sm:$0xf]
      %v8239 = vld [vmem:[%s11 + $0x80] sm:$0xf]
      %v8240 = vld [vmem:[%s11 + $0x84] sm:$0xf]
      %v8241 = vld [vmem:[%s11 + $0x88] sm:$0xf]
      %v8242 = vld [vmem:[%s11 + $0x8c] sm:$0xf]
      %v8243 = vld [vmem:[%s11 + $0x90] sm:$0xf]
      %v8244 = vld [vmem:[%s11 + $0x94] sm:$0xf]
      %v8245 = vld [vmem:[%s11 + $0x98] sm:$0xf]
      %v8246 = vld [vmem:[%s11 + $0x9c] sm:$0xf]
      %v8247 = vld [vmem:[%s11 + $0xa0] sm:$0xf]
      %v8248 = vld [vmem:[%s11 + $0xa4] sm:$0xf]
      %v8249 = vld [vmem:[%s11 + $0xa8] sm:$0xf]
      %v8250 = vld [vmem:[%s11 + $0xac] sm:$0xf]
      %v8251 = vld [vmem:[%s11 + $0xb0] sm:$0xf]
      %v8252 = vld [vmem:[%s11 + $0xb4] sm:$0xf]
      %v8253 = vld [vmem:[%s11 + $0xb8] sm:$0xf]
      %v8254 = vld [vmem:[%s11 + $0xbc] sm:$0xf]
      %v8255 = vld [vmem:[%s11 + $0xc0] sm:$0xf]
      %v8256 = vld [vmem:[%s11 + $0xc4] sm:$0xf]
      %v8257 = vld [vmem:[%s11 + $0xc8] sm:$0xf]
      %v8258 = vld [vmem:[%s11 + $0xcc] sm:$0xf]
      %v8259 = vld [vmem:[%s11 + $0xd0] sm:$0xf]
      %v8260 = vld [vmem:[%s11 + $0xd4] sm:$0xf]
      %v8261 = vld [vmem:[%s11 + $0xd8] sm:$0xf]
      %v8262 = vld [vmem:[%s11 + $0xdc] sm:$0xf]
      %v8263 = vld [vmem:[%s11 + $0xe0] sm:$0xf]
      %v8264 = vld [vmem:[%s11 + $0xe4] sm:$0xf]
      %v8265 = vld [vmem:[%s11 + $0xe8] sm:$0xf]
      %v8266 = vld [vmem:[%s11 + $0xec] sm:$0xf]
      %v8267 = vld [vmem:[%s11 + $0xf0] sm:$0xf]
      %v8268 = vld [vmem:[%s11 + $0xf4] sm:$0xf]
      %v8269 = vld [vmem:[%s11 + $0xf8] sm:$0xf]
      %v8270 = vld [vmem:[%s11 + $0xfc] sm:$0xf]
      %v8271 = vld [vmem:[%s11 + $0x100] sm:$0xf]
      %v8272 = vld [vmem:[%s11 + $0x104] sm:$0xf]
      %v8273 = vld [vmem:[%s11 + $0x108] sm:$0xf]
      %v8274 = vld [vmem:[%s11 + $0x10c] sm:$0xf]
      %v8275 = vld [vmem:[%s11 + $0x110] sm:$0xf]
      %v8276 = vld [vmem:[%s11 + $0x114] sm:$0xf]
      %v8277 = vld [vmem:[%s11 + $0x118] sm:$0xf]
      %v8278 = vld [vmem:[%s11 + $0x11c] sm:$0xf]
      %v8279 = vld [vmem:[%s11 + $0x120] sm:$0xf]
      %v8280 = vld [vmem:[%s11 + $0x124] sm:$0xf]
      %v8281 = vld [vmem:[%s11 + $0x128] sm:$0xf]
      %v8282 = vld [vmem:[%s11 + $0x12c] sm:$0xf]
      %v8283 = vld [vmem:[%s12] sm:$0x1]
      %v8285 = vperm.slane %v8283, 0
      %v8395 = vunpack.c.l.b16 %v8099
      %v8396 = vunpack.c.h.b16 %v8099
      %v8397 = vunpack.c.l.b16 %v8100
      %v8398 = vunpack.c.h.b16 %v8100
      %v8399 = vunpack.c.l.b16 %v8101
      %v8400 = vunpack.c.l.b16 %v8102
      %v8401 = vunpack.c.h.b16 %v8102
      %v8402 = vunpack.c.l.b16 %v8103
      %v8403 = vunpack.c.h.b16 %v8103
      %v8404 = vunpack.c.l.b16 %v8104
      %v8405 = vunpack.c.l.b16 %v8105
      %v8406 = vunpack.c.h.b16 %v8105
      %v8407 = vunpack.c.l.b16 %v8106
      %v8408 = vunpack.c.h.b16 %v8106
      %v8409 = vunpack.c.l.b16 %v8107
      %v8410 = vunpack.c.l.b16 %v8108
      %v8411 = vunpack.c.h.b16 %v8108
      %v8412 = vunpack.c.l.b16 %v8109
      %v8413 = vunpack.c.h.b16 %v8109
      %v8414 = vunpack.c.l.b16 %v8110
      %v8415 = vunpack.c.l.b16 %v8111
      %v8416 = vunpack.c.h.b16 %v8111
      %v8417 = vunpack.c.l.b16 %v8112
      %v8418 = vunpack.c.h.b16 %v8112
      %v8419 = vunpack.c.l.b16 %v8113
      %v8420 = vunpack.c.l.b16 %v8114
      %v8421 = vunpack.c.h.b16 %v8114
      %v8422 = vunpack.c.l.b16 %v8115
      %v8423 = vunpack.c.h.b16 %v8115
      %v8424 = vunpack.c.l.b16 %v8116
      %v8425 = vunpack.c.l.b16 %v8117
      %v8426 = vunpack.c.h.b16 %v8117
      %v8427 = vunpack.c.l.b16 %v8118
      %v8428 = vunpack.c.h.b16 %v8118
      %v8429 = vunpack.c.l.b16 %v8119
      %v8430 = vunpack.c.l.b16 %v8120
      %v8431 = vunpack.c.h.b16 %v8120
      %v8432 = vunpack.c.l.b16 %v8121
      %v8433 = vunpack.c.h.b16 %v8121
      %v8434 = vunpack.c.l.b16 %v8122
      %v8435 = vunpack.c.l.b16 %v8123
      %v8436 = vunpack.c.h.b16 %v8123
      %v8437 = vunpack.c.l.b16 %v8124
      %v8438 = vunpack.c.h.b16 %v8124
      %v8439 = vunpack.c.l.b16 %v8125
      %v8440 = vunpack.c.l.b16 %v8126
      %v8441 = vunpack.c.h.b16 %v8126
      %v8442 = vunpack.c.l.b16 %v8127
      %v8443 = vunpack.c.h.b16 %v8127
      %v8444 = vunpack.c.l.b16 %v8128
      %v8445 = vunpack.c.l.b16 %v8129
      %v8446 = vunpack.c.h.b16 %v8129
      %v8447 = vunpack.c.l.b16 %v8130
      %v8448 = vunpack.c.h.b16 %v8130
      %v8449 = vunpack.c.l.b16 %v8131
      %v8450 = vunpack.c.l.b16 %v8132
      %v8451 = vunpack.c.h.b16 %v8132
      %v8452 = vunpack.c.l.b16 %v8133
      %v8453 = vunpack.c.h.b16 %v8133
      %v8454 = vunpack.c.l.b16 %v8134
      %v8455 = vunpack.c.l.b16 %v8135
      %v8456 = vunpack.c.h.b16 %v8135
      %v8457 = vunpack.c.l.b16 %v8136
      %v8458 = vunpack.c.h.b16 %v8136
      %v8459 = vunpack.c.l.b16 %v8137
      %v8460 = vunpack.c.l.b16 %v8138
      %v8461 = vunpack.c.h.b16 %v8138
      %v8462 = vunpack.c.l.b16 %v8139
      %v8463 = vunpack.c.h.b16 %v8139
      %v8464 = vunpack.c.l.b16 %v8140
      %v8465 = vunpack.c.l.b16 %v8141
      %v8466 = vunpack.c.h.b16 %v8141
      %v8467 = vunpack.c.l.b16 %v8142
      %v8468 = vunpack.c.h.b16 %v8142
      %v8469 = vunpack.c.l.b16 %v8143
      %v8470 = vunpack.c.l.b16 %v8144
      %v8471 = vunpack.c.h.b16 %v8144
      %v8472 = vunpack.c.l.b16 %v8145
      %v8473 = vunpack.c.h.b16 %v8145
      %v8474 = vunpack.c.l.b16 %v8146
      %v8475 = vunpack.c.l.b16 %v8147
      %v8476 = vunpack.c.h.b16 %v8147
      %v8477 = vunpack.c.l.b16 %v8148
      %v8478 = vunpack.c.h.b16 %v8148
      %v8479 = vunpack.c.l.b16 %v8149
      %v8480 = vunpack.c.l.b16 %v8150
      %v8481 = vunpack.c.h.b16 %v8150
      %v8482 = vunpack.c.l.b16 %v8151
      %v8483 = vunpack.c.h.b16 %v8151
      %v8484 = vunpack.c.l.b16 %v8152
      %v8485 = vunpack.c.l.b16 %v8153
      %v8486 = vunpack.c.h.b16 %v8153
      %v8487 = vunpack.c.l.b16 %v8154
      %v8488 = vunpack.c.h.b16 %v8154
      %v8489 = vunpack.c.l.b16 %v8155
      %v8490 = vunpack.c.l.b16 %v8156
      %v8491 = vunpack.c.h.b16 %v8156
      %v8492 = vunpack.c.l.b16 %v8157
      %v8493 = vunpack.c.h.b16 %v8157
      %v8494 = vunpack.c.l.b16 %v8158
      %v8495 = vunpack.c.l.b16 %v8159
      %v8496 = vunpack.c.h.b16 %v8159
      %v8497 = vunpack.c.l.b16 %v8160
      %v8498 = vunpack.c.h.b16 %v8160
      %v8499 = vunpack.c.l.b16 %v8161
      %v8500 = vunpack.c.l.b16 %v8162
      %v8501 = vunpack.c.h.b16 %v8162
      %v8502 = vunpack.c.l.b16 %v8163
      %v8503 = vunpack.c.h.b16 %v8163
      %v8504 = vunpack.c.l.b16 %v8164
      %v8505 = vunpack.c.l.b16 %v8165
      %v8506 = vunpack.c.h.b16 %v8165
      %v8507 = vunpack.c.l.b16 %v8166
      %v8508 = vunpack.c.h.b16 %v8166
      %v8509 = vunpack.c.l.b16 %v8167
      %v8510 = vunpack.c.l.b16 %v8168
      %v8511 = vunpack.c.h.b16 %v8168
      %v8512 = vunpack.c.l.b16 %v8169
      %v8513 = vunpack.c.h.b16 %v8169
      %v8514 = vunpack.c.l.b16 %v8170
      %v8515 = vunpack.c.l.b16 %v8171
      %v8516 = vunpack.c.h.b16 %v8171
      %v8517 = vunpack.c.l.b16 %v8172
      %v8518 = vunpack.c.h.b16 %v8172
      %v8519 = vunpack.c.l.b16 %v8173
      %v8520 = vunpack.c.l.b16 %v8174
      %v8521 = vunpack.c.h.b16 %v8174
      %v8522 = vunpack.c.l.b16 %v8175
      %v8523 = vunpack.c.h.b16 %v8175
      %v8524 = vunpack.c.l.b16 %v8176
      %v8525 = vunpack.c.l.b16 %v8177
      %v8526 = vunpack.c.h.b16 %v8177
      %v8527 = vunpack.c.l.b16 %v8178
      %v8528 = vunpack.c.h.b16 %v8178
      %v8529 = vunpack.c.l.b16 %v8179
      %v8530 = vunpack.c.l.b16 %v8180
      %v8531 = vunpack.c.h.b16 %v8180
      %v8532 = vunpack.c.l.b16 %v8181
      %v8533 = vunpack.c.h.b16 %v8181
      %v8534 = vunpack.c.l.b16 %v8182
      %v8535 = vunpack.c.l.b16 %v8183
      %v8536 = vunpack.c.h.b16 %v8183
      %v8537 = vunpack.c.l.b16 %v8184
      %v8538 = vunpack.c.h.b16 %v8184
      %v8539 = vunpack.c.l.b16 %v8185
      %v8540 = vunpack.c.l.b16 %v8186
      %v8541 = vunpack.c.h.b16 %v8186
      %v8542 = vunpack.c.l.b16 %v8187
      %v8543 = vunpack.c.h.b16 %v8187
      %v8544 = vunpack.c.l.b16 %v8188
      %v8545 = vunpack.c.l.b16 %v8189
      %v8546 = vunpack.c.h.b16 %v8189
      %v8547 = vunpack.c.l.b16 %v8190
      %v8548 = vunpack.c.h.b16 %v8190
      %v8549 = vunpack.c.l.b16 %v8191
      %v8550 = vunpack.c.l.b16 %v8192
      %v8551 = vunpack.c.h.b16 %v8192
      %v8552 = vunpack.c.l.b16 %v8193
      %v8553 = vunpack.c.h.b16 %v8193
      %v8554 = vunpack.c.l.b16 %v8194
      %v8555 = vunpack.c.l.b16 %v8195
      %v8556 = vunpack.c.h.b16 %v8195
      %v8557 = vunpack.c.l.b16 %v8196
      %v8558 = vunpack.c.h.b16 %v8196
      %v8559 = vunpack.c.l.b16 %v8197
      %v8560 = vunpack.c.l.b16 %v8198
      %v8561 = vunpack.c.h.b16 %v8198
      %v8562 = vunpack.c.l.b16 %v8199
      %v8563 = vunpack.c.h.b16 %v8199
      %v8564 = vunpack.c.l.b16 %v8200
      %v8565 = vunpack.c.l.b16 %v8201
      %v8566 = vunpack.c.h.b16 %v8201
      %v8567 = vunpack.c.l.b16 %v8202
      %v8568 = vunpack.c.h.b16 %v8202
      %v8569 = vunpack.c.l.b16 %v8203
      %v8570 = vunpack.c.l.b16 %v8204
      %v8571 = vunpack.c.h.b16 %v8204
      %v8572 = vunpack.c.l.b16 %v8205
      %v8573 = vunpack.c.h.b16 %v8205
      %v8574 = vunpack.c.l.b16 %v8206
      %v8575 = vpack.c.b16 %v8400, %v8395
      %v8576 = vpack.c.b16 %v8401, %v8396
      %v8577 = vpack.c.b16 %v8402, %v8397
      %v8578 = vpack.c.b16 %v8403, %v8398
      %v8579 = vpack.c.b16 %v8404, %v8399
      %v8580 = vpack.c.b16 %v8410, %v8405
      %v8581 = vpack.c.b16 %v8411, %v8406
      %v8582 = vpack.c.b16 %v8412, %v8407
      %v8583 = vpack.c.b16 %v8413, %v8408
      %v8584 = vpack.c.b16 %v8414, %v8409
      %v8585 = vpack.c.b16 %v8420, %v8415
      %v8586 = vpack.c.b16 %v8421, %v8416
      %v8587 = vpack.c.b16 %v8422, %v8417
      %v8588 = vpack.c.b16 %v8423, %v8418
      %v8589 = vpack.c.b16 %v8424, %v8419
      %v8590 = vpack.c.b16 %v8430, %v8425
      %v8591 = vpack.c.b16 %v8431, %v8426
      %v8592 = vpack.c.b16 %v8432, %v8427
      %v8593 = vpack.c.b16 %v8433, %v8428
      %v8594 = vpack.c.b16 %v8434, %v8429
      %v8595 = vpack.c.b16 %v8440, %v8435
      %v8596 = vpack.c.b16 %v8441, %v8436
      %v8597 = vpack.c.b16 %v8442, %v8437
      %v8598 = vpack.c.b16 %v8443, %v8438
      %v8599 = vpack.c.b16 %v8444, %v8439
      %v8600 = vpack.c.b16 %v8450, %v8445
      %v8601 = vpack.c.b16 %v8451, %v8446
      %v8602 = vpack.c.b16 %v8452, %v8447
      %v8603 = vpack.c.b16 %v8453, %v8448
      %v8604 = vpack.c.b16 %v8454, %v8449
      %v8605 = vpack.c.b16 %v8460, %v8455
      %v8606 = vpack.c.b16 %v8461, %v8456
      %v8607 = vpack.c.b16 %v8462, %v8457
      %v8608 = vpack.c.b16 %v8463, %v8458
      %v8609 = vpack.c.b16 %v8464, %v8459
      %v8610 = vpack.c.b16 %v8470, %v8465
      %v8611 = vpack.c.b16 %v8471, %v8466
      %v8612 = vpack.c.b16 %v8472, %v8467
      %v8613 = vpack.c.b16 %v8473, %v8468
      %v8614 = vpack.c.b16 %v8474, %v8469
      %v8615 = vpack.c.b16 %v8480, %v8475
      %v8616 = vpack.c.b16 %v8481, %v8476
      %v8617 = vpack.c.b16 %v8482, %v8477
      %v8618 = vpack.c.b16 %v8483, %v8478
      %v8619 = vpack.c.b16 %v8484, %v8479
      %v8620 = vpack.c.b16 %v8490, %v8485
      %v8621 = vpack.c.b16 %v8491, %v8486
      %v8622 = vpack.c.b16 %v8492, %v8487
      %v8623 = vpack.c.b16 %v8493, %v8488
      %v8624 = vpack.c.b16 %v8494, %v8489
      %v8625 = vpack.c.b16 %v8500, %v8495
      %v8626 = vpack.c.b16 %v8501, %v8496
      %v8627 = vpack.c.b16 %v8502, %v8497
      %v8628 = vpack.c.b16 %v8503, %v8498
      %v8629 = vpack.c.b16 %v8504, %v8499
      %v8630 = vpack.c.b16 %v8510, %v8505
      %v8631 = vpack.c.b16 %v8511, %v8506
      %v8632 = vpack.c.b16 %v8512, %v8507
      %v8633 = vpack.c.b16 %v8513, %v8508
      %v8634 = vpack.c.b16 %v8514, %v8509
      %v8635 = vpack.c.b16 %v8520, %v8515
      %v8636 = vpack.c.b16 %v8521, %v8516
      %v8637 = vpack.c.b16 %v8522, %v8517
      %v8638 = vpack.c.b16 %v8523, %v8518
      %v8639 = vpack.c.b16 %v8524, %v8519
      %v8640 = vpack.c.b16 %v8530, %v8525
      %v8641 = vpack.c.b16 %v8531, %v8526
      %v8642 = vpack.c.b16 %v8532, %v8527
      %v8643 = vpack.c.b16 %v8533, %v8528
      %v8644 = vpack.c.b16 %v8534, %v8529
      %v8645 = vpack.c.b16 %v8540, %v8535
      %v8646 = vpack.c.b16 %v8541, %v8536
      %v8647 = vpack.c.b16 %v8542, %v8537
      %v8648 = vpack.c.b16 %v8543, %v8538
      %v8649 = vpack.c.b16 %v8544, %v8539
      %v8650 = vpack.c.b16 %v8550, %v8545
      %v8651 = vpack.c.b16 %v8551, %v8546
      %v8652 = vpack.c.b16 %v8552, %v8547
      %v8653 = vpack.c.b16 %v8553, %v8548
      %v8654 = vpack.c.b16 %v8554, %v8549
      %v8655 = vpack.c.b16 %v8560, %v8555
      %v8656 = vpack.c.b16 %v8561, %v8556
      %v8657 = vpack.c.b16 %v8562, %v8557
      %v8658 = vpack.c.b16 %v8563, %v8558
      %v8659 = vpack.c.b16 %v8564, %v8559
      %v8660 = vpack.c.b16 %v8570, %v8565
      %v8661 = vpack.c.b16 %v8571, %v8566
      %v8662 = vpack.c.b16 %v8572, %v8567
      %v8663 = vpack.c.b16 %v8573, %v8568
      %v8664 = vpack.c.b16 %v8574, %v8569
      %v8813 = vunpack.c.l.b16 %v8207
      %v8814 = vunpack.c.l.b16 %v8208
      %v8815 = vunpack.c.l.b16 %v8209
      %v8816 = vunpack.c.l.b16 %v8210
      %v8817 = vunpack.c.l.b16 %v8211
      %v8818 = vunpack.c.l.b16 %v8212
      %v8819 = vunpack.c.l.b16 %v8213
      %v8820 = vunpack.c.l.b16 %v8214
      %v8821 = vunpack.c.l.b16 %v8215
      %v8822 = vunpack.c.l.b16 %v8216
      %v8823 = vunpack.c.l.b16 %v8217
      %v8824 = vunpack.c.l.b16 %v8218
      %v8825 = vunpack.c.l.b16 %v8219
      %v8826 = vunpack.c.l.b16 %v8220
      %v8827 = vunpack.c.l.b16 %v8221
      %v8828 = vunpack.c.l.b16 %v8222
      %v8829 = vunpack.c.l.b16 %v8223
      %v8830 = vunpack.c.l.b16 %v8224
      %v8831 = vunpack.c.l.b16 %v8225
      %v8832 = vunpack.c.l.b16 %v8226
      %v8833 = vunpack.c.l.b16 %v8227
      %v8834 = vunpack.c.l.b16 %v8228
      %v8835 = vunpack.c.l.b16 %v8229
      %v8836 = vunpack.c.l.b16 %v8230
      %v8837 = vunpack.c.l.b16 %v8231
      %v8838 = vunpack.c.l.b16 %v8232
      %v8839 = vunpack.c.l.b16 %v8233
      %v8840 = vunpack.c.l.b16 %v8234
      %v8841 = vunpack.c.l.b16 %v8235
      %v8842 = vunpack.c.l.b16 %v8236
      %v8843 = vunpack.c.l.b16 %v8237
      %v8844 = vunpack.c.l.b16 %v8238
      %v8845 = vunpack.c.l.b16 %v8239
      %v8846 = vunpack.c.l.b16 %v8240
      %v8847 = vunpack.c.l.b16 %v8241
      %v8848 = vunpack.c.l.b16 %v8242
      %v8849 = vunpack.c.l.b16 %v8243
      %v8850 = vunpack.c.l.b16 %v8244
      %v8851 = vunpack.c.l.b16 %v8245
      %v8852 = vunpack.c.l.b16 %v8246
      %v8853 = vunpack.c.l.b16 %v8247
      %v8854 = vunpack.c.l.b16 %v8248
      %v8855 = vunpack.c.l.b16 %v8249
      %v8856 = vunpack.c.l.b16 %v8250
      %v8857 = vunpack.c.l.b16 %v8251
      %v8858 = vunpack.c.l.b16 %v8252
      %v8859 = vunpack.c.l.b16 %v8253
      %v8860 = vunpack.c.l.b16 %v8254
      %v8861 = vunpack.c.l.b16 %v8255
      %v8862 = vunpack.c.l.b16 %v8256
      %v8863 = vunpack.c.l.b16 %v8257
      %v8864 = vunpack.c.l.b16 %v8258
      %v8865 = vunpack.c.l.b16 %v8259
      %v8866 = vunpack.c.l.b16 %v8260
      %v8867 = vunpack.c.l.b16 %v8261
      %v8868 = vunpack.c.l.b16 %v8262
      %v8869 = vunpack.c.l.b16 %v8263
      %v8870 = vunpack.c.l.b16 %v8264
      %v8871 = vunpack.c.l.b16 %v8265
      %v8872 = vunpack.c.l.b16 %v8266
      %v8873 = vunpack.c.l.b16 %v8267
      %v8874 = vunpack.c.l.b16 %v8268
      %v8875 = vunpack.c.l.b16 %v8269
      %v8876 = vunpack.c.l.b16 %v8270
      %v8877 = vunpack.c.l.b16 %v8271
      %v8878 = vunpack.c.l.b16 %v8272
      %v8879 = vunpack.c.l.b16 %v8273
      %v8880 = vunpack.c.l.b16 %v8274
      %v8881 = vunpack.c.l.b16 %v8275
      %v8882 = vunpack.c.l.b16 %v8276
      %v8883 = vunpack.c.l.b16 %v8277
      %v8884 = vunpack.c.l.b16 %v8278
      %v8885 = vunpack.c.l.b16 %v8279
      %v8886 = vunpack.c.l.b16 %v8280
      %v8887 = vunpack.c.l.b16 %v8281
      %v8888 = vunpack.c.l.b16 %v8282
      %v8889 = vpack.c.b16 %v8814, %v8813
      %v8890 = vpack.c.b16 %v8816, %v8815
      %v8891 = vpack.c.b16 %v8818, %v8817
      %v8892 = vpack.c.b16 %v8820, %v8819
      %v8893 = vpack.c.b16 %v8822, %v8821
      %v8894 = vpack.c.b16 %v8824, %v8823
      %v8895 = vpack.c.b16 %v8826, %v8825
      %v8896 = vpack.c.b16 %v8828, %v8827
      %v8897 = vpack.c.b16 %v8830, %v8829
      %v8898 = vpack.c.b16 %v8832, %v8831
      %v8899 = vpack.c.b16 %v8834, %v8833
      %v8900 = vpack.c.b16 %v8836, %v8835
      %v8901 = vpack.c.b16 %v8838, %v8837
      %v8902 = vpack.c.b16 %v8840, %v8839
      %v8903 = vpack.c.b16 %v8842, %v8841
      %v8904 = vpack.c.b16 %v8844, %v8843
      %v8905 = vpack.c.b16 %v8846, %v8845
      %v8906 = vpack.c.b16 %v8848, %v8847
      %v8907 = vpack.c.b16 %v8850, %v8849
      %v8908 = vpack.c.b16 %v8852, %v8851
      %v8909 = vpack.c.b16 %v8854, %v8853
      %v8910 = vpack.c.b16 %v8856, %v8855
      %v8911 = vpack.c.b16 %v8858, %v8857
      %v8912 = vpack.c.b16 %v8860, %v8859
      %v8913 = vpack.c.b16 %v8862, %v8861
      %v8914 = vpack.c.b16 %v8864, %v8863
      %v8915 = vpack.c.b16 %v8866, %v8865
      %v8916 = vpack.c.b16 %v8868, %v8867
      %v8917 = vpack.c.b16 %v8870, %v8869
      %v8918 = vpack.c.b16 %v8872, %v8871
      %v8919 = vpack.c.b16 %v8874, %v8873
      %v8920 = vpack.c.b16 %v8876, %v8875
      %v8921 = vpack.c.b16 %v8878, %v8877
      %v8922 = vpack.c.b16 %v8880, %v8879
      %v8923 = vpack.c.b16 %v8882, %v8881
      %v8924 = vpack.c.b16 %v8884, %v8883
      %v8925 = vpack.c.b16 %v8886, %v8885
      %v8926 = vpack.c.b16 %v8888, %v8887
      %vm8965 = vcmask 785408
      %v8967 = vsel %vm8965, %v8579, 0
      %v8970 = vsel %vm8965, %v8584, 0
      %v8973 = vsel %vm8965, %v8589, 0
      %v8976 = vsel %vm8965, %v8594, 0
      %v8979 = vsel %vm8965, %v8599, 0
      %v8982 = vsel %vm8965, %v8604, 0
      %v8985 = vsel %vm8965, %v8609, 0
      %v8988 = vsel %vm8965, %v8614, 0
      %v8991 = vsel %vm8965, %v8619, 0
      %v8994 = vsel %vm8965, %v8624, 0
      %v8997 = vsel %vm8965, %v8629, 0
      %v9000 = vsel %vm8965, %v8634, 0
      %v9003 = vsel %vm8965, %v8639, 0
      %v9006 = vsel %vm8965, %v8644, 0
      %v9009 = vsel %vm8965, %v8649, 0
      %v9012 = vsel %vm8965, %v8654, 0
      %v9015 = vsel %vm8965, %v8659, 0
      %v9018 = vsel %vm8965, %v8664, 0
      %9020 = vmatpush.bf16.msra.mxu0 %v8896
      %9021 = vmatpush.bf16.msra.mxu0 %v8895
      %9022 = vmatpush.bf16.msra.mxu0 %v8894
      %9023 = vmatpush.bf16.msra.mxu0 %v8893
      %9024 = vmatpush.bf16.msra.mxu0 %v8892
      %9025 = vmatpush.bf16.msra.mxu0 %v8891
      %9026 = vmatpush.bf16.msra.mxu0 %v8890
      %9027 = vmatpush.bf16.msra.mxu0 %v8889
      %9028 = vmatmul.bf16.gmra.mxu0 %v8575
      %v9029 = vpop.f32.mrf.mxu0
      %v9030 = vadd.f32 %v8285, %v9029
      %v9031 = vpop.f32.mrf.mxu0
      %v9032 = vadd.f32 %v8285, %v9031
      %9033 = vmatmul.bf16.gmra.mxu0 %v8580
      %v9034 = vpop.f32.mrf.mxu0
      %v9035 = vadd.f32 %v8285, %v9034
      %v9036 = vpop.f32.mrf.mxu0
      %v9037 = vadd.f32 %v8285, %v9036
      %9038 = vmatmul.bf16.gmra.mxu0 %v8585
      %v9039 = vpop.f32.mrf.mxu0
      %v9040 = vadd.f32 %v8285, %v9039
      %v9041 = vpop.f32.mrf.mxu0
      %v9042 = vadd.f32 %v8285, %v9041
      %9043 = vmatmul.bf16.gmra.mxu0 %v8590
      %v9044 = vpop.f32.mrf.mxu0
      %v9045 = vadd.f32 %v8285, %v9044
      %v9046 = vpop.f32.mrf.mxu0
      %v9047 = vadd.f32 %v8285, %v9046
      %9048 = vmatmul.bf16.gmra.mxu0 %v8595
      %v9049 = vpop.f32.mrf.mxu0
      %v9050 = vadd.f32 %v8285, %v9049
      %v9051 = vpop.f32.mrf.mxu0
      %v9052 = vadd.f32 %v8285, %v9051
      %9053 = vmatmul.bf16.gmra.mxu0 %v8600
      %v9054 = vpop.f32.mrf.mxu0
      %v9055 = vadd.f32 %v8285, %v9054
      %v9056 = vpop.f32.mrf.mxu0
      %v9057 = vadd.f32 %v8285, %v9056
      %9058 = vmatmul.bf16.gmra.mxu0 %v8605
      %v9059 = vpop.f32.mrf.mxu0
      %v9060 = vadd.f32 %v8285, %v9059
      %v9061 = vpop.f32.mrf.mxu0
      %v9062 = vadd.f32 %v8285, %v9061
      %9063 = vmatmul.bf16.gmra.mxu0 %v8610
      %v9064 = vpop.f32.mrf.mxu0
      %v9065 = vadd.f32 %v8285, %v9064
      %v9066 = vpop.f32.mrf.mxu0
      %v9067 = vadd.f32 %v8285, %v9066
      %9068 = vmatmul.bf16.gmra.mxu0 %v8615
      %v9069 = vpop.f32.mrf.mxu0
      %v9070 = vadd.f32 %v8285, %v9069
      %v9071 = vpop.f32.mrf.mxu0
      %v9072 = vadd.f32 %v8285, %v9071
      %9073 = vmatmul.bf16.gmra.mxu0 %v8620
      %v9074 = vpop.f32.mrf.mxu0
      %v9075 = vadd.f32 %v8285, %v9074
      %v9076 = vpop.f32.mrf.mxu0
      %v9077 = vadd.f32 %v8285, %v9076
      %9078 = vmatmul.bf16.gmra.mxu0 %v8625
      %v9079 = vpop.f32.mrf.mxu0
      %v9080 = vadd.f32 %v8285, %v9079
      %v9081 = vpop.f32.mrf.mxu0
      %v9082 = vadd.f32 %v8285, %v9081
      %9083 = vmatmul.bf16.gmra.mxu0 %v8630
      %v9084 = vpop.f32.mrf.mxu0
      %v9085 = vadd.f32 %v8285, %v9084
      %v9086 = vpop.f32.mrf.mxu0
      %v9087 = vadd.f32 %v8285, %v9086
      %9088 = vmatmul.bf16.gmra.mxu0 %v8635
      %v9089 = vpop.f32.mrf.mxu0
      %v9090 = vadd.f32 %v8285, %v9089
      %v9091 = vpop.f32.mrf.mxu0
      %v9092 = vadd.f32 %v8285, %v9091
      %9093 = vmatmul.bf16.gmra.mxu0 %v8640
      %v9094 = vpop.f32.mrf.mxu0
      %v9095 = vadd.f32 %v8285, %v9094
      %v9096 = vpop.f32.mrf.mxu0
      %v9097 = vadd.f32 %v8285, %v9096
      %9098 = vmatmul.bf16.gmra.mxu0 %v8645
      %v9099 = vpop.f32.mrf.mxu0
      %v9100 = vadd.f32 %v8285, %v9099
      %v9101 = vpop.f32.mrf.mxu0
      %v9102 = vadd.f32 %v8285, %v9101
      %9103 = vmatmul.bf16.gmra.mxu0 %v8650
      %v9104 = vpop.f32.mrf.mxu0
      %v9105 = vadd.f32 %v8285, %v9104
      %v9106 = vpop.f32.mrf.mxu0
      %v9107 = vadd.f32 %v8285, %v9106
      %9108 = vmatmul.bf16.gmra.mxu0 %v8655
      %v9109 = vpop.f32.mrf.mxu0
      %v9110 = vadd.f32 %v8285, %v9109
      %v9111 = vpop.f32.mrf.mxu0
      %v9112 = vadd.f32 %v8285, %v9111
      %9113 = vmatmul.bf16.gmra.mxu0 %v8660
      %v9114 = vpop.f32.mrf.mxu0
      %v9115 = vadd.f32 %v8285, %v9114
      %v9116 = vpop.f32.mrf.mxu0
      %v9117 = vadd.f32 %v8285, %v9116
      %9118 = vdwg.mxu0
      %9119 = vmatpush.bf16.msra.mxu0 %v8904
      %9120 = vmatpush.bf16.msra.mxu0 %v8903
      %9121 = vmatpush.bf16.msra.mxu0 %v8902
      %9122 = vmatpush.bf16.msra.mxu0 %v8901
      %9123 = vmatpush.bf16.msra.mxu0 %v8900
      %9124 = vmatpush.bf16.msra.mxu0 %v8899
      %9125 = vmatpush.bf16.msra.mxu0 %v8898
      %9126 = vmatpush.bf16.msra.mxu0 %v8897
      %9127 = vmatmul.bf16.gmra.mxu0 %v8576
      %v9128 = vpop.f32.mrf.mxu0
      %v9129 = vadd.f32 %v9030, %v9128
      %v9130 = vpop.f32.mrf.mxu0
      %v9131 = vadd.f32 %v9032, %v9130
      %9132 = vmatmul.bf16.gmra.mxu0 %v8581
      %v9133 = vpop.f32.mrf.mxu0
      %v9134 = vadd.f32 %v9035, %v9133
      %v9135 = vpop.f32.mrf.mxu0
      %v9136 = vadd.f32 %v9037, %v9135
      %9137 = vmatmul.bf16.gmra.mxu0 %v8586
      %v9138 = vpop.f32.mrf.mxu0
      %v9139 = vadd.f32 %v9040, %v9138
      %v9140 = vpop.f32.mrf.mxu0
      %v9141 = vadd.f32 %v9042, %v9140
      %9142 = vmatmul.bf16.gmra.mxu0 %v8591
      %v9143 = vpop.f32.mrf.mxu0
      %v9144 = vadd.f32 %v9045, %v9143
      %v9145 = vpop.f32.mrf.mxu0
      %v9146 = vadd.f32 %v9047, %v9145
      %9147 = vmatmul.bf16.gmra.mxu0 %v8596
      %v9148 = vpop.f32.mrf.mxu0
      %v9149 = vadd.f32 %v9050, %v9148
      %v9150 = vpop.f32.mrf.mxu0
      %v9151 = vadd.f32 %v9052, %v9150
      %9152 = vmatmul.bf16.gmra.mxu0 %v8601
      %v9153 = vpop.f32.mrf.mxu0
      %v9154 = vadd.f32 %v9055, %v9153
      %v9155 = vpop.f32.mrf.mxu0
      %v9156 = vadd.f32 %v9057, %v9155
      %9157 = vmatmul.bf16.gmra.mxu0 %v8606
      %v9158 = vpop.f32.mrf.mxu0
      %v9159 = vadd.f32 %v9060, %v9158
      %v9160 = vpop.f32.mrf.mxu0
      %v9161 = vadd.f32 %v9062, %v9160
      %9162 = vmatmul.bf16.gmra.mxu0 %v8611
      %v9163 = vpop.f32.mrf.mxu0
      %v9164 = vadd.f32 %v9065, %v9163
      %v9165 = vpop.f32.mrf.mxu0
      %v9166 = vadd.f32 %v9067, %v9165
      %9167 = vmatmul.bf16.gmra.mxu0 %v8616
      %v9168 = vpop.f32.mrf.mxu0
      %v9169 = vadd.f32 %v9070, %v9168
      %v9170 = vpop.f32.mrf.mxu0
      %v9171 = vadd.f32 %v9072, %v9170
      %9172 = vmatmul.bf16.gmra.mxu0 %v8621
      %v9173 = vpop.f32.mrf.mxu0
      %v9174 = vadd.f32 %v9075, %v9173
      %v9175 = vpop.f32.mrf.mxu0
      %v9176 = vadd.f32 %v9077, %v9175
      %9177 = vmatmul.bf16.gmra.mxu0 %v8626
      %v9178 = vpop.f32.mrf.mxu0
      %v9179 = vadd.f32 %v9080, %v9178
      %v9180 = vpop.f32.mrf.mxu0
      %v9181 = vadd.f32 %v9082, %v9180
      %9182 = vmatmul.bf16.gmra.mxu0 %v8631
      %v9183 = vpop.f32.mrf.mxu0
      %v9184 = vadd.f32 %v9085, %v9183
      %v9185 = vpop.f32.mrf.mxu0
      %v9186 = vadd.f32 %v9087, %v9185
      %9187 = vmatmul.bf16.gmra.mxu0 %v8636
      %v9188 = vpop.f32.mrf.mxu0
      %v9189 = vadd.f32 %v9090, %v9188
      %v9190 = vpop.f32.mrf.mxu0
      %v9191 = vadd.f32 %v9092, %v9190
      %9192 = vmatmul.bf16.gmra.mxu0 %v8641
      %v9193 = vpop.f32.mrf.mxu0
      %v9194 = vadd.f32 %v9095, %v9193
      %v9195 = vpop.f32.mrf.mxu0
      %v9196 = vadd.f32 %v9097, %v9195
      %9197 = vmatmul.bf16.gmra.mxu0 %v8646
      %v9198 = vpop.f32.mrf.mxu0
      %v9199 = vadd.f32 %v9100, %v9198
      %v9200 = vpop.f32.mrf.mxu0
      %v9201 = vadd.f32 %v9102, %v9200
      %9202 = vmatmul.bf16.gmra.mxu0 %v8651
      %v9203 = vpop.f32.mrf.mxu0
      %v9204 = vadd.f32 %v9105, %v9203
      %v9205 = vpop.f32.mrf.mxu0
      %v9206 = vadd.f32 %v9107, %v9205
      %9207 = vmatmul.bf16.gmra.mxu0 %v8656
      %v9208 = vpop.f32.mrf.mxu0
      %v9209 = vadd.f32 %v9110, %v9208
      %v9210 = vpop.f32.mrf.mxu0
      %v9211 = vadd.f32 %v9112, %v9210
      %9212 = vmatmul.bf16.gmra.mxu0 %v8661
      %v9213 = vpop.f32.mrf.mxu0
      %v9214 = vadd.f32 %v9115, %v9213
      %v9215 = vpop.f32.mrf.mxu0
      %v9216 = vadd.f32 %v9117, %v9215
      %9217 = vdwg.mxu0
      %9218 = vmatpush.bf16.msra.mxu0 %v8912
      %9219 = vmatpush.bf16.msra.mxu0 %v8911
      %9220 = vmatpush.bf16.msra.mxu0 %v8910
      %9221 = vmatpush.bf16.msra.mxu0 %v8909
      %9222 = vmatpush.bf16.msra.mxu0 %v8908
      %9223 = vmatpush.bf16.msra.mxu0 %v8907
      %9224 = vmatpush.bf16.msra.mxu0 %v8906
      %9225 = vmatpush.bf16.msra.mxu0 %v8905
      %9226 = vmatmul.bf16.gmra.mxu0 %v8577
      %v9227 = vpop.f32.mrf.mxu0
      %v9228 = vadd.f32 %v9129, %v9227
      %v9229 = vpop.f32.mrf.mxu0
      %v9230 = vadd.f32 %v9131, %v9229
      %9231 = vmatmul.bf16.gmra.mxu0 %v8582
      %v9232 = vpop.f32.mrf.mxu0
      %v9233 = vadd.f32 %v9134, %v9232
      %v9234 = vpop.f32.mrf.mxu0
      %v9235 = vadd.f32 %v9136, %v9234
      %9236 = vmatmul.bf16.gmra.mxu0 %v8587
      %v9237 = vpop.f32.mrf.mxu0
      %v9238 = vadd.f32 %v9139, %v9237
      %v9239 = vpop.f32.mrf.mxu0
      %v9240 = vadd.f32 %v9141, %v9239
      %9241 = vmatmul.bf16.gmra.mxu0 %v8592
      %v9242 = vpop.f32.mrf.mxu0
      %v9243 = vadd.f32 %v9144, %v9242
      %v9244 = vpop.f32.mrf.mxu0
      %v9245 = vadd.f32 %v9146, %v9244
      %9246 = vmatmul.bf16.gmra.mxu0 %v8597
      %v9247 = vpop.f32.mrf.mxu0
      %v9248 = vadd.f32 %v9149, %v9247
      %v9249 = vpop.f32.mrf.mxu0
      %v9250 = vadd.f32 %v9151, %v9249
      %9251 = vmatmul.bf16.gmra.mxu0 %v8602
      %v9252 = vpop.f32.mrf.mxu0
      %v9253 = vadd.f32 %v9154, %v9252
      %v9254 = vpop.f32.mrf.mxu0
      %v9255 = vadd.f32 %v9156, %v9254
      %9256 = vmatmul.bf16.gmra.mxu0 %v8607
      %v9257 = vpop.f32.mrf.mxu0
      %v9258 = vadd.f32 %v9159, %v9257
      %v9259 = vpop.f32.mrf.mxu0
      %v9260 = vadd.f32 %v9161, %v9259
      %9261 = vmatmul.bf16.gmra.mxu0 %v8612
      %v9262 = vpop.f32.mrf.mxu0
      %v9263 = vadd.f32 %v9164, %v9262
      %v9264 = vpop.f32.mrf.mxu0
      %v9265 = vadd.f32 %v9166, %v9264
      %9266 = vmatmul.bf16.gmra.mxu0 %v8617
      %v9267 = vpop.f32.mrf.mxu0
      %v9268 = vadd.f32 %v9169, %v9267
      %v9269 = vpop.f32.mrf.mxu0
      %v9270 = vadd.f32 %v9171, %v9269
      %9271 = vmatmul.bf16.gmra.mxu0 %v8622
      %v9272 = vpop.f32.mrf.mxu0
      %v9273 = vadd.f32 %v9174, %v9272
      %v9274 = vpop.f32.mrf.mxu0
      %v9275 = vadd.f32 %v9176, %v9274
      %9276 = vmatmul.bf16.gmra.mxu0 %v8627
      %v9277 = vpop.f32.mrf.mxu0
      %v9278 = vadd.f32 %v9179, %v9277
      %v9279 = vpop.f32.mrf.mxu0
      %v9280 = vadd.f32 %v9181, %v9279
      %9281 = vmatmul.bf16.gmra.mxu0 %v8632
      %v9282 = vpop.f32.mrf.mxu0
      %v9283 = vadd.f32 %v9184, %v9282
      %v9284 = vpop.f32.mrf.mxu0
      %v9285 = vadd.f32 %v9186, %v9284
      %9286 = vmatmul.bf16.gmra.mxu0 %v8637
      %v9287 = vpop.f32.mrf.mxu0
      %v9288 = vadd.f32 %v9189, %v9287
      %v9289 = vpop.f32.mrf.mxu0
      %v9290 = vadd.f32 %v9191, %v9289
      %9291 = vmatmul.bf16.gmra.mxu0 %v8642
      %v9292 = vpop.f32.mrf.mxu0
      %v9293 = vadd.f32 %v9194, %v9292
      %v9294 = vpop.f32.mrf.mxu0
      %v9295 = vadd.f32 %v9196, %v9294
      %9296 = vmatmul.bf16.gmra.mxu0 %v8647
      %v9297 = vpop.f32.mrf.mxu0
      %v9298 = vadd.f32 %v9199, %v9297
      %v9299 = vpop.f32.mrf.mxu0
      %v9300 = vadd.f32 %v9201, %v9299
      %9301 = vmatmul.bf16.gmra.mxu0 %v8652
      %v9302 = vpop.f32.mrf.mxu0
      %v9303 = vadd.f32 %v9204, %v9302
      %v9304 = vpop.f32.mrf.mxu0
      %v9305 = vadd.f32 %v9206, %v9304
      %9306 = vmatmul.bf16.gmra.mxu0 %v8657
      %v9307 = vpop.f32.mrf.mxu0
      %v9308 = vadd.f32 %v9209, %v9307
      %v9309 = vpop.f32.mrf.mxu0
      %v9310 = vadd.f32 %v9211, %v9309
      %9311 = vmatmul.bf16.gmra.mxu0 %v8662
      %v9312 = vpop.f32.mrf.mxu0
      %v9313 = vadd.f32 %v9214, %v9312
      %v9314 = vpop.f32.mrf.mxu0
      %v9315 = vadd.f32 %v9216, %v9314
      %9316 = vdwg.mxu0
      %9317 = vmatpush.bf16.msra.mxu0 %v8920
      %9318 = vmatpush.bf16.msra.mxu0 %v8919
      %9319 = vmatpush.bf16.msra.mxu0 %v8918
      %9320 = vmatpush.bf16.msra.mxu0 %v8917
      %9321 = vmatpush.bf16.msra.mxu0 %v8916
      %9322 = vmatpush.bf16.msra.mxu0 %v8915
      %9323 = vmatpush.bf16.msra.mxu0 %v8914
      %9324 = vmatpush.bf16.msra.mxu0 %v8913
      %9325 = vmatmul.bf16.gmra.mxu0 %v8578
      %v9326 = vpop.f32.mrf.mxu0
      %v9327 = vadd.f32 %v9228, %v9326
      %v9328 = vpop.f32.mrf.mxu0
      %v9329 = vadd.f32 %v9230, %v9328
      %9330 = vmatmul.bf16.gmra.mxu0 %v8583
      %v9331 = vpop.f32.mrf.mxu0
      %v9332 = vadd.f32 %v9233, %v9331
      %v9333 = vpop.f32.mrf.mxu0
      %v9334 = vadd.f32 %v9235, %v9333
      %9335 = vmatmul.bf16.gmra.mxu0 %v8588
      %v9336 = vpop.f32.mrf.mxu0
      %v9337 = vadd.f32 %v9238, %v9336
      %v9338 = vpop.f32.mrf.mxu0
      %v9339 = vadd.f32 %v9240, %v9338
      %9340 = vmatmul.bf16.gmra.mxu0 %v8593
      %v9341 = vpop.f32.mrf.mxu0
      %v9342 = vadd.f32 %v9243, %v9341
      %v9343 = vpop.f32.mrf.mxu0
      %v9344 = vadd.f32 %v9245, %v9343
      %9345 = vmatmul.bf16.gmra.mxu0 %v8598
      %v9346 = vpop.f32.mrf.mxu0
      %v9347 = vadd.f32 %v9248, %v9346
      %v9348 = vpop.f32.mrf.mxu0
      %v9349 = vadd.f32 %v9250, %v9348
      %9350 = vmatmul.bf16.gmra.mxu0 %v8603
      %v9351 = vpop.f32.mrf.mxu0
      %v9352 = vadd.f32 %v9253, %v9351
      %v9353 = vpop.f32.mrf.mxu0
      %v9354 = vadd.f32 %v9255, %v9353
      %9355 = vmatmul.bf16.gmra.mxu0 %v8608
      %v9356 = vpop.f32.mrf.mxu0
      %v9357 = vadd.f32 %v9258, %v9356
      %v9358 = vpop.f32.mrf.mxu0
      %v9359 = vadd.f32 %v9260, %v9358
      %9360 = vmatmul.bf16.gmra.mxu0 %v8613
      %v9361 = vpop.f32.mrf.mxu0
      %v9362 = vadd.f32 %v9263, %v9361
      %v9363 = vpop.f32.mrf.mxu0
      %v9364 = vadd.f32 %v9265, %v9363
      %9365 = vmatmul.bf16.gmra.mxu0 %v8618
      %v9366 = vpop.f32.mrf.mxu0
      %v9367 = vadd.f32 %v9268, %v9366
      %v9368 = vpop.f32.mrf.mxu0
      %v9369 = vadd.f32 %v9270, %v9368
      %9370 = vmatmul.bf16.gmra.mxu0 %v8623
      %v9371 = vpop.f32.mrf.mxu0
      %v9372 = vadd.f32 %v9273, %v9371
      %v9373 = vpop.f32.mrf.mxu0
      %v9374 = vadd.f32 %v9275, %v9373
      %9375 = vmatmul.bf16.gmra.mxu0 %v8628
      %v9376 = vpop.f32.mrf.mxu0
      %v9377 = vadd.f32 %v9278, %v9376
      %v9378 = vpop.f32.mrf.mxu0
      %v9379 = vadd.f32 %v9280, %v9378
      %9380 = vmatmul.bf16.gmra.mxu0 %v8633
      %v9381 = vpop.f32.mrf.mxu0
      %v9382 = vadd.f32 %v9283, %v9381
      %v9383 = vpop.f32.mrf.mxu0
      %v9384 = vadd.f32 %v9285, %v9383
      %9385 = vmatmul.bf16.gmra.mxu0 %v8638
      %v9386 = vpop.f32.mrf.mxu0
      %v9387 = vadd.f32 %v9288, %v9386
      %v9388 = vpop.f32.mrf.mxu0
      %v9389 = vadd.f32 %v9290, %v9388
      %9390 = vmatmul.bf16.gmra.mxu0 %v8643
      %v9391 = vpop.f32.mrf.mxu0
      %v9392 = vadd.f32 %v9293, %v9391
      %v9393 = vpop.f32.mrf.mxu0
      %v9394 = vadd.f32 %v9295, %v9393
      %9395 = vmatmul.bf16.gmra.mxu0 %v8648
      %v9396 = vpop.f32.mrf.mxu0
      %v9397 = vadd.f32 %v9298, %v9396
      %v9398 = vpop.f32.mrf.mxu0
      %v9399 = vadd.f32 %v9300, %v9398
      %9400 = vmatmul.bf16.gmra.mxu0 %v8653
      %v9401 = vpop.f32.mrf.mxu0
      %v9402 = vadd.f32 %v9303, %v9401
      %v9403 = vpop.f32.mrf.mxu0
      %v9404 = vadd.f32 %v9305, %v9403
      %9405 = vmatmul.bf16.gmra.mxu0 %v8658
      %v9406 = vpop.f32.mrf.mxu0
      %v9407 = vadd.f32 %v9308, %v9406
      %v9408 = vpop.f32.mrf.mxu0
      %v9409 = vadd.f32 %v9310, %v9408
      %9410 = vmatmul.bf16.gmra.mxu0 %v8663
      %v9411 = vpop.f32.mrf.mxu0
      %v9412 = vadd.f32 %v9313, %v9411
      %v9413 = vpop.f32.mrf.mxu0
      %v9414 = vadd.f32 %v9315, %v9413
      %9415 = vdwg.mxu0
      %9416 = vmatpush.bf16.msra.mxu0 0
      %9417 = vmatpush.bf16.msra.mxu0 0
      %9418 = vmatpush.bf16.msra.mxu0 %v8926
      %9419 = vmatpush.bf16.msra.mxu0 %v8925
      %9420 = vmatpush.bf16.msra.mxu0 %v8924
      %9421 = vmatpush.bf16.msra.mxu0 %v8923
      %9422 = vmatpush.bf16.msra.mxu0 %v8922
      %9423 = vmatpush.bf16.msra.mxu0 %v8921
      %9424 = vmatmul.bf16.gmra.mxu0 %v8967
      %v9425 = vpop.f32.mrf.mxu0
      %v9426 = vadd.f32 %v9327, %v9425
      %v9427 = vpop.f32.mrf.mxu0
      %v9428 = vadd.f32 %v9329, %v9427
      %9429 = vmatmul.bf16.gmra.mxu0 %v8970
      %v9430 = vpop.f32.mrf.mxu0
      %v9431 = vadd.f32 %v9332, %v9430
      %v9432 = vpop.f32.mrf.mxu0
      %v9433 = vadd.f32 %v9334, %v9432
      %9434 = vmatmul.bf16.gmra.mxu0 %v8973
      %v9435 = vpop.f32.mrf.mxu0
      %v9436 = vadd.f32 %v9337, %v9435
      %v9437 = vpop.f32.mrf.mxu0
      %v9438 = vadd.f32 %v9339, %v9437
      %9439 = vmatmul.bf16.gmra.mxu0 %v8976
      %v9440 = vpop.f32.mrf.mxu0
      %v9441 = vadd.f32 %v9342, %v9440
      %v9442 = vpop.f32.mrf.mxu0
      %v9443 = vadd.f32 %v9344, %v9442
      %9444 = vmatmul.bf16.gmra.mxu0 %v8979
      %v9445 = vpop.f32.mrf.mxu0
      %v9446 = vadd.f32 %v9347, %v9445
      %v9447 = vpop.f32.mrf.mxu0
      %v9448 = vadd.f32 %v9349, %v9447
      %9449 = vmatmul.bf16.gmra.mxu0 %v8982
      %v9450 = vpop.f32.mrf.mxu0
      %v9451 = vadd.f32 %v9352, %v9450
      %v9452 = vpop.f32.mrf.mxu0
      %v9453 = vadd.f32 %v9354, %v9452
      %9454 = vmatmul.bf16.gmra.mxu0 %v8985
      %v9455 = vpop.f32.mrf.mxu0
      %v9456 = vadd.f32 %v9357, %v9455
      %v9457 = vpop.f32.mrf.mxu0
      %v9458 = vadd.f32 %v9359, %v9457
      %9459 = vmatmul.bf16.gmra.mxu0 %v8988
      %v9460 = vpop.f32.mrf.mxu0
      %v9461 = vadd.f32 %v9362, %v9460
      %v9462 = vpop.f32.mrf.mxu0
      %v9463 = vadd.f32 %v9364, %v9462
      %9464 = vmatmul.bf16.gmra.mxu0 %v8991
      %v9465 = vpop.f32.mrf.mxu0
      %v9466 = vadd.f32 %v9367, %v9465
      %v9467 = vpop.f32.mrf.mxu0
      %v9468 = vadd.f32 %v9369, %v9467
      %9469 = vmatmul.bf16.gmra.mxu0 %v8994
      %v9470 = vpop.f32.mrf.mxu0
      %v9471 = vadd.f32 %v9372, %v9470
      %v9472 = vpop.f32.mrf.mxu0
      %v9473 = vadd.f32 %v9374, %v9472
      %9474 = vmatmul.bf16.gmra.mxu0 %v8997
      %v9475 = vpop.f32.mrf.mxu0
      %v9476 = vadd.f32 %v9377, %v9475
      %v9477 = vpop.f32.mrf.mxu0
      %v9478 = vadd.f32 %v9379, %v9477
      %9479 = vmatmul.bf16.gmra.mxu0 %v9000
      %v9480 = vpop.f32.mrf.mxu0
      %v9481 = vadd.f32 %v9382, %v9480
      %v9482 = vpop.f32.mrf.mxu0
      %v9483 = vadd.f32 %v9384, %v9482
      %9484 = vmatmul.bf16.gmra.mxu0 %v9003
      %v9485 = vpop.f32.mrf.mxu0
      %v9486 = vadd.f32 %v9387, %v9485
      %v9487 = vpop.f32.mrf.mxu0
      %v9488 = vadd.f32 %v9389, %v9487
      %9489 = vmatmul.bf16.gmra.mxu0 %v9006
      %v9490 = vpop.f32.mrf.mxu0
      %v9491 = vadd.f32 %v9392, %v9490
      %v9492 = vpop.f32.mrf.mxu0
      %v9493 = vadd.f32 %v9394, %v9492
      %9494 = vmatmul.bf16.gmra.mxu0 %v9009
      %v9495 = vpop.f32.mrf.mxu0
      %v9496 = vadd.f32 %v9397, %v9495
      %v9497 = vpop.f32.mrf.mxu0
      %v9498 = vadd.f32 %v9399, %v9497
      %9499 = vmatmul.bf16.gmra.mxu0 %v9012
      %v9500 = vpop.f32.mrf.mxu0
      %v9501 = vadd.f32 %v9402, %v9500
      %v9502 = vpop.f32.mrf.mxu0
      %v9503 = vadd.f32 %v9404, %v9502
      %9504 = vmatmul.bf16.gmra.mxu0 %v9015
      %v9505 = vpop.f32.mrf.mxu0
      %v9506 = vadd.f32 %v9407, %v9505
      %v9507 = vpop.f32.mrf.mxu0
      %v9508 = vadd.f32 %v9409, %v9507
      %9509 = vmatmul.bf16.gmra.mxu0 %v9018
      %v9510 = vpop.f32.mrf.mxu0
      %v9511 = vadd.f32 %v9412, %v9510
      %v9512 = vpop.f32.mrf.mxu0
      %v9513 = vadd.f32 %v9414, %v9512
      %9514 = vdwg.mxu0
      %9515 = vst.msk [vmem:[%s468] sm:$0xff] %vm5087, %v9426
      %9516 = vst.msk [vmem:[%s468 + $0x8] sm:$0xff] %vm5087, %v9428
      %9517 = vst.msk [vmem:[%s468 + $0x10] sm:$0xff] %vm5087, %v9431
      %9518 = vst.msk [vmem:[%s468 + $0x18] sm:$0xff] %vm5087, %v9433
      %9519 = vst.msk [vmem:[%s468 + $0x20] sm:$0xff] %vm5087, %v9436
      %9520 = vst.msk [vmem:[%s468 + $0x28] sm:$0xff] %vm5087, %v9438
      %9521 = vst.msk [vmem:[%s468 + $0x30] sm:$0xff] %vm5087, %v9441
      %9522 = vst.msk [vmem:[%s468 + $0x38] sm:$0xff] %vm5087, %v9443
      %9523 = vst.msk [vmem:[%s468 + $0x40] sm:$0xff] %vm5087, %v9446
      %9524 = vst.msk [vmem:[%s468 + $0x48] sm:$0xff] %vm5087, %v9448
      %9525 = vst.msk [vmem:[%s468 + $0x50] sm:$0xff] %vm5087, %v9451
      %9526 = vst.msk [vmem:[%s468 + $0x58] sm:$0xff] %vm5087, %v9453
      %9527 = vst.msk [vmem:[%s468 + $0x60] sm:$0xff] %vm5087, %v9456
      %9528 = vst.msk [vmem:[%s468 + $0x68] sm:$0xff] %vm5087, %v9458
      %9529 = vst.msk [vmem:[%s468 + $0x70] sm:$0xff] %vm5087, %v9461
      %9530 = vst.msk [vmem:[%s468 + $0x78] sm:$0xff] %vm5087, %v9463
      %9531 = vst.msk [vmem:[%s468 + $0x80] sm:$0xff] %vm5087, %v9466
      %9532 = vst.msk [vmem:[%s468 + $0x88] sm:$0xff] %vm5087, %v9468
      %9533 = vst.msk [vmem:[%s468 + $0x90] sm:$0xff] %vm5087, %v9471
      %9534 = vst.msk [vmem:[%s468 + $0x98] sm:$0xff] %vm5087, %v9473
      %9535 = vst.msk [vmem:[%s468 + $0xa0] sm:$0xff] %vm5087, %v9476
      %9536 = vst.msk [vmem:[%s468 + $0xa8] sm:$0xff] %vm5087, %v9478
      %9537 = vst.msk [vmem:[%s468 + $0xb0] sm:$0xff] %vm5087, %v9481
      %9538 = vst.msk [vmem:[%s468 + $0xb8] sm:$0xff] %vm5087, %v9483
      %9539 = vst.msk [vmem:[%s468 + $0xc0] sm:$0xff] %vm5087, %v9486
      %9540 = vst.msk [vmem:[%s468 + $0xc8] sm:$0xff] %vm5087, %v9488
      %9541 = vst.msk [vmem:[%s468 + $0xd0] sm:$0xff] %vm5087, %v9491
      %9542 = vst.msk [vmem:[%s468 + $0xd8] sm:$0xff] %vm5087, %v9493
      %9543 = vst.msk [vmem:[%s468 + $0xe0] sm:$0xff] %vm5087, %v9496
      %9544 = vst.msk [vmem:[%s468 + $0xe8] sm:$0xff] %vm5087, %v9498
      %9545 = vst.msk [vmem:[%s468 + $0xf0] sm:$0xff] %vm5087, %v9501
      %9546 = vst.msk [vmem:[%s468 + $0xf8] sm:$0xff] %vm5087, %v9503
      %9547 = vst.msk [vmem:[%s468 + $0x100] sm:$0xff] %vm5087, %v9506
      %9548 = vst.msk [vmem:[%s468 + $0x108] sm:$0xff] %vm5087, %v9508
      %9549 = vst.msk [vmem:[%s468 + $0x110] sm:$0xff] %vm5087, %v9511
      %9550 = vst.msk [vmem:[%s468 + $0x118] sm:$0xff] %vm5087, %v9513
      %p9551 = scmp.lt.s32.totalorder %s24, 1
      %s9552 = scalar_select %p9551, %s24, 1
      %s9553 = smul.addr %s9552, 36
      %s9554 = smul.addr %s9553, 8
      %s9555 = scalar_lea.vmem %s13, %s9554
      // Predicated region
      $region73: #{residual_block_forward.1} parent=71 // pred_check
        %p9556 = pneg %p330
      $region74: #{residual_block_forward.1} parent=71 // pred_check_branch
        %9558 = sbr.rel (%p9556) target = $region76
      $region75: #{residual_block_forward.1} parent=71 // pred_region
        _
      $region76: #{residual_block_forward.1} parent=71 // pred_fallthru
        _
    $region72: #{residual_block_forward.1} parent=5 // pred_fallthru
      _
    %p9559 = scmp.le.s32.totalorder 2, %s19
    // Predicated region
    $region77: #{residual_block_forward.1} parent=5 // pred_check
      %p9560 = pneg %p9559
    $region78: #{residual_block_forward.1} parent=5 // pred_check_branch
      %9562 = sbr.rel (%p9560) target = $region80
    $region79: #{residual_block_forward.1} parent=5 // pred_region
      %s9563 = ssub.s32 %s19, 2
      // Predicated region
      $region81: #{residual_block_forward.1} parent=79 // pred_check
        %p9564 = pneg %p336
      $region82: #{residual_block_forward.1} parent=79 // pred_check_branch
        %9566 = sbr.rel (%p9564) target = $region84
      $region83: #{residual_block_forward.1} parent=79 // pred_region
        %p9567 = scmp.lt.s32.totalorder %s25, 1
        %s9568 = scalar_select %p9567, %s25, 1
        %s9569 = smul.addr %s9568, 36
        %s9570 = smul.addr %s9569, 8
        %s9571 = scalar_lea.vmem %s13, %s9570
      $region84: #{residual_block_forward.1} parent=79 // pred_fallthru
        _
    $region80: #{residual_block_forward.1} parent=5 // pred_fallthru
      _
  $region6: #{residual_block_forward.1} parent=0 // loop_footer
    %s23 = sadd.s32 1, %s19
  $region7: #{residual_block_forward.1} parent=0 // loop_footer_branch
    %18 = sbr.rel target = $region3
  $region8: #{residual_block_forward.1} parent=0 // loop_exit
    _

</llo_original>
